<compile_context>
chip_gen: v5e
topology: v5e:2x2
jax: 0.10.0
libtpu: 0.0.40
codegen_flags: <defaults>
</compile_context>

<pallas_src>
import jax
import jax.numpy as jnp
import numpy as np
from jax.experimental import pallas as pl
from jax.experimental.pallas import tpu as pltpu


def _round_up(x, m):
    return (x + m - 1) // m * m


def _batch_tile(n):
    """Rows per grid step: multiple of 16 (layout-preserving bf16 reshapes),
    >=2 grid steps when the batch allows (both TensorCores on v7x), capped at
    128 rows so per-step VMEM stays small."""
    if n <= 16:
        return 16
    steps = max(2, -(-n // 128))
    return int(min(128, _round_up(-(-n // steps), 16)))


# --------------------------- the fused kernel --------------------------------

def _net_kernel(x6_ref, t1_ref, b1_ref, w2t_ref, b2_ref,
                w1p_ref, bf1_ref, wf2_ref, bf2_ref, o_ref):
    """Whole Net forward for one batch tile of `tb` images.

    x6_ref : [12, tb, 168]  strided 6-row input bands (pool-row major, batch minor)
    t1_ref : [168, 1024]    conv1 Toeplitz weight, cols = (dy,dx, jp, cout)
    w2t_ref: [5, 256, 512]  conv2 Toeplitz weight per kernel row, cols = (j2, cout)
    w1p_ref: [8, 512, 128]  fc1 weight slab per i2 (NCHW flatten order folded in)
    wf2_ref: [128, 10]      fc2 weight (rows 84..127 zero)
    """
    tb = o_ref.shape[0]
    f32 = jnp.float32

    # conv1 as one matmul: rows (ip, n), cols (pool offset g = dy*2+dx, jp, co).
    x6 = x6_ref[...].reshape(12 * tb, 168)
    y1 = jnp.dot(x6, t1_ref[...], preferred_element_type=f32)       # [12tb,1024]
    # 2x2 max-pool == elementwise max of the four lane-aligned 256-col groups.
    m = jnp.maximum(jnp.maximum(y1[:, 0:256], y1[:, 256:512]),
                    jnp.maximum(y1[:, 512:768], y1[:, 768:1024]))
    h1 = jnp.maximum(m + b1_ref[...], 0.0).astype(jnp.bfloat16)     # [12tb,256]
    h1 = h1.reshape(12, tb, 256)

    # conv2: Toeplitz over (jp, cin) lanes, accumulated over the 5 kernel rows;
    # each row band is a free leading-dim slice.
    acc2 = jnp.dot(h1[0:8].reshape(8 * tb, 256), w2t_ref[0],
                   preferred_element_type=f32)                      # [8tb, 512]
    for kh in range(1, 5):
        acc2 = acc2 + jnp.dot(h1[kh:kh + 8].reshape(8 * tb, 256),
                              w2t_ref[kh], preferred_element_type=f32)
    a2 = jnp.maximum(acc2 + b2_ref[...], 0.0).astype(jnp.bfloat16)  # [8tb, 512]
    a2 = a2.reshape(8, tb, 512)

    # fc1: contraction over (cout, i2, j2); the i2 part is 8 accumulating
    # matmuls over free leading-dim slices (PyTorch's NCHW flatten order is
    # baked into w1p's row permutation).
    accf = jnp.dot(a2[0], w1p_ref[0], preferred_element_type=f32)   # [tb, 128]
    for i2 in range(1, 8):
        accf = accf + jnp.dot(a2[i2], w1p_ref[i2], preferred_element_type=f32)
    hf = jnp.maximum(accf + bf1_ref[...], 0.0).astype(jnp.bfloat16)
    # TODO(synk): training-mode dropout(0.5) not implemented (identity at
    # inference); would use pltpu.prng_seed / pltpu.prng_random_bits here.

    # fc2 + log_softmax.
    logits = jnp.dot(hf, wf2_ref[...], preferred_element_type=f32) + bf2_ref[...]
    z = logits - jnp.max(logits, axis=-1, keepdims=True)
    o_ref[...] = z - jnp.log(jnp.sum(jnp.exp(z), axis=-1, keepdims=True))


# --------------------------- forward wrapper ----------------------------------

def net_forward(prep, x_nchw):
    """Pallas forward of Net.  x_nchw: [N, 1, 28, 28] f32 -> [N, 10] log-probs."""
    n = x_nchw.shape[0]
    tb = _batch_tile(n)
    npad = _round_up(n, tb)
    x = x_nchw.reshape(n, 28, 28).astype(jnp.bfloat16)
    if npad != n:
        x = jnp.pad(x, ((0, npad - n), (0, 0), (0, 0)))
    # Strided 6-row input bands, pooled-row-major / batch-minor: [12, Np, 168].
    x6 = jnp.stack([x[:, 2 * ip:2 * ip + 6, :] for ip in range(12)], axis=0)
    x6 = x6.reshape(12, npad, 168)

    out = pl.pallas_call(
        _net_kernel,
        out_shape=jax.ShapeDtypeStruct((npad, 10), jnp.float32),
        grid=(npad // tb,),
        in_specs=[
            pl.BlockSpec((12, tb, 168), lambda i: (0, i, 0)),
            pl.BlockSpec((168, 1024), lambda i: (0, 0)),
            pl.BlockSpec((1, 256), lambda i: (0, 0)),
            pl.BlockSpec((5, 256, 512), lambda i: (0, 0, 0)),
            pl.BlockSpec((1, 512), lambda i: (0, 0)),
            pl.BlockSpec((8, 512, 128), lambda i: (0, 0, 0)),
            pl.BlockSpec((1, 128), lambda i: (0, 0)),
            pl.BlockSpec((128, 10), lambda i: (0, 0)),
            pl.BlockSpec((1, 10), lambda i: (0, 0)),
        ],
        out_specs=pl.BlockSpec((tb, 10), lambda i: (i, 0)),
        compiler_params=pltpu.CompilerParams(
            dimension_semantics=("parallel",),
            vmem_limit_bytes=48 * 1024 * 1024),
    )(x6, prep["t1"], prep["b1"], prep["w2t"], prep["b2"],
      prep["w1p"], prep["bf1"], prep["wf2"], prep["bf2"])
    return out[:n]


# --------------------------- one-time weight prep -----------------------------

def prepare_params(params):
    """One-time weight repacking (Toeplitz/block matrices, flatten-order
    permutation, zero padding, bf16 casts) — hoisted out of the forward."""
    c1w = np.asarray(params["conv1_w"], np.float32)   # [16, 1, 5, 5]
    c1b = np.asarray(params["conv1_b"], np.float32)   # [16]
    c2w = np.asarray(params["conv2_w"], np.float32)   # [64, 16, 5, 5]
    c2b = np.asarray(params["conv2_b"], np.float32)   # [64]
    f1w = np.asarray(params["fc1_w"], np.float32)     # [84, 4096]
    f1b = np.asarray(params["fc1_b"], np.float32)     # [84]
    f2w = np.asarray(params["fc2_w"], np.float32)     # [10, 84]
    f2b = np.asarray(params["fc2_b"], np.float32)     # [10]

    # conv1 Toeplitz(+pool-offset) weight: [168, 1024]
    #   row = (dy+kh)*28 + (2*jp+dx+kw);  col = (dy*2+dx)*256 + jp*16 + co
    # so that X6[ip, n, :] @ T1[:, col] = conv1(x)[n, 2ip+dy, 2jp+dx, co].
    t1 = np.zeros((168, 1024), np.float32)
    for dy in range(2):
        for dx in range(2):
            g = (dy * 2 + dx) * 256
            for jp in range(12):
                for kh in range(5):
                    for kw in range(5):
                        row = (dy + kh) * 28 + (2 * jp + dx + kw)
                        col = g + jp * 16
                        t1[row, col:col + 16] = c1w[:, 0, kh, kw]
    b1 = np.tile(c1b, 16).reshape(1, 256)             # bias per (jp, co) lane

    # conv2 Toeplitz weight per kernel row: [5, 256, 512]
    #   lhs lane = jp_in*16 + cin ; col = j2*64 + cout
    w2t = np.zeros((5, 256, 512), np.float32)
    for kh in range(5):
        for j2 in range(8):
            for kw in range(5):
                jp_in = j2 + kw
                w2t[kh, jp_in * 16:(jp_in + 1) * 16, j2 * 64:(j2 + 1) * 64] = \
                    c2w[:, :, kh, kw].T
    b2 = np.tile(c2b, 8).reshape(1, 512)              # bias per (j2, co) lane

    # fc1: PyTorch flattens conv2 output [N, 64, 8, 8] as (co, i2, j2); the
    # kernel's conv2 activation is rows=(i2, n), lanes=(j2, co) -> one
    # [512, 128] slab per i2 (outputs zero-padded 84 -> 128).
    w1p = f1w.reshape(84, 64, 8, 8).transpose(2, 3, 1, 0).reshape(8, 512, 84)
    w1p = np.pad(w1p, ((0, 0), (0, 0), (0, 44)))
    bf1 = np.pad(f1b, (0, 44)).reshape(1, 128)

    # fc2: zero rows for the padded fc1 outputs keep the math exact.
    wf2 = np.pad(f2w.T, ((0, 44), (0, 0)))            # [128, 10]
    bf2 = f2b.reshape(1, 10)

    bf16 = jnp.bfloat16
    return dict(
        t1=jnp.asarray(t1, bf16), b1=jnp.asarray(b1, jnp.float32),
        w2t=jnp.asarray(w2t, bf16), b2=jnp.asarray(b2, jnp.float32),
        w1p=jnp.asarray(w1p, bf16), bf1=jnp.asarray(bf1, jnp.float32),
        wf2=jnp.asarray(wf2, bf16), bf2=jnp.asarray(bf2, jnp.float32),
    )


def init_params(key):
    ks = jax.random.split(key, 8)

    def u(k, shape, fan_in):
        bound = 1.0 / jnp.sqrt(jnp.float32(fan_in))
        return jax.random.uniform(k, shape, jnp.float32, -bound, bound)

    return dict(
        conv1_w=u(ks[0], (16, 1, 5, 5), 1 * 5 * 5),
        conv1_b=u(ks[1], (16,), 1 * 5 * 5),
        conv2_w=u(ks[2], (64, 16, 5, 5), 16 * 5 * 5),
        conv2_b=u(ks[3], (64,), 16 * 5 * 5),
        fc1_w=u(ks[4], (84, 4096), 4096),
        fc1_b=u(ks[5], (84,), 4096),
        fc2_w=u(ks[6], (10, 84), 84),
        fc2_b=u(ks[7], (10,), 84),
    )


# --------------------------- pure-JAX reference --------------------------------

def _im2col(x, k):
    """x: [N, H, W, C] NHWC -> [N*Ho*Wo, k*k*C], feature order (kh, kw, cin)."""
    n, h, w, c = x.shape
    ho, wo = h - k + 1, w - k + 1
    cols = [x[:, kh:kh + ho, kw:kw + wo, :] for kh in range(k) for kw in range(k)]
    return jnp.concatenate(cols, axis=-1).reshape(n * ho * wo, k * k * c), (n, ho, wo)


def _conv_w_to_cols(w_pt):
    """PyTorch conv weight [Cout, Cin, kh, kw] -> [kh*kw*Cin, Cout] columns."""
    cout, cin, kh, kw = w_pt.shape
    return jnp.transpose(w_pt, (2, 3, 1, 0)).reshape(kh * kw * cin, cout)


def net_forward_ref(params, x_nchw):
    """Pure-JAX f32 reference of the same math (sanity check)."""
    hp = jax.lax.Precision.HIGHEST
    n = x_nchw.shape[0]
    x = jnp.transpose(x_nchw, (0, 2, 3, 1))
    p1, (_, ho1, wo1) = _im2col(x, 5)
    y1 = (jnp.dot(p1, _conv_w_to_cols(params["conv1_w"]), precision=hp)
          + params["conv1_b"]).reshape(n, ho1, wo1, 16)
    h1 = jnp.maximum(jnp.max(y1.reshape(n, 12, 2, 12, 2, 16), axis=(2, 4)), 0.0)
    p2, (_, ho2, wo2) = _im2col(h1, 5)
    y2 = jnp.maximum(jnp.dot(p2, _conv_w_to_cols(params["conv2_w"]),
                             precision=hp) + params["conv2_b"], 0.0)
    y2 = y2.reshape(n, ho2, wo2, 64)
    flat = jnp.transpose(y2, (0, 3, 1, 2)).reshape(n, 4096)
    h2 = jnp.maximum(jnp.dot(flat, params["fc1_w"].T, precision=hp)
                     + params["fc1_b"], 0.0)
    logits = jnp.dot(h2, params["fc2_w"].T, precision=hp) + params["fc2_b"]
    return jax.nn.log_softmax(logits, axis=1)


if __name__ == "__main__":
    key = jax.random.PRNGKey(0)
    k_x, k_p = jax.random.split(key)
    # MNIST-shaped input (forced by fc1's 4096 = 64*8*8): [batch, 1, 28, 28]
    x = jax.random.normal(k_x, (2, 1, 28, 28), jnp.float32)
    params = init_params(k_p)
    prep = prepare_params(params)          # one-time weight repack (host)

    fwd = jax.jit(net_forward)
    out = jax.block_until_ready(fwd(prep, x))

    assert out.shape == (2, 10), out.shape
    assert bool(jnp.all(jnp.isfinite(out)))
    # each row of a log_softmax output must log-normalize to 0
    lse = jax.scipy.special.logsumexp(out, axis=1)
    assert bool(jnp.allclose(lse, 0.0, atol=1e-4)), lse
    ref = net_forward_ref(params, x)
    # bf16 operands (f32 accumulation) -> tolerance-based comparison
    assert bool(jnp.allclose(out, ref, atol=3e-2, rtol=3e-2)), (
        float(jnp.max(jnp.abs(out - ref))))
    print("KERNEL_OK")
</pallas_src>

<mosaic_0001>
module attributes {stable_mosaic.version = 11 : i64} {
  func.func @_net_kernel(%arg0: i32, %arg1: memref<12x16x168xbf16, #tpu.memory_space<vmem>>, %arg2: memref<168x1024xbf16, #tpu.memory_space<vmem>>, %arg3: memref<1x256xf32, #tpu.memory_space<vmem>>, %arg4: memref<5x256x512xbf16, #tpu.memory_space<vmem>>, %arg5: memref<1x512xf32, #tpu.memory_space<vmem>>, %arg6: memref<8x512x128xbf16, #tpu.memory_space<vmem>>, %arg7: memref<1x128xf32, #tpu.memory_space<vmem>>, %arg8: memref<128x10xbf16, #tpu.memory_space<vmem>>, %arg9: memref<1x10xf32, #tpu.memory_space<vmem>>, %arg10: memref<16x10xf32, #tpu.memory_space<vmem>>) attributes {dimension_semantics = [#tpu.dimension_semantics<parallel>], iteration_bounds = array<i64: 1>, scalar_prefetch = 0 : i64, scratch_operands = 0 : i64, tpu.core_type = #tpu.core_type<tc>, window_params = [{transform_indices = @transform_0, window_bounds = array<i64: 12, 16, 168>}, {pipeline_mode = #tpu.pipeline_mode<synchronous>, transform_indices = @transform_1, window_bounds = array<i64: 168, 1024>}, {pipeline_mode = #tpu.pipeline_mode<synchronous>, transform_indices = @transform_2, window_bounds = array<i64: 1, 256>}, {pipeline_mode = #tpu.pipeline_mode<synchronous>, transform_indices = @transform_3, window_bounds = array<i64: 5, 256, 512>}, {pipeline_mode = #tpu.pipeline_mode<synchronous>, transform_indices = @transform_4, window_bounds = array<i64: 1, 512>}, {pipeline_mode = #tpu.pipeline_mode<synchronous>, transform_indices = @transform_5, window_bounds = array<i64: 8, 512, 128>}, {pipeline_mode = #tpu.pipeline_mode<synchronous>, transform_indices = @transform_6, window_bounds = array<i64: 1, 128>}, {pipeline_mode = #tpu.pipeline_mode<synchronous>, transform_indices = @transform_7, window_bounds = array<i64: 128, 10>}, {pipeline_mode = #tpu.pipeline_mode<synchronous>, transform_indices = @transform_8, window_bounds = array<i64: 1, 10>}, {transform_indices = @transform_9, window_bounds = array<i64: 16, 10>}]} {
    %c0 = arith.constant 0 : index
    %c0_0 = arith.constant 0 : index
    %c0_1 = arith.constant 0 : index
    %0 = vector.load %arg1[%c0, %c0_0, %c0_1] : memref<12x16x168xbf16, #tpu.memory_space<vmem>>, vector<12x16x168xbf16>
    %1 = vector.shape_cast %0 : vector<12x16x168xbf16> to vector<192x168xbf16>
    %c0_2 = arith.constant 0 : index
    %c0_3 = arith.constant 0 : index
    %2 = vector.load %arg2[%c0_2, %c0_3] : memref<168x1024xbf16, #tpu.memory_space<vmem>>, vector<168x1024xbf16>
    %cst = arith.constant dense<0.000000e+00> : vector<192x1024xf32>
    %3 = tpu.matmul %1, %2, %cst {dimension_numbers = #tpu.dot_dimension_numbers<[1], [0], [0], [1], [0, 0, 1, 1], [], []>} : vector<192x168xbf16>, vector<168x1024xbf16>, vector<192x1024xf32> -> vector<192x1024xf32>
    %4 = vector.extract_strided_slice %3 {offsets = [0, 0], sizes = [192, 256], strides = [1, 1]} : vector<192x1024xf32> to vector<192x256xf32>
    %5 = vector.extract_strided_slice %3 {offsets = [0, 256], sizes = [192, 256], strides = [1, 1]} : vector<192x1024xf32> to vector<192x256xf32>
    %6 = arith.maximumf %4, %5 : vector<192x256xf32>
    %7 = vector.extract_strided_slice %3 {offsets = [0, 512], sizes = [192, 256], strides = [1, 1]} : vector<192x1024xf32> to vector<192x256xf32>
    %8 = vector.extract_strided_slice %3 {offsets = [0, 768], sizes = [192, 256], strides = [1, 1]} : vector<192x1024xf32> to vector<192x256xf32>
    %9 = arith.maximumf %7, %8 : vector<192x256xf32>
    %10 = arith.maximumf %6, %9 : vector<192x256xf32>
    %c0_4 = arith.constant 0 : index
    %c0_5 = arith.constant 0 : index
    %11 = vector.load %arg3[%c0_4, %c0_5] : memref<1x256xf32, #tpu.memory_space<vmem>>, vector<1x256xf32>
    %12 = vector.broadcast %11 : vector<1x256xf32> to vector<192x256xf32>
    %13 = arith.addf %10, %12 : vector<192x256xf32>
    %cst_6 = arith.constant 0.000000e+00 : f32
    %14 = vector.broadcast %cst_6 : f32 to vector<192x256xf32>
    %15 = arith.maximumf %13, %14 : vector<192x256xf32>
    %16 = arith.truncf %15 : vector<192x256xf32> to vector<192x256xbf16>
    %17 = vector.shape_cast %16 : vector<192x256xbf16> to vector<12x16x256xbf16>
    %18 = vector.extract_strided_slice %17 {offsets = [0, 0, 0], sizes = [8, 16, 256], strides = [1, 1, 1]} : vector<12x16x256xbf16> to vector<8x16x256xbf16>
    %19 = vector.shape_cast %18 : vector<8x16x256xbf16> to vector<128x256xbf16>
    %c0_7 = arith.constant 0 : index
    %c0_8 = arith.constant 0 : index
    %c0_9 = arith.constant 0 : index
    %20 = vector.load %arg4[%c0_7, %c0_8, %c0_9] : memref<5x256x512xbf16, #tpu.memory_space<vmem>>, vector<1x256x512xbf16>
    %21 = vector.shape_cast %20 : vector<1x256x512xbf16> to vector<256x512xbf16>
    %cst_10 = arith.constant dense<0.000000e+00> : vector<128x512xf32>
    %22 = tpu.matmul %19, %21, %cst_10 {dimension_numbers = #tpu.dot_dimension_numbers<[1], [0], [0], [1], [0, 0, 1, 1], [], []>} : vector<128x256xbf16>, vector<256x512xbf16>, vector<128x512xf32> -> vector<128x512xf32>
    %23 = vector.extract_strided_slice %17 {offsets = [1, 0, 0], sizes = [8, 16, 256], strides = [1, 1, 1]} : vector<12x16x256xbf16> to vector<8x16x256xbf16>
    %24 = vector.shape_cast %23 : vector<8x16x256xbf16> to vector<128x256xbf16>
    %c1 = arith.constant 1 : index
    %c0_11 = arith.constant 0 : index
    %c0_12 = arith.constant 0 : index
    %25 = vector.load %arg4[%c1, %c0_11, %c0_12] : memref<5x256x512xbf16, #tpu.memory_space<vmem>>, vector<1x256x512xbf16>
    %26 = vector.shape_cast %25 : vector<1x256x512xbf16> to vector<256x512xbf16>
    %cst_13 = arith.constant dense<0.000000e+00> : vector<128x512xf32>
    %27 = tpu.matmul %24, %26, %cst_13 {dimension_numbers = #tpu.dot_dimension_numbers<[1], [0], [0], [1], [0, 0, 1, 1], [], []>} : vector<128x256xbf16>, vector<256x512xbf16>, vector<128x512xf32> -> vector<128x512xf32>
    %28 = arith.addf %22, %27 : vector<128x512xf32>
    %29 = vector.extract_strided_slice %17 {offsets = [2, 0, 0], sizes = [8, 16, 256], strides = [1, 1, 1]} : vector<12x16x256xbf16> to vector<8x16x256xbf16>
    %30 = vector.shape_cast %29 : vector<8x16x256xbf16> to vector<128x256xbf16>
    %c2 = arith.constant 2 : index
    %c0_14 = arith.constant 0 : index
    %c0_15 = arith.constant 0 : index
    %31 = vector.load %arg4[%c2, %c0_14, %c0_15] : memref<5x256x512xbf16, #tpu.memory_space<vmem>>, vector<1x256x512xbf16>
    %32 = vector.shape_cast %31 : vector<1x256x512xbf16> to vector<256x512xbf16>
    %cst_16 = arith.constant dense<0.000000e+00> : vector<128x512xf32>
    %33 = tpu.matmul %30, %32, %cst_16 {dimension_numbers = #tpu.dot_dimension_numbers<[1], [0], [0], [1], [0, 0, 1, 1], [], []>} : vector<128x256xbf16>, vector<256x512xbf16>, vector<128x512xf32> -> vector<128x512xf32>
    %34 = arith.addf %28, %33 : vector<128x512xf32>
    %35 = vector.extract_strided_slice %17 {offsets = [3, 0, 0], sizes = [8, 16, 256], strides = [1, 1, 1]} : vector<12x16x256xbf16> to vector<8x16x256xbf16>
    %36 = vector.shape_cast %35 : vector<8x16x256xbf16> to vector<128x256xbf16>
    %c3 = arith.constant 3 : index
    %c0_17 = arith.constant 0 : index
    %c0_18 = arith.constant 0 : index
    %37 = vector.load %arg4[%c3, %c0_17, %c0_18] : memref<5x256x512xbf16, #tpu.memory_space<vmem>>, vector<1x256x512xbf16>
    %38 = vector.shape_cast %37 : vector<1x256x512xbf16> to vector<256x512xbf16>
    %cst_19 = arith.constant dense<0.000000e+00> : vector<128x512xf32>
    %39 = tpu.matmul %36, %38, %cst_19 {dimension_numbers = #tpu.dot_dimension_numbers<[1], [0], [0], [1], [0, 0, 1, 1], [], []>} : vector<128x256xbf16>, vector<256x512xbf16>, vector<128x512xf32> -> vector<128x512xf32>
    %40 = arith.addf %34, %39 : vector<128x512xf32>
    %41 = vector.extract_strided_slice %17 {offsets = [4, 0, 0], sizes = [8, 16, 256], strides = [1, 1, 1]} : vector<12x16x256xbf16> to vector<8x16x256xbf16>
    %42 = vector.shape_cast %41 : vector<8x16x256xbf16> to vector<128x256xbf16>
    %c4 = arith.constant 4 : index
    %c0_20 = arith.constant 0 : index
    %c0_21 = arith.constant 0 : index
    %43 = vector.load %arg4[%c4, %c0_20, %c0_21] : memref<5x256x512xbf16, #tpu.memory_space<vmem>>, vector<1x256x512xbf16>
    %44 = vector.shape_cast %43 : vector<1x256x512xbf16> to vector<256x512xbf16>
    %cst_22 = arith.constant dense<0.000000e+00> : vector<128x512xf32>
    %45 = tpu.matmul %42, %44, %cst_22 {dimension_numbers = #tpu.dot_dimension_numbers<[1], [0], [0], [1], [0, 0, 1, 1], [], []>} : vector<128x256xbf16>, vector<256x512xbf16>, vector<128x512xf32> -> vector<128x512xf32>
    %46 = arith.addf %40, %45 : vector<128x512xf32>
    %c0_23 = arith.constant 0 : index
    %c0_24 = arith.constant 0 : index
    %47 = vector.load %arg5[%c0_23, %c0_24] : memref<1x512xf32, #tpu.memory_space<vmem>>, vector<1x512xf32>
    %48 = vector.broadcast %47 : vector<1x512xf32> to vector<128x512xf32>
    %49 = arith.addf %46, %48 : vector<128x512xf32>
    %cst_25 = arith.constant 0.000000e+00 : f32
    %50 = vector.broadcast %cst_25 : f32 to vector<128x512xf32>
    %51 = arith.maximumf %49, %50 : vector<128x512xf32>
    %52 = arith.truncf %51 : vector<128x512xf32> to vector<128x512xbf16>
    %53 = vector.shape_cast %52 : vector<128x512xbf16> to vector<8x16x512xbf16>
    %54 = vector.extract_strided_slice %53 {offsets = [0, 0, 0], sizes = [1, 16, 512], strides = [1, 1, 1]} : vector<8x16x512xbf16> to vector<1x16x512xbf16>
    %55 = vector.shape_cast %54 : vector<1x16x512xbf16> to vector<16x512xbf16>
    %c0_26 = arith.constant 0 : index
    %c0_27 = arith.constant 0 : index
    %c0_28 = arith.constant 0 : index
    %56 = vector.load %arg6[%c0_26, %c0_27, %c0_28] : memref<8x512x128xbf16, #tpu.memory_space<vmem>>, vector<1x512x128xbf16>
    %57 = vector.shape_cast %56 : vector<1x512x128xbf16> to vector<512x128xbf16>
    %cst_29 = arith.constant dense<0.000000e+00> : vector<16x128xf32>
    %58 = tpu.matmul %55, %57, %cst_29 {dimension_numbers = #tpu.dot_dimension_numbers<[1], [0], [0], [1], [0, 0, 1, 1], [], []>} : vector<16x512xbf16>, vector<512x128xbf16>, vector<16x128xf32> -> vector<16x128xf32>
    %59 = vector.extract_strided_slice %53 {offsets = [1, 0, 0], sizes = [1, 16, 512], strides = [1, 1, 1]} : vector<8x16x512xbf16> to vector<1x16x512xbf16>
    %60 = vector.shape_cast %59 : vector<1x16x512xbf16> to vector<16x512xbf16>
    %c1_30 = arith.constant 1 : index
    %c0_31 = arith.constant 0 : index
    %c0_32 = arith.constant 0 : index
    %61 = vector.load %arg6[%c1_30, %c0_31, %c0_32] : memref<8x512x128xbf16, #tpu.memory_space<vmem>>, vector<1x512x128xbf16>
    %62 = vector.shape_cast %61 : vector<1x512x128xbf16> to vector<512x128xbf16>
    %cst_33 = arith.constant dense<0.000000e+00> : vector<16x128xf32>
    %63 = tpu.matmul %60, %62, %cst_33 {dimension_numbers = #tpu.dot_dimension_numbers<[1], [0], [0], [1], [0, 0, 1, 1], [], []>} : vector<16x512xbf16>, vector<512x128xbf16>, vector<16x128xf32> -> vector<16x128xf32>
    %64 = arith.addf %58, %63 : vector<16x128xf32>
    %65 = vector.extract_strided_slice %53 {offsets = [2, 0, 0], sizes = [1, 16, 512], strides = [1, 1, 1]} : vector<8x16x512xbf16> to vector<1x16x512xbf16>
    %66 = vector.shape_cast %65 : vector<1x16x512xbf16> to vector<16x512xbf16>
    %c2_34 = arith.constant 2 : index
    %c0_35 = arith.constant 0 : index
    %c0_36 = arith.constant 0 : index
    %67 = vector.load %arg6[%c2_34, %c0_35, %c0_36] : memref<8x512x128xbf16, #tpu.memory_space<vmem>>, vector<1x512x128xbf16>
    %68 = vector.shape_cast %67 : vector<1x512x128xbf16> to vector<512x128xbf16>
    %cst_37 = arith.constant dense<0.000000e+00> : vector<16x128xf32>
    %69 = tpu.matmul %66, %68, %cst_37 {dimension_numbers = #tpu.dot_dimension_numbers<[1], [0], [0], [1], [0, 0, 1, 1], [], []>} : vector<16x512xbf16>, vector<512x128xbf16>, vector<16x128xf32> -> vector<16x128xf32>
    %70 = arith.addf %64, %69 : vector<16x128xf32>
    %71 = vector.extract_strided_slice %53 {offsets = [3, 0, 0], sizes = [1, 16, 512], strides = [1, 1, 1]} : vector<8x16x512xbf16> to vector<1x16x512xbf16>
    %72 = vector.shape_cast %71 : vector<1x16x512xbf16> to vector<16x512xbf16>
    %c3_38 = arith.constant 3 : index
    %c0_39 = arith.constant 0 : index
    %c0_40 = arith.constant 0 : index
    %73 = vector.load %arg6[%c3_38, %c0_39, %c0_40] : memref<8x512x128xbf16, #tpu.memory_space<vmem>>, vector<1x512x128xbf16>
    %74 = vector.shape_cast %73 : vector<1x512x128xbf16> to vector<512x128xbf16>
    %cst_41 = arith.constant dense<0.000000e+00> : vector<16x128xf32>
    %75 = tpu.matmul %72, %74, %cst_41 {dimension_numbers = #tpu.dot_dimension_numbers<[1], [0], [0], [1], [0, 0, 1, 1], [], []>} : vector<16x512xbf16>, vector<512x128xbf16>, vector<16x128xf32> -> vector<16x128xf32>
    %76 = arith.addf %70, %75 : vector<16x128xf32>
    %77 = vector.extract_strided_slice %53 {offsets = [4, 0, 0], sizes = [1, 16, 512], strides = [1, 1, 1]} : vector<8x16x512xbf16> to vector<1x16x512xbf16>
    %78 = vector.shape_cast %77 : vector<1x16x512xbf16> to vector<16x512xbf16>
    %c4_42 = arith.constant 4 : index
    %c0_43 = arith.constant 0 : index
    %c0_44 = arith.constant 0 : index
    %79 = vector.load %arg6[%c4_42, %c0_43, %c0_44] : memref<8x512x128xbf16, #tpu.memory_space<vmem>>, vector<1x512x128xbf16>
    %80 = vector.shape_cast %79 : vector<1x512x128xbf16> to vector<512x128xbf16>
    %cst_45 = arith.constant dense<0.000000e+00> : vector<16x128xf32>
    %81 = tpu.matmul %78, %80, %cst_45 {dimension_numbers = #tpu.dot_dimension_numbers<[1], [0], [0], [1], [0, 0, 1, 1], [], []>} : vector<16x512xbf16>, vector<512x128xbf16>, vector<16x128xf32> -> vector<16x128xf32>
    %82 = arith.addf %76, %81 : vector<16x128xf32>
    %83 = vector.extract_strided_slice %53 {offsets = [5, 0, 0], sizes = [1, 16, 512], strides = [1, 1, 1]} : vector<8x16x512xbf16> to vector<1x16x512xbf16>
    %84 = vector.shape_cast %83 : vector<1x16x512xbf16> to vector<16x512xbf16>
    %c5 = arith.constant 5 : index
    %c0_46 = arith.constant 0 : index
    %c0_47 = arith.constant 0 : index
    %85 = vector.load %arg6[%c5, %c0_46, %c0_47] : memref<8x512x128xbf16, #tpu.memory_space<vmem>>, vector<1x512x128xbf16>
    %86 = vector.shape_cast %85 : vector<1x512x128xbf16> to vector<512x128xbf16>
    %cst_48 = arith.constant dense<0.000000e+00> : vector<16x128xf32>
    %87 = tpu.matmul %84, %86, %cst_48 {dimension_numbers = #tpu.dot_dimension_numbers<[1], [0], [0], [1], [0, 0, 1, 1], [], []>} : vector<16x512xbf16>, vector<512x128xbf16>, vector<16x128xf32> -> vector<16x128xf32>
    %88 = arith.addf %82, %87 : vector<16x128xf32>
    %89 = vector.extract_strided_slice %53 {offsets = [6, 0, 0], sizes = [1, 16, 512], strides = [1, 1, 1]} : vector<8x16x512xbf16> to vector<1x16x512xbf16>
    %90 = vector.shape_cast %89 : vector<1x16x512xbf16> to vector<16x512xbf16>
    %c6 = arith.constant 6 : index
    %c0_49 = arith.constant 0 : index
    %c0_50 = arith.constant 0 : index
    %91 = vector.load %arg6[%c6, %c0_49, %c0_50] : memref<8x512x128xbf16, #tpu.memory_space<vmem>>, vector<1x512x128xbf16>
    %92 = vector.shape_cast %91 : vector<1x512x128xbf16> to vector<512x128xbf16>
    %cst_51 = arith.constant dense<0.000000e+00> : vector<16x128xf32>
    %93 = tpu.matmul %90, %92, %cst_51 {dimension_numbers = #tpu.dot_dimension_numbers<[1], [0], [0], [1], [0, 0, 1, 1], [], []>} : vector<16x512xbf16>, vector<512x128xbf16>, vector<16x128xf32> -> vector<16x128xf32>
    %94 = arith.addf %88, %93 : vector<16x128xf32>
    %95 = vector.extract_strided_slice %53 {offsets = [7, 0, 0], sizes = [1, 16, 512], strides = [1, 1, 1]} : vector<8x16x512xbf16> to vector<1x16x512xbf16>
    %96 = vector.shape_cast %95 : vector<1x16x512xbf16> to vector<16x512xbf16>
    %c7 = arith.constant 7 : index
    %c0_52 = arith.constant 0 : index
    %c0_53 = arith.constant 0 : index
    %97 = vector.load %arg6[%c7, %c0_52, %c0_53] : memref<8x512x128xbf16, #tpu.memory_space<vmem>>, vector<1x512x128xbf16>
    %98 = vector.shape_cast %97 : vector<1x512x128xbf16> to vector<512x128xbf16>
    %cst_54 = arith.constant dense<0.000000e+00> : vector<16x128xf32>
    %99 = tpu.matmul %96, %98, %cst_54 {dimension_numbers = #tpu.dot_dimension_numbers<[1], [0], [0], [1], [0, 0, 1, 1], [], []>} : vector<16x512xbf16>, vector<512x128xbf16>, vector<16x128xf32> -> vector<16x128xf32>
    %100 = arith.addf %94, %99 : vector<16x128xf32>
    %c0_55 = arith.constant 0 : index
    %c0_56 = arith.constant 0 : index
    %101 = vector.load %arg7[%c0_55, %c0_56] : memref<1x128xf32, #tpu.memory_space<vmem>>, vector<1x128xf32>
    %102 = vector.broadcast %101 : vector<1x128xf32> to vector<16x128xf32>
    %103 = arith.addf %100, %102 : vector<16x128xf32>
    %cst_57 = arith.constant 0.000000e+00 : f32
    %104 = vector.broadcast %cst_57 : f32 to vector<16x128xf32>
    %105 = arith.maximumf %103, %104 : vector<16x128xf32>
    %106 = arith.truncf %105 : vector<16x128xf32> to vector<16x128xbf16>
    %c0_58 = arith.constant 0 : index
    %c0_59 = arith.constant 0 : index
    %107 = vector.load %arg8[%c0_58, %c0_59] : memref<128x10xbf16, #tpu.memory_space<vmem>>, vector<128x10xbf16>
    %cst_60 = arith.constant dense<0.000000e+00> : vector<16x10xf32>
    %108 = tpu.matmul %106, %107, %cst_60 {dimension_numbers = #tpu.dot_dimension_numbers<[1], [0], [0], [1], [0, 0, 1, 1], [], []>} : vector<16x128xbf16>, vector<128x10xbf16>, vector<16x10xf32> -> vector<16x10xf32>
    %c0_61 = arith.constant 0 : index
    %c0_62 = arith.constant 0 : index
    %109 = vector.load %arg9[%c0_61, %c0_62] : memref<1x10xf32, #tpu.memory_space<vmem>>, vector<1x10xf32>
    %110 = vector.broadcast %109 : vector<1x10xf32> to vector<16x10xf32>
    %111 = arith.addf %108, %110 : vector<16x10xf32>
    %cst_63 = arith.constant dense<0xFF800000> : vector<16xf32>
    %112 = vector.multi_reduction <maximumf>, %111, %cst_63 [1] : vector<16x10xf32> to vector<16xf32>
    %113 = vector.shape_cast %112 : vector<16xf32> to vector<16x1xf32>
    %114 = vector.broadcast %113 : vector<16x1xf32> to vector<16x10xf32>
    %115 = arith.subf %111, %114 : vector<16x10xf32>
    %116 = math.exp %115 : vector<16x10xf32>
    %cst_64 = arith.constant dense<0.000000e+00> : vector<16xf32>
    %117 = vector.multi_reduction <add>, %116, %cst_64 [1] : vector<16x10xf32> to vector<16xf32>
    %118 = vector.shape_cast %117 : vector<16xf32> to vector<16x1xf32>
    %119 = math.log %118 : vector<16x1xf32>
    %120 = vector.broadcast %119 : vector<16x1xf32> to vector<16x10xf32>
    %121 = arith.subf %115, %120 : vector<16x10xf32>
    %c0_65 = arith.constant 0 : index
    %c0_66 = arith.constant 0 : index
    %122 = vector.load %arg10[%c0_65, %c0_66] : memref<16x10xf32, #tpu.memory_space<vmem>>, vector<16x10xf32>
    tpu.vector_store %arg10[%c0_65, %c0_66], %121 {strides = array<i32>} : memref<16x10xf32, #tpu.memory_space<vmem>>, vector<16x10xf32>,
    return
  }
  func.func @transform_0(%arg0: i32) -> (i32, i32, i32) {
    %c0_i32 = arith.constant 0 : i32
    %c0_i32_0 = arith.constant 0 : i32
    %c0_i32_1 = arith.constant 0 : i32
    return %c0_i32, %arg0, %c0_i32_0 : i32, i32, i32
  }
  func.func @transform_1(%arg0: i32) -> (i32, i32) {
    %c0_i32 = arith.constant 0 : i32
    %c0_i32_0 = arith.constant 0 : i32
    %c0_i32_1 = arith.constant 0 : i32
    return %c0_i32, %c0_i32_0 : i32, i32
  }
  func.func @transform_2(%arg0: i32) -> (i32, i32) {
    %c0_i32 = arith.constant 0 : i32
    %c0_i32_0 = arith.constant 0 : i32
    %c0_i32_1 = arith.constant 0 : i32
    return %c0_i32, %c0_i32_0 : i32, i32
  }
  func.func @transform_3(%arg0: i32) -> (i32, i32, i32) {
    %c0_i32 = arith.constant 0 : i32
    %c0_i32_0 = arith.constant 0 : i32
    %c0_i32_1 = arith.constant 0 : i32
    %c0_i32_2 = arith.constant 0 : i32
    return %c0_i32, %c0_i32_0, %c0_i32_1 : i32, i32, i32
  }
  func.func @transform_4(%arg0: i32) -> (i32, i32) {
    %c0_i32 = arith.constant 0 : i32
    %c0_i32_0 = arith.constant 0 : i32
    %c0_i32_1 = arith.constant 0 : i32
    return %c0_i32, %c0_i32_0 : i32, i32
  }
  func.func @transform_5(%arg0: i32) -> (i32, i32, i32) {
    %c0_i32 = arith.constant 0 : i32
    %c0_i32_0 = arith.constant 0 : i32
    %c0_i32_1 = arith.constant 0 : i32
    %c0_i32_2 = arith.constant 0 : i32
    return %c0_i32, %c0_i32_0, %c0_i32_1 : i32, i32, i32
  }
  func.func @transform_6(%arg0: i32) -> (i32, i32) {
    %c0_i32 = arith.constant 0 : i32
    %c0_i32_0 = arith.constant 0 : i32
    %c0_i32_1 = arith.constant 0 : i32
    return %c0_i32, %c0_i32_0 : i32, i32
  }
  func.func @transform_7(%arg0: i32) -> (i32, i32) {
    %c0_i32 = arith.constant 0 : i32
    %c0_i32_0 = arith.constant 0 : i32
    %c0_i32_1 = arith.constant 0 : i32
    return %c0_i32, %c0_i32_0 : i32, i32
  }
  func.func @transform_8(%arg0: i32) -> (i32, i32) {
    %c0_i32 = arith.constant 0 : i32
    %c0_i32_0 = arith.constant 0 : i32
    %c0_i32_1 = arith.constant 0 : i32
    return %c0_i32, %c0_i32_0 : i32, i32
  }
  func.func @transform_9(%arg0: i32) -> (i32, i32) {
    %c0_i32 = arith.constant 0 : i32
    %c0_i32_0 = arith.constant 0 : i32
    return %arg0, %c0_i32 : i32, i32
  }
}

</mosaic_0001>

<llo_original>
// kernel: net_forward.1
$region0: #{net_forward.1}
  #allocation0 [shape = 'u32[]', space=smem, size = 0x4, offset = 0x4, fixed_abs, tag = 'smem constant byte address 0x4 - core index']
  #allocation1 [shape = 'u32[72,128]{1,0:T(1,128)}', space=vmem, size = 0x9000, scoped, tag = 'internal scratch']
  %s0 = inlined_call_operand.vmem [shape: bf16[12,16,168], index: 0, kind: input, shape index: {}]
  %s1 = inlined_call_operand.vmem [shape: bf16[168,1024], index: 1, kind: input, shape index: {}]
  %s2 = inlined_call_operand.vmem [shape: f32[1,256], index: 2, kind: input, shape index: {}]
  %s3 = inlined_call_operand.vmem [shape: bf16[5,256,512], index: 3, kind: input, shape index: {}]
  %s4 = inlined_call_operand.vmem [shape: f32[1,512], index: 4, kind: input, shape index: {}]
  %s5 = inlined_call_operand.hbm [shape: bf16[8,512,128], index: 5, kind: input, shape index: {}]
  %s6 = inlined_call_operand.vmem [shape: f32[1,128], index: 6, kind: input, shape index: {}]
  %s7 = inlined_call_operand.vmem [shape: bf16[128,10], index: 7, kind: input, shape index: {}]
  %s8 = inlined_call_operand.vmem [shape: f32[1,10], index: 8, kind: input, shape index: {}]
  %s9 = inlined_call_operand.vmem [shape: f32[16,10], index: 9, kind: output, shape index: {}]
  %s10 = sld [smem:[#allocation0]]
  $region50: #{net_forward.1} parent=0
    _
  %s12 = ssub.s32 1, %s10
  %s13 = scalar_select 0, %s12, %s10
  $region1: #{net_forward.1} parent=0
    #allocation2 [shape = 'u8[1048576]{0}', space=vmem, size = 0x100000, scoped, tag = 'input window, operand 5, single buffered']
    #allocation3 [shape = 's32[1]{0}', space=sflag, size = 0x4, scoped, tag = 'scoped memory for net_forward.1']
    %14 = vsyncpa [#allocation3], 0
    // Predicated region
    $region2: #{net_forward.1} parent=1 // pred_check
      _
    $region3: #{net_forward.1} parent=1 // pred_check_branch
      %16 = sbr.rel (0) target = $region5
    $region4: #{net_forward.1} parent=1 // pred_region
      _
    $region5: #{net_forward.1} parent=1 // pred_fallthru
      _
    // Predicated region
    $region6: #{net_forward.1} parent=1 // pred_check
      _
    $region7: #{net_forward.1} parent=1 // pred_check_branch
      %18 = sbr.rel (0) target = $region9
    $region8: #{net_forward.1} parent=1 // pred_region
      _
    $region9: #{net_forward.1} parent=1 // pred_fallthru
      _
    // Predicated region
    $region10: #{net_forward.1} parent=1 // pred_check
      _
    $region11: #{net_forward.1} parent=1 // pred_check_branch
      %20 = sbr.rel (0) target = $region13
    $region12: #{net_forward.1} parent=1 // pred_region
      _
    $region13: #{net_forward.1} parent=1 // pred_fallthru
      _
    // Predicated region
    $region14: #{net_forward.1} parent=1 // pred_check
      _
    $region15: #{net_forward.1} parent=1 // pred_check_branch
      %22 = sbr.rel (0) target = $region17
    $region16: #{net_forward.1} parent=1 // pred_region
      _
    $region17: #{net_forward.1} parent=1 // pred_fallthru
      _
    // Predicated region
    $region18: #{net_forward.1} parent=1 // pred_check
      _
    $region19: #{net_forward.1} parent=1 // pred_check_branch
      %24 = sbr.rel (0) target = $region21
    $region20: #{net_forward.1} parent=1 // pred_region
      _
    $region21: #{net_forward.1} parent=1 // pred_fallthru
      _
    // Predicated region
    $region22: #{net_forward.1} parent=1 // pred_check
      _
    $region23: #{net_forward.1} parent=1 // pred_check_branch
      %26 = sbr.rel (0) target = $region25
    $region24: #{net_forward.1} parent=1 // pred_region
      %28 = vsyncadd [#allocation3], 0
      %s29 = sshll.u32 %s5, 4
      %s30 = int_to_ptr.hbm [resolvable:$true] %s29
      %s31 = sshll.u32 [#allocation2], 4
      %s32 = int_to_ptr.vmem [resolvable:$true] %s31
      %37 = dma.hbm_to_vmem [thread:$0]  %s30, 32768, %s32, [#allocation3], 64, 64, 4
    $region25: #{net_forward.1} parent=1 // pred_fallthru
      _
    // Predicated region
    $region26: #{net_forward.1} parent=1 // pred_check
      _
    $region27: #{net_forward.1} parent=1 // pred_check_branch
      %39 = sbr.rel (0) target = $region29
    $region28: #{net_forward.1} parent=1 // pred_region
      _
    $region29: #{net_forward.1} parent=1 // pred_fallthru
      _
    // Predicated region
    $region30: #{net_forward.1} parent=1 // pred_check
      _
    $region31: #{net_forward.1} parent=1 // pred_check_branch
      %41 = sbr.rel (0) target = $region33
    $region32: #{net_forward.1} parent=1 // pred_region
      _
    $region33: #{net_forward.1} parent=1 // pred_fallthru
      _
    // Predicated region
    $region34: #{net_forward.1} parent=1 // pred_check
      _
    $region35: #{net_forward.1} parent=1 // pred_check_branch
      %43 = sbr.rel (0) target = $region37
    $region36: #{net_forward.1} parent=1 // pred_region
      _
    $region37: #{net_forward.1} parent=1 // pred_fallthru
      _
    // Predicated region
    $region38: #{net_forward.1} parent=1 // pred_check
      _
    $region39: #{net_forward.1} parent=1 // pred_check_branch
      %45 = sbr.rel (0) target = $region41
    $region40: #{net_forward.1} parent=1 // pred_region
      %47 = dma.done [#allocation3], 32768
    $region41: #{net_forward.1} parent=1 // pred_fallthru
      _
    %v49 = vld [vmem:[%s0] sm:$0xff]
    %v50 = vld [vmem:[%s0 + $0x8] sm:$0xff]
    %v51 = vld [vmem:[%s0 + $0x10] sm:$0xff]
    %v52 = vld [vmem:[%s0 + $0x18] sm:$0xff]
    %v53 = vld [vmem:[%s0 + $0x20] sm:$0xff]
    %v54 = vld [vmem:[%s0 + $0x28] sm:$0xff]
    %v55 = vld [vmem:[%s0 + $0x30] sm:$0xff]
    %v56 = vld [vmem:[%s0 + $0x38] sm:$0xff]
    %v57 = vld [vmem:[%s0 + $0x40] sm:$0xff]
    %v58 = vld [vmem:[%s0 + $0x48] sm:$0xff]
    %v59 = vld [vmem:[%s0 + $0x50] sm:$0xff]
    %v60 = vld [vmem:[%s0 + $0x58] sm:$0xff]
    %v61 = vld [vmem:[%s0 + $0x60] sm:$0xff]
    %v62 = vld [vmem:[%s0 + $0x68] sm:$0xff]
    %v63 = vld [vmem:[%s0 + $0x70] sm:$0xff]
    %v64 = vld [vmem:[%s0 + $0x78] sm:$0xff]
    %v65 = vld [vmem:[%s0 + $0x80] sm:$0xff]
    %v66 = vld [vmem:[%s0 + $0x88] sm:$0xff]
    %v67 = vld [vmem:[%s0 + $0x90] sm:$0xff]
    %v68 = vld [vmem:[%s0 + $0x98] sm:$0xff]
    %v69 = vld [vmem:[%s0 + $0xa0] sm:$0xff]
    %v70 = vld [vmem:[%s0 + $0xa8] sm:$0xff]
    %v71 = vld [vmem:[%s0 + $0xb0] sm:$0xff]
    %v72 = vld [vmem:[%s0 + $0xb8] sm:$0xff]
    %v73 = vld [vmem:[%s1] sm:$0xff]
    %v74 = vld [vmem:[%s1 + $0x8] sm:$0xff]
    %v75 = vld [vmem:[%s1 + $0x10] sm:$0xff]
    %v76 = vld [vmem:[%s1 + $0x18] sm:$0xff]
    %v77 = vld [vmem:[%s1 + $0x20] sm:$0xff]
    %v78 = vld [vmem:[%s1 + $0x28] sm:$0xff]
    %v79 = vld [vmem:[%s1 + $0x30] sm:$0xff]
    %v80 = vld [vmem:[%s1 + $0x38] sm:$0xff]
    %v81 = vld [vmem:[%s1 + $0x40] sm:$0xff]
    %v82 = vld [vmem:[%s1 + $0x48] sm:$0xff]
    %v83 = vld [vmem:[%s1 + $0x50] sm:$0xff]
    %v84 = vld [vmem:[%s1 + $0x58] sm:$0xff]
    %v85 = vld [vmem:[%s1 + $0x60] sm:$0xff]
    %v86 = vld [vmem:[%s1 + $0x68] sm:$0xff]
    %v87 = vld [vmem:[%s1 + $0x70] sm:$0xff]
    %v88 = vld [vmem:[%s1 + $0x78] sm:$0xff]
    %v89 = vld [vmem:[%s1 + $0x80] sm:$0xff]
    %v90 = vld [vmem:[%s1 + $0x88] sm:$0xff]
    %v91 = vld [vmem:[%s1 + $0x90] sm:$0xff]
    %v92 = vld [vmem:[%s1 + $0x98] sm:$0xff]
    %v93 = vld [vmem:[%s1 + $0xa0] sm:$0xff]
    %v94 = vld [vmem:[%s1 + $0xa8] sm:$0xff]
    %v95 = vld [vmem:[%s1 + $0xb0] sm:$0xff]
    %v96 = vld [vmem:[%s1 + $0xb8] sm:$0xff]
    %v97 = vld [vmem:[%s1 + $0xc0] sm:$0xff]
    %v98 = vld [vmem:[%s1 + $0xc8] sm:$0xff]
    %v99 = vld [vmem:[%s1 + $0xd0] sm:$0xff]
    %v100 = vld [vmem:[%s1 + $0xd8] sm:$0xff]
    %v101 = vld [vmem:[%s1 + $0xe0] sm:$0xff]
    %v102 = vld [vmem:[%s1 + $0xe8] sm:$0xff]
    %v103 = vld [vmem:[%s1 + $0xf0] sm:$0xff]
    %v104 = vld [vmem:[%s1 + $0xf8] sm:$0xff]
    %v105 = vld [vmem:[%s1 + $0x100] sm:$0xff]
    %v106 = vld [vmem:[%s1 + $0x108] sm:$0xff]
    %v107 = vld [vmem:[%s1 + $0x110] sm:$0xff]
    %v108 = vld [vmem:[%s1 + $0x118] sm:$0xff]
    %v109 = vld [vmem:[%s1 + $0x120] sm:$0xff]
    %v110 = vld [vmem:[%s1 + $0x128] sm:$0xff]
    %v111 = vld [vmem:[%s1 + $0x130] sm:$0xff]
    %v112 = vld [vmem:[%s1 + $0x138] sm:$0xff]
    %v113 = vld [vmem:[%s1 + $0x140] sm:$0xff]
    %v114 = vld [vmem:[%s1 + $0x148] sm:$0xff]
    %v115 = vld [vmem:[%s1 + $0x150] sm:$0xff]
    %v116 = vld [vmem:[%s1 + $0x158] sm:$0xff]
    %v117 = vld [vmem:[%s1 + $0x160] sm:$0xff]
    %v118 = vld [vmem:[%s1 + $0x168] sm:$0xff]
    %v119 = vld [vmem:[%s1 + $0x170] sm:$0xff]
    %v120 = vld [vmem:[%s1 + $0x178] sm:$0xff]
    %v121 = vld [vmem:[%s1 + $0x180] sm:$0xff]
    %v122 = vld [vmem:[%s1 + $0x188] sm:$0xff]
    %v123 = vld [vmem:[%s1 + $0x190] sm:$0xff]
    %v124 = vld [vmem:[%s1 + $0x198] sm:$0xff]
    %v125 = vld [vmem:[%s1 + $0x1a0] sm:$0xff]
    %v126 = vld [vmem:[%s1 + $0x1a8] sm:$0xff]
    %v127 = vld [vmem:[%s1 + $0x1b0] sm:$0xff]
    %v128 = vld [vmem:[%s1 + $0x1b8] sm:$0xff]
    %v129 = vld [vmem:[%s1 + $0x1c0] sm:$0xff]
    %v130 = vld [vmem:[%s1 + $0x1c8] sm:$0xff]
    %v131 = vld [vmem:[%s1 + $0x1d0] sm:$0xff]
    %v132 = vld [vmem:[%s1 + $0x1d8] sm:$0xff]
    %v133 = vld [vmem:[%s1 + $0x1e0] sm:$0xff]
    %v134 = vld [vmem:[%s1 + $0x1e8] sm:$0xff]
    %v135 = vld [vmem:[%s1 + $0x1f0] sm:$0xff]
    %v136 = vld [vmem:[%s1 + $0x1f8] sm:$0xff]
    %v137 = vld [vmem:[%s1 + $0x200] sm:$0xff]
    %v138 = vld [vmem:[%s1 + $0x208] sm:$0xff]
    %v139 = vld [vmem:[%s1 + $0x210] sm:$0xff]
    %v140 = vld [vmem:[%s1 + $0x218] sm:$0xff]
    %v141 = vld [vmem:[%s1 + $0x220] sm:$0xff]
    %v142 = vld [vmem:[%s1 + $0x228] sm:$0xff]
    %v143 = vld [vmem:[%s1 + $0x230] sm:$0xff]
    %v144 = vld [vmem:[%s1 + $0x238] sm:$0xff]
    %v145 = vld [vmem:[%s1 + $0x240] sm:$0xff]
    %v146 = vld [vmem:[%s1 + $0x248] sm:$0xff]
    %v147 = vld [vmem:[%s1 + $0x250] sm:$0xff]
    %v148 = vld [vmem:[%s1 + $0x258] sm:$0xff]
    %v149 = vld [vmem:[%s1 + $0x260] sm:$0xff]
    %v150 = vld [vmem:[%s1 + $0x268] sm:$0xff]
    %v151 = vld [vmem:[%s1 + $0x270] sm:$0xff]
    %v152 = vld [vmem:[%s1 + $0x278] sm:$0xff]
    %v153 = vld [vmem:[%s1 + $0x280] sm:$0xff]
    %v154 = vld [vmem:[%s1 + $0x288] sm:$0xff]
    %v155 = vld [vmem:[%s1 + $0x290] sm:$0xff]
    %v156 = vld [vmem:[%s1 + $0x298] sm:$0xff]
    %v181 = vunpack.c.l.b16 %v49
    %v182 = vunpack.c.h.b16 %v49
    %v183 = vunpack.c.l.b16 %v50
    %v184 = vunpack.c.h.b16 %v50
    %v185 = vunpack.c.l.b16 %v51
    %v186 = vunpack.c.h.b16 %v51
    %v187 = vunpack.c.l.b16 %v52
    %v188 = vunpack.c.h.b16 %v52
    %v189 = vunpack.c.l.b16 %v53
    %v190 = vunpack.c.h.b16 %v53
    %v191 = vunpack.c.l.b16 %v54
    %v192 = vunpack.c.h.b16 %v54
    %v193 = vunpack.c.l.b16 %v55
    %v194 = vunpack.c.h.b16 %v55
    %v195 = vunpack.c.l.b16 %v56
    %v196 = vunpack.c.h.b16 %v56
    %v197 = vunpack.c.l.b16 %v57
    %v198 = vunpack.c.h.b16 %v57
    %v199 = vunpack.c.l.b16 %v58
    %v200 = vunpack.c.h.b16 %v58
    %v201 = vunpack.c.l.b16 %v59
    %v202 = vunpack.c.h.b16 %v59
    %v203 = vunpack.c.l.b16 %v60
    %v204 = vunpack.c.h.b16 %v60
    %v205 = vunpack.c.l.b16 %v61
    %v206 = vunpack.c.h.b16 %v61
    %v207 = vunpack.c.l.b16 %v62
    %v208 = vunpack.c.h.b16 %v62
    %v209 = vunpack.c.l.b16 %v63
    %v210 = vunpack.c.h.b16 %v63
    %v211 = vunpack.c.l.b16 %v64
    %v212 = vunpack.c.h.b16 %v64
    %v213 = vunpack.c.l.b16 %v65
    %v214 = vunpack.c.h.b16 %v65
    %v215 = vunpack.c.l.b16 %v66
    %v216 = vunpack.c.h.b16 %v66
    %v217 = vunpack.c.l.b16 %v67
    %v218 = vunpack.c.h.b16 %v67
    %v219 = vunpack.c.l.b16 %v68
    %v220 = vunpack.c.h.b16 %v68
    %v221 = vunpack.c.l.b16 %v69
    %v222 = vunpack.c.h.b16 %v69
    %v223 = vunpack.c.l.b16 %v70
    %v224 = vunpack.c.h.b16 %v70
    %v225 = vunpack.c.l.b16 %v71
    %v226 = vunpack.c.h.b16 %v71
    %v227 = vunpack.c.l.b16 %v72
    %v228 = vunpack.c.h.b16 %v72
    %v229 = vpack.c.b16 %v183, %v181
    %v230 = vpack.c.b16 %v184, %v182
    %v231 = vpack.c.b16 %v187, %v185
    %v232 = vpack.c.b16 %v188, %v186
    %v233 = vpack.c.b16 %v191, %v189
    %v234 = vpack.c.b16 %v192, %v190
    %v235 = vpack.c.b16 %v195, %v193
    %v236 = vpack.c.b16 %v196, %v194
    %v237 = vpack.c.b16 %v199, %v197
    %v238 = vpack.c.b16 %v200, %v198
    %v239 = vpack.c.b16 %v203, %v201
    %v240 = vpack.c.b16 %v204, %v202
    %v241 = vpack.c.b16 %v207, %v205
    %v242 = vpack.c.b16 %v208, %v206
    %v243 = vpack.c.b16 %v211, %v209
    %v244 = vpack.c.b16 %v212, %v210
    %v245 = vpack.c.b16 %v215, %v213
    %v246 = vpack.c.b16 %v216, %v214
    %v247 = vpack.c.b16 %v219, %v217
    %v248 = vpack.c.b16 %v220, %v218
    %v249 = vpack.c.b16 %v223, %v221
    %v250 = vpack.c.b16 %v224, %v222
    %v251 = vpack.c.b16 %v227, %v225
    %v252 = vpack.c.b16 %v228, %v226
    %v349 = vunpack.c.l.b16 %v73
    %v350 = vunpack.c.h.b16 %v73
    %v351 = vunpack.c.l.b16 %v74
    %v352 = vunpack.c.h.b16 %v74
    %v353 = vunpack.c.l.b16 %v75
    %v354 = vunpack.c.h.b16 %v75
    %v355 = vunpack.c.l.b16 %v76
    %v356 = vunpack.c.h.b16 %v76
    %v357 = vunpack.c.l.b16 %v77
    %v358 = vunpack.c.h.b16 %v77
    %v359 = vunpack.c.l.b16 %v78
    %v360 = vunpack.c.h.b16 %v78
    %v361 = vunpack.c.l.b16 %v79
    %v362 = vunpack.c.h.b16 %v79
    %v363 = vunpack.c.l.b16 %v80
    %v364 = vunpack.c.h.b16 %v80
    %v365 = vunpack.c.l.b16 %v81
    %v366 = vunpack.c.h.b16 %v81
    %v367 = vunpack.c.l.b16 %v82
    %v368 = vunpack.c.h.b16 %v82
    %v369 = vunpack.c.l.b16 %v83
    %v370 = vunpack.c.h.b16 %v83
    %v371 = vunpack.c.l.b16 %v84
    %v372 = vunpack.c.h.b16 %v84
    %v373 = vunpack.c.l.b16 %v85
    %v374 = vunpack.c.h.b16 %v85
    %v375 = vunpack.c.l.b16 %v86
    %v376 = vunpack.c.h.b16 %v86
    %v377 = vunpack.c.l.b16 %v87
    %v378 = vunpack.c.h.b16 %v87
    %v379 = vunpack.c.l.b16 %v88
    %v380 = vunpack.c.h.b16 %v88
    %v381 = vunpack.c.l.b16 %v89
    %v382 = vunpack.c.h.b16 %v89
    %v383 = vunpack.c.l.b16 %v90
    %v384 = vunpack.c.h.b16 %v90
    %v385 = vunpack.c.l.b16 %v91
    %v386 = vunpack.c.h.b16 %v91
    %v387 = vunpack.c.l.b16 %v92
    %v388 = vunpack.c.h.b16 %v92
    %v389 = vunpack.c.l.b16 %v93
    %v390 = vunpack.c.h.b16 %v93
    %v391 = vunpack.c.l.b16 %v94
    %v392 = vunpack.c.h.b16 %v94
    %v393 = vunpack.c.l.b16 %v95
    %v394 = vunpack.c.h.b16 %v95
    %v395 = vunpack.c.l.b16 %v96
    %v396 = vunpack.c.h.b16 %v96
    %v397 = vunpack.c.l.b16 %v97
    %v398 = vunpack.c.h.b16 %v97
    %v399 = vunpack.c.l.b16 %v98
    %v400 = vunpack.c.h.b16 %v98
    %v401 = vunpack.c.l.b16 %v99
    %v402 = vunpack.c.h.b16 %v99
    %v403 = vunpack.c.l.b16 %v100
    %v404 = vunpack.c.h.b16 %v100
    %v405 = vunpack.c.l.b16 %v101
    %v406 = vunpack.c.h.b16 %v101
    %v407 = vunpack.c.l.b16 %v102
    %v408 = vunpack.c.h.b16 %v102
    %v409 = vunpack.c.l.b16 %v103
    %v410 = vunpack.c.h.b16 %v103
    %v411 = vunpack.c.l.b16 %v104
    %v412 = vunpack.c.h.b16 %v104
    %v413 = vunpack.c.l.b16 %v105
    %v414 = vunpack.c.h.b16 %v105
    %v415 = vunpack.c.l.b16 %v106
    %v416 = vunpack.c.h.b16 %v106
    %v417 = vunpack.c.l.b16 %v107
    %v418 = vunpack.c.h.b16 %v107
    %v419 = vunpack.c.l.b16 %v108
    %v420 = vunpack.c.h.b16 %v108
    %v421 = vunpack.c.l.b16 %v109
    %v422 = vunpack.c.h.b16 %v109
    %v423 = vunpack.c.l.b16 %v110
    %v424 = vunpack.c.h.b16 %v110
    %v425 = vunpack.c.l.b16 %v111
    %v426 = vunpack.c.h.b16 %v111
    %v427 = vunpack.c.l.b16 %v112
    %v428 = vunpack.c.h.b16 %v112
    %v429 = vunpack.c.l.b16 %v113
    %v430 = vunpack.c.h.b16 %v113
    %v431 = vunpack.c.l.b16 %v114
    %v432 = vunpack.c.h.b16 %v114
    %v433 = vunpack.c.l.b16 %v115
    %v434 = vunpack.c.h.b16 %v115
    %v435 = vunpack.c.l.b16 %v116
    %v436 = vunpack.c.h.b16 %v116
    %v437 = vunpack.c.l.b16 %v117
    %v438 = vunpack.c.h.b16 %v117
    %v439 = vunpack.c.l.b16 %v118
    %v440 = vunpack.c.h.b16 %v118
    %v441 = vunpack.c.l.b16 %v119
    %v442 = vunpack.c.h.b16 %v119
    %v443 = vunpack.c.l.b16 %v120
    %v444 = vunpack.c.h.b16 %v120
    %v445 = vunpack.c.l.b16 %v121
    %v446 = vunpack.c.h.b16 %v121
    %v447 = vunpack.c.l.b16 %v122
    %v448 = vunpack.c.h.b16 %v122
    %v449 = vunpack.c.l.b16 %v123
    %v450 = vunpack.c.h.b16 %v123
    %v451 = vunpack.c.l.b16 %v124
    %v452 = vunpack.c.h.b16 %v124
    %v453 = vunpack.c.l.b16 %v125
    %v454 = vunpack.c.h.b16 %v125
    %v455 = vunpack.c.l.b16 %v126
    %v456 = vunpack.c.h.b16 %v126
    %v457 = vunpack.c.l.b16 %v127
    %v458 = vunpack.c.h.b16 %v127
    %v459 = vunpack.c.l.b16 %v128
    %v460 = vunpack.c.h.b16 %v128
    %v461 = vunpack.c.l.b16 %v129
    %v462 = vunpack.c.h.b16 %v129
    %v463 = vunpack.c.l.b16 %v130
    %v464 = vunpack.c.h.b16 %v130
    %v465 = vunpack.c.l.b16 %v131
    %v466 = vunpack.c.h.b16 %v131
    %v467 = vunpack.c.l.b16 %v132
    %v468 = vunpack.c.h.b16 %v132
    %v469 = vunpack.c.l.b16 %v133
    %v470 = vunpack.c.h.b16 %v133
    %v471 = vunpack.c.l.b16 %v134
    %v472 = vunpack.c.h.b16 %v134
    %v473 = vunpack.c.l.b16 %v135
    %v474 = vunpack.c.h.b16 %v135
    %v475 = vunpack.c.l.b16 %v136
    %v476 = vunpack.c.h.b16 %v136
    %v477 = vunpack.c.l.b16 %v137
    %v478 = vunpack.c.h.b16 %v137
    %v479 = vunpack.c.l.b16 %v138
    %v480 = vunpack.c.h.b16 %v138
    %v481 = vunpack.c.l.b16 %v139
    %v482 = vunpack.c.h.b16 %v139
    %v483 = vunpack.c.l.b16 %v140
    %v484 = vunpack.c.h.b16 %v140
    %v485 = vunpack.c.l.b16 %v141
    %v486 = vunpack.c.h.b16 %v141
    %v487 = vunpack.c.l.b16 %v142
    %v488 = vunpack.c.h.b16 %v142
    %v489 = vunpack.c.l.b16 %v143
    %v490 = vunpack.c.h.b16 %v143
    %v491 = vunpack.c.l.b16 %v144
    %v492 = vunpack.c.h.b16 %v144
    %v493 = vunpack.c.l.b16 %v145
    %v494 = vunpack.c.h.b16 %v145
    %v495 = vunpack.c.l.b16 %v146
    %v496 = vunpack.c.h.b16 %v146
    %v497 = vunpack.c.l.b16 %v147
    %v498 = vunpack.c.h.b16 %v147
    %v499 = vunpack.c.l.b16 %v148
    %v500 = vunpack.c.h.b16 %v148
    %v501 = vunpack.c.l.b16 %v149
    %v502 = vunpack.c.h.b16 %v149
    %v503 = vunpack.c.l.b16 %v150
    %v504 = vunpack.c.h.b16 %v150
    %v505 = vunpack.c.l.b16 %v151
    %v506 = vunpack.c.h.b16 %v151
    %v507 = vunpack.c.l.b16 %v152
    %v508 = vunpack.c.h.b16 %v152
    %v509 = vunpack.c.l.b16 %v153
    %v510 = vunpack.c.h.b16 %v153
    %v511 = vunpack.c.l.b16 %v154
    %v512 = vunpack.c.h.b16 %v154
    %v513 = vunpack.c.l.b16 %v155
    %v514 = vunpack.c.h.b16 %v155
    %v515 = vunpack.c.l.b16 %v156
    %v516 = vunpack.c.h.b16 %v156
    %v517 = vpack.c.b16 %v357, %v349
    %v518 = vpack.c.b16 %v358, %v350
    %v519 = vpack.c.b16 %v359, %v351
    %v520 = vpack.c.b16 %v360, %v352
    %v521 = vpack.c.b16 %v361, %v353
    %v522 = vpack.c.b16 %v362, %v354
    %v523 = vpack.c.b16 %v363, %v355
    %v524 = vpack.c.b16 %v364, %v356
    %v525 = vpack.c.b16 %v373, %v365
    %v526 = vpack.c.b16 %v374, %v366
    %v527 = vpack.c.b16 %v375, %v367
    %v528 = vpack.c.b16 %v376, %v368
    %v529 = vpack.c.b16 %v377, %v369
    %v530 = vpack.c.b16 %v378, %v370
    %v531 = vpack.c.b16 %v379, %v371
    %v532 = vpack.c.b16 %v380, %v372
    %v533 = vpack.c.b16 %v389, %v381
    %v534 = vpack.c.b16 %v390, %v382
    %v535 = vpack.c.b16 %v391, %v383
    %v536 = vpack.c.b16 %v392, %v384
    %v537 = vpack.c.b16 %v393, %v385
    %v538 = vpack.c.b16 %v394, %v386
    %v539 = vpack.c.b16 %v395, %v387
    %v540 = vpack.c.b16 %v396, %v388
    %v541 = vpack.c.b16 %v405, %v397
    %v542 = vpack.c.b16 %v406, %v398
    %v543 = vpack.c.b16 %v407, %v399
    %v544 = vpack.c.b16 %v408, %v400
    %v545 = vpack.c.b16 %v409, %v401
    %v546 = vpack.c.b16 %v410, %v402
    %v547 = vpack.c.b16 %v411, %v403
    %v548 = vpack.c.b16 %v412, %v404
    %v549 = vpack.c.b16 %v421, %v413
    %v550 = vpack.c.b16 %v422, %v414
    %v551 = vpack.c.b16 %v423, %v415
    %v552 = vpack.c.b16 %v424, %v416
    %v553 = vpack.c.b16 %v425, %v417
    %v554 = vpack.c.b16 %v426, %v418
    %v555 = vpack.c.b16 %v427, %v419
    %v556 = vpack.c.b16 %v428, %v420
    %v557 = vpack.c.b16 %v437, %v429
    %v558 = vpack.c.b16 %v438, %v430
    %v559 = vpack.c.b16 %v439, %v431
    %v560 = vpack.c.b16 %v440, %v432
    %v561 = vpack.c.b16 %v441, %v433
    %v562 = vpack.c.b16 %v442, %v434
    %v563 = vpack.c.b16 %v443, %v435
    %v564 = vpack.c.b16 %v444, %v436
    %v565 = vpack.c.b16 %v453, %v445
    %v566 = vpack.c.b16 %v454, %v446
    %v567 = vpack.c.b16 %v455, %v447
    %v568 = vpack.c.b16 %v456, %v448
    %v569 = vpack.c.b16 %v457, %v449
    %v570 = vpack.c.b16 %v458, %v450
    %v571 = vpack.c.b16 %v459, %v451
    %v572 = vpack.c.b16 %v460, %v452
    %v573 = vpack.c.b16 %v469, %v461
    %v574 = vpack.c.b16 %v470, %v462
    %v575 = vpack.c.b16 %v471, %v463
    %v576 = vpack.c.b16 %v472, %v464
    %v577 = vpack.c.b16 %v473, %v465
    %v578 = vpack.c.b16 %v474, %v466
    %v579 = vpack.c.b16 %v475, %v467
    %v580 = vpack.c.b16 %v476, %v468
    %v581 = vpack.c.b16 %v485, %v477
    %v582 = vpack.c.b16 %v486, %v478
    %v583 = vpack.c.b16 %v487, %v479
    %v584 = vpack.c.b16 %v488, %v480
    %v585 = vpack.c.b16 %v489, %v481
    %v586 = vpack.c.b16 %v490, %v482
    %v587 = vpack.c.b16 %v491, %v483
    %v588 = vpack.c.b16 %v492, %v484
    %v589 = vpack.c.b16 %v501, %v493
    %v590 = vpack.c.b16 %v502, %v494
    %v591 = vpack.c.b16 %v503, %v495
    %v592 = vpack.c.b16 %v504, %v496
    %v593 = vpack.c.b16 %v505, %v497
    %v594 = vpack.c.b16 %v506, %v498
    %v595 = vpack.c.b16 %v507, %v499
    %v596 = vpack.c.b16 %v508, %v500
    %v597 = vpack.c.b16 %v509, %v509
    %v598 = vpack.c.b16 %v510, %v510
    %v599 = vpack.c.b16 %v511, %v511
    %v600 = vpack.c.b16 %v512, %v512
    %v601 = vpack.c.b16 %v513, %v513
    %v602 = vpack.c.b16 %v514, %v514
    %v603 = vpack.c.b16 %v515, %v515
    %v604 = vpack.c.b16 %v516, %v516
    %vm685 = vcmask 326656
    %v687 = vsel %vm685, %v230, 0
    %v690 = vsel %vm685, %v232, 0
    %v693 = vsel %vm685, %v234, 0
    %v696 = vsel %vm685, %v236, 0
    %v699 = vsel %vm685, %v238, 0
    %v702 = vsel %vm685, %v240, 0
    %v705 = vsel %vm685, %v242, 0
    %v708 = vsel %vm685, %v244, 0
    %v711 = vsel %vm685, %v246, 0
    %v714 = vsel %vm685, %v248, 0
    %v717 = vsel %vm685, %v250, 0
    %v720 = vsel %vm685, %v252, 0
    %vm722 = vcmask 1043456
    %v724 = vsel %vm722, %v597, 0
    %v727 = vsel %vm722, %v598, 0
    %v730 = vsel %vm722, %v599, 0
    %v733 = vsel %vm722, %v600, 0
    %v736 = vsel %vm722, %v601, 0
    %v739 = vsel %vm722, %v602, 0
    %v742 = vsel %vm722, %v603, 0
    %v745 = vsel %vm722, %v604, 0
    %747 = vmatpush.bf16.msra.mxu0 %v573
    %748 = vmatpush.bf16.msra.mxu0 %v565
    %749 = vmatpush.bf16.msra.mxu0 %v557
    %750 = vmatpush.bf16.msra.mxu0 %v549
    %751 = vmatpush.bf16.msra.mxu0 %v541
    %752 = vmatpush.bf16.msra.mxu0 %v533
    %753 = vmatpush.bf16.msra.mxu0 %v525
    %754 = vmatpush.bf16.msra.mxu0 %v517
    %755 = vmatmul.bf16.gmra.mxu0 %v229
    %v756 = vpop.f32.mrf.mxu0
    %v757 = vadd.f32 0.0, %v756
    %v758 = vpop.f32.mrf.mxu0
    %v759 = vadd.f32 0.0, %v758
    %760 = vmatmul.bf16.gmra.mxu0 %v231
    %v761 = vpop.f32.mrf.mxu0
    %v762 = vadd.f32 0.0, %v761
    %v763 = vpop.f32.mrf.mxu0
    %v764 = vadd.f32 0.0, %v763
    %765 = vmatmul.bf16.gmra.mxu0 %v233
    %v766 = vpop.f32.mrf.mxu0
    %v767 = vadd.f32 0.0, %v766
    %v768 = vpop.f32.mrf.mxu0
    %v769 = vadd.f32 0.0, %v768
    %770 = vmatmul.bf16.gmra.mxu0 %v235
    %v771 = vpop.f32.mrf.mxu0
    %v772 = vadd.f32 0.0, %v771
    %v773 = vpop.f32.mrf.mxu0
    %v774 = vadd.f32 0.0, %v773
    %775 = vmatmul.bf16.gmra.mxu0 %v237
    %v776 = vpop.f32.mrf.mxu0
    %v777 = vadd.f32 0.0, %v776
    %v778 = vpop.f32.mrf.mxu0
    %v779 = vadd.f32 0.0, %v778
    %780 = vmatmul.bf16.gmra.mxu0 %v239
    %v781 = vpop.f32.mrf.mxu0
    %v782 = vadd.f32 0.0, %v781
    %v783 = vpop.f32.mrf.mxu0
    %v784 = vadd.f32 0.0, %v783
    %785 = vmatmul.bf16.gmra.mxu0 %v241
    %v786 = vpop.f32.mrf.mxu0
    %v787 = vadd.f32 0.0, %v786
    %v788 = vpop.f32.mrf.mxu0
    %v789 = vadd.f32 0.0, %v788
    %790 = vmatmul.bf16.gmra.mxu0 %v243
    %v791 = vpop.f32.mrf.mxu0
    %v792 = vadd.f32 0.0, %v791
    %v793 = vpop.f32.mrf.mxu0
    %v794 = vadd.f32 0.0, %v793
    %795 = vmatmul.bf16.gmra.mxu0 %v245
    %v796 = vpop.f32.mrf.mxu0
    %v797 = vadd.f32 0.0, %v796
    %v798 = vpop.f32.mrf.mxu0
    %v799 = vadd.f32 0.0, %v798
    %800 = vmatmul.bf16.gmra.mxu0 %v247
    %v801 = vpop.f32.mrf.mxu0
    %v802 = vadd.f32 0.0, %v801
    %v803 = vpop.f32.mrf.mxu0
    %v804 = vadd.f32 0.0, %v803
    %805 = vmatmul.bf16.gmra.mxu0 %v249
    %v806 = vpop.f32.mrf.mxu0
    %v807 = vadd.f32 0.0, %v806
    %v808 = vpop.f32.mrf.mxu0
    %v809 = vadd.f32 0.0, %v808
    %810 = vmatmul.bf16.gmra.mxu0 %v251
    %v811 = vpop.f32.mrf.mxu0
    %v812 = vadd.f32 0.0, %v811
    %v813 = vpop.f32.mrf.mxu0
    %v814 = vadd.f32 0.0, %v813
    %815 = vdwg.mxu0
    %816 = vmatpush.bf16.msra.mxu0 0
    %817 = vmatpush.bf16.msra.mxu0 0
    %818 = vmatpush.bf16.msra.mxu0 0
    %819 = vmatpush.bf16.msra.mxu0 0
    %820 = vmatpush.bf16.msra.mxu0 0
    %821 = vmatpush.bf16.msra.mxu0 %v724
    %822 = vmatpush.bf16.msra.mxu0 %v589
    %823 = vmatpush.bf16.msra.mxu0 %v581
    %824 = vmatmul.bf16.gmra.mxu0 %v687
    %v825 = vpop.f32.mrf.mxu0
    %v826 = vadd.f32 %v757, %v825
    %v827 = vpop.f32.mrf.mxu0
    %v828 = vadd.f32 %v759, %v827
    %829 = vmatmul.bf16.gmra.mxu0 %v690
    %v830 = vpop.f32.mrf.mxu0
    %v831 = vadd.f32 %v762, %v830
    %v832 = vpop.f32.mrf.mxu0
    %v833 = vadd.f32 %v764, %v832
    %834 = vmatmul.bf16.gmra.mxu0 %v693
    %v835 = vpop.f32.mrf.mxu0
    %v836 = vadd.f32 %v767, %v835
    %v837 = vpop.f32.mrf.mxu0
    %v838 = vadd.f32 %v769, %v837
    %839 = vmatmul.bf16.gmra.mxu0 %v696
    %v840 = vpop.f32.mrf.mxu0
    %v841 = vadd.f32 %v772, %v840
    %v842 = vpop.f32.mrf.mxu0
    %v843 = vadd.f32 %v774, %v842
    %844 = vmatmul.bf16.gmra.mxu0 %v699
    %v845 = vpop.f32.mrf.mxu0
    %v846 = vadd.f32 %v777, %v845
    %v847 = vpop.f32.mrf.mxu0
    %v848 = vadd.f32 %v779, %v847
    %849 = vmatmul.bf16.gmra.mxu0 %v702
    %v850 = vpop.f32.mrf.mxu0
    %v851 = vadd.f32 %v782, %v850
    %v852 = vpop.f32.mrf.mxu0
    %v853 = vadd.f32 %v784, %v852
    %854 = vmatmul.bf16.gmra.mxu0 %v705
    %v855 = vpop.f32.mrf.mxu0
    %v856 = vadd.f32 %v787, %v855
    %v857 = vpop.f32.mrf.mxu0
    %v858 = vadd.f32 %v789, %v857
    %859 = vmatmul.bf16.gmra.mxu0 %v708
    %v860 = vpop.f32.mrf.mxu0
    %v861 = vadd.f32 %v792, %v860
    %v862 = vpop.f32.mrf.mxu0
    %v863 = vadd.f32 %v794, %v862
    %864 = vmatmul.bf16.gmra.mxu0 %v711
    %v865 = vpop.f32.mrf.mxu0
    %v866 = vadd.f32 %v797, %v865
    %v867 = vpop.f32.mrf.mxu0
    %v868 = vadd.f32 %v799, %v867
    %869 = vmatmul.bf16.gmra.mxu0 %v714
    %v870 = vpop.f32.mrf.mxu0
    %v871 = vadd.f32 %v802, %v870
    %v872 = vpop.f32.mrf.mxu0
    %v873 = vadd.f32 %v804, %v872
    %874 = vmatmul.bf16.gmra.mxu0 %v717
    %v875 = vpop.f32.mrf.mxu0
    %v876 = vadd.f32 %v807, %v875
    %v877 = vpop.f32.mrf.mxu0
    %v878 = vadd.f32 %v809, %v877
    %879 = vmatmul.bf16.gmra.mxu0 %v720
    %v880 = vpop.f32.mrf.mxu0
    %v881 = vadd.f32 %v812, %v880
    %v882 = vpop.f32.mrf.mxu0
    %v883 = vadd.f32 %v814, %v882
    %884 = vdwg.mxu0
    %885 = vmatpush.bf16.msra.mxu0 %v574
    %886 = vmatpush.bf16.msra.mxu0 %v566
    %887 = vmatpush.bf16.msra.mxu0 %v558
    %888 = vmatpush.bf16.msra.mxu0 %v550
    %889 = vmatpush.bf16.msra.mxu0 %v542
    %890 = vmatpush.bf16.msra.mxu0 %v534
    %891 = vmatpush.bf16.msra.mxu0 %v526
    %892 = vmatpush.bf16.msra.mxu0 %v518
    %893 = vmatmul.bf16.gmra.mxu0 %v229
    %v894 = vpop.f32.mrf.mxu0
    %v895 = vadd.f32 0.0, %v894
    %v896 = vpop.f32.mrf.mxu0
    %v897 = vadd.f32 0.0, %v896
    %898 = vmatmul.bf16.gmra.mxu0 %v231
    %v899 = vpop.f32.mrf.mxu0
    %v900 = vadd.f32 0.0, %v899
    %v901 = vpop.f32.mrf.mxu0
    %v902 = vadd.f32 0.0, %v901
    %903 = vmatmul.bf16.gmra.mxu0 %v233
    %v904 = vpop.f32.mrf.mxu0
    %v905 = vadd.f32 0.0, %v904
    %v906 = vpop.f32.mrf.mxu0
    %v907 = vadd.f32 0.0, %v906
    %908 = vmatmul.bf16.gmra.mxu0 %v235
    %v909 = vpop.f32.mrf.mxu0
    %v910 = vadd.f32 0.0, %v909
    %v911 = vpop.f32.mrf.mxu0
    %v912 = vadd.f32 0.0, %v911
    %913 = vmatmul.bf16.gmra.mxu0 %v237
    %v914 = vpop.f32.mrf.mxu0
    %v915 = vadd.f32 0.0, %v914
    %v916 = vpop.f32.mrf.mxu0
    %v917 = vadd.f32 0.0, %v916
    %918 = vmatmul.bf16.gmra.mxu0 %v239
    %v919 = vpop.f32.mrf.mxu0
    %v920 = vadd.f32 0.0, %v919
    %v921 = vpop.f32.mrf.mxu0
    %v922 = vadd.f32 0.0, %v921
    %923 = vmatmul.bf16.gmra.mxu0 %v241
    %v924 = vpop.f32.mrf.mxu0
    %v925 = vadd.f32 0.0, %v924
    %v926 = vpop.f32.mrf.mxu0
    %v927 = vadd.f32 0.0, %v926
    %928 = vmatmul.bf16.gmra.mxu0 %v243
    %v929 = vpop.f32.mrf.mxu0
    %v930 = vadd.f32 0.0, %v929
    %v931 = vpop.f32.mrf.mxu0
    %v932 = vadd.f32 0.0, %v931
    %933 = vmatmul.bf16.gmra.mxu0 %v245
    %v934 = vpop.f32.mrf.mxu0
    %v935 = vadd.f32 0.0, %v934
    %v936 = vpop.f32.mrf.mxu0
    %v937 = vadd.f32 0.0, %v936
    %938 = vmatmul.bf16.gmra.mxu0 %v247
    %v939 = vpop.f32.mrf.mxu0
    %v940 = vadd.f32 0.0, %v939
    %v941 = vpop.f32.mrf.mxu0
    %v942 = vadd.f32 0.0, %v941
    %943 = vmatmul.bf16.gmra.mxu0 %v249
    %v944 = vpop.f32.mrf.mxu0
    %v945 = vadd.f32 0.0, %v944
    %v946 = vpop.f32.mrf.mxu0
    %v947 = vadd.f32 0.0, %v946
    %948 = vmatmul.bf16.gmra.mxu0 %v251
    %v949 = vpop.f32.mrf.mxu0
    %v950 = vadd.f32 0.0, %v949
    %v951 = vpop.f32.mrf.mxu0
    %v952 = vadd.f32 0.0, %v951
    %953 = vdwg.mxu0
    %954 = vmatpush.bf16.msra.mxu0 0
    %955 = vmatpush.bf16.msra.mxu0 0
    %956 = vmatpush.bf16.msra.mxu0 0
    %957 = vmatpush.bf16.msra.mxu0 0
    %958 = vmatpush.bf16.msra.mxu0 0
    %959 = vmatpush.bf16.msra.mxu0 %v727
    %960 = vmatpush.bf16.msra.mxu0 %v590
    %961 = vmatpush.bf16.msra.mxu0 %v582
    %962 = vmatmul.bf16.gmra.mxu0 %v687
    %v963 = vpop.f32.mrf.mxu0
    %v964 = vadd.f32 %v895, %v963
    %v965 = vpop.f32.mrf.mxu0
    %v966 = vadd.f32 %v897, %v965
    %967 = vmatmul.bf16.gmra.mxu0 %v690
    %v968 = vpop.f32.mrf.mxu0
    %v969 = vadd.f32 %v900, %v968
    %v970 = vpop.f32.mrf.mxu0
    %v971 = vadd.f32 %v902, %v970
    %972 = vmatmul.bf16.gmra.mxu0 %v693
    %v973 = vpop.f32.mrf.mxu0
    %v974 = vadd.f32 %v905, %v973
    %v975 = vpop.f32.mrf.mxu0
    %v976 = vadd.f32 %v907, %v975
    %977 = vmatmul.bf16.gmra.mxu0 %v696
    %v978 = vpop.f32.mrf.mxu0
    %v979 = vadd.f32 %v910, %v978
    %v980 = vpop.f32.mrf.mxu0
    %v981 = vadd.f32 %v912, %v980
    %982 = vmatmul.bf16.gmra.mxu0 %v699
    %v983 = vpop.f32.mrf.mxu0
    %v984 = vadd.f32 %v915, %v983
    %v985 = vpop.f32.mrf.mxu0
    %v986 = vadd.f32 %v917, %v985
    %987 = vmatmul.bf16.gmra.mxu0 %v702
    %v988 = vpop.f32.mrf.mxu0
    %v989 = vadd.f32 %v920, %v988
    %v990 = vpop.f32.mrf.mxu0
    %v991 = vadd.f32 %v922, %v990
    %992 = vmatmul.bf16.gmra.mxu0 %v705
    %v993 = vpop.f32.mrf.mxu0
    %v994 = vadd.f32 %v925, %v993
    %v995 = vpop.f32.mrf.mxu0
    %v996 = vadd.f32 %v927, %v995
    %997 = vmatmul.bf16.gmra.mxu0 %v708
    %v998 = vpop.f32.mrf.mxu0
    %v999 = vadd.f32 %v930, %v998
    %v1000 = vpop.f32.mrf.mxu0
    %v1001 = vadd.f32 %v932, %v1000
    %1002 = vmatmul.bf16.gmra.mxu0 %v711
    %v1003 = vpop.f32.mrf.mxu0
    %v1004 = vadd.f32 %v935, %v1003
    %v1005 = vpop.f32.mrf.mxu0
    %v1006 = vadd.f32 %v937, %v1005
    %1007 = vmatmul.bf16.gmra.mxu0 %v714
    %v1008 = vpop.f32.mrf.mxu0
    %v1009 = vadd.f32 %v940, %v1008
    %v1010 = vpop.f32.mrf.mxu0
    %v1011 = vadd.f32 %v942, %v1010
    %1012 = vmatmul.bf16.gmra.mxu0 %v717
    %v1013 = vpop.f32.mrf.mxu0
    %v1014 = vadd.f32 %v945, %v1013
    %v1015 = vpop.f32.mrf.mxu0
    %v1016 = vadd.f32 %v947, %v1015
    %1017 = vmatmul.bf16.gmra.mxu0 %v720
    %v1018 = vpop.f32.mrf.mxu0
    %v1019 = vadd.f32 %v950, %v1018
    %v1020 = vpop.f32.mrf.mxu0
    %v1021 = vadd.f32 %v952, %v1020
    %1022 = vdwg.mxu0
    %1023 = vmatpush.bf16.msra.mxu0 %v575
    %1024 = vmatpush.bf16.msra.mxu0 %v567
    %1025 = vmatpush.bf16.msra.mxu0 %v559
    %1026 = vmatpush.bf16.msra.mxu0 %v551
    %1027 = vmatpush.bf16.msra.mxu0 %v543
    %1028 = vmatpush.bf16.msra.mxu0 %v535
    %1029 = vmatpush.bf16.msra.mxu0 %v527
    %1030 = vmatpush.bf16.msra.mxu0 %v519
    %1031 = vmatmul.bf16.gmra.mxu0 %v229
    %v1032 = vpop.f32.mrf.mxu0
    %v1033 = vadd.f32 0.0, %v1032
    %v1034 = vpop.f32.mrf.mxu0
    %v1035 = vadd.f32 0.0, %v1034
    %1036 = vmatmul.bf16.gmra.mxu0 %v231
    %v1037 = vpop.f32.mrf.mxu0
    %v1038 = vadd.f32 0.0, %v1037
    %v1039 = vpop.f32.mrf.mxu0
    %v1040 = vadd.f32 0.0, %v1039
    %1041 = vmatmul.bf16.gmra.mxu0 %v233
    %v1042 = vpop.f32.mrf.mxu0
    %v1043 = vadd.f32 0.0, %v1042
    %v1044 = vpop.f32.mrf.mxu0
    %v1045 = vadd.f32 0.0, %v1044
    %1046 = vmatmul.bf16.gmra.mxu0 %v235
    %v1047 = vpop.f32.mrf.mxu0
    %v1048 = vadd.f32 0.0, %v1047
    %v1049 = vpop.f32.mrf.mxu0
    %v1050 = vadd.f32 0.0, %v1049
    %1051 = vmatmul.bf16.gmra.mxu0 %v237
    %v1052 = vpop.f32.mrf.mxu0
    %v1053 = vadd.f32 0.0, %v1052
    %v1054 = vpop.f32.mrf.mxu0
    %v1055 = vadd.f32 0.0, %v1054
    %1056 = vmatmul.bf16.gmra.mxu0 %v239
    %v1057 = vpop.f32.mrf.mxu0
    %v1058 = vadd.f32 0.0, %v1057
    %v1059 = vpop.f32.mrf.mxu0
    %v1060 = vadd.f32 0.0, %v1059
    %1061 = vmatmul.bf16.gmra.mxu0 %v241
    %v1062 = vpop.f32.mrf.mxu0
    %v1063 = vadd.f32 0.0, %v1062
    %v1064 = vpop.f32.mrf.mxu0
    %v1065 = vadd.f32 0.0, %v1064
    %1066 = vmatmul.bf16.gmra.mxu0 %v243
    %v1067 = vpop.f32.mrf.mxu0
    %v1068 = vadd.f32 0.0, %v1067
    %v1069 = vpop.f32.mrf.mxu0
    %v1070 = vadd.f32 0.0, %v1069
    %1071 = vmatmul.bf16.gmra.mxu0 %v245
    %v1072 = vpop.f32.mrf.mxu0
    %v1073 = vadd.f32 0.0, %v1072
    %v1074 = vpop.f32.mrf.mxu0
    %v1075 = vadd.f32 0.0, %v1074
    %1076 = vmatmul.bf16.gmra.mxu0 %v247
    %v1077 = vpop.f32.mrf.mxu0
    %v1078 = vadd.f32 0.0, %v1077
    %v1079 = vpop.f32.mrf.mxu0
    %v1080 = vadd.f32 0.0, %v1079
    %1081 = vmatmul.bf16.gmra.mxu0 %v249
    %v1082 = vpop.f32.mrf.mxu0
    %v1083 = vadd.f32 0.0, %v1082
    %v1084 = vpop.f32.mrf.mxu0
    %v1085 = vadd.f32 0.0, %v1084
    %1086 = vmatmul.bf16.gmra.mxu0 %v251
    %v1087 = vpop.f32.mrf.mxu0
    %v1088 = vadd.f32 0.0, %v1087
    %v1089 = vpop.f32.mrf.mxu0
    %v1090 = vadd.f32 0.0, %v1089
    %1091 = vdwg.mxu0
    %1092 = vmatpush.bf16.msra.mxu0 0
    %1093 = vmatpush.bf16.msra.mxu0 0
    %1094 = vmatpush.bf16.msra.mxu0 0
    %1095 = vmatpush.bf16.msra.mxu0 0
    %1096 = vmatpush.bf16.msra.mxu0 0
    %1097 = vmatpush.bf16.msra.mxu0 %v730
    %1098 = vmatpush.bf16.msra.mxu0 %v591
    %1099 = vmatpush.bf16.msra.mxu0 %v583
    %1100 = vmatmul.bf16.gmra.mxu0 %v687
    %v1101 = vpop.f32.mrf.mxu0
    %v1102 = vadd.f32 %v1033, %v1101
    %v1103 = vpop.f32.mrf.mxu0
    %v1104 = vadd.f32 %v1035, %v1103
    %1105 = vmatmul.bf16.gmra.mxu0 %v690
    %v1106 = vpop.f32.mrf.mxu0
    %v1107 = vadd.f32 %v1038, %v1106
    %v1108 = vpop.f32.mrf.mxu0
    %v1109 = vadd.f32 %v1040, %v1108
    %1110 = vmatmul.bf16.gmra.mxu0 %v693
    %v1111 = vpop.f32.mrf.mxu0
    %v1112 = vadd.f32 %v1043, %v1111
    %v1113 = vpop.f32.mrf.mxu0
    %v1114 = vadd.f32 %v1045, %v1113
    %1115 = vmatmul.bf16.gmra.mxu0 %v696
    %v1116 = vpop.f32.mrf.mxu0
    %v1117 = vadd.f32 %v1048, %v1116
    %v1118 = vpop.f32.mrf.mxu0
    %v1119 = vadd.f32 %v1050, %v1118
    %1120 = vmatmul.bf16.gmra.mxu0 %v699
    %v1121 = vpop.f32.mrf.mxu0
    %v1122 = vadd.f32 %v1053, %v1121
    %v1123 = vpop.f32.mrf.mxu0
    %v1124 = vadd.f32 %v1055, %v1123
    %1125 = vmatmul.bf16.gmra.mxu0 %v702
    %v1126 = vpop.f32.mrf.mxu0
    %v1127 = vadd.f32 %v1058, %v1126
    %v1128 = vpop.f32.mrf.mxu0
    %v1129 = vadd.f32 %v1060, %v1128
    %1130 = vmatmul.bf16.gmra.mxu0 %v705
    %v1131 = vpop.f32.mrf.mxu0
    %v1132 = vadd.f32 %v1063, %v1131
    %v1133 = vpop.f32.mrf.mxu0
    %v1134 = vadd.f32 %v1065, %v1133
    %1135 = vmatmul.bf16.gmra.mxu0 %v708
    %v1136 = vpop.f32.mrf.mxu0
    %v1137 = vadd.f32 %v1068, %v1136
    %v1138 = vpop.f32.mrf.mxu0
    %v1139 = vadd.f32 %v1070, %v1138
    %1140 = vmatmul.bf16.gmra.mxu0 %v711
    %v1141 = vpop.f32.mrf.mxu0
    %v1142 = vadd.f32 %v1073, %v1141
    %v1143 = vpop.f32.mrf.mxu0
    %v1144 = vadd.f32 %v1075, %v1143
    %1145 = vmatmul.bf16.gmra.mxu0 %v714
    %v1146 = vpop.f32.mrf.mxu0
    %v1147 = vadd.f32 %v1078, %v1146
    %v1148 = vpop.f32.mrf.mxu0
    %v1149 = vadd.f32 %v1080, %v1148
    %1150 = vmatmul.bf16.gmra.mxu0 %v717
    %v1151 = vpop.f32.mrf.mxu0
    %v1152 = vadd.f32 %v1083, %v1151
    %v1153 = vpop.f32.mrf.mxu0
    %v1154 = vadd.f32 %v1085, %v1153
    %1155 = vmatmul.bf16.gmra.mxu0 %v720
    %v1156 = vpop.f32.mrf.mxu0
    %v1157 = vadd.f32 %v1088, %v1156
    %v1158 = vpop.f32.mrf.mxu0
    %v1159 = vadd.f32 %v1090, %v1158
    %1160 = vdwg.mxu0
    %1161 = vmatpush.bf16.msra.mxu0 %v576
    %1162 = vmatpush.bf16.msra.mxu0 %v568
    %1163 = vmatpush.bf16.msra.mxu0 %v560
    %1164 = vmatpush.bf16.msra.mxu0 %v552
    %1165 = vmatpush.bf16.msra.mxu0 %v544
    %1166 = vmatpush.bf16.msra.mxu0 %v536
    %1167 = vmatpush.bf16.msra.mxu0 %v528
    %1168 = vmatpush.bf16.msra.mxu0 %v520
    %1169 = vmatmul.bf16.gmra.mxu0 %v229
    %v1170 = vpop.f32.mrf.mxu0
    %v1171 = vadd.f32 0.0, %v1170
    %v1172 = vpop.f32.mrf.mxu0
    %v1173 = vadd.f32 0.0, %v1172
    %1174 = vmatmul.bf16.gmra.mxu0 %v231
    %v1175 = vpop.f32.mrf.mxu0
    %v1176 = vadd.f32 0.0, %v1175
    %v1177 = vpop.f32.mrf.mxu0
    %v1178 = vadd.f32 0.0, %v1177
    %1179 = vmatmul.bf16.gmra.mxu0 %v233
    %v1180 = vpop.f32.mrf.mxu0
    %v1181 = vadd.f32 0.0, %v1180
    %v1182 = vpop.f32.mrf.mxu0
    %v1183 = vadd.f32 0.0, %v1182
    %1184 = vmatmul.bf16.gmra.mxu0 %v235
    %v1185 = vpop.f32.mrf.mxu0
    %v1186 = vadd.f32 0.0, %v1185
    %v1187 = vpop.f32.mrf.mxu0
    %v1188 = vadd.f32 0.0, %v1187
    %1189 = vmatmul.bf16.gmra.mxu0 %v237
    %v1190 = vpop.f32.mrf.mxu0
    %v1191 = vadd.f32 0.0, %v1190
    %v1192 = vpop.f32.mrf.mxu0
    %v1193 = vadd.f32 0.0, %v1192
    %1194 = vmatmul.bf16.gmra.mxu0 %v239
    %v1195 = vpop.f32.mrf.mxu0
    %v1196 = vadd.f32 0.0, %v1195
    %v1197 = vpop.f32.mrf.mxu0
    %v1198 = vadd.f32 0.0, %v1197
    %1199 = vmatmul.bf16.gmra.mxu0 %v241
    %v1200 = vpop.f32.mrf.mxu0
    %v1201 = vadd.f32 0.0, %v1200
    %v1202 = vpop.f32.mrf.mxu0
    %v1203 = vadd.f32 0.0, %v1202
    %1204 = vmatmul.bf16.gmra.mxu0 %v243
    %v1205 = vpop.f32.mrf.mxu0
    %v1206 = vadd.f32 0.0, %v1205
    %v1207 = vpop.f32.mrf.mxu0
    %v1208 = vadd.f32 0.0, %v1207
    %1209 = vmatmul.bf16.gmra.mxu0 %v245
    %v1210 = vpop.f32.mrf.mxu0
    %v1211 = vadd.f32 0.0, %v1210
    %v1212 = vpop.f32.mrf.mxu0
    %v1213 = vadd.f32 0.0, %v1212
    %1214 = vmatmul.bf16.gmra.mxu0 %v247
    %v1215 = vpop.f32.mrf.mxu0
    %v1216 = vadd.f32 0.0, %v1215
    %v1217 = vpop.f32.mrf.mxu0
    %v1218 = vadd.f32 0.0, %v1217
    %1219 = vmatmul.bf16.gmra.mxu0 %v249
    %v1220 = vpop.f32.mrf.mxu0
    %v1221 = vadd.f32 0.0, %v1220
    %v1222 = vpop.f32.mrf.mxu0
    %v1223 = vadd.f32 0.0, %v1222
    %1224 = vmatmul.bf16.gmra.mxu0 %v251
    %v1225 = vpop.f32.mrf.mxu0
    %v1226 = vadd.f32 0.0, %v1225
    %v1227 = vpop.f32.mrf.mxu0
    %v1228 = vadd.f32 0.0, %v1227
    %1229 = vdwg.mxu0
    %1230 = vmatpush.bf16.msra.mxu0 0
    %1231 = vmatpush.bf16.msra.mxu0 0
    %1232 = vmatpush.bf16.msra.mxu0 0
    %1233 = vmatpush.bf16.msra.mxu0 0
    %1234 = vmatpush.bf16.msra.mxu0 0
    %1235 = vmatpush.bf16.msra.mxu0 %v733
    %1236 = vmatpush.bf16.msra.mxu0 %v592
    %1237 = vmatpush.bf16.msra.mxu0 %v584
    %1238 = vmatmul.bf16.gmra.mxu0 %v687
    %v1239 = vpop.f32.mrf.mxu0
    %v1240 = vadd.f32 %v1171, %v1239
    %v1241 = vpop.f32.mrf.mxu0
    %v1242 = vadd.f32 %v1173, %v1241
    %1243 = vmatmul.bf16.gmra.mxu0 %v690
    %v1244 = vpop.f32.mrf.mxu0
    %v1245 = vadd.f32 %v1176, %v1244
    %v1246 = vpop.f32.mrf.mxu0
    %v1247 = vadd.f32 %v1178, %v1246
    %1248 = vmatmul.bf16.gmra.mxu0 %v693
    %v1249 = vpop.f32.mrf.mxu0
    %v1250 = vadd.f32 %v1181, %v1249
    %v1251 = vpop.f32.mrf.mxu0
    %v1252 = vadd.f32 %v1183, %v1251
    %1253 = vmatmul.bf16.gmra.mxu0 %v696
    %v1254 = vpop.f32.mrf.mxu0
    %v1255 = vadd.f32 %v1186, %v1254
    %v1256 = vpop.f32.mrf.mxu0
    %v1257 = vadd.f32 %v1188, %v1256
    %1258 = vmatmul.bf16.gmra.mxu0 %v699
    %v1259 = vpop.f32.mrf.mxu0
    %v1260 = vadd.f32 %v1191, %v1259
    %v1261 = vpop.f32.mrf.mxu0
    %v1262 = vadd.f32 %v1193, %v1261
    %1263 = vmatmul.bf16.gmra.mxu0 %v702
    %v1264 = vpop.f32.mrf.mxu0
    %v1265 = vadd.f32 %v1196, %v1264
    %v1266 = vpop.f32.mrf.mxu0
    %v1267 = vadd.f32 %v1198, %v1266
    %1268 = vmatmul.bf16.gmra.mxu0 %v705
    %v1269 = vpop.f32.mrf.mxu0
    %v1270 = vadd.f32 %v1201, %v1269
    %v1271 = vpop.f32.mrf.mxu0
    %v1272 = vadd.f32 %v1203, %v1271
    %1273 = vmatmul.bf16.gmra.mxu0 %v708
    %v1274 = vpop.f32.mrf.mxu0
    %v1275 = vadd.f32 %v1206, %v1274
    %v1276 = vpop.f32.mrf.mxu0
    %v1277 = vadd.f32 %v1208, %v1276
    %1278 = vmatmul.bf16.gmra.mxu0 %v711
    %v1279 = vpop.f32.mrf.mxu0
    %v1280 = vadd.f32 %v1211, %v1279
    %v1281 = vpop.f32.mrf.mxu0
    %v1282 = vadd.f32 %v1213, %v1281
    %1283 = vmatmul.bf16.gmra.mxu0 %v714
    %v1284 = vpop.f32.mrf.mxu0
    %v1285 = vadd.f32 %v1216, %v1284
    %v1286 = vpop.f32.mrf.mxu0
    %v1287 = vadd.f32 %v1218, %v1286
    %1288 = vmatmul.bf16.gmra.mxu0 %v717
    %v1289 = vpop.f32.mrf.mxu0
    %v1290 = vadd.f32 %v1221, %v1289
    %v1291 = vpop.f32.mrf.mxu0
    %v1292 = vadd.f32 %v1223, %v1291
    %1293 = vmatmul.bf16.gmra.mxu0 %v720
    %v1294 = vpop.f32.mrf.mxu0
    %v1295 = vadd.f32 %v1226, %v1294
    %v1296 = vpop.f32.mrf.mxu0
    %v1297 = vadd.f32 %v1228, %v1296
    %1298 = vdwg.mxu0
    %1299 = vmatpush.bf16.msra.mxu0 %v577
    %1300 = vmatpush.bf16.msra.mxu0 %v569
    %1301 = vmatpush.bf16.msra.mxu0 %v561
    %1302 = vmatpush.bf16.msra.mxu0 %v553
    %1303 = vmatpush.bf16.msra.mxu0 %v545
    %1304 = vmatpush.bf16.msra.mxu0 %v537
    %1305 = vmatpush.bf16.msra.mxu0 %v529
    %1306 = vmatpush.bf16.msra.mxu0 %v521
    %1307 = vmatmul.bf16.gmra.mxu0 %v229
    %v1308 = vpop.f32.mrf.mxu0
    %v1309 = vadd.f32 0.0, %v1308
    %v1310 = vpop.f32.mrf.mxu0
    %v1311 = vadd.f32 0.0, %v1310
    %1312 = vmatmul.bf16.gmra.mxu0 %v231
    %v1313 = vpop.f32.mrf.mxu0
    %v1314 = vadd.f32 0.0, %v1313
    %v1315 = vpop.f32.mrf.mxu0
    %v1316 = vadd.f32 0.0, %v1315
    %1317 = vmatmul.bf16.gmra.mxu0 %v233
    %v1318 = vpop.f32.mrf.mxu0
    %v1319 = vadd.f32 0.0, %v1318
    %v1320 = vpop.f32.mrf.mxu0
    %v1321 = vadd.f32 0.0, %v1320
    %1322 = vmatmul.bf16.gmra.mxu0 %v235
    %v1323 = vpop.f32.mrf.mxu0
    %v1324 = vadd.f32 0.0, %v1323
    %v1325 = vpop.f32.mrf.mxu0
    %v1326 = vadd.f32 0.0, %v1325
    %1327 = vmatmul.bf16.gmra.mxu0 %v237
    %v1328 = vpop.f32.mrf.mxu0
    %v1329 = vadd.f32 0.0, %v1328
    %v1330 = vpop.f32.mrf.mxu0
    %v1331 = vadd.f32 0.0, %v1330
    %1332 = vmatmul.bf16.gmra.mxu0 %v239
    %v1333 = vpop.f32.mrf.mxu0
    %v1334 = vadd.f32 0.0, %v1333
    %v1335 = vpop.f32.mrf.mxu0
    %v1336 = vadd.f32 0.0, %v1335
    %1337 = vmatmul.bf16.gmra.mxu0 %v241
    %v1338 = vpop.f32.mrf.mxu0
    %v1339 = vadd.f32 0.0, %v1338
    %v1340 = vpop.f32.mrf.mxu0
    %v1341 = vadd.f32 0.0, %v1340
    %1342 = vmatmul.bf16.gmra.mxu0 %v243
    %v1343 = vpop.f32.mrf.mxu0
    %v1344 = vadd.f32 0.0, %v1343
    %v1345 = vpop.f32.mrf.mxu0
    %v1346 = vadd.f32 0.0, %v1345
    %1347 = vmatmul.bf16.gmra.mxu0 %v245
    %v1348 = vpop.f32.mrf.mxu0
    %v1349 = vadd.f32 0.0, %v1348
    %v1350 = vpop.f32.mrf.mxu0
    %v1351 = vadd.f32 0.0, %v1350
    %1352 = vmatmul.bf16.gmra.mxu0 %v247
    %v1353 = vpop.f32.mrf.mxu0
    %v1354 = vadd.f32 0.0, %v1353
    %v1355 = vpop.f32.mrf.mxu0
    %v1356 = vadd.f32 0.0, %v1355
    %1357 = vmatmul.bf16.gmra.mxu0 %v249
    %v1358 = vpop.f32.mrf.mxu0
    %v1359 = vadd.f32 0.0, %v1358
    %v1360 = vpop.f32.mrf.mxu0
    %v1361 = vadd.f32 0.0, %v1360
    %1362 = vmatmul.bf16.gmra.mxu0 %v251
    %v1363 = vpop.f32.mrf.mxu0
    %v1364 = vadd.f32 0.0, %v1363
    %v1365 = vpop.f32.mrf.mxu0
    %v1366 = vadd.f32 0.0, %v1365
    %1367 = vdwg.mxu0
    %1368 = vmatpush.bf16.msra.mxu0 0
    %1369 = vmatpush.bf16.msra.mxu0 0
    %1370 = vmatpush.bf16.msra.mxu0 0
    %1371 = vmatpush.bf16.msra.mxu0 0
    %1372 = vmatpush.bf16.msra.mxu0 0
    %1373 = vmatpush.bf16.msra.mxu0 %v736
    %1374 = vmatpush.bf16.msra.mxu0 %v593
    %1375 = vmatpush.bf16.msra.mxu0 %v585
    %1376 = vmatmul.bf16.gmra.mxu0 %v687
    %v1377 = vpop.f32.mrf.mxu0
    %v1378 = vadd.f32 %v1309, %v1377
    %v1379 = vpop.f32.mrf.mxu0
    %v1380 = vadd.f32 %v1311, %v1379
    %1381 = vmatmul.bf16.gmra.mxu0 %v690
    %v1382 = vpop.f32.mrf.mxu0
    %v1383 = vadd.f32 %v1314, %v1382
    %v1384 = vpop.f32.mrf.mxu0
    %v1385 = vadd.f32 %v1316, %v1384
    %1386 = vmatmul.bf16.gmra.mxu0 %v693
    %v1387 = vpop.f32.mrf.mxu0
    %v1388 = vadd.f32 %v1319, %v1387
    %v1389 = vpop.f32.mrf.mxu0
    %v1390 = vadd.f32 %v1321, %v1389
    %1391 = vmatmul.bf16.gmra.mxu0 %v696
    %v1392 = vpop.f32.mrf.mxu0
    %v1393 = vadd.f32 %v1324, %v1392
    %v1394 = vpop.f32.mrf.mxu0
    %v1395 = vadd.f32 %v1326, %v1394
    %1396 = vmatmul.bf16.gmra.mxu0 %v699
    %v1397 = vpop.f32.mrf.mxu0
    %v1398 = vadd.f32 %v1329, %v1397
    %v1399 = vpop.f32.mrf.mxu0
    %v1400 = vadd.f32 %v1331, %v1399
    %1401 = vmatmul.bf16.gmra.mxu0 %v702
    %v1402 = vpop.f32.mrf.mxu0
    %v1403 = vadd.f32 %v1334, %v1402
    %v1404 = vpop.f32.mrf.mxu0
    %v1405 = vadd.f32 %v1336, %v1404
    %1406 = vmatmul.bf16.gmra.mxu0 %v705
    %v1407 = vpop.f32.mrf.mxu0
    %v1408 = vadd.f32 %v1339, %v1407
    %v1409 = vpop.f32.mrf.mxu0
    %v1410 = vadd.f32 %v1341, %v1409
    %1411 = vmatmul.bf16.gmra.mxu0 %v708
    %v1412 = vpop.f32.mrf.mxu0
    %v1413 = vadd.f32 %v1344, %v1412
    %v1414 = vpop.f32.mrf.mxu0
    %v1415 = vadd.f32 %v1346, %v1414
    %1416 = vmatmul.bf16.gmra.mxu0 %v711
    %v1417 = vpop.f32.mrf.mxu0
    %v1418 = vadd.f32 %v1349, %v1417
    %v1419 = vpop.f32.mrf.mxu0
    %v1420 = vadd.f32 %v1351, %v1419
    %1421 = vmatmul.bf16.gmra.mxu0 %v714
    %v1422 = vpop.f32.mrf.mxu0
    %v1423 = vadd.f32 %v1354, %v1422
    %v1424 = vpop.f32.mrf.mxu0
    %v1425 = vadd.f32 %v1356, %v1424
    %1426 = vmatmul.bf16.gmra.mxu0 %v717
    %v1427 = vpop.f32.mrf.mxu0
    %v1428 = vadd.f32 %v1359, %v1427
    %v1429 = vpop.f32.mrf.mxu0
    %v1430 = vadd.f32 %v1361, %v1429
    %1431 = vmatmul.bf16.gmra.mxu0 %v720
    %v1432 = vpop.f32.mrf.mxu0
    %v1433 = vadd.f32 %v1364, %v1432
    %v1434 = vpop.f32.mrf.mxu0
    %v1435 = vadd.f32 %v1366, %v1434
    %1436 = vdwg.mxu0
    %1437 = vmatpush.bf16.msra.mxu0 %v578
    %1438 = vmatpush.bf16.msra.mxu0 %v570
    %1439 = vmatpush.bf16.msra.mxu0 %v562
    %1440 = vmatpush.bf16.msra.mxu0 %v554
    %1441 = vmatpush.bf16.msra.mxu0 %v546
    %1442 = vmatpush.bf16.msra.mxu0 %v538
    %1443 = vmatpush.bf16.msra.mxu0 %v530
    %1444 = vmatpush.bf16.msra.mxu0 %v522
    %1445 = vmatmul.bf16.gmra.mxu0 %v229
    %v1446 = vpop.f32.mrf.mxu0
    %v1447 = vadd.f32 0.0, %v1446
    %v1448 = vpop.f32.mrf.mxu0
    %v1449 = vadd.f32 0.0, %v1448
    %1450 = vmatmul.bf16.gmra.mxu0 %v231
    %v1451 = vpop.f32.mrf.mxu0
    %v1452 = vadd.f32 0.0, %v1451
    %v1453 = vpop.f32.mrf.mxu0
    %v1454 = vadd.f32 0.0, %v1453
    %1455 = vmatmul.bf16.gmra.mxu0 %v233
    %v1456 = vpop.f32.mrf.mxu0
    %v1457 = vadd.f32 0.0, %v1456
    %v1458 = vpop.f32.mrf.mxu0
    %v1459 = vadd.f32 0.0, %v1458
    %1460 = vmatmul.bf16.gmra.mxu0 %v235
    %v1461 = vpop.f32.mrf.mxu0
    %v1462 = vadd.f32 0.0, %v1461
    %v1463 = vpop.f32.mrf.mxu0
    %v1464 = vadd.f32 0.0, %v1463
    %1465 = vmatmul.bf16.gmra.mxu0 %v237
    %v1466 = vpop.f32.mrf.mxu0
    %v1467 = vadd.f32 0.0, %v1466
    %v1468 = vpop.f32.mrf.mxu0
    %v1469 = vadd.f32 0.0, %v1468
    %1470 = vmatmul.bf16.gmra.mxu0 %v239
    %v1471 = vpop.f32.mrf.mxu0
    %v1472 = vadd.f32 0.0, %v1471
    %v1473 = vpop.f32.mrf.mxu0
    %v1474 = vadd.f32 0.0, %v1473
    %1475 = vmatmul.bf16.gmra.mxu0 %v241
    %v1476 = vpop.f32.mrf.mxu0
    %v1477 = vadd.f32 0.0, %v1476
    %v1478 = vpop.f32.mrf.mxu0
    %v1479 = vadd.f32 0.0, %v1478
    %1480 = vmatmul.bf16.gmra.mxu0 %v243
    %v1481 = vpop.f32.mrf.mxu0
    %v1482 = vadd.f32 0.0, %v1481
    %v1483 = vpop.f32.mrf.mxu0
    %v1484 = vadd.f32 0.0, %v1483
    %1485 = vmatmul.bf16.gmra.mxu0 %v245
    %v1486 = vpop.f32.mrf.mxu0
    %v1487 = vadd.f32 0.0, %v1486
    %v1488 = vpop.f32.mrf.mxu0
    %v1489 = vadd.f32 0.0, %v1488
    %1490 = vmatmul.bf16.gmra.mxu0 %v247
    %v1491 = vpop.f32.mrf.mxu0
    %v1492 = vadd.f32 0.0, %v1491
    %v1493 = vpop.f32.mrf.mxu0
    %v1494 = vadd.f32 0.0, %v1493
    %1495 = vmatmul.bf16.gmra.mxu0 %v249
    %v1496 = vpop.f32.mrf.mxu0
    %v1497 = vadd.f32 0.0, %v1496
    %v1498 = vpop.f32.mrf.mxu0
    %v1499 = vadd.f32 0.0, %v1498
    %1500 = vmatmul.bf16.gmra.mxu0 %v251
    %v1501 = vpop.f32.mrf.mxu0
    %v1502 = vadd.f32 0.0, %v1501
    %v1503 = vpop.f32.mrf.mxu0
    %v1504 = vadd.f32 0.0, %v1503
    %1505 = vdwg.mxu0
    %1506 = vmatpush.bf16.msra.mxu0 0
    %1507 = vmatpush.bf16.msra.mxu0 0
    %1508 = vmatpush.bf16.msra.mxu0 0
    %1509 = vmatpush.bf16.msra.mxu0 0
    %1510 = vmatpush.bf16.msra.mxu0 0
    %1511 = vmatpush.bf16.msra.mxu0 %v739
    %1512 = vmatpush.bf16.msra.mxu0 %v594
    %1513 = vmatpush.bf16.msra.mxu0 %v586
    %1514 = vmatmul.bf16.gmra.mxu0 %v687
    %v1515 = vpop.f32.mrf.mxu0
    %v1516 = vadd.f32 %v1447, %v1515
    %v1517 = vpop.f32.mrf.mxu0
    %v1518 = vadd.f32 %v1449, %v1517
    %1519 = vmatmul.bf16.gmra.mxu0 %v690
    %v1520 = vpop.f32.mrf.mxu0
    %v1521 = vadd.f32 %v1452, %v1520
    %v1522 = vpop.f32.mrf.mxu0
    %v1523 = vadd.f32 %v1454, %v1522
    %1524 = vmatmul.bf16.gmra.mxu0 %v693
    %v1525 = vpop.f32.mrf.mxu0
    %v1526 = vadd.f32 %v1457, %v1525
    %v1527 = vpop.f32.mrf.mxu0
    %v1528 = vadd.f32 %v1459, %v1527
    %1529 = vmatmul.bf16.gmra.mxu0 %v696
    %v1530 = vpop.f32.mrf.mxu0
    %v1531 = vadd.f32 %v1462, %v1530
    %v1532 = vpop.f32.mrf.mxu0
    %v1533 = vadd.f32 %v1464, %v1532
    %1534 = vmatmul.bf16.gmra.mxu0 %v699
    %v1535 = vpop.f32.mrf.mxu0
    %v1536 = vadd.f32 %v1467, %v1535
    %v1537 = vpop.f32.mrf.mxu0
    %v1538 = vadd.f32 %v1469, %v1537
    %1539 = vmatmul.bf16.gmra.mxu0 %v702
    %v1540 = vpop.f32.mrf.mxu0
    %v1541 = vadd.f32 %v1472, %v1540
    %v1542 = vpop.f32.mrf.mxu0
    %v1543 = vadd.f32 %v1474, %v1542
    %1544 = vmatmul.bf16.gmra.mxu0 %v705
    %v1545 = vpop.f32.mrf.mxu0
    %v1546 = vadd.f32 %v1477, %v1545
    %v1547 = vpop.f32.mrf.mxu0
    %v1548 = vadd.f32 %v1479, %v1547
    %1549 = vmatmul.bf16.gmra.mxu0 %v708
    %v1550 = vpop.f32.mrf.mxu0
    %v1551 = vadd.f32 %v1482, %v1550
    %v1552 = vpop.f32.mrf.mxu0
    %v1553 = vadd.f32 %v1484, %v1552
    %1554 = vmatmul.bf16.gmra.mxu0 %v711
    %v1555 = vpop.f32.mrf.mxu0
    %v1556 = vadd.f32 %v1487, %v1555
    %v1557 = vpop.f32.mrf.mxu0
    %v1558 = vadd.f32 %v1489, %v1557
    %1559 = vmatmul.bf16.gmra.mxu0 %v714
    %v1560 = vpop.f32.mrf.mxu0
    %v1561 = vadd.f32 %v1492, %v1560
    %v1562 = vpop.f32.mrf.mxu0
    %v1563 = vadd.f32 %v1494, %v1562
    %1564 = vmatmul.bf16.gmra.mxu0 %v717
    %v1565 = vpop.f32.mrf.mxu0
    %v1566 = vadd.f32 %v1497, %v1565
    %v1567 = vpop.f32.mrf.mxu0
    %v1568 = vadd.f32 %v1499, %v1567
    %1569 = vmatmul.bf16.gmra.mxu0 %v720
    %v1570 = vpop.f32.mrf.mxu0
    %v1571 = vadd.f32 %v1502, %v1570
    %v1572 = vpop.f32.mrf.mxu0
    %v1573 = vadd.f32 %v1504, %v1572
    %1574 = vdwg.mxu0
    %1575 = vmatpush.bf16.msra.mxu0 %v579
    %1576 = vmatpush.bf16.msra.mxu0 %v571
    %1577 = vmatpush.bf16.msra.mxu0 %v563
    %1578 = vmatpush.bf16.msra.mxu0 %v555
    %1579 = vmatpush.bf16.msra.mxu0 %v547
    %1580 = vmatpush.bf16.msra.mxu0 %v539
    %1581 = vmatpush.bf16.msra.mxu0 %v531
    %1582 = vmatpush.bf16.msra.mxu0 %v523
    %1583 = vmatmul.bf16.gmra.mxu0 %v229
    %v1584 = vpop.f32.mrf.mxu0
    %v1585 = vadd.f32 0.0, %v1584
    %v1586 = vpop.f32.mrf.mxu0
    %v1587 = vadd.f32 0.0, %v1586
    %1588 = vmatmul.bf16.gmra.mxu0 %v231
    %v1589 = vpop.f32.mrf.mxu0
    %v1590 = vadd.f32 0.0, %v1589
    %v1591 = vpop.f32.mrf.mxu0
    %v1592 = vadd.f32 0.0, %v1591
    %1593 = vmatmul.bf16.gmra.mxu0 %v233
    %v1594 = vpop.f32.mrf.mxu0
    %v1595 = vadd.f32 0.0, %v1594
    %v1596 = vpop.f32.mrf.mxu0
    %v1597 = vadd.f32 0.0, %v1596
    %1598 = vmatmul.bf16.gmra.mxu0 %v235
    %v1599 = vpop.f32.mrf.mxu0
    %v1600 = vadd.f32 0.0, %v1599
    %v1601 = vpop.f32.mrf.mxu0
    %v1602 = vadd.f32 0.0, %v1601
    %1603 = vmatmul.bf16.gmra.mxu0 %v237
    %v1604 = vpop.f32.mrf.mxu0
    %v1605 = vadd.f32 0.0, %v1604
    %v1606 = vpop.f32.mrf.mxu0
    %v1607 = vadd.f32 0.0, %v1606
    %1608 = vmatmul.bf16.gmra.mxu0 %v239
    %v1609 = vpop.f32.mrf.mxu0
    %v1610 = vadd.f32 0.0, %v1609
    %v1611 = vpop.f32.mrf.mxu0
    %v1612 = vadd.f32 0.0, %v1611
    %1613 = vmatmul.bf16.gmra.mxu0 %v241
    %v1614 = vpop.f32.mrf.mxu0
    %v1615 = vadd.f32 0.0, %v1614
    %v1616 = vpop.f32.mrf.mxu0
    %v1617 = vadd.f32 0.0, %v1616
    %1618 = vmatmul.bf16.gmra.mxu0 %v243
    %v1619 = vpop.f32.mrf.mxu0
    %v1620 = vadd.f32 0.0, %v1619
    %v1621 = vpop.f32.mrf.mxu0
    %v1622 = vadd.f32 0.0, %v1621
    %1623 = vmatmul.bf16.gmra.mxu0 %v245
    %v1624 = vpop.f32.mrf.mxu0
    %v1625 = vadd.f32 0.0, %v1624
    %v1626 = vpop.f32.mrf.mxu0
    %v1627 = vadd.f32 0.0, %v1626
    %1628 = vmatmul.bf16.gmra.mxu0 %v247
    %v1629 = vpop.f32.mrf.mxu0
    %v1630 = vadd.f32 0.0, %v1629
    %v1631 = vpop.f32.mrf.mxu0
    %v1632 = vadd.f32 0.0, %v1631
    %1633 = vmatmul.bf16.gmra.mxu0 %v249
    %v1634 = vpop.f32.mrf.mxu0
    %v1635 = vadd.f32 0.0, %v1634
    %v1636 = vpop.f32.mrf.mxu0
    %v1637 = vadd.f32 0.0, %v1636
    %1638 = vmatmul.bf16.gmra.mxu0 %v251
    %v1639 = vpop.f32.mrf.mxu0
    %v1640 = vadd.f32 0.0, %v1639
    %v1641 = vpop.f32.mrf.mxu0
    %v1642 = vadd.f32 0.0, %v1641
    %1643 = vdwg.mxu0
    %1644 = vmatpush.bf16.msra.mxu0 0
    %1645 = vmatpush.bf16.msra.mxu0 0
    %1646 = vmatpush.bf16.msra.mxu0 0
    %1647 = vmatpush.bf16.msra.mxu0 0
    %1648 = vmatpush.bf16.msra.mxu0 0
    %1649 = vmatpush.bf16.msra.mxu0 %v742
    %1650 = vmatpush.bf16.msra.mxu0 %v595
    %1651 = vmatpush.bf16.msra.mxu0 %v587
    %1652 = vmatmul.bf16.gmra.mxu0 %v687
    %v1653 = vpop.f32.mrf.mxu0
    %v1654 = vadd.f32 %v1585, %v1653
    %v1655 = vpop.f32.mrf.mxu0
    %v1656 = vadd.f32 %v1587, %v1655
    %1657 = vmatmul.bf16.gmra.mxu0 %v690
    %v1658 = vpop.f32.mrf.mxu0
    %v1659 = vadd.f32 %v1590, %v1658
    %v1660 = vpop.f32.mrf.mxu0
    %v1661 = vadd.f32 %v1592, %v1660
    %1662 = vmatmul.bf16.gmra.mxu0 %v693
    %v1663 = vpop.f32.mrf.mxu0
    %v1664 = vadd.f32 %v1595, %v1663
    %v1665 = vpop.f32.mrf.mxu0
    %v1666 = vadd.f32 %v1597, %v1665
    %1667 = vmatmul.bf16.gmra.mxu0 %v696
    %v1668 = vpop.f32.mrf.mxu0
    %v1669 = vadd.f32 %v1600, %v1668
    %v1670 = vpop.f32.mrf.mxu0
    %v1671 = vadd.f32 %v1602, %v1670
    %1672 = vmatmul.bf16.gmra.mxu0 %v699
    %v1673 = vpop.f32.mrf.mxu0
    %v1674 = vadd.f32 %v1605, %v1673
    %v1675 = vpop.f32.mrf.mxu0
    %v1676 = vadd.f32 %v1607, %v1675
    %1677 = vmatmul.bf16.gmra.mxu0 %v702
    %v1678 = vpop.f32.mrf.mxu0
    %v1679 = vadd.f32 %v1610, %v1678
    %v1680 = vpop.f32.mrf.mxu0
    %v1681 = vadd.f32 %v1612, %v1680
    %1682 = vmatmul.bf16.gmra.mxu0 %v705
    %v1683 = vpop.f32.mrf.mxu0
    %v1684 = vadd.f32 %v1615, %v1683
    %v1685 = vpop.f32.mrf.mxu0
    %v1686 = vadd.f32 %v1617, %v1685
    %1687 = vmatmul.bf16.gmra.mxu0 %v708
    %v1688 = vpop.f32.mrf.mxu0
    %v1689 = vadd.f32 %v1620, %v1688
    %v1690 = vpop.f32.mrf.mxu0
    %v1691 = vadd.f32 %v1622, %v1690
    %1692 = vmatmul.bf16.gmra.mxu0 %v711
    %v1693 = vpop.f32.mrf.mxu0
    %v1694 = vadd.f32 %v1625, %v1693
    %v1695 = vpop.f32.mrf.mxu0
    %v1696 = vadd.f32 %v1627, %v1695
    %1697 = vmatmul.bf16.gmra.mxu0 %v714
    %v1698 = vpop.f32.mrf.mxu0
    %v1699 = vadd.f32 %v1630, %v1698
    %v1700 = vpop.f32.mrf.mxu0
    %v1701 = vadd.f32 %v1632, %v1700
    %1702 = vmatmul.bf16.gmra.mxu0 %v717
    %v1703 = vpop.f32.mrf.mxu0
    %v1704 = vadd.f32 %v1635, %v1703
    %v1705 = vpop.f32.mrf.mxu0
    %v1706 = vadd.f32 %v1637, %v1705
    %1707 = vmatmul.bf16.gmra.mxu0 %v720
    %v1708 = vpop.f32.mrf.mxu0
    %v1709 = vadd.f32 %v1640, %v1708
    %v1710 = vpop.f32.mrf.mxu0
    %v1711 = vadd.f32 %v1642, %v1710
    %1712 = vdwg.mxu0
    %1713 = vmatpush.bf16.msra.mxu0 %v580
    %1714 = vmatpush.bf16.msra.mxu0 %v572
    %1715 = vmatpush.bf16.msra.mxu0 %v564
    %1716 = vmatpush.bf16.msra.mxu0 %v556
    %1717 = vmatpush.bf16.msra.mxu0 %v548
    %1718 = vmatpush.bf16.msra.mxu0 %v540
    %1719 = vmatpush.bf16.msra.mxu0 %v532
    %1720 = vmatpush.bf16.msra.mxu0 %v524
    %1721 = vmatmul.bf16.gmra.mxu0 %v229
    %v1722 = vpop.f32.mrf.mxu0
    %v1723 = vadd.f32 0.0, %v1722
    %v1724 = vpop.f32.mrf.mxu0
    %v1725 = vadd.f32 0.0, %v1724
    %1726 = vmatmul.bf16.gmra.mxu0 %v231
    %v1727 = vpop.f32.mrf.mxu0
    %v1728 = vadd.f32 0.0, %v1727
    %v1729 = vpop.f32.mrf.mxu0
    %v1730 = vadd.f32 0.0, %v1729
    %1731 = vmatmul.bf16.gmra.mxu0 %v233
    %v1732 = vpop.f32.mrf.mxu0
    %v1733 = vadd.f32 0.0, %v1732
    %v1734 = vpop.f32.mrf.mxu0
    %v1735 = vadd.f32 0.0, %v1734
    %1736 = vmatmul.bf16.gmra.mxu0 %v235
    %v1737 = vpop.f32.mrf.mxu0
    %v1738 = vadd.f32 0.0, %v1737
    %v1739 = vpop.f32.mrf.mxu0
    %v1740 = vadd.f32 0.0, %v1739
    %1741 = vmatmul.bf16.gmra.mxu0 %v237
    %v1742 = vpop.f32.mrf.mxu0
    %v1743 = vadd.f32 0.0, %v1742
    %v1744 = vpop.f32.mrf.mxu0
    %v1745 = vadd.f32 0.0, %v1744
    %1746 = vmatmul.bf16.gmra.mxu0 %v239
    %v1747 = vpop.f32.mrf.mxu0
    %v1748 = vadd.f32 0.0, %v1747
    %v1749 = vpop.f32.mrf.mxu0
    %v1750 = vadd.f32 0.0, %v1749
    %1751 = vmatmul.bf16.gmra.mxu0 %v241
    %v1752 = vpop.f32.mrf.mxu0
    %v1753 = vadd.f32 0.0, %v1752
    %v1754 = vpop.f32.mrf.mxu0
    %v1755 = vadd.f32 0.0, %v1754
    %1756 = vmatmul.bf16.gmra.mxu0 %v243
    %v1757 = vpop.f32.mrf.mxu0
    %v1758 = vadd.f32 0.0, %v1757
    %v1759 = vpop.f32.mrf.mxu0
    %v1760 = vadd.f32 0.0, %v1759
    %1761 = vmatmul.bf16.gmra.mxu0 %v245
    %v1762 = vpop.f32.mrf.mxu0
    %v1763 = vadd.f32 0.0, %v1762
    %v1764 = vpop.f32.mrf.mxu0
    %v1765 = vadd.f32 0.0, %v1764
    %1766 = vmatmul.bf16.gmra.mxu0 %v247
    %v1767 = vpop.f32.mrf.mxu0
    %v1768 = vadd.f32 0.0, %v1767
    %v1769 = vpop.f32.mrf.mxu0
    %v1770 = vadd.f32 0.0, %v1769
    %1771 = vmatmul.bf16.gmra.mxu0 %v249
    %v1772 = vpop.f32.mrf.mxu0
    %v1773 = vadd.f32 0.0, %v1772
    %v1774 = vpop.f32.mrf.mxu0
    %v1775 = vadd.f32 0.0, %v1774
    %1776 = vmatmul.bf16.gmra.mxu0 %v251
    %v1777 = vpop.f32.mrf.mxu0
    %v1778 = vadd.f32 0.0, %v1777
    %v1779 = vpop.f32.mrf.mxu0
    %v1780 = vadd.f32 0.0, %v1779
    %1781 = vdwg.mxu0
    %1782 = vmatpush.bf16.msra.mxu0 0
    %1783 = vmatpush.bf16.msra.mxu0 0
    %1784 = vmatpush.bf16.msra.mxu0 0
    %1785 = vmatpush.bf16.msra.mxu0 0
    %1786 = vmatpush.bf16.msra.mxu0 0
    %1787 = vmatpush.bf16.msra.mxu0 %v745
    %1788 = vmatpush.bf16.msra.mxu0 %v596
    %1789 = vmatpush.bf16.msra.mxu0 %v588
    %1790 = vmatmul.bf16.gmra.mxu0 %v687
    %v1791 = vpop.f32.mrf.mxu0
    %v1792 = vadd.f32 %v1723, %v1791
    %v1793 = vpop.f32.mrf.mxu0
    %v1794 = vadd.f32 %v1725, %v1793
    %1795 = vmatmul.bf16.gmra.mxu0 %v690
    %v1796 = vpop.f32.mrf.mxu0
    %v1797 = vadd.f32 %v1728, %v1796
    %v1798 = vpop.f32.mrf.mxu0
    %v1799 = vadd.f32 %v1730, %v1798
    %1800 = vmatmul.bf16.gmra.mxu0 %v693
    %v1801 = vpop.f32.mrf.mxu0
    %v1802 = vadd.f32 %v1733, %v1801
    %v1803 = vpop.f32.mrf.mxu0
    %v1804 = vadd.f32 %v1735, %v1803
    %1805 = vmatmul.bf16.gmra.mxu0 %v696
    %v1806 = vpop.f32.mrf.mxu0
    %v1807 = vadd.f32 %v1738, %v1806
    %v1808 = vpop.f32.mrf.mxu0
    %v1809 = vadd.f32 %v1740, %v1808
    %1810 = vmatmul.bf16.gmra.mxu0 %v699
    %v1811 = vpop.f32.mrf.mxu0
    %v1812 = vadd.f32 %v1743, %v1811
    %v1813 = vpop.f32.mrf.mxu0
    %v1814 = vadd.f32 %v1745, %v1813
    %1815 = vmatmul.bf16.gmra.mxu0 %v702
    %v1816 = vpop.f32.mrf.mxu0
    %v1817 = vadd.f32 %v1748, %v1816
    %v1818 = vpop.f32.mrf.mxu0
    %v1819 = vadd.f32 %v1750, %v1818
    %1820 = vmatmul.bf16.gmra.mxu0 %v705
    %v1821 = vpop.f32.mrf.mxu0
    %v1822 = vadd.f32 %v1753, %v1821
    %v1823 = vpop.f32.mrf.mxu0
    %v1824 = vadd.f32 %v1755, %v1823
    %1825 = vmatmul.bf16.gmra.mxu0 %v708
    %v1826 = vpop.f32.mrf.mxu0
    %v1827 = vadd.f32 %v1758, %v1826
    %v1828 = vpop.f32.mrf.mxu0
    %v1829 = vadd.f32 %v1760, %v1828
    %1830 = vmatmul.bf16.gmra.mxu0 %v711
    %v1831 = vpop.f32.mrf.mxu0
    %v1832 = vadd.f32 %v1763, %v1831
    %v1833 = vpop.f32.mrf.mxu0
    %v1834 = vadd.f32 %v1765, %v1833
    %1835 = vmatmul.bf16.gmra.mxu0 %v714
    %v1836 = vpop.f32.mrf.mxu0
    %v1837 = vadd.f32 %v1768, %v1836
    %v1838 = vpop.f32.mrf.mxu0
    %v1839 = vadd.f32 %v1770, %v1838
    %1840 = vmatmul.bf16.gmra.mxu0 %v717
    %v1841 = vpop.f32.mrf.mxu0
    %v1842 = vadd.f32 %v1773, %v1841
    %v1843 = vpop.f32.mrf.mxu0
    %v1844 = vadd.f32 %v1775, %v1843
    %1845 = vmatmul.bf16.gmra.mxu0 %v720
    %v1846 = vpop.f32.mrf.mxu0
    %v1847 = vadd.f32 %v1778, %v1846
    %v1848 = vpop.f32.mrf.mxu0
    %v1849 = vadd.f32 %v1780, %v1848
    %1850 = vdwg.mxu0
    %v1851 = vmax.f32 %v826, %v1102
    %v1852 = vmax.f32 %v964, %v1240
    %v1853 = vmax.f32 %v828, %v1104
    %v1854 = vmax.f32 %v966, %v1242
    %v1855 = vmax.f32 %v831, %v1107
    %v1856 = vmax.f32 %v969, %v1245
    %v1857 = vmax.f32 %v833, %v1109
    %v1858 = vmax.f32 %v971, %v1247
    %v1859 = vmax.f32 %v836, %v1112
    %v1860 = vmax.f32 %v974, %v1250
    %v1861 = vmax.f32 %v838, %v1114
    %v1862 = vmax.f32 %v976, %v1252
    %v1863 = vmax.f32 %v841, %v1117
    %v1864 = vmax.f32 %v979, %v1255
    %v1865 = vmax.f32 %v843, %v1119
    %v1866 = vmax.f32 %v981, %v1257
    %v1867 = vmax.f32 %v846, %v1122
    %v1868 = vmax.f32 %v984, %v1260
    %v1869 = vmax.f32 %v848, %v1124
    %v1870 = vmax.f32 %v986, %v1262
    %v1871 = vmax.f32 %v851, %v1127
    %v1872 = vmax.f32 %v989, %v1265
    %v1873 = vmax.f32 %v853, %v1129
    %v1874 = vmax.f32 %v991, %v1267
    %v1875 = vmax.f32 %v856, %v1132
    %v1876 = vmax.f32 %v994, %v1270
    %v1877 = vmax.f32 %v858, %v1134
    %v1878 = vmax.f32 %v996, %v1272
    %v1879 = vmax.f32 %v861, %v1137
    %v1880 = vmax.f32 %v999, %v1275
    %v1881 = vmax.f32 %v863, %v1139
    %v1882 = vmax.f32 %v1001, %v1277
    %v1883 = vmax.f32 %v866, %v1142
    %v1884 = vmax.f32 %v1004, %v1280
    %v1885 = vmax.f32 %v868, %v1144
    %v1886 = vmax.f32 %v1006, %v1282
    %v1887 = vmax.f32 %v871, %v1147
    %v1888 = vmax.f32 %v1009, %v1285
    %v1889 = vmax.f32 %v873, %v1149
    %v1890 = vmax.f32 %v1011, %v1287
    %v1891 = vmax.f32 %v876, %v1152
    %v1892 = vmax.f32 %v1014, %v1290
    %v1893 = vmax.f32 %v878, %v1154
    %v1894 = vmax.f32 %v1016, %v1292
    %v1895 = vmax.f32 %v881, %v1157
    %v1896 = vmax.f32 %v1019, %v1295
    %v1897 = vmax.f32 %v883, %v1159
    %v1898 = vmax.f32 %v1021, %v1297
    %v1899 = vmax.f32 %v1378, %v1654
    %v1900 = vmax.f32 %v1516, %v1792
    %v1901 = vmax.f32 %v1380, %v1656
    %v1902 = vmax.f32 %v1518, %v1794
    %v1903 = vmax.f32 %v1383, %v1659
    %v1904 = vmax.f32 %v1521, %v1797
    %v1905 = vmax.f32 %v1385, %v1661
    %v1906 = vmax.f32 %v1523, %v1799
    %v1907 = vmax.f32 %v1388, %v1664
    %v1908 = vmax.f32 %v1526, %v1802
    %v1909 = vmax.f32 %v1390, %v1666
    %v1910 = vmax.f32 %v1528, %v1804
    %v1911 = vmax.f32 %v1393, %v1669
    %v1912 = vmax.f32 %v1531, %v1807
    %v1913 = vmax.f32 %v1395, %v1671
    %v1914 = vmax.f32 %v1533, %v1809
    %v1915 = vmax.f32 %v1398, %v1674
    %v1916 = vmax.f32 %v1536, %v1812
    %v1917 = vmax.f32 %v1400, %v1676
    %v1918 = vmax.f32 %v1538, %v1814
    %v1919 = vmax.f32 %v1403, %v1679
    %v1920 = vmax.f32 %v1541, %v1817
    %v1921 = vmax.f32 %v1405, %v1681
    %v1922 = vmax.f32 %v1543, %v1819
    %v1923 = vmax.f32 %v1408, %v1684
    %v1924 = vmax.f32 %v1546, %v1822
    %v1925 = vmax.f32 %v1410, %v1686
    %v1926 = vmax.f32 %v1548, %v1824
    %v1927 = vmax.f32 %v1413, %v1689
    %v1928 = vmax.f32 %v1551, %v1827
    %v1929 = vmax.f32 %v1415, %v1691
    %v1930 = vmax.f32 %v1553, %v1829
    %v1931 = vmax.f32 %v1418, %v1694
    %v1932 = vmax.f32 %v1556, %v1832
    %v1933 = vmax.f32 %v1420, %v1696
    %v1934 = vmax.f32 %v1558, %v1834
    %v1935 = vmax.f32 %v1423, %v1699
    %v1936 = vmax.f32 %v1561, %v1837
    %v1937 = vmax.f32 %v1425, %v1701
    %v1938 = vmax.f32 %v1563, %v1839
    %v1939 = vmax.f32 %v1428, %v1704
    %v1940 = vmax.f32 %v1566, %v1842
    %v1941 = vmax.f32 %v1430, %v1706
    %v1942 = vmax.f32 %v1568, %v1844
    %v1943 = vmax.f32 %v1433, %v1709
    %v1944 = vmax.f32 %v1571, %v1847
    %v1945 = vmax.f32 %v1435, %v1711
    %v1946 = vmax.f32 %v1573, %v1849
    %v1947 = vmax.f32 %v1851, %v1899
    %v1948 = vmax.f32 %v1852, %v1900
    %v1949 = vmax.f32 %v1853, %v1901
    %v1950 = vmax.f32 %v1854, %v1902
    %v1951 = vmax.f32 %v1855, %v1903
    %v1952 = vmax.f32 %v1856, %v1904
    %v1953 = vmax.f32 %v1857, %v1905
    %v1954 = vmax.f32 %v1858, %v1906
    %v1955 = vmax.f32 %v1859, %v1907
    %v1956 = vmax.f32 %v1860, %v1908
    %v1957 = vmax.f32 %v1861, %v1909
    %v1958 = vmax.f32 %v1862, %v1910
    %v1959 = vmax.f32 %v1863, %v1911
    %v1960 = vmax.f32 %v1864, %v1912
    %v1961 = vmax.f32 %v1865, %v1913
    %v1962 = vmax.f32 %v1866, %v1914
    %v1963 = vmax.f32 %v1867, %v1915
    %v1964 = vmax.f32 %v1868, %v1916
    %v1965 = vmax.f32 %v1869, %v1917
    %v1966 = vmax.f32 %v1870, %v1918
    %v1967 = vmax.f32 %v1871, %v1919
    %v1968 = vmax.f32 %v1872, %v1920
    %v1969 = vmax.f32 %v1873, %v1921
    %v1970 = vmax.f32 %v1874, %v1922
    %v1971 = vmax.f32 %v1875, %v1923
    %v1972 = vmax.f32 %v1876, %v1924
    %v1973 = vmax.f32 %v1877, %v1925
    %v1974 = vmax.f32 %v1878, %v1926
    %v1975 = vmax.f32 %v1879, %v1927
    %v1976 = vmax.f32 %v1880, %v1928
    %v1977 = vmax.f32 %v1881, %v1929
    %v1978 = vmax.f32 %v1882, %v1930
    %v1979 = vmax.f32 %v1883, %v1931
    %v1980 = vmax.f32 %v1884, %v1932
    %v1981 = vmax.f32 %v1885, %v1933
    %v1982 = vmax.f32 %v1886, %v1934
    %v1983 = vmax.f32 %v1887, %v1935
    %v1984 = vmax.f32 %v1888, %v1936
    %v1985 = vmax.f32 %v1889, %v1937
    %v1986 = vmax.f32 %v1890, %v1938
    %v1987 = vmax.f32 %v1891, %v1939
    %v1988 = vmax.f32 %v1892, %v1940
    %v1989 = vmax.f32 %v1893, %v1941
    %v1990 = vmax.f32 %v1894, %v1942
    %v1991 = vmax.f32 %v1895, %v1943
    %v1992 = vmax.f32 %v1896, %v1944
    %v1993 = vmax.f32 %v1897, %v1945
    %v1994 = vmax.f32 %v1898, %v1946
    %v1995 = vld [vmem:[%s2] sm:$0x3]
    %v1997 = vperm.slane %v1995, 0
    %v1998 = vperm.slane %v1995, 1
    %v2001 = vadd.f32 %v1947, %v1997
    %v2002 = vadd.f32 %v1948, %v1998
    %v2003 = vadd.f32 %v1949, %v1997
    %v2004 = vadd.f32 %v1950, %v1998
    %v2005 = vadd.f32 %v1951, %v1997
    %v2006 = vadd.f32 %v1952, %v1998
    %v2007 = vadd.f32 %v1953, %v1997
    %v2008 = vadd.f32 %v1954, %v1998
    %v2009 = vadd.f32 %v1955, %v1997
    %v2010 = vadd.f32 %v1956, %v1998
    %v2011 = vadd.f32 %v1957, %v1997
    %v2012 = vadd.f32 %v1958, %v1998
    %v2013 = vadd.f32 %v1959, %v1997
    %v2014 = vadd.f32 %v1960, %v1998
    %v2015 = vadd.f32 %v1961, %v1997
    %v2016 = vadd.f32 %v1962, %v1998
    %v2017 = vadd.f32 %v1963, %v1997
    %v2018 = vadd.f32 %v1964, %v1998
    %v2019 = vadd.f32 %v1965, %v1997
    %v2020 = vadd.f32 %v1966, %v1998
    %v2021 = vadd.f32 %v1967, %v1997
    %v2022 = vadd.f32 %v1968, %v1998
    %v2023 = vadd.f32 %v1969, %v1997
    %v2024 = vadd.f32 %v1970, %v1998
    %v2025 = vadd.f32 %v1971, %v1997
    %v2026 = vadd.f32 %v1972, %v1998
    %v2027 = vadd.f32 %v1973, %v1997
    %v2028 = vadd.f32 %v1974, %v1998
    %v2029 = vadd.f32 %v1975, %v1997
    %v2030 = vadd.f32 %v1976, %v1998
    %v2031 = vadd.f32 %v1977, %v1997
    %v2032 = vadd.f32 %v1978, %v1998
    %v2033 = vadd.f32 %v1979, %v1997
    %v2034 = vadd.f32 %v1980, %v1998
    %v2035 = vadd.f32 %v1981, %v1997
    %v2036 = vadd.f32 %v1982, %v1998
    %v2037 = vadd.f32 %v1983, %v1997
    %v2038 = vadd.f32 %v1984, %v1998
    %v2039 = vadd.f32 %v1985, %v1997
    %v2040 = vadd.f32 %v1986, %v1998
    %v2041 = vadd.f32 %v1987, %v1997
    %v2042 = vadd.f32 %v1988, %v1998
    %v2043 = vadd.f32 %v1989, %v1997
    %v2044 = vadd.f32 %v1990, %v1998
    %v2045 = vadd.f32 %v1991, %v1997
    %v2046 = vadd.f32 %v1992, %v1998
    %v2047 = vadd.f32 %v1993, %v1997
    %v2048 = vadd.f32 %v1994, %v1998
    %v2049 = vmax.f32 %v2001, 0.0
    %v2050 = vmax.f32 %v2002, 0.0
    %v2051 = vmax.f32 %v2003, 0.0
    %v2052 = vmax.f32 %v2004, 0.0
    %v2053 = vmax.f32 %v2005, 0.0
    %v2054 = vmax.f32 %v2006, 0.0
    %v2055 = vmax.f32 %v2007, 0.0
    %v2056 = vmax.f32 %v2008, 0.0
    %v2057 = vmax.f32 %v2009, 0.0
    %v2058 = vmax.f32 %v2010, 0.0
    %v2059 = vmax.f32 %v2011, 0.0
    %v2060 = vmax.f32 %v2012, 0.0
    %v2061 = vmax.f32 %v2013, 0.0
    %v2062 = vmax.f32 %v2014, 0.0
    %v2063 = vmax.f32 %v2015, 0.0
    %v2064 = vmax.f32 %v2016, 0.0
    %v2065 = vmax.f32 %v2017, 0.0
    %v2066 = vmax.f32 %v2018, 0.0
    %v2067 = vmax.f32 %v2019, 0.0
    %v2068 = vmax.f32 %v2020, 0.0
    %v2069 = vmax.f32 %v2021, 0.0
    %v2070 = vmax.f32 %v2022, 0.0
    %v2071 = vmax.f32 %v2023, 0.0
    %v2072 = vmax.f32 %v2024, 0.0
    %v2073 = vmax.f32 %v2025, 0.0
    %v2074 = vmax.f32 %v2026, 0.0
    %v2075 = vmax.f32 %v2027, 0.0
    %v2076 = vmax.f32 %v2028, 0.0
    %v2077 = vmax.f32 %v2029, 0.0
    %v2078 = vmax.f32 %v2030, 0.0
    %v2079 = vmax.f32 %v2031, 0.0
    %v2080 = vmax.f32 %v2032, 0.0
    %v2081 = vmax.f32 %v2033, 0.0
    %v2082 = vmax.f32 %v2034, 0.0
    %v2083 = vmax.f32 %v2035, 0.0
    %v2084 = vmax.f32 %v2036, 0.0
    %v2085 = vmax.f32 %v2037, 0.0
    %v2086 = vmax.f32 %v2038, 0.0
    %v2087 = vmax.f32 %v2039, 0.0
    %v2088 = vmax.f32 %v2040, 0.0
    %v2089 = vmax.f32 %v2041, 0.0
    %v2090 = vmax.f32 %v2042, 0.0
    %v2091 = vmax.f32 %v2043, 0.0
    %v2092 = vmax.f32 %v2044, 0.0
    %v2093 = vmax.f32 %v2045, 0.0
    %v2094 = vmax.f32 %v2046, 0.0
    %v2095 = vmax.f32 %v2047, 0.0
    %v2096 = vmax.f32 %v2048, 0.0
    %v2097 = vpack.c.bf16 %v2050, %v2049
    %v2098 = vpack.c.bf16 %v2052, %v2051
    %v2099 = vpack.c.bf16 %v2054, %v2053
    %v2100 = vpack.c.bf16 %v2056, %v2055
    %v2101 = vpack.c.bf16 %v2058, %v2057
    %v2102 = vpack.c.bf16 %v2060, %v2059
    %v2103 = vpack.c.bf16 %v2062, %v2061
    %v2104 = vpack.c.bf16 %v2064, %v2063
    %v2105 = vpack.c.bf16 %v2066, %v2065
    %v2106 = vpack.c.bf16 %v2068, %v2067
    %v2107 = vpack.c.bf16 %v2070, %v2069
    %v2108 = vpack.c.bf16 %v2072, %v2071
    %v2109 = vpack.c.bf16 %v2074, %v2073
    %v2110 = vpack.c.bf16 %v2076, %v2075
    %v2111 = vpack.c.bf16 %v2078, %v2077
    %v2112 = vpack.c.bf16 %v2080, %v2079
    %v2113 = vpack.c.bf16 %v2082, %v2081
    %v2114 = vpack.c.bf16 %v2084, %v2083
    %v2115 = vpack.c.bf16 %v2086, %v2085
    %v2116 = vpack.c.bf16 %v2088, %v2087
    %v2117 = vpack.c.bf16 %v2090, %v2089
    %v2118 = vpack.c.bf16 %v2092, %v2091
    %v2119 = vpack.c.bf16 %v2094, %v2093
    %v2120 = vpack.c.bf16 %v2096, %v2095
    %v2121 = vld [vmem:[%s3] sm:$0xff]
    %v2122 = vld [vmem:[%s3 + $0x8] sm:$0xff]
    %v2123 = vld [vmem:[%s3 + $0x10] sm:$0xff]
    %v2124 = vld [vmem:[%s3 + $0x18] sm:$0xff]
    %v2125 = vld [vmem:[%s3 + $0x20] sm:$0xff]
    %v2126 = vld [vmem:[%s3 + $0x28] sm:$0xff]
    %v2127 = vld [vmem:[%s3 + $0x30] sm:$0xff]
    %v2128 = vld [vmem:[%s3 + $0x38] sm:$0xff]
    %v2129 = vld [vmem:[%s3 + $0x40] sm:$0xff]
    %v2130 = vld [vmem:[%s3 + $0x48] sm:$0xff]
    %v2131 = vld [vmem:[%s3 + $0x50] sm:$0xff]
    %v2132 = vld [vmem:[%s3 + $0x58] sm:$0xff]
    %v2133 = vld [vmem:[%s3 + $0x60] sm:$0xff]
    %v2134 = vld [vmem:[%s3 + $0x68] sm:$0xff]
    %v2135 = vld [vmem:[%s3 + $0x70] sm:$0xff]
    %v2136 = vld [vmem:[%s3 + $0x78] sm:$0xff]
    %v2137 = vld [vmem:[%s3 + $0x80] sm:$0xff]
    %v2138 = vld [vmem:[%s3 + $0x88] sm:$0xff]
    %v2139 = vld [vmem:[%s3 + $0x90] sm:$0xff]
    %v2140 = vld [vmem:[%s3 + $0x98] sm:$0xff]
    %v2141 = vld [vmem:[%s3 + $0xa0] sm:$0xff]
    %v2142 = vld [vmem:[%s3 + $0xa8] sm:$0xff]
    %v2143 = vld [vmem:[%s3 + $0xb0] sm:$0xff]
    %v2144 = vld [vmem:[%s3 + $0xb8] sm:$0xff]
    %v2145 = vld [vmem:[%s3 + $0xc0] sm:$0xff]
    %v2146 = vld [vmem:[%s3 + $0xc8] sm:$0xff]
    %v2147 = vld [vmem:[%s3 + $0xd0] sm:$0xff]
    %v2148 = vld [vmem:[%s3 + $0xd8] sm:$0xff]
    %v2149 = vld [vmem:[%s3 + $0xe0] sm:$0xff]
    %v2150 = vld [vmem:[%s3 + $0xe8] sm:$0xff]
    %v2151 = vld [vmem:[%s3 + $0xf0] sm:$0xff]
    %v2152 = vld [vmem:[%s3 + $0xf8] sm:$0xff]
    %v2153 = vld [vmem:[%s3 + $0x100] sm:$0xff]
    %v2154 = vld [vmem:[%s3 + $0x108] sm:$0xff]
    %v2155 = vld [vmem:[%s3 + $0x110] sm:$0xff]
    %v2156 = vld [vmem:[%s3 + $0x118] sm:$0xff]
    %v2157 = vld [vmem:[%s3 + $0x120] sm:$0xff]
    %v2158 = vld [vmem:[%s3 + $0x128] sm:$0xff]
    %v2159 = vld [vmem:[%s3 + $0x130] sm:$0xff]
    %v2160 = vld [vmem:[%s3 + $0x138] sm:$0xff]
    %v2161 = vld [vmem:[%s3 + $0x140] sm:$0xff]
    %v2162 = vld [vmem:[%s3 + $0x148] sm:$0xff]
    %v2163 = vld [vmem:[%s3 + $0x150] sm:$0xff]
    %v2164 = vld [vmem:[%s3 + $0x158] sm:$0xff]
    %v2165 = vld [vmem:[%s3 + $0x160] sm:$0xff]
    %v2166 = vld [vmem:[%s3 + $0x168] sm:$0xff]
    %v2167 = vld [vmem:[%s3 + $0x170] sm:$0xff]
    %v2168 = vld [vmem:[%s3 + $0x178] sm:$0xff]
    %v2169 = vld [vmem:[%s3 + $0x180] sm:$0xff]
    %v2170 = vld [vmem:[%s3 + $0x188] sm:$0xff]
    %v2171 = vld [vmem:[%s3 + $0x190] sm:$0xff]
    %v2172 = vld [vmem:[%s3 + $0x198] sm:$0xff]
    %v2173 = vld [vmem:[%s3 + $0x1a0] sm:$0xff]
    %v2174 = vld [vmem:[%s3 + $0x1a8] sm:$0xff]
    %v2175 = vld [vmem:[%s3 + $0x1b0] sm:$0xff]
    %v2176 = vld [vmem:[%s3 + $0x1b8] sm:$0xff]
    %v2177 = vld [vmem:[%s3 + $0x1c0] sm:$0xff]
    %v2178 = vld [vmem:[%s3 + $0x1c8] sm:$0xff]
    %v2179 = vld [vmem:[%s3 + $0x1d0] sm:$0xff]
    %v2180 = vld [vmem:[%s3 + $0x1d8] sm:$0xff]
    %v2181 = vld [vmem:[%s3 + $0x1e0] sm:$0xff]
    %v2182 = vld [vmem:[%s3 + $0x1e8] sm:$0xff]
    %v2183 = vld [vmem:[%s3 + $0x1f0] sm:$0xff]
    %v2184 = vld [vmem:[%s3 + $0x1f8] sm:$0xff]
    %s2185 = scalar_lea.vmem %s3, 512
    %v2186 = vld [vmem:[%s2185] sm:$0xff]
    %v2187 = vld [vmem:[%s2185 + $0x8] sm:$0xff]
    %v2188 = vld [vmem:[%s2185 + $0x10] sm:$0xff]
    %v2189 = vld [vmem:[%s2185 + $0x18] sm:$0xff]
    %v2190 = vld [vmem:[%s2185 + $0x20] sm:$0xff]
    %v2191 = vld [vmem:[%s2185 + $0x28] sm:$0xff]
    %v2192 = vld [vmem:[%s2185 + $0x30] sm:$0xff]
    %v2193 = vld [vmem:[%s2185 + $0x38] sm:$0xff]
    %v2194 = vld [vmem:[%s2185 + $0x40] sm:$0xff]
    %v2195 = vld [vmem:[%s2185 + $0x48] sm:$0xff]
    %v2196 = vld [vmem:[%s2185 + $0x50] sm:$0xff]
    %v2197 = vld [vmem:[%s2185 + $0x58] sm:$0xff]
    %v2198 = vld [vmem:[%s2185 + $0x60] sm:$0xff]
    %v2199 = vld [vmem:[%s2185 + $0x68] sm:$0xff]
    %v2200 = vld [vmem:[%s2185 + $0x70] sm:$0xff]
    %v2201 = vld [vmem:[%s2185 + $0x78] sm:$0xff]
    %v2202 = vld [vmem:[%s2185 + $0x80] sm:$0xff]
    %v2203 = vld [vmem:[%s2185 + $0x88] sm:$0xff]
    %v2204 = vld [vmem:[%s2185 + $0x90] sm:$0xff]
    %v2205 = vld [vmem:[%s2185 + $0x98] sm:$0xff]
    %v2206 = vld [vmem:[%s2185 + $0xa0] sm:$0xff]
    %v2207 = vld [vmem:[%s2185 + $0xa8] sm:$0xff]
    %v2208 = vld [vmem:[%s2185 + $0xb0] sm:$0xff]
    %v2209 = vld [vmem:[%s2185 + $0xb8] sm:$0xff]
    %v2210 = vld [vmem:[%s2185 + $0xc0] sm:$0xff]
    %v2211 = vld [vmem:[%s2185 + $0xc8] sm:$0xff]
    %v2212 = vld [vmem:[%s2185 + $0xd0] sm:$0xff]
    %v2213 = vld [vmem:[%s2185 + $0xd8] sm:$0xff]
    %v2214 = vld [vmem:[%s2185 + $0xe0] sm:$0xff]
    %v2215 = vld [vmem:[%s2185 + $0xe8] sm:$0xff]
    %v2216 = vld [vmem:[%s2185 + $0xf0] sm:$0xff]
    %v2217 = vld [vmem:[%s2185 + $0xf8] sm:$0xff]
    %v2218 = vld [vmem:[%s2185 + $0x100] sm:$0xff]
    %v2219 = vld [vmem:[%s2185 + $0x108] sm:$0xff]
    %v2220 = vld [vmem:[%s2185 + $0x110] sm:$0xff]
    %v2221 = vld [vmem:[%s2185 + $0x118] sm:$0xff]
    %v2222 = vld [vmem:[%s2185 + $0x120] sm:$0xff]
    %v2223 = vld [vmem:[%s2185 + $0x128] sm:$0xff]
    %v2224 = vld [vmem:[%s2185 + $0x130] sm:$0xff]
    %v2225 = vld [vmem:[%s2185 + $0x138] sm:$0xff]
    %v2226 = vld [vmem:[%s2185 + $0x140] sm:$0xff]
    %v2227 = vld [vmem:[%s2185 + $0x148] sm:$0xff]
    %v2228 = vld [vmem:[%s2185 + $0x150] sm:$0xff]
    %v2229 = vld [vmem:[%s2185 + $0x158] sm:$0xff]
    %v2230 = vld [vmem:[%s2185 + $0x160] sm:$0xff]
    %v2231 = vld [vmem:[%s2185 + $0x168] sm:$0xff]
    %v2232 = vld [vmem:[%s2185 + $0x170] sm:$0xff]
    %v2233 = vld [vmem:[%s2185 + $0x178] sm:$0xff]
    %v2234 = vld [vmem:[%s2185 + $0x180] sm:$0xff]
    %v2235 = vld [vmem:[%s2185 + $0x188] sm:$0xff]
    %v2236 = vld [vmem:[%s2185 + $0x190] sm:$0xff]
    %v2237 = vld [vmem:[%s2185 + $0x198] sm:$0xff]
    %v2238 = vld [vmem:[%s2185 + $0x1a0] sm:$0xff]
    %v2239 = vld [vmem:[%s2185 + $0x1a8] sm:$0xff]
    %v2240 = vld [vmem:[%s2185 + $0x1b0] sm:$0xff]
    %v2241 = vld [vmem:[%s2185 + $0x1b8] sm:$0xff]
    %v2242 = vld [vmem:[%s2185 + $0x1c0] sm:$0xff]
    %v2243 = vld [vmem:[%s2185 + $0x1c8] sm:$0xff]
    %v2244 = vld [vmem:[%s2185 + $0x1d0] sm:$0xff]
    %v2245 = vld [vmem:[%s2185 + $0x1d8] sm:$0xff]
    %v2246 = vld [vmem:[%s2185 + $0x1e0] sm:$0xff]
    %v2247 = vld [vmem:[%s2185 + $0x1e8] sm:$0xff]
    %v2248 = vld [vmem:[%s2185 + $0x1f0] sm:$0xff]
    %v2249 = vld [vmem:[%s2185 + $0x1f8] sm:$0xff]
    %v2266 = vunpack.c.l.b16 %v2099
    %v2267 = vunpack.c.h.b16 %v2099
    %v2268 = vunpack.c.l.b16 %v2100
    %v2269 = vunpack.c.h.b16 %v2100
    %v2270 = vunpack.c.l.b16 %v2101
    %v2271 = vunpack.c.h.b16 %v2101
    %v2272 = vunpack.c.l.b16 %v2102
    %v2273 = vunpack.c.h.b16 %v2102
    %v2274 = vunpack.c.l.b16 %v2103
    %v2275 = vunpack.c.h.b16 %v2103
    %v2276 = vunpack.c.l.b16 %v2104
    %v2277 = vunpack.c.h.b16 %v2104
    %v2278 = vunpack.c.l.b16 %v2105
    %v2279 = vunpack.c.h.b16 %v2105
    %v2280 = vunpack.c.l.b16 %v2106
    %v2281 = vunpack.c.h.b16 %v2106
    %v2282 = vunpack.c.l.b16 %v2107
    %v2283 = vunpack.c.h.b16 %v2107
    %v2284 = vunpack.c.l.b16 %v2108
    %v2285 = vunpack.c.h.b16 %v2108
    %v2286 = vunpack.c.l.b16 %v2109
    %v2287 = vunpack.c.h.b16 %v2109
    %v2288 = vunpack.c.l.b16 %v2110
    %v2289 = vunpack.c.h.b16 %v2110
    %v2290 = vunpack.c.l.b16 %v2111
    %v2291 = vunpack.c.h.b16 %v2111
    %v2292 = vunpack.c.l.b16 %v2112
    %v2293 = vunpack.c.h.b16 %v2112
    %v2294 = vunpack.c.l.b16 %v2113
    %v2295 = vunpack.c.h.b16 %v2113
    %v2296 = vunpack.c.l.b16 %v2114
    %v2297 = vunpack.c.h.b16 %v2114
    %v2298 = vpack.c.b16 %v2268, %v2266
    %v2299 = vpack.c.b16 %v2269, %v2267
    %v2300 = vpack.c.b16 %v2272, %v2270
    %v2301 = vpack.c.b16 %v2273, %v2271
    %v2302 = vpack.c.b16 %v2276, %v2274
    %v2303 = vpack.c.b16 %v2277, %v2275
    %v2304 = vpack.c.b16 %v2280, %v2278
    %v2305 = vpack.c.b16 %v2281, %v2279
    %v2306 = vpack.c.b16 %v2284, %v2282
    %v2307 = vpack.c.b16 %v2285, %v2283
    %v2308 = vpack.c.b16 %v2288, %v2286
    %v2309 = vpack.c.b16 %v2289, %v2287
    %v2310 = vpack.c.b16 %v2292, %v2290
    %v2311 = vpack.c.b16 %v2293, %v2291
    %v2312 = vpack.c.b16 %v2296, %v2294
    %v2313 = vpack.c.b16 %v2297, %v2295
    %v2394 = vunpack.c.l.b16 %v2186
    %v2395 = vunpack.c.h.b16 %v2186
    %v2396 = vunpack.c.l.b16 %v2187
    %v2397 = vunpack.c.h.b16 %v2187
    %v2398 = vunpack.c.l.b16 %v2188
    %v2399 = vunpack.c.h.b16 %v2188
    %v2400 = vunpack.c.l.b16 %v2189
    %v2401 = vunpack.c.h.b16 %v2189
    %v2402 = vunpack.c.l.b16 %v2190
    %v2403 = vunpack.c.h.b16 %v2190
    %v2404 = vunpack.c.l.b16 %v2191
    %v2405 = vunpack.c.h.b16 %v2191
    %v2406 = vunpack.c.l.b16 %v2192
    %v2407 = vunpack.c.h.b16 %v2192
    %v2408 = vunpack.c.l.b16 %v2193
    %v2409 = vunpack.c.h.b16 %v2193
    %v2410 = vunpack.c.l.b16 %v2194
    %v2411 = vunpack.c.h.b16 %v2194
    %v2412 = vunpack.c.l.b16 %v2195
    %v2413 = vunpack.c.h.b16 %v2195
    %v2414 = vunpack.c.l.b16 %v2196
    %v2415 = vunpack.c.h.b16 %v2196
    %v2416 = vunpack.c.l.b16 %v2197
    %v2417 = vunpack.c.h.b16 %v2197
    %v2418 = vunpack.c.l.b16 %v2198
    %v2419 = vunpack.c.h.b16 %v2198
    %v2420 = vunpack.c.l.b16 %v2199
    %v2421 = vunpack.c.h.b16 %v2199
    %v2422 = vunpack.c.l.b16 %v2200
    %v2423 = vunpack.c.h.b16 %v2200
    %v2424 = vunpack.c.l.b16 %v2201
    %v2425 = vunpack.c.h.b16 %v2201
    %v2426 = vunpack.c.l.b16 %v2202
    %v2427 = vunpack.c.h.b16 %v2202
    %v2428 = vunpack.c.l.b16 %v2203
    %v2429 = vunpack.c.h.b16 %v2203
    %v2430 = vunpack.c.l.b16 %v2204
    %v2431 = vunpack.c.h.b16 %v2204
    %v2432 = vunpack.c.l.b16 %v2205
    %v2433 = vunpack.c.h.b16 %v2205
    %v2434 = vunpack.c.l.b16 %v2206
    %v2435 = vunpack.c.h.b16 %v2206
    %v2436 = vunpack.c.l.b16 %v2207
    %v2437 = vunpack.c.h.b16 %v2207
    %v2438 = vunpack.c.l.b16 %v2208
    %v2439 = vunpack.c.h.b16 %v2208
    %v2440 = vunpack.c.l.b16 %v2209
    %v2441 = vunpack.c.h.b16 %v2209
    %v2442 = vunpack.c.l.b16 %v2210
    %v2443 = vunpack.c.h.b16 %v2210
    %v2444 = vunpack.c.l.b16 %v2211
    %v2445 = vunpack.c.h.b16 %v2211
    %v2446 = vunpack.c.l.b16 %v2212
    %v2447 = vunpack.c.h.b16 %v2212
    %v2448 = vunpack.c.l.b16 %v2213
    %v2449 = vunpack.c.h.b16 %v2213
    %v2450 = vunpack.c.l.b16 %v2214
    %v2451 = vunpack.c.h.b16 %v2214
    %v2452 = vunpack.c.l.b16 %v2215
    %v2453 = vunpack.c.h.b16 %v2215
    %v2454 = vunpack.c.l.b16 %v2216
    %v2455 = vunpack.c.h.b16 %v2216
    %v2456 = vunpack.c.l.b16 %v2217
    %v2457 = vunpack.c.h.b16 %v2217
    %v2458 = vunpack.c.l.b16 %v2218
    %v2459 = vunpack.c.h.b16 %v2218
    %v2460 = vunpack.c.l.b16 %v2219
    %v2461 = vunpack.c.h.b16 %v2219
    %v2462 = vunpack.c.l.b16 %v2220
    %v2463 = vunpack.c.h.b16 %v2220
    %v2464 = vunpack.c.l.b16 %v2221
    %v2465 = vunpack.c.h.b16 %v2221
    %v2466 = vunpack.c.l.b16 %v2222
    %v2467 = vunpack.c.h.b16 %v2222
    %v2468 = vunpack.c.l.b16 %v2223
    %v2469 = vunpack.c.h.b16 %v2223
    %v2470 = vunpack.c.l.b16 %v2224
    %v2471 = vunpack.c.h.b16 %v2224
    %v2472 = vunpack.c.l.b16 %v2225
    %v2473 = vunpack.c.h.b16 %v2225
    %v2474 = vunpack.c.l.b16 %v2226
    %v2475 = vunpack.c.h.b16 %v2226
    %v2476 = vunpack.c.l.b16 %v2227
    %v2477 = vunpack.c.h.b16 %v2227
    %v2478 = vunpack.c.l.b16 %v2228
    %v2479 = vunpack.c.h.b16 %v2228
    %v2480 = vunpack.c.l.b16 %v2229
    %v2481 = vunpack.c.h.b16 %v2229
    %v2482 = vunpack.c.l.b16 %v2230
    %v2483 = vunpack.c.h.b16 %v2230
    %v2484 = vunpack.c.l.b16 %v2231
    %v2485 = vunpack.c.h.b16 %v2231
    %v2486 = vunpack.c.l.b16 %v2232
    %v2487 = vunpack.c.h.b16 %v2232
    %v2488 = vunpack.c.l.b16 %v2233
    %v2489 = vunpack.c.h.b16 %v2233
    %v2490 = vunpack.c.l.b16 %v2234
    %v2491 = vunpack.c.h.b16 %v2234
    %v2492 = vunpack.c.l.b16 %v2235
    %v2493 = vunpack.c.h.b16 %v2235
    %v2494 = vunpack.c.l.b16 %v2236
    %v2495 = vunpack.c.h.b16 %v2236
    %v2496 = vunpack.c.l.b16 %v2237
    %v2497 = vunpack.c.h.b16 %v2237
    %v2498 = vunpack.c.l.b16 %v2238
    %v2499 = vunpack.c.h.b16 %v2238
    %v2500 = vunpack.c.l.b16 %v2239
    %v2501 = vunpack.c.h.b16 %v2239
    %v2502 = vunpack.c.l.b16 %v2240
    %v2503 = vunpack.c.h.b16 %v2240
    %v2504 = vunpack.c.l.b16 %v2241
    %v2505 = vunpack.c.h.b16 %v2241
    %v2506 = vunpack.c.l.b16 %v2242
    %v2507 = vunpack.c.h.b16 %v2242
    %v2508 = vunpack.c.l.b16 %v2243
    %v2509 = vunpack.c.h.b16 %v2243
    %v2510 = vunpack.c.l.b16 %v2244
    %v2511 = vunpack.c.h.b16 %v2244
    %v2512 = vunpack.c.l.b16 %v2245
    %v2513 = vunpack.c.h.b16 %v2245
    %v2514 = vunpack.c.l.b16 %v2246
    %v2515 = vunpack.c.h.b16 %v2246
    %v2516 = vunpack.c.l.b16 %v2247
    %v2517 = vunpack.c.h.b16 %v2247
    %v2518 = vunpack.c.l.b16 %v2248
    %v2519 = vunpack.c.h.b16 %v2248
    %v2520 = vunpack.c.l.b16 %v2249
    %v2521 = vunpack.c.h.b16 %v2249
    %v2522 = vpack.c.b16 %v2398, %v2394
    %v2523 = vpack.c.b16 %v2399, %v2395
    %v2524 = vpack.c.b16 %v2400, %v2396
    %v2525 = vpack.c.b16 %v2401, %v2397
    %v2526 = vpack.c.b16 %v2406, %v2402
    %v2527 = vpack.c.b16 %v2407, %v2403
    %v2528 = vpack.c.b16 %v2408, %v2404
    %v2529 = vpack.c.b16 %v2409, %v2405
    %v2530 = vpack.c.b16 %v2414, %v2410
    %v2531 = vpack.c.b16 %v2415, %v2411
    %v2532 = vpack.c.b16 %v2416, %v2412
    %v2533 = vpack.c.b16 %v2417, %v2413
    %v2534 = vpack.c.b16 %v2422, %v2418
    %v2535 = vpack.c.b16 %v2423, %v2419
    %v2536 = vpack.c.b16 %v2424, %v2420
    %v2537 = vpack.c.b16 %v2425, %v2421
    %v2538 = vpack.c.b16 %v2430, %v2426
    %v2539 = vpack.c.b16 %v2431, %v2427
    %v2540 = vpack.c.b16 %v2432, %v2428
    %v2541 = vpack.c.b16 %v2433, %v2429
    %v2542 = vpack.c.b16 %v2438, %v2434
    %v2543 = vpack.c.b16 %v2439, %v2435
    %v2544 = vpack.c.b16 %v2440, %v2436
    %v2545 = vpack.c.b16 %v2441, %v2437
    %v2546 = vpack.c.b16 %v2446, %v2442
    %v2547 = vpack.c.b16 %v2447, %v2443
    %v2548 = vpack.c.b16 %v2448, %v2444
    %v2549 = vpack.c.b16 %v2449, %v2445
    %v2550 = vpack.c.b16 %v2454, %v2450
    %v2551 = vpack.c.b16 %v2455, %v2451
    %v2552 = vpack.c.b16 %v2456, %v2452
    %v2553 = vpack.c.b16 %v2457, %v2453
    %v2554 = vpack.c.b16 %v2462, %v2458
    %v2555 = vpack.c.b16 %v2463, %v2459
    %v2556 = vpack.c.b16 %v2464, %v2460
    %v2557 = vpack.c.b16 %v2465, %v2461
    %v2558 = vpack.c.b16 %v2470, %v2466
    %v2559 = vpack.c.b16 %v2471, %v2467
    %v2560 = vpack.c.b16 %v2472, %v2468
    %v2561 = vpack.c.b16 %v2473, %v2469
    %v2562 = vpack.c.b16 %v2478, %v2474
    %v2563 = vpack.c.b16 %v2479, %v2475
    %v2564 = vpack.c.b16 %v2480, %v2476
    %v2565 = vpack.c.b16 %v2481, %v2477
    %v2566 = vpack.c.b16 %v2486, %v2482
    %v2567 = vpack.c.b16 %v2487, %v2483
    %v2568 = vpack.c.b16 %v2488, %v2484
    %v2569 = vpack.c.b16 %v2489, %v2485
    %v2570 = vpack.c.b16 %v2494, %v2490
    %v2571 = vpack.c.b16 %v2495, %v2491
    %v2572 = vpack.c.b16 %v2496, %v2492
    %v2573 = vpack.c.b16 %v2497, %v2493
    %v2574 = vpack.c.b16 %v2502, %v2498
    %v2575 = vpack.c.b16 %v2503, %v2499
    %v2576 = vpack.c.b16 %v2504, %v2500
    %v2577 = vpack.c.b16 %v2505, %v2501
    %v2578 = vpack.c.b16 %v2510, %v2506
    %v2579 = vpack.c.b16 %v2511, %v2507
    %v2580 = vpack.c.b16 %v2512, %v2508
    %v2581 = vpack.c.b16 %v2513, %v2509
    %v2582 = vpack.c.b16 %v2518, %v2514
    %v2583 = vpack.c.b16 %v2519, %v2515
    %v2584 = vpack.c.b16 %v2520, %v2516
    %v2585 = vpack.c.b16 %v2521, %v2517
    %2650 = vmatpush.bf16.msra.mxu0 %v2550
    %2651 = vmatpush.bf16.msra.mxu0 %v2546
    %2652 = vmatpush.bf16.msra.mxu0 %v2542
    %2653 = vmatpush.bf16.msra.mxu0 %v2538
    %2654 = vmatpush.bf16.msra.mxu0 %v2534
    %2655 = vmatpush.bf16.msra.mxu0 %v2530
    %2656 = vmatpush.bf16.msra.mxu0 %v2526
    %2657 = vmatpush.bf16.msra.mxu0 %v2522
    %2658 = vmatmul.bf16.gmra.mxu0 %v2298
    %v2659 = vpop.f32.mrf.mxu0
    %v2660 = vadd.f32 0.0, %v2659
    %v2661 = vpop.f32.mrf.mxu0
    %v2662 = vadd.f32 0.0, %v2661
    %2663 = vmatmul.bf16.gmra.mxu0 %v2300
    %v2664 = vpop.f32.mrf.mxu0
    %v2665 = vadd.f32 0.0, %v2664
    %v2666 = vpop.f32.mrf.mxu0
    %v2667 = vadd.f32 0.0, %v2666
    %2668 = vmatmul.bf16.gmra.mxu0 %v2302
    %v2669 = vpop.f32.mrf.mxu0
    %v2670 = vadd.f32 0.0, %v2669
    %v2671 = vpop.f32.mrf.mxu0
    %v2672 = vadd.f32 0.0, %v2671
    %2673 = vmatmul.bf16.gmra.mxu0 %v2304
    %v2674 = vpop.f32.mrf.mxu0
    %v2675 = vadd.f32 0.0, %v2674
    %v2676 = vpop.f32.mrf.mxu0
    %v2677 = vadd.f32 0.0, %v2676
    %2678 = vmatmul.bf16.gmra.mxu0 %v2306
    %v2679 = vpop.f32.mrf.mxu0
    %v2680 = vadd.f32 0.0, %v2679
    %v2681 = vpop.f32.mrf.mxu0
    %v2682 = vadd.f32 0.0, %v2681
    %2683 = vmatmul.bf16.gmra.mxu0 %v2308
    %v2684 = vpop.f32.mrf.mxu0
    %v2685 = vadd.f32 0.0, %v2684
    %v2686 = vpop.f32.mrf.mxu0
    %v2687 = vadd.f32 0.0, %v2686
    %2688 = vmatmul.bf16.gmra.mxu0 %v2310
    %v2689 = vpop.f32.mrf.mxu0
    %v2690 = vadd.f32 0.0, %v2689
    %v2691 = vpop.f32.mrf.mxu0
    %v2692 = vadd.f32 0.0, %v2691
    %2693 = vmatmul.bf16.gmra.mxu0 %v2312
    %v2694 = vpop.f32.mrf.mxu0
    %v2695 = vadd.f32 0.0, %v2694
    %v2696 = vpop.f32.mrf.mxu0
    %v2697 = vadd.f32 0.0, %v2696
    %2698 = vdwg.mxu0
    %2699 = vmatpush.bf16.msra.mxu0 %v2582
    %2700 = vmatpush.bf16.msra.mxu0 %v2578
    %2701 = vmatpush.bf16.msra.mxu0 %v2574
    %2702 = vmatpush.bf16.msra.mxu0 %v2570
    %2703 = vmatpush.bf16.msra.mxu0 %v2566
    %2704 = vmatpush.bf16.msra.mxu0 %v2562
    %2705 = vmatpush.bf16.msra.mxu0 %v2558
    %2706 = vmatpush.bf16.msra.mxu0 %v2554
    %2707 = vmatmul.bf16.gmra.mxu0 %v2299
    %v2708 = vpop.f32.mrf.mxu0
    %v2709 = vadd.f32 %v2660, %v2708
    %v2710 = vpop.f32.mrf.mxu0
    %v2711 = vadd.f32 %v2662, %v2710
    %2712 = vmatmul.bf16.gmra.mxu0 %v2301
    %v2713 = vpop.f32.mrf.mxu0
    %v2714 = vadd.f32 %v2665, %v2713
    %v2715 = vpop.f32.mrf.mxu0
    %v2716 = vadd.f32 %v2667, %v2715
    %2717 = vmatmul.bf16.gmra.mxu0 %v2303
    %v2718 = vpop.f32.mrf.mxu0
    %v2719 = vadd.f32 %v2670, %v2718
    %v2720 = vpop.f32.mrf.mxu0
    %v2721 = vadd.f32 %v2672, %v2720
    %2722 = vmatmul.bf16.gmra.mxu0 %v2305
    %v2723 = vpop.f32.mrf.mxu0
    %v2724 = vadd.f32 %v2675, %v2723
    %v2725 = vpop.f32.mrf.mxu0
    %v2726 = vadd.f32 %v2677, %v2725
    %2727 = vmatmul.bf16.gmra.mxu0 %v2307
    %v2728 = vpop.f32.mrf.mxu0
    %v2729 = vadd.f32 %v2680, %v2728
    %v2730 = vpop.f32.mrf.mxu0
    %v2731 = vadd.f32 %v2682, %v2730
    %2732 = vmatmul.bf16.gmra.mxu0 %v2309
    %v2733 = vpop.f32.mrf.mxu0
    %v2734 = vadd.f32 %v2685, %v2733
    %v2735 = vpop.f32.mrf.mxu0
    %v2736 = vadd.f32 %v2687, %v2735
    %2737 = vmatmul.bf16.gmra.mxu0 %v2311
    %v2738 = vpop.f32.mrf.mxu0
    %v2739 = vadd.f32 %v2690, %v2738
    %v2740 = vpop.f32.mrf.mxu0
    %v2741 = vadd.f32 %v2692, %v2740
    %2742 = vmatmul.bf16.gmra.mxu0 %v2313
    %v2743 = vpop.f32.mrf.mxu0
    %v2744 = vadd.f32 %v2695, %v2743
    %v2745 = vpop.f32.mrf.mxu0
    %v2746 = vadd.f32 %v2697, %v2745
    %2747 = vdwg.mxu0
    %2748 = vmatpush.bf16.msra.mxu0 %v2551
    %2749 = vmatpush.bf16.msra.mxu0 %v2547
    %2750 = vmatpush.bf16.msra.mxu0 %v2543
    %2751 = vmatpush.bf16.msra.mxu0 %v2539
    %2752 = vmatpush.bf16.msra.mxu0 %v2535
    %2753 = vmatpush.bf16.msra.mxu0 %v2531
    %2754 = vmatpush.bf16.msra.mxu0 %v2527
    %2755 = vmatpush.bf16.msra.mxu0 %v2523
    %2756 = vmatmul.bf16.gmra.mxu0 %v2298
    %v2757 = vpop.f32.mrf.mxu0
    %v2758 = vadd.f32 0.0, %v2757
    %v2759 = vpop.f32.mrf.mxu0
    %v2760 = vadd.f32 0.0, %v2759
    %2761 = vmatmul.bf16.gmra.mxu0 %v2300
    %v2762 = vpop.f32.mrf.mxu0
    %v2763 = vadd.f32 0.0, %v2762
    %v2764 = vpop.f32.mrf.mxu0
    %v2765 = vadd.f32 0.0, %v2764
    %2766 = vmatmul.bf16.gmra.mxu0 %v2302
    %v2767 = vpop.f32.mrf.mxu0
    %v2768 = vadd.f32 0.0, %v2767
    %v2769 = vpop.f32.mrf.mxu0
    %v2770 = vadd.f32 0.0, %v2769
    %2771 = vmatmul.bf16.gmra.mxu0 %v2304
    %v2772 = vpop.f32.mrf.mxu0
    %v2773 = vadd.f32 0.0, %v2772
    %v2774 = vpop.f32.mrf.mxu0
    %v2775 = vadd.f32 0.0, %v2774
    %2776 = vmatmul.bf16.gmra.mxu0 %v2306
    %v2777 = vpop.f32.mrf.mxu0
    %v2778 = vadd.f32 0.0, %v2777
    %v2779 = vpop.f32.mrf.mxu0
    %v2780 = vadd.f32 0.0, %v2779
    %2781 = vmatmul.bf16.gmra.mxu0 %v2308
    %v2782 = vpop.f32.mrf.mxu0
    %v2783 = vadd.f32 0.0, %v2782
    %v2784 = vpop.f32.mrf.mxu0
    %v2785 = vadd.f32 0.0, %v2784
    %2786 = vmatmul.bf16.gmra.mxu0 %v2310
    %v2787 = vpop.f32.mrf.mxu0
    %v2788 = vadd.f32 0.0, %v2787
    %v2789 = vpop.f32.mrf.mxu0
    %v2790 = vadd.f32 0.0, %v2789
    %2791 = vmatmul.bf16.gmra.mxu0 %v2312
    %v2792 = vpop.f32.mrf.mxu0
    %v2793 = vadd.f32 0.0, %v2792
    %v2794 = vpop.f32.mrf.mxu0
    %v2795 = vadd.f32 0.0, %v2794
    %2796 = vdwg.mxu0
    %2797 = vmatpush.bf16.msra.mxu0 %v2583
    %2798 = vmatpush.bf16.msra.mxu0 %v2579
    %2799 = vmatpush.bf16.msra.mxu0 %v2575
    %2800 = vmatpush.bf16.msra.mxu0 %v2571
    %2801 = vmatpush.bf16.msra.mxu0 %v2567
    %2802 = vmatpush.bf16.msra.mxu0 %v2563
    %2803 = vmatpush.bf16.msra.mxu0 %v2559
    %2804 = vmatpush.bf16.msra.mxu0 %v2555
    %2805 = vmatmul.bf16.gmra.mxu0 %v2299
    %v2806 = vpop.f32.mrf.mxu0
    %v2807 = vadd.f32 %v2758, %v2806
    %v2808 = vpop.f32.mrf.mxu0
    %v2809 = vadd.f32 %v2760, %v2808
    %2810 = vmatmul.bf16.gmra.mxu0 %v2301
    %v2811 = vpop.f32.mrf.mxu0
    %v2812 = vadd.f32 %v2763, %v2811
    %v2813 = vpop.f32.mrf.mxu0
    %v2814 = vadd.f32 %v2765, %v2813
    %2815 = vmatmul.bf16.gmra.mxu0 %v2303
    %v2816 = vpop.f32.mrf.mxu0
    %v2817 = vadd.f32 %v2768, %v2816
    %v2818 = vpop.f32.mrf.mxu0
    %v2819 = vadd.f32 %v2770, %v2818
    %2820 = vmatmul.bf16.gmra.mxu0 %v2305
    %v2821 = vpop.f32.mrf.mxu0
    %v2822 = vadd.f32 %v2773, %v2821
    %v2823 = vpop.f32.mrf.mxu0
    %v2824 = vadd.f32 %v2775, %v2823
    %2825 = vmatmul.bf16.gmra.mxu0 %v2307
    %v2826 = vpop.f32.mrf.mxu0
    %v2827 = vadd.f32 %v2778, %v2826
    %v2828 = vpop.f32.mrf.mxu0
    %v2829 = vadd.f32 %v2780, %v2828
    %2830 = vmatmul.bf16.gmra.mxu0 %v2309
    %v2831 = vpop.f32.mrf.mxu0
    %v2832 = vadd.f32 %v2783, %v2831
    %v2833 = vpop.f32.mrf.mxu0
    %v2834 = vadd.f32 %v2785, %v2833
    %2835 = vmatmul.bf16.gmra.mxu0 %v2311
    %v2836 = vpop.f32.mrf.mxu0
    %v2837 = vadd.f32 %v2788, %v2836
    %v2838 = vpop.f32.mrf.mxu0
    %v2839 = vadd.f32 %v2790, %v2838
    %2840 = vmatmul.bf16.gmra.mxu0 %v2313
    %v2841 = vpop.f32.mrf.mxu0
    %v2842 = vadd.f32 %v2793, %v2841
    %v2843 = vpop.f32.mrf.mxu0
    %v2844 = vadd.f32 %v2795, %v2843
    %2845 = vdwg.mxu0
    %2846 = vmatpush.bf16.msra.mxu0 %v2552
    %2847 = vmatpush.bf16.msra.mxu0 %v2548
    %2848 = vmatpush.bf16.msra.mxu0 %v2544
    %2849 = vmatpush.bf16.msra.mxu0 %v2540
    %2850 = vmatpush.bf16.msra.mxu0 %v2536
    %2851 = vmatpush.bf16.msra.mxu0 %v2532
    %2852 = vmatpush.bf16.msra.mxu0 %v2528
    %2853 = vmatpush.bf16.msra.mxu0 %v2524
    %2854 = vmatmul.bf16.gmra.mxu0 %v2298
    %v2855 = vpop.f32.mrf.mxu0
    %v2856 = vadd.f32 0.0, %v2855
    %v2857 = vpop.f32.mrf.mxu0
    %v2858 = vadd.f32 0.0, %v2857
    %2859 = vmatmul.bf16.gmra.mxu0 %v2300
    %v2860 = vpop.f32.mrf.mxu0
    %v2861 = vadd.f32 0.0, %v2860
    %v2862 = vpop.f32.mrf.mxu0
    %v2863 = vadd.f32 0.0, %v2862
    %2864 = vmatmul.bf16.gmra.mxu0 %v2302
    %v2865 = vpop.f32.mrf.mxu0
    %v2866 = vadd.f32 0.0, %v2865
    %v2867 = vpop.f32.mrf.mxu0
    %v2868 = vadd.f32 0.0, %v2867
    %2869 = vmatmul.bf16.gmra.mxu0 %v2304
    %v2870 = vpop.f32.mrf.mxu0
    %v2871 = vadd.f32 0.0, %v2870
    %v2872 = vpop.f32.mrf.mxu0
    %v2873 = vadd.f32 0.0, %v2872
    %2874 = vmatmul.bf16.gmra.mxu0 %v2306
    %v2875 = vpop.f32.mrf.mxu0
    %v2876 = vadd.f32 0.0, %v2875
    %v2877 = vpop.f32.mrf.mxu0
    %v2878 = vadd.f32 0.0, %v2877
    %2879 = vmatmul.bf16.gmra.mxu0 %v2308
    %v2880 = vpop.f32.mrf.mxu0
    %v2881 = vadd.f32 0.0, %v2880
    %v2882 = vpop.f32.mrf.mxu0
    %v2883 = vadd.f32 0.0, %v2882
    %2884 = vmatmul.bf16.gmra.mxu0 %v2310
    %v2885 = vpop.f32.mrf.mxu0
    %v2886 = vadd.f32 0.0, %v2885
    %v2887 = vpop.f32.mrf.mxu0
    %v2888 = vadd.f32 0.0, %v2887
    %2889 = vmatmul.bf16.gmra.mxu0 %v2312
    %v2890 = vpop.f32.mrf.mxu0
    %v2891 = vadd.f32 0.0, %v2890
    %v2892 = vpop.f32.mrf.mxu0
    %v2893 = vadd.f32 0.0, %v2892
    %2894 = vdwg.mxu0
    %2895 = vmatpush.bf16.msra.mxu0 %v2584
    %2896 = vmatpush.bf16.msra.mxu0 %v2580
    %2897 = vmatpush.bf16.msra.mxu0 %v2576
    %2898 = vmatpush.bf16.msra.mxu0 %v2572
    %2899 = vmatpush.bf16.msra.mxu0 %v2568
    %2900 = vmatpush.bf16.msra.mxu0 %v2564
    %2901 = vmatpush.bf16.msra.mxu0 %v2560
    %2902 = vmatpush.bf16.msra.mxu0 %v2556
    %2903 = vmatmul.bf16.gmra.mxu0 %v2299
    %v2904 = vpop.f32.mrf.mxu0
    %v2905 = vadd.f32 %v2856, %v2904
    %v2906 = vpop.f32.mrf.mxu0
    %v2907 = vadd.f32 %v2858, %v2906
    %2908 = vmatmul.bf16.gmra.mxu0 %v2301
    %v2909 = vpop.f32.mrf.mxu0
    %v2910 = vadd.f32 %v2861, %v2909
    %v2911 = vpop.f32.mrf.mxu0
    %v2912 = vadd.f32 %v2863, %v2911
    %2913 = vmatmul.bf16.gmra.mxu0 %v2303
    %v2914 = vpop.f32.mrf.mxu0
    %v2915 = vadd.f32 %v2866, %v2914
    %v2916 = vpop.f32.mrf.mxu0
    %v2917 = vadd.f32 %v2868, %v2916
    %2918 = vmatmul.bf16.gmra.mxu0 %v2305
    %v2919 = vpop.f32.mrf.mxu0
    %v2920 = vadd.f32 %v2871, %v2919
    %v2921 = vpop.f32.mrf.mxu0
    %v2922 = vadd.f32 %v2873, %v2921
    %2923 = vmatmul.bf16.gmra.mxu0 %v2307
    %v2924 = vpop.f32.mrf.mxu0
    %v2925 = vadd.f32 %v2876, %v2924
    %v2926 = vpop.f32.mrf.mxu0
    %v2927 = vadd.f32 %v2878, %v2926
    %2928 = vmatmul.bf16.gmra.mxu0 %v2309
    %v2929 = vpop.f32.mrf.mxu0
    %v2930 = vadd.f32 %v2881, %v2929
    %v2931 = vpop.f32.mrf.mxu0
    %v2932 = vadd.f32 %v2883, %v2931
    %2933 = vmatmul.bf16.gmra.mxu0 %v2311
    %v2934 = vpop.f32.mrf.mxu0
    %v2935 = vadd.f32 %v2886, %v2934
    %v2936 = vpop.f32.mrf.mxu0
    %v2937 = vadd.f32 %v2888, %v2936
    %2938 = vmatmul.bf16.gmra.mxu0 %v2313
    %v2939 = vpop.f32.mrf.mxu0
    %v2940 = vadd.f32 %v2891, %v2939
    %v2941 = vpop.f32.mrf.mxu0
    %v2942 = vadd.f32 %v2893, %v2941
    %2943 = vdwg.mxu0
    %2944 = vmatpush.bf16.msra.mxu0 %v2553
    %2945 = vmatpush.bf16.msra.mxu0 %v2549
    %2946 = vmatpush.bf16.msra.mxu0 %v2545
    %2947 = vmatpush.bf16.msra.mxu0 %v2541
    %2948 = vmatpush.bf16.msra.mxu0 %v2537
    %2949 = vmatpush.bf16.msra.mxu0 %v2533
    %2950 = vmatpush.bf16.msra.mxu0 %v2529
    %2951 = vmatpush.bf16.msra.mxu0 %v2525
    %2952 = vmatmul.bf16.gmra.mxu0 %v2298
    %v2953 = vpop.f32.mrf.mxu0
    %v2954 = vadd.f32 0.0, %v2953
    %v2955 = vpop.f32.mrf.mxu0
    %v2956 = vadd.f32 0.0, %v2955
    %2957 = vmatmul.bf16.gmra.mxu0 %v2300
    %v2958 = vpop.f32.mrf.mxu0
    %v2959 = vadd.f32 0.0, %v2958
    %v2960 = vpop.f32.mrf.mxu0
    %v2961 = vadd.f32 0.0, %v2960
    %2962 = vmatmul.bf16.gmra.mxu0 %v2302
    %v2963 = vpop.f32.mrf.mxu0
    %v2964 = vadd.f32 0.0, %v2963
    %v2965 = vpop.f32.mrf.mxu0
    %v2966 = vadd.f32 0.0, %v2965
    %2967 = vmatmul.bf16.gmra.mxu0 %v2304
    %v2968 = vpop.f32.mrf.mxu0
    %v2969 = vadd.f32 0.0, %v2968
    %v2970 = vpop.f32.mrf.mxu0
    %v2971 = vadd.f32 0.0, %v2970
    %2972 = vmatmul.bf16.gmra.mxu0 %v2306
    %v2973 = vpop.f32.mrf.mxu0
    %v2974 = vadd.f32 0.0, %v2973
    %v2975 = vpop.f32.mrf.mxu0
    %v2976 = vadd.f32 0.0, %v2975
    %2977 = vmatmul.bf16.gmra.mxu0 %v2308
    %v2978 = vpop.f32.mrf.mxu0
    %v2979 = vadd.f32 0.0, %v2978
    %v2980 = vpop.f32.mrf.mxu0
    %v2981 = vadd.f32 0.0, %v2980
    %2982 = vmatmul.bf16.gmra.mxu0 %v2310
    %v2983 = vpop.f32.mrf.mxu0
    %v2984 = vadd.f32 0.0, %v2983
    %v2985 = vpop.f32.mrf.mxu0
    %v2986 = vadd.f32 0.0, %v2985
    %2987 = vmatmul.bf16.gmra.mxu0 %v2312
    %v2988 = vpop.f32.mrf.mxu0
    %v2989 = vadd.f32 0.0, %v2988
    %v2990 = vpop.f32.mrf.mxu0
    %v2991 = vadd.f32 0.0, %v2990
    %2992 = vdwg.mxu0
    %2993 = vmatpush.bf16.msra.mxu0 %v2585
    %2994 = vmatpush.bf16.msra.mxu0 %v2581
    %2995 = vmatpush.bf16.msra.mxu0 %v2577
    %2996 = vmatpush.bf16.msra.mxu0 %v2573
    %2997 = vmatpush.bf16.msra.mxu0 %v2569
    %2998 = vmatpush.bf16.msra.mxu0 %v2565
    %2999 = vmatpush.bf16.msra.mxu0 %v2561
    %3000 = vmatpush.bf16.msra.mxu0 %v2557
    %3001 = vmatmul.bf16.gmra.mxu0 %v2299
    %v3002 = vpop.f32.mrf.mxu0
    %v3003 = vadd.f32 %v2954, %v3002
    %v3004 = vpop.f32.mrf.mxu0
    %v3005 = vadd.f32 %v2956, %v3004
    %3006 = vmatmul.bf16.gmra.mxu0 %v2301
    %v3007 = vpop.f32.mrf.mxu0
    %v3008 = vadd.f32 %v2959, %v3007
    %v3009 = vpop.f32.mrf.mxu0
    %v3010 = vadd.f32 %v2961, %v3009
    %3011 = vmatmul.bf16.gmra.mxu0 %v2303
    %v3012 = vpop.f32.mrf.mxu0
    %v3013 = vadd.f32 %v2964, %v3012
    %v3014 = vpop.f32.mrf.mxu0
    %v3015 = vadd.f32 %v2966, %v3014
    %3016 = vmatmul.bf16.gmra.mxu0 %v2305
    %v3017 = vpop.f32.mrf.mxu0
    %v3018 = vadd.f32 %v2969, %v3017
    %v3019 = vpop.f32.mrf.mxu0
    %v3020 = vadd.f32 %v2971, %v3019
    %3021 = vmatmul.bf16.gmra.mxu0 %v2307
    %v3022 = vpop.f32.mrf.mxu0
    %v3023 = vadd.f32 %v2974, %v3022
    %v3024 = vpop.f32.mrf.mxu0
    %v3025 = vadd.f32 %v2976, %v3024
    %3026 = vmatmul.bf16.gmra.mxu0 %v2309
    %v3027 = vpop.f32.mrf.mxu0
    %v3028 = vadd.f32 %v2979, %v3027
    %v3029 = vpop.f32.mrf.mxu0
    %v3030 = vadd.f32 %v2981, %v3029
    %3031 = vmatmul.bf16.gmra.mxu0 %v2311
    %v3032 = vpop.f32.mrf.mxu0
    %v3033 = vadd.f32 %v2984, %v3032
    %v3034 = vpop.f32.mrf.mxu0
    %v3035 = vadd.f32 %v2986, %v3034
    %3036 = vmatmul.bf16.gmra.mxu0 %v2313
    %v3037 = vpop.f32.mrf.mxu0
    %v3038 = vadd.f32 %v2989, %v3037
    %v3039 = vpop.f32.mrf.mxu0
    %v3040 = vadd.f32 %v2991, %v3039
    %3041 = vdwg.mxu0
    %v3044 = vunpack.c.l.b16 %v2097
    %v3045 = vunpack.c.h.b16 %v2097
    %v3046 = vunpack.c.l.b16 %v2098
    %v3047 = vunpack.c.h.b16 %v2098
    %v3048 = vpack.c.b16 %v3046, %v3044
    %v3049 = vpack.c.b16 %v3047, %v3045
    %v3116 = vunpack.c.l.b16 %v2121
    %v3117 = vunpack.c.h.b16 %v2121
    %v3118 = vunpack.c.l.b16 %v2122
    %v3119 = vunpack.c.h.b16 %v2122
    %v3120 = vunpack.c.l.b16 %v2123
    %v3121 = vunpack.c.h.b16 %v2123
    %v3122 = vunpack.c.l.b16 %v2124
    %v3123 = vunpack.c.h.b16 %v2124
    %v3124 = vunpack.c.l.b16 %v2125
    %v3125 = vunpack.c.h.b16 %v2125
    %v3126 = vunpack.c.l.b16 %v2126
    %v3127 = vunpack.c.h.b16 %v2126
    %v3128 = vunpack.c.l.b16 %v2127
    %v3129 = vunpack.c.h.b16 %v2127
    %v3130 = vunpack.c.l.b16 %v2128
    %v3131 = vunpack.c.h.b16 %v2128
    %v3132 = vunpack.c.l.b16 %v2129
    %v3133 = vunpack.c.h.b16 %v2129
    %v3134 = vunpack.c.l.b16 %v2130
    %v3135 = vunpack.c.h.b16 %v2130
    %v3136 = vunpack.c.l.b16 %v2131
    %v3137 = vunpack.c.h.b16 %v2131
    %v3138 = vunpack.c.l.b16 %v2132
    %v3139 = vunpack.c.h.b16 %v2132
    %v3140 = vunpack.c.l.b16 %v2133
    %v3141 = vunpack.c.h.b16 %v2133
    %v3142 = vunpack.c.l.b16 %v2134
    %v3143 = vunpack.c.h.b16 %v2134
    %v3144 = vunpack.c.l.b16 %v2135
    %v3145 = vunpack.c.h.b16 %v2135
    %v3146 = vunpack.c.l.b16 %v2136
    %v3147 = vunpack.c.h.b16 %v2136
    %v3148 = vunpack.c.l.b16 %v2137
    %v3149 = vunpack.c.h.b16 %v2137
    %v3150 = vunpack.c.l.b16 %v2138
    %v3151 = vunpack.c.h.b16 %v2138
    %v3152 = vunpack.c.l.b16 %v2139
    %v3153 = vunpack.c.h.b16 %v2139
    %v3154 = vunpack.c.l.b16 %v2140
    %v3155 = vunpack.c.h.b16 %v2140
    %v3156 = vunpack.c.l.b16 %v2141
    %v3157 = vunpack.c.h.b16 %v2141
    %v3158 = vunpack.c.l.b16 %v2142
    %v3159 = vunpack.c.h.b16 %v2142
    %v3160 = vunpack.c.l.b16 %v2143
    %v3161 = vunpack.c.h.b16 %v2143
    %v3162 = vunpack.c.l.b16 %v2144
    %v3163 = vunpack.c.h.b16 %v2144
    %v3164 = vunpack.c.l.b16 %v2145
    %v3165 = vunpack.c.h.b16 %v2145
    %v3166 = vunpack.c.l.b16 %v2146
    %v3167 = vunpack.c.h.b16 %v2146
    %v3168 = vunpack.c.l.b16 %v2147
    %v3169 = vunpack.c.h.b16 %v2147
    %v3170 = vunpack.c.l.b16 %v2148
    %v3171 = vunpack.c.h.b16 %v2148
    %v3172 = vunpack.c.l.b16 %v2149
    %v3173 = vunpack.c.h.b16 %v2149
    %v3174 = vunpack.c.l.b16 %v2150
    %v3175 = vunpack.c.h.b16 %v2150
    %v3176 = vunpack.c.l.b16 %v2151
    %v3177 = vunpack.c.h.b16 %v2151
    %v3178 = vunpack.c.l.b16 %v2152
    %v3179 = vunpack.c.h.b16 %v2152
    %v3180 = vunpack.c.l.b16 %v2153
    %v3181 = vunpack.c.h.b16 %v2153
    %v3182 = vunpack.c.l.b16 %v2154
    %v3183 = vunpack.c.h.b16 %v2154
    %v3184 = vunpack.c.l.b16 %v2155
    %v3185 = vunpack.c.h.b16 %v2155
    %v3186 = vunpack.c.l.b16 %v2156
    %v3187 = vunpack.c.h.b16 %v2156
    %v3188 = vunpack.c.l.b16 %v2157
    %v3189 = vunpack.c.h.b16 %v2157
    %v3190 = vunpack.c.l.b16 %v2158
    %v3191 = vunpack.c.h.b16 %v2158
    %v3192 = vunpack.c.l.b16 %v2159
    %v3193 = vunpack.c.h.b16 %v2159
    %v3194 = vunpack.c.l.b16 %v2160
    %v3195 = vunpack.c.h.b16 %v2160
    %v3196 = vunpack.c.l.b16 %v2161
    %v3197 = vunpack.c.h.b16 %v2161
    %v3198 = vunpack.c.l.b16 %v2162
    %v3199 = vunpack.c.h.b16 %v2162
    %v3200 = vunpack.c.l.b16 %v2163
    %v3201 = vunpack.c.h.b16 %v2163
    %v3202 = vunpack.c.l.b16 %v2164
    %v3203 = vunpack.c.h.b16 %v2164
    %v3204 = vunpack.c.l.b16 %v2165
    %v3205 = vunpack.c.h.b16 %v2165
    %v3206 = vunpack.c.l.b16 %v2166
    %v3207 = vunpack.c.h.b16 %v2166
    %v3208 = vunpack.c.l.b16 %v2167
    %v3209 = vunpack.c.h.b16 %v2167
    %v3210 = vunpack.c.l.b16 %v2168
    %v3211 = vunpack.c.h.b16 %v2168
    %v3212 = vunpack.c.l.b16 %v2169
    %v3213 = vunpack.c.h.b16 %v2169
    %v3214 = vunpack.c.l.b16 %v2170
    %v3215 = vunpack.c.h.b16 %v2170
    %v3216 = vunpack.c.l.b16 %v2171
    %v3217 = vunpack.c.h.b16 %v2171
    %v3218 = vunpack.c.l.b16 %v2172
    %v3219 = vunpack.c.h.b16 %v2172
    %v3220 = vunpack.c.l.b16 %v2173
    %v3221 = vunpack.c.h.b16 %v2173
    %v3222 = vunpack.c.l.b16 %v2174
    %v3223 = vunpack.c.h.b16 %v2174
    %v3224 = vunpack.c.l.b16 %v2175
    %v3225 = vunpack.c.h.b16 %v2175
    %v3226 = vunpack.c.l.b16 %v2176
    %v3227 = vunpack.c.h.b16 %v2176
    %v3228 = vunpack.c.l.b16 %v2177
    %v3229 = vunpack.c.h.b16 %v2177
    %v3230 = vunpack.c.l.b16 %v2178
    %v3231 = vunpack.c.h.b16 %v2178
    %v3232 = vunpack.c.l.b16 %v2179
    %v3233 = vunpack.c.h.b16 %v2179
    %v3234 = vunpack.c.l.b16 %v2180
    %v3235 = vunpack.c.h.b16 %v2180
    %v3236 = vunpack.c.l.b16 %v2181
    %v3237 = vunpack.c.h.b16 %v2181
    %v3238 = vunpack.c.l.b16 %v2182
    %v3239 = vunpack.c.h.b16 %v2182
    %v3240 = vunpack.c.l.b16 %v2183
    %v3241 = vunpack.c.h.b16 %v2183
    %v3242 = vunpack.c.l.b16 %v2184
    %v3243 = vunpack.c.h.b16 %v2184
    %v3244 = vpack.c.b16 %v3120, %v3116
    %v3245 = vpack.c.b16 %v3121, %v3117
    %v3246 = vpack.c.b16 %v3122, %v3118
    %v3247 = vpack.c.b16 %v3123, %v3119
    %v3248 = vpack.c.b16 %v3128, %v3124
    %v3249 = vpack.c.b16 %v3129, %v3125
    %v3250 = vpack.c.b16 %v3130, %v3126
    %v3251 = vpack.c.b16 %v3131, %v3127
    %v3252 = vpack.c.b16 %v3136, %v3132
    %v3253 = vpack.c.b16 %v3137, %v3133
    %v3254 = vpack.c.b16 %v3138, %v3134
    %v3255 = vpack.c.b16 %v3139, %v3135
    %v3256 = vpack.c.b16 %v3144, %v3140
    %v3257 = vpack.c.b16 %v3145, %v3141
    %v3258 = vpack.c.b16 %v3146, %v3142
    %v3259 = vpack.c.b16 %v3147, %v3143
    %v3260 = vpack.c.b16 %v3152, %v3148
    %v3261 = vpack.c.b16 %v3153, %v3149
    %v3262 = vpack.c.b16 %v3154, %v3150
    %v3263 = vpack.c.b16 %v3155, %v3151
    %v3264 = vpack.c.b16 %v3160, %v3156
    %v3265 = vpack.c.b16 %v3161, %v3157
    %v3266 = vpack.c.b16 %v3162, %v3158
    %v3267 = vpack.c.b16 %v3163, %v3159
    %v3268 = vpack.c.b16 %v3168, %v3164
    %v3269 = vpack.c.b16 %v3169, %v3165
    %v3270 = vpack.c.b16 %v3170, %v3166
    %v3271 = vpack.c.b16 %v3171, %v3167
    %v3272 = vpack.c.b16 %v3176, %v3172
    %v3273 = vpack.c.b16 %v3177, %v3173
    %v3274 = vpack.c.b16 %v3178, %v3174
    %v3275 = vpack.c.b16 %v3179, %v3175
    %v3276 = vpack.c.b16 %v3184, %v3180
    %v3277 = vpack.c.b16 %v3185, %v3181
    %v3278 = vpack.c.b16 %v3186, %v3182
    %v3279 = vpack.c.b16 %v3187, %v3183
    %v3280 = vpack.c.b16 %v3192, %v3188
    %v3281 = vpack.c.b16 %v3193, %v3189
    %v3282 = vpack.c.b16 %v3194, %v3190
    %v3283 = vpack.c.b16 %v3195, %v3191
    %v3284 = vpack.c.b16 %v3200, %v3196
    %v3285 = vpack.c.b16 %v3201, %v3197
    %v3286 = vpack.c.b16 %v3202, %v3198
    %v3287 = vpack.c.b16 %v3203, %v3199
    %v3288 = vpack.c.b16 %v3208, %v3204
    %v3289 = vpack.c.b16 %v3209, %v3205
    %v3290 = vpack.c.b16 %v3210, %v3206
    %v3291 = vpack.c.b16 %v3211, %v3207
    %v3292 = vpack.c.b16 %v3216, %v3212
    %v3293 = vpack.c.b16 %v3217, %v3213
    %v3294 = vpack.c.b16 %v3218, %v3214
    %v3295 = vpack.c.b16 %v3219, %v3215
    %v3296 = vpack.c.b16 %v3224, %v3220
    %v3297 = vpack.c.b16 %v3225, %v3221
    %v3298 = vpack.c.b16 %v3226, %v3222
    %v3299 = vpack.c.b16 %v3227, %v3223
    %v3300 = vpack.c.b16 %v3232, %v3228
    %v3301 = vpack.c.b16 %v3233, %v3229
    %v3302 = vpack.c.b16 %v3234, %v3230
    %v3303 = vpack.c.b16 %v3235, %v3231
    %v3304 = vpack.c.b16 %v3240, %v3236
    %v3305 = vpack.c.b16 %v3241, %v3237
    %v3306 = vpack.c.b16 %v3242, %v3238
    %v3307 = vpack.c.b16 %v3243, %v3239
    %3372 = vmatpush.bf16.msra.mxu0 %v3272
    %3373 = vmatpush.bf16.msra.mxu0 %v3268
    %3374 = vmatpush.bf16.msra.mxu0 %v3264
    %3375 = vmatpush.bf16.msra.mxu0 %v3260
    %3376 = vmatpush.bf16.msra.mxu0 %v3256
    %3377 = vmatpush.bf16.msra.mxu0 %v3252
    %3378 = vmatpush.bf16.msra.mxu0 %v3248
    %3379 = vmatpush.bf16.msra.mxu0 %v3244
    %3380 = vmatmul.bf16.gmra.mxu0 %v3048
    %v3381 = vpop.f32.mrf.mxu0
    %v3382 = vadd.f32 %v2709, %v3381
    %v3383 = vpop.f32.mrf.mxu0
    %v3384 = vadd.f32 %v2711, %v3383
    %3385 = vmatmul.bf16.gmra.mxu0 %v2298
    %v3386 = vpop.f32.mrf.mxu0
    %v3387 = vadd.f32 %v2714, %v3386
    %v3388 = vpop.f32.mrf.mxu0
    %v3389 = vadd.f32 %v2716, %v3388
    %3390 = vmatmul.bf16.gmra.mxu0 %v2300
    %v3391 = vpop.f32.mrf.mxu0
    %v3392 = vadd.f32 %v2719, %v3391
    %v3393 = vpop.f32.mrf.mxu0
    %v3394 = vadd.f32 %v2721, %v3393
    %3395 = vmatmul.bf16.gmra.mxu0 %v2302
    %v3396 = vpop.f32.mrf.mxu0
    %v3397 = vadd.f32 %v2724, %v3396
    %v3398 = vpop.f32.mrf.mxu0
    %v3399 = vadd.f32 %v2726, %v3398
    %3400 = vmatmul.bf16.gmra.mxu0 %v2304
    %v3401 = vpop.f32.mrf.mxu0
    %v3402 = vadd.f32 %v2729, %v3401
    %v3403 = vpop.f32.mrf.mxu0
    %v3404 = vadd.f32 %v2731, %v3403
    %3405 = vmatmul.bf16.gmra.mxu0 %v2306
    %v3406 = vpop.f32.mrf.mxu0
    %v3407 = vadd.f32 %v2734, %v3406
    %v3408 = vpop.f32.mrf.mxu0
    %v3409 = vadd.f32 %v2736, %v3408
    %3410 = vmatmul.bf16.gmra.mxu0 %v2308
    %v3411 = vpop.f32.mrf.mxu0
    %v3412 = vadd.f32 %v2739, %v3411
    %v3413 = vpop.f32.mrf.mxu0
    %v3414 = vadd.f32 %v2741, %v3413
    %3415 = vmatmul.bf16.gmra.mxu0 %v2310
    %v3416 = vpop.f32.mrf.mxu0
    %v3417 = vadd.f32 %v2744, %v3416
    %v3418 = vpop.f32.mrf.mxu0
    %v3419 = vadd.f32 %v2746, %v3418
    %3420 = vdwg.mxu0
    %3421 = vmatpush.bf16.msra.mxu0 %v3304
    %3422 = vmatpush.bf16.msra.mxu0 %v3300
    %3423 = vmatpush.bf16.msra.mxu0 %v3296
    %3424 = vmatpush.bf16.msra.mxu0 %v3292
    %3425 = vmatpush.bf16.msra.mxu0 %v3288
    %3426 = vmatpush.bf16.msra.mxu0 %v3284
    %3427 = vmatpush.bf16.msra.mxu0 %v3280
    %3428 = vmatpush.bf16.msra.mxu0 %v3276
    %3429 = vmatmul.bf16.gmra.mxu0 %v3049
    %v3430 = vpop.f32.mrf.mxu0
    %v3431 = vadd.f32 %v3382, %v3430
    %v3432 = vpop.f32.mrf.mxu0
    %v3433 = vadd.f32 %v3384, %v3432
    %3434 = vmatmul.bf16.gmra.mxu0 %v2299
    %v3435 = vpop.f32.mrf.mxu0
    %v3436 = vadd.f32 %v3387, %v3435
    %v3437 = vpop.f32.mrf.mxu0
    %v3438 = vadd.f32 %v3389, %v3437
    %3439 = vmatmul.bf16.gmra.mxu0 %v2301
    %v3440 = vpop.f32.mrf.mxu0
    %v3441 = vadd.f32 %v3392, %v3440
    %v3442 = vpop.f32.mrf.mxu0
    %v3443 = vadd.f32 %v3394, %v3442
    %3444 = vmatmul.bf16.gmra.mxu0 %v2303
    %v3445 = vpop.f32.mrf.mxu0
    %v3446 = vadd.f32 %v3397, %v3445
    %v3447 = vpop.f32.mrf.mxu0
    %v3448 = vadd.f32 %v3399, %v3447
    %3449 = vmatmul.bf16.gmra.mxu0 %v2305
    %v3450 = vpop.f32.mrf.mxu0
    %v3451 = vadd.f32 %v3402, %v3450
    %v3452 = vpop.f32.mrf.mxu0
    %v3453 = vadd.f32 %v3404, %v3452
    %3454 = vmatmul.bf16.gmra.mxu0 %v2307
    %v3455 = vpop.f32.mrf.mxu0
    %v3456 = vadd.f32 %v3407, %v3455
    %v3457 = vpop.f32.mrf.mxu0
    %v3458 = vadd.f32 %v3409, %v3457
    %3459 = vmatmul.bf16.gmra.mxu0 %v2309
    %v3460 = vpop.f32.mrf.mxu0
    %v3461 = vadd.f32 %v3412, %v3460
    %v3462 = vpop.f32.mrf.mxu0
    %v3463 = vadd.f32 %v3414, %v3462
    %3464 = vmatmul.bf16.gmra.mxu0 %v2311
    %v3465 = vpop.f32.mrf.mxu0
    %v3466 = vadd.f32 %v3417, %v3465
    %v3467 = vpop.f32.mrf.mxu0
    %v3468 = vadd.f32 %v3419, %v3467
    %3469 = vdwg.mxu0
    %3470 = vmatpush.bf16.msra.mxu0 %v3273
    %3471 = vmatpush.bf16.msra.mxu0 %v3269
    %3472 = vmatpush.bf16.msra.mxu0 %v3265
    %3473 = vmatpush.bf16.msra.mxu0 %v3261
    %3474 = vmatpush.bf16.msra.mxu0 %v3257
    %3475 = vmatpush.bf16.msra.mxu0 %v3253
    %3476 = vmatpush.bf16.msra.mxu0 %v3249
    %3477 = vmatpush.bf16.msra.mxu0 %v3245
    %3478 = vmatmul.bf16.gmra.mxu0 %v3048
    %v3479 = vpop.f32.mrf.mxu0
    %v3480 = vadd.f32 %v2807, %v3479
    %v3481 = vpop.f32.mrf.mxu0
    %v3482 = vadd.f32 %v2809, %v3481
    %3483 = vmatmul.bf16.gmra.mxu0 %v2298
    %v3484 = vpop.f32.mrf.mxu0
    %v3485 = vadd.f32 %v2812, %v3484
    %v3486 = vpop.f32.mrf.mxu0
    %v3487 = vadd.f32 %v2814, %v3486
    %3488 = vmatmul.bf16.gmra.mxu0 %v2300
    %v3489 = vpop.f32.mrf.mxu0
    %v3490 = vadd.f32 %v2817, %v3489
    %v3491 = vpop.f32.mrf.mxu0
    %v3492 = vadd.f32 %v2819, %v3491
    %3493 = vmatmul.bf16.gmra.mxu0 %v2302
    %v3494 = vpop.f32.mrf.mxu0
    %v3495 = vadd.f32 %v2822, %v3494
    %v3496 = vpop.f32.mrf.mxu0
    %v3497 = vadd.f32 %v2824, %v3496
    %3498 = vmatmul.bf16.gmra.mxu0 %v2304
    %v3499 = vpop.f32.mrf.mxu0
    %v3500 = vadd.f32 %v2827, %v3499
    %v3501 = vpop.f32.mrf.mxu0
    %v3502 = vadd.f32 %v2829, %v3501
    %3503 = vmatmul.bf16.gmra.mxu0 %v2306
    %v3504 = vpop.f32.mrf.mxu0
    %v3505 = vadd.f32 %v2832, %v3504
    %v3506 = vpop.f32.mrf.mxu0
    %v3507 = vadd.f32 %v2834, %v3506
    %3508 = vmatmul.bf16.gmra.mxu0 %v2308
    %v3509 = vpop.f32.mrf.mxu0
    %v3510 = vadd.f32 %v2837, %v3509
    %v3511 = vpop.f32.mrf.mxu0
    %v3512 = vadd.f32 %v2839, %v3511
    %3513 = vmatmul.bf16.gmra.mxu0 %v2310
    %v3514 = vpop.f32.mrf.mxu0
    %v3515 = vadd.f32 %v2842, %v3514
    %v3516 = vpop.f32.mrf.mxu0
    %v3517 = vadd.f32 %v2844, %v3516
    %3518 = vdwg.mxu0
    %3519 = vmatpush.bf16.msra.mxu0 %v3305
    %3520 = vmatpush.bf16.msra.mxu0 %v3301
    %3521 = vmatpush.bf16.msra.mxu0 %v3297
    %3522 = vmatpush.bf16.msra.mxu0 %v3293
    %3523 = vmatpush.bf16.msra.mxu0 %v3289
    %3524 = vmatpush.bf16.msra.mxu0 %v3285
    %3525 = vmatpush.bf16.msra.mxu0 %v3281
    %3526 = vmatpush.bf16.msra.mxu0 %v3277
    %3527 = vmatmul.bf16.gmra.mxu0 %v3049
    %v3528 = vpop.f32.mrf.mxu0
    %v3529 = vadd.f32 %v3480, %v3528
    %v3530 = vpop.f32.mrf.mxu0
    %v3531 = vadd.f32 %v3482, %v3530
    %3532 = vmatmul.bf16.gmra.mxu0 %v2299
    %v3533 = vpop.f32.mrf.mxu0
    %v3534 = vadd.f32 %v3485, %v3533
    %v3535 = vpop.f32.mrf.mxu0
    %v3536 = vadd.f32 %v3487, %v3535
    %3537 = vmatmul.bf16.gmra.mxu0 %v2301
    %v3538 = vpop.f32.mrf.mxu0
    %v3539 = vadd.f32 %v3490, %v3538
    %v3540 = vpop.f32.mrf.mxu0
    %v3541 = vadd.f32 %v3492, %v3540
    %3542 = vmatmul.bf16.gmra.mxu0 %v2303
    %v3543 = vpop.f32.mrf.mxu0
    %v3544 = vadd.f32 %v3495, %v3543
    %v3545 = vpop.f32.mrf.mxu0
    %v3546 = vadd.f32 %v3497, %v3545
    %3547 = vmatmul.bf16.gmra.mxu0 %v2305
    %v3548 = vpop.f32.mrf.mxu0
    %v3549 = vadd.f32 %v3500, %v3548
    %v3550 = vpop.f32.mrf.mxu0
    %v3551 = vadd.f32 %v3502, %v3550
    %3552 = vmatmul.bf16.gmra.mxu0 %v2307
    %v3553 = vpop.f32.mrf.mxu0
    %v3554 = vadd.f32 %v3505, %v3553
    %v3555 = vpop.f32.mrf.mxu0
    %v3556 = vadd.f32 %v3507, %v3555
    %3557 = vmatmul.bf16.gmra.mxu0 %v2309
    %v3558 = vpop.f32.mrf.mxu0
    %v3559 = vadd.f32 %v3510, %v3558
    %v3560 = vpop.f32.mrf.mxu0
    %v3561 = vadd.f32 %v3512, %v3560
    %3562 = vmatmul.bf16.gmra.mxu0 %v2311
    %v3563 = vpop.f32.mrf.mxu0
    %v3564 = vadd.f32 %v3515, %v3563
    %v3565 = vpop.f32.mrf.mxu0
    %v3566 = vadd.f32 %v3517, %v3565
    %3567 = vdwg.mxu0
    %3568 = vmatpush.bf16.msra.mxu0 %v3274
    %3569 = vmatpush.bf16.msra.mxu0 %v3270
    %3570 = vmatpush.bf16.msra.mxu0 %v3266
    %3571 = vmatpush.bf16.msra.mxu0 %v3262
    %3572 = vmatpush.bf16.msra.mxu0 %v3258
    %3573 = vmatpush.bf16.msra.mxu0 %v3254
    %3574 = vmatpush.bf16.msra.mxu0 %v3250
    %3575 = vmatpush.bf16.msra.mxu0 %v3246
    %3576 = vmatmul.bf16.gmra.mxu0 %v3048
    %v3577 = vpop.f32.mrf.mxu0
    %v3578 = vadd.f32 %v2905, %v3577
    %v3579 = vpop.f32.mrf.mxu0
    %v3580 = vadd.f32 %v2907, %v3579
    %3581 = vmatmul.bf16.gmra.mxu0 %v2298
    %v3582 = vpop.f32.mrf.mxu0
    %v3583 = vadd.f32 %v2910, %v3582
    %v3584 = vpop.f32.mrf.mxu0
    %v3585 = vadd.f32 %v2912, %v3584
    %3586 = vmatmul.bf16.gmra.mxu0 %v2300
    %v3587 = vpop.f32.mrf.mxu0
    %v3588 = vadd.f32 %v2915, %v3587
    %v3589 = vpop.f32.mrf.mxu0
    %v3590 = vadd.f32 %v2917, %v3589
    %3591 = vmatmul.bf16.gmra.mxu0 %v2302
    %v3592 = vpop.f32.mrf.mxu0
    %v3593 = vadd.f32 %v2920, %v3592
    %v3594 = vpop.f32.mrf.mxu0
    %v3595 = vadd.f32 %v2922, %v3594
    %3596 = vmatmul.bf16.gmra.mxu0 %v2304
    %v3597 = vpop.f32.mrf.mxu0
    %v3598 = vadd.f32 %v2925, %v3597
    %v3599 = vpop.f32.mrf.mxu0
    %v3600 = vadd.f32 %v2927, %v3599
    %3601 = vmatmul.bf16.gmra.mxu0 %v2306
    %v3602 = vpop.f32.mrf.mxu0
    %v3603 = vadd.f32 %v2930, %v3602
    %v3604 = vpop.f32.mrf.mxu0
    %v3605 = vadd.f32 %v2932, %v3604
    %3606 = vmatmul.bf16.gmra.mxu0 %v2308
    %v3607 = vpop.f32.mrf.mxu0
    %v3608 = vadd.f32 %v2935, %v3607
    %v3609 = vpop.f32.mrf.mxu0
    %v3610 = vadd.f32 %v2937, %v3609
    %3611 = vmatmul.bf16.gmra.mxu0 %v2310
    %v3612 = vpop.f32.mrf.mxu0
    %v3613 = vadd.f32 %v2940, %v3612
    %v3614 = vpop.f32.mrf.mxu0
    %v3615 = vadd.f32 %v2942, %v3614
    %3616 = vdwg.mxu0
    %3617 = vmatpush.bf16.msra.mxu0 %v3306
    %3618 = vmatpush.bf16.msra.mxu0 %v3302
    %3619 = vmatpush.bf16.msra.mxu0 %v3298
    %3620 = vmatpush.bf16.msra.mxu0 %v3294
    %3621 = vmatpush.bf16.msra.mxu0 %v3290
    %3622 = vmatpush.bf16.msra.mxu0 %v3286
    %3623 = vmatpush.bf16.msra.mxu0 %v3282
    %3624 = vmatpush.bf16.msra.mxu0 %v3278
    %3625 = vmatmul.bf16.gmra.mxu0 %v3049
    %v3626 = vpop.f32.mrf.mxu0
    %v3627 = vadd.f32 %v3578, %v3626
    %v3628 = vpop.f32.mrf.mxu0
    %v3629 = vadd.f32 %v3580, %v3628
    %3630 = vmatmul.bf16.gmra.mxu0 %v2299
    %v3631 = vpop.f32.mrf.mxu0
    %v3632 = vadd.f32 %v3583, %v3631
    %v3633 = vpop.f32.mrf.mxu0
    %v3634 = vadd.f32 %v3585, %v3633
    %3635 = vmatmul.bf16.gmra.mxu0 %v2301
    %v3636 = vpop.f32.mrf.mxu0
    %v3637 = vadd.f32 %v3588, %v3636
    %v3638 = vpop.f32.mrf.mxu0
    %v3639 = vadd.f32 %v3590, %v3638
    %3640 = vmatmul.bf16.gmra.mxu0 %v2303
    %v3641 = vpop.f32.mrf.mxu0
    %v3642 = vadd.f32 %v3593, %v3641
    %v3643 = vpop.f32.mrf.mxu0
    %v3644 = vadd.f32 %v3595, %v3643
    %3645 = vmatmul.bf16.gmra.mxu0 %v2305
    %v3646 = vpop.f32.mrf.mxu0
    %v3647 = vadd.f32 %v3598, %v3646
    %v3648 = vpop.f32.mrf.mxu0
    %v3649 = vadd.f32 %v3600, %v3648
    %3650 = vmatmul.bf16.gmra.mxu0 %v2307
    %v3651 = vpop.f32.mrf.mxu0
    %v3652 = vadd.f32 %v3603, %v3651
    %v3653 = vpop.f32.mrf.mxu0
    %v3654 = vadd.f32 %v3605, %v3653
    %3655 = vmatmul.bf16.gmra.mxu0 %v2309
    %v3656 = vpop.f32.mrf.mxu0
    %v3657 = vadd.f32 %v3608, %v3656
    %v3658 = vpop.f32.mrf.mxu0
    %v3659 = vadd.f32 %v3610, %v3658
    %3660 = vmatmul.bf16.gmra.mxu0 %v2311
    %v3661 = vpop.f32.mrf.mxu0
    %v3662 = vadd.f32 %v3613, %v3661
    %v3663 = vpop.f32.mrf.mxu0
    %v3664 = vadd.f32 %v3615, %v3663
    %3665 = vdwg.mxu0
    %3666 = vmatpush.bf16.msra.mxu0 %v3275
    %3667 = vmatpush.bf16.msra.mxu0 %v3271
    %3668 = vmatpush.bf16.msra.mxu0 %v3267
    %3669 = vmatpush.bf16.msra.mxu0 %v3263
    %3670 = vmatpush.bf16.msra.mxu0 %v3259
    %3671 = vmatpush.bf16.msra.mxu0 %v3255
    %3672 = vmatpush.bf16.msra.mxu0 %v3251
    %3673 = vmatpush.bf16.msra.mxu0 %v3247
    %3674 = vmatmul.bf16.gmra.mxu0 %v3048
    %v3675 = vpop.f32.mrf.mxu0
    %v3676 = vadd.f32 %v3003, %v3675
    %v3677 = vpop.f32.mrf.mxu0
    %v3678 = vadd.f32 %v3005, %v3677
    %3679 = vmatmul.bf16.gmra.mxu0 %v2298
    %v3680 = vpop.f32.mrf.mxu0
    %v3681 = vadd.f32 %v3008, %v3680
    %v3682 = vpop.f32.mrf.mxu0
    %v3683 = vadd.f32 %v3010, %v3682
    %3684 = vmatmul.bf16.gmra.mxu0 %v2300
    %v3685 = vpop.f32.mrf.mxu0
    %v3686 = vadd.f32 %v3013, %v3685
    %v3687 = vpop.f32.mrf.mxu0
    %v3688 = vadd.f32 %v3015, %v3687
    %3689 = vmatmul.bf16.gmra.mxu0 %v2302
    %v3690 = vpop.f32.mrf.mxu0
    %v3691 = vadd.f32 %v3018, %v3690
    %v3692 = vpop.f32.mrf.mxu0
    %v3693 = vadd.f32 %v3020, %v3692
    %3694 = vmatmul.bf16.gmra.mxu0 %v2304
    %v3695 = vpop.f32.mrf.mxu0
    %v3696 = vadd.f32 %v3023, %v3695
    %v3697 = vpop.f32.mrf.mxu0
    %v3698 = vadd.f32 %v3025, %v3697
    %3699 = vmatmul.bf16.gmra.mxu0 %v2306
    %v3700 = vpop.f32.mrf.mxu0
    %v3701 = vadd.f32 %v3028, %v3700
    %v3702 = vpop.f32.mrf.mxu0
    %v3703 = vadd.f32 %v3030, %v3702
    %3704 = vmatmul.bf16.gmra.mxu0 %v2308
    %v3705 = vpop.f32.mrf.mxu0
    %v3706 = vadd.f32 %v3033, %v3705
    %v3707 = vpop.f32.mrf.mxu0
    %v3708 = vadd.f32 %v3035, %v3707
    %3709 = vmatmul.bf16.gmra.mxu0 %v2310
    %v3710 = vpop.f32.mrf.mxu0
    %v3711 = vadd.f32 %v3038, %v3710
    %v3712 = vpop.f32.mrf.mxu0
    %v3713 = vadd.f32 %v3040, %v3712
    %3714 = vdwg.mxu0
    %3715 = vmatpush.bf16.msra.mxu0 %v3307
    %3716 = vmatpush.bf16.msra.mxu0 %v3303
    %3717 = vmatpush.bf16.msra.mxu0 %v3299
    %3718 = vmatpush.bf16.msra.mxu0 %v3295
    %3719 = vmatpush.bf16.msra.mxu0 %v3291
    %3720 = vmatpush.bf16.msra.mxu0 %v3287
    %3721 = vmatpush.bf16.msra.mxu0 %v3283
    %3722 = vmatpush.bf16.msra.mxu0 %v3279
    %3723 = vmatmul.bf16.gmra.mxu0 %v3049
    %v3724 = vpop.f32.mrf.mxu0
    %v3725 = vadd.f32 %v3676, %v3724
    %v3726 = vpop.f32.mrf.mxu0
    %v3727 = vadd.f32 %v3678, %v3726
    %3728 = vmatmul.bf16.gmra.mxu0 %v2299
    %v3729 = vpop.f32.mrf.mxu0
    %v3730 = vadd.f32 %v3681, %v3729
    %v3731 = vpop.f32.mrf.mxu0
    %v3732 = vadd.f32 %v3683, %v3731
    %3733 = vmatmul.bf16.gmra.mxu0 %v2301
    %v3734 = vpop.f32.mrf.mxu0
    %v3735 = vadd.f32 %v3686, %v3734
    %v3736 = vpop.f32.mrf.mxu0
    %v3737 = vadd.f32 %v3688, %v3736
    %3738 = vmatmul.bf16.gmra.mxu0 %v2303
    %v3739 = vpop.f32.mrf.mxu0
    %v3740 = vadd.f32 %v3691, %v3739
    %v3741 = vpop.f32.mrf.mxu0
    %v3742 = vadd.f32 %v3693, %v3741
    %3743 = vmatmul.bf16.gmra.mxu0 %v2305
    %v3744 = vpop.f32.mrf.mxu0
    %v3745 = vadd.f32 %v3696, %v3744
    %v3746 = vpop.f32.mrf.mxu0
    %v3747 = vadd.f32 %v3698, %v3746
    %3748 = vmatmul.bf16.gmra.mxu0 %v2307
    %v3749 = vpop.f32.mrf.mxu0
    %v3750 = vadd.f32 %v3701, %v3749
    %v3751 = vpop.f32.mrf.mxu0
    %v3752 = vadd.f32 %v3703, %v3751
    %3753 = vmatmul.bf16.gmra.mxu0 %v2309
    %v3754 = vpop.f32.mrf.mxu0
    %v3755 = vadd.f32 %v3706, %v3754
    %v3756 = vpop.f32.mrf.mxu0
    %v3757 = vadd.f32 %v3708, %v3756
    %3758 = vmatmul.bf16.gmra.mxu0 %v2311
    %v3759 = vpop.f32.mrf.mxu0
    %v3760 = vadd.f32 %v3711, %v3759
    %v3761 = vpop.f32.mrf.mxu0
    %v3762 = vadd.f32 %v3713, %v3761
    %3763 = vdwg.mxu0
    %s3764 = scalar_lea.vmem %s3, 1024
    %v3765 = vld [vmem:[%s3764] sm:$0xff]
    %v3766 = vld [vmem:[%s3764 + $0x8] sm:$0xff]
    %v3767 = vld [vmem:[%s3764 + $0x10] sm:$0xff]
    %v3768 = vld [vmem:[%s3764 + $0x18] sm:$0xff]
    %v3769 = vld [vmem:[%s3764 + $0x20] sm:$0xff]
    %v3770 = vld [vmem:[%s3764 + $0x28] sm:$0xff]
    %v3771 = vld [vmem:[%s3764 + $0x30] sm:$0xff]
    %v3772 = vld [vmem:[%s3764 + $0x38] sm:$0xff]
    %v3773 = vld [vmem:[%s3764 + $0x40] sm:$0xff]
    %v3774 = vld [vmem:[%s3764 + $0x48] sm:$0xff]
    %v3775 = vld [vmem:[%s3764 + $0x50] sm:$0xff]
    %v3776 = vld [vmem:[%s3764 + $0x58] sm:$0xff]
    %v3777 = vld [vmem:[%s3764 + $0x60] sm:$0xff]
    %v3778 = vld [vmem:[%s3764 + $0x68] sm:$0xff]
    %v3779 = vld [vmem:[%s3764 + $0x70] sm:$0xff]
    %v3780 = vld [vmem:[%s3764 + $0x78] sm:$0xff]
    %v3781 = vld [vmem:[%s3764 + $0x80] sm:$0xff]
    %v3782 = vld [vmem:[%s3764 + $0x88] sm:$0xff]
    %v3783 = vld [vmem:[%s3764 + $0x90] sm:$0xff]
    %v3784 = vld [vmem:[%s3764 + $0x98] sm:$0xff]
    %v3785 = vld [vmem:[%s3764 + $0xa0] sm:$0xff]
    %v3786 = vld [vmem:[%s3764 + $0xa8] sm:$0xff]
    %v3787 = vld [vmem:[%s3764 + $0xb0] sm:$0xff]
    %v3788 = vld [vmem:[%s3764 + $0xb8] sm:$0xff]
    %v3789 = vld [vmem:[%s3764 + $0xc0] sm:$0xff]
    %v3790 = vld [vmem:[%s3764 + $0xc8] sm:$0xff]
    %v3791 = vld [vmem:[%s3764 + $0xd0] sm:$0xff]
    %v3792 = vld [vmem:[%s3764 + $0xd8] sm:$0xff]
    %v3793 = vld [vmem:[%s3764 + $0xe0] sm:$0xff]
    %v3794 = vld [vmem:[%s3764 + $0xe8] sm:$0xff]
    %v3795 = vld [vmem:[%s3764 + $0xf0] sm:$0xff]
    %v3796 = vld [vmem:[%s3764 + $0xf8] sm:$0xff]
    %v3797 = vld [vmem:[%s3764 + $0x100] sm:$0xff]
    %v3798 = vld [vmem:[%s3764 + $0x108] sm:$0xff]
    %v3799 = vld [vmem:[%s3764 + $0x110] sm:$0xff]
    %v3800 = vld [vmem:[%s3764 + $0x118] sm:$0xff]
    %v3801 = vld [vmem:[%s3764 + $0x120] sm:$0xff]
    %v3802 = vld [vmem:[%s3764 + $0x128] sm:$0xff]
    %v3803 = vld [vmem:[%s3764 + $0x130] sm:$0xff]
    %v3804 = vld [vmem:[%s3764 + $0x138] sm:$0xff]
    %v3805 = vld [vmem:[%s3764 + $0x140] sm:$0xff]
    %v3806 = vld [vmem:[%s3764 + $0x148] sm:$0xff]
    %v3807 = vld [vmem:[%s3764 + $0x150] sm:$0xff]
    %v3808 = vld [vmem:[%s3764 + $0x158] sm:$0xff]
    %v3809 = vld [vmem:[%s3764 + $0x160] sm:$0xff]
    %v3810 = vld [vmem:[%s3764 + $0x168] sm:$0xff]
    %v3811 = vld [vmem:[%s3764 + $0x170] sm:$0xff]
    %v3812 = vld [vmem:[%s3764 + $0x178] sm:$0xff]
    %v3813 = vld [vmem:[%s3764 + $0x180] sm:$0xff]
    %v3814 = vld [vmem:[%s3764 + $0x188] sm:$0xff]
    %v3815 = vld [vmem:[%s3764 + $0x190] sm:$0xff]
    %v3816 = vld [vmem:[%s3764 + $0x198] sm:$0xff]
    %v3817 = vld [vmem:[%s3764 + $0x1a0] sm:$0xff]
    %v3818 = vld [vmem:[%s3764 + $0x1a8] sm:$0xff]
    %v3819 = vld [vmem:[%s3764 + $0x1b0] sm:$0xff]
    %v3820 = vld [vmem:[%s3764 + $0x1b8] sm:$0xff]
    %v3821 = vld [vmem:[%s3764 + $0x1c0] sm:$0xff]
    %v3822 = vld [vmem:[%s3764 + $0x1c8] sm:$0xff]
    %v3823 = vld [vmem:[%s3764 + $0x1d0] sm:$0xff]
    %v3824 = vld [vmem:[%s3764 + $0x1d8] sm:$0xff]
    %v3825 = vld [vmem:[%s3764 + $0x1e0] sm:$0xff]
    %v3826 = vld [vmem:[%s3764 + $0x1e8] sm:$0xff]
    %v3827 = vld [vmem:[%s3764 + $0x1f0] sm:$0xff]
    %v3828 = vld [vmem:[%s3764 + $0x1f8] sm:$0xff]
    %v3831 = vunpack.c.l.b16 %v2115
    %v3832 = vunpack.c.h.b16 %v2115
    %v3833 = vunpack.c.l.b16 %v2116
    %v3834 = vunpack.c.h.b16 %v2116
    %v3835 = vpack.c.b16 %v3833, %v3831
    %v3836 = vpack.c.b16 %v3834, %v3832
    %v3903 = vunpack.c.l.b16 %v3765
    %v3904 = vunpack.c.h.b16 %v3765
    %v3905 = vunpack.c.l.b16 %v3766
    %v3906 = vunpack.c.h.b16 %v3766
    %v3907 = vunpack.c.l.b16 %v3767
    %v3908 = vunpack.c.h.b16 %v3767
    %v3909 = vunpack.c.l.b16 %v3768
    %v3910 = vunpack.c.h.b16 %v3768
    %v3911 = vunpack.c.l.b16 %v3769
    %v3912 = vunpack.c.h.b16 %v3769
    %v3913 = vunpack.c.l.b16 %v3770
    %v3914 = vunpack.c.h.b16 %v3770
    %v3915 = vunpack.c.l.b16 %v3771
    %v3916 = vunpack.c.h.b16 %v3771
    %v3917 = vunpack.c.l.b16 %v3772
    %v3918 = vunpack.c.h.b16 %v3772
    %v3919 = vunpack.c.l.b16 %v3773
    %v3920 = vunpack.c.h.b16 %v3773
    %v3921 = vunpack.c.l.b16 %v3774
    %v3922 = vunpack.c.h.b16 %v3774
    %v3923 = vunpack.c.l.b16 %v3775
    %v3924 = vunpack.c.h.b16 %v3775
    %v3925 = vunpack.c.l.b16 %v3776
    %v3926 = vunpack.c.h.b16 %v3776
    %v3927 = vunpack.c.l.b16 %v3777
    %v3928 = vunpack.c.h.b16 %v3777
    %v3929 = vunpack.c.l.b16 %v3778
    %v3930 = vunpack.c.h.b16 %v3778
    %v3931 = vunpack.c.l.b16 %v3779
    %v3932 = vunpack.c.h.b16 %v3779
    %v3933 = vunpack.c.l.b16 %v3780
    %v3934 = vunpack.c.h.b16 %v3780
    %v3935 = vunpack.c.l.b16 %v3781
    %v3936 = vunpack.c.h.b16 %v3781
    %v3937 = vunpack.c.l.b16 %v3782
    %v3938 = vunpack.c.h.b16 %v3782
    %v3939 = vunpack.c.l.b16 %v3783
    %v3940 = vunpack.c.h.b16 %v3783
    %v3941 = vunpack.c.l.b16 %v3784
    %v3942 = vunpack.c.h.b16 %v3784
    %v3943 = vunpack.c.l.b16 %v3785
    %v3944 = vunpack.c.h.b16 %v3785
    %v3945 = vunpack.c.l.b16 %v3786
    %v3946 = vunpack.c.h.b16 %v3786
    %v3947 = vunpack.c.l.b16 %v3787
    %v3948 = vunpack.c.h.b16 %v3787
    %v3949 = vunpack.c.l.b16 %v3788
    %v3950 = vunpack.c.h.b16 %v3788
    %v3951 = vunpack.c.l.b16 %v3789
    %v3952 = vunpack.c.h.b16 %v3789
    %v3953 = vunpack.c.l.b16 %v3790
    %v3954 = vunpack.c.h.b16 %v3790
    %v3955 = vunpack.c.l.b16 %v3791
    %v3956 = vunpack.c.h.b16 %v3791
    %v3957 = vunpack.c.l.b16 %v3792
    %v3958 = vunpack.c.h.b16 %v3792
    %v3959 = vunpack.c.l.b16 %v3793
    %v3960 = vunpack.c.h.b16 %v3793
    %v3961 = vunpack.c.l.b16 %v3794
    %v3962 = vunpack.c.h.b16 %v3794
    %v3963 = vunpack.c.l.b16 %v3795
    %v3964 = vunpack.c.h.b16 %v3795
    %v3965 = vunpack.c.l.b16 %v3796
    %v3966 = vunpack.c.h.b16 %v3796
    %v3967 = vunpack.c.l.b16 %v3797
    %v3968 = vunpack.c.h.b16 %v3797
    %v3969 = vunpack.c.l.b16 %v3798
    %v3970 = vunpack.c.h.b16 %v3798
    %v3971 = vunpack.c.l.b16 %v3799
    %v3972 = vunpack.c.h.b16 %v3799
    %v3973 = vunpack.c.l.b16 %v3800
    %v3974 = vunpack.c.h.b16 %v3800
    %v3975 = vunpack.c.l.b16 %v3801
    %v3976 = vunpack.c.h.b16 %v3801
    %v3977 = vunpack.c.l.b16 %v3802
    %v3978 = vunpack.c.h.b16 %v3802
    %v3979 = vunpack.c.l.b16 %v3803
    %v3980 = vunpack.c.h.b16 %v3803
    %v3981 = vunpack.c.l.b16 %v3804
    %v3982 = vunpack.c.h.b16 %v3804
    %v3983 = vunpack.c.l.b16 %v3805
    %v3984 = vunpack.c.h.b16 %v3805
    %v3985 = vunpack.c.l.b16 %v3806
    %v3986 = vunpack.c.h.b16 %v3806
    %v3987 = vunpack.c.l.b16 %v3807
    %v3988 = vunpack.c.h.b16 %v3807
    %v3989 = vunpack.c.l.b16 %v3808
    %v3990 = vunpack.c.h.b16 %v3808
    %v3991 = vunpack.c.l.b16 %v3809
    %v3992 = vunpack.c.h.b16 %v3809
    %v3993 = vunpack.c.l.b16 %v3810
    %v3994 = vunpack.c.h.b16 %v3810
    %v3995 = vunpack.c.l.b16 %v3811
    %v3996 = vunpack.c.h.b16 %v3811
    %v3997 = vunpack.c.l.b16 %v3812
    %v3998 = vunpack.c.h.b16 %v3812
    %v3999 = vunpack.c.l.b16 %v3813
    %v4000 = vunpack.c.h.b16 %v3813
    %v4001 = vunpack.c.l.b16 %v3814
    %v4002 = vunpack.c.h.b16 %v3814
    %v4003 = vunpack.c.l.b16 %v3815
    %v4004 = vunpack.c.h.b16 %v3815
    %v4005 = vunpack.c.l.b16 %v3816
    %v4006 = vunpack.c.h.b16 %v3816
    %v4007 = vunpack.c.l.b16 %v3817
    %v4008 = vunpack.c.h.b16 %v3817
    %v4009 = vunpack.c.l.b16 %v3818
    %v4010 = vunpack.c.h.b16 %v3818
    %v4011 = vunpack.c.l.b16 %v3819
    %v4012 = vunpack.c.h.b16 %v3819
    %v4013 = vunpack.c.l.b16 %v3820
    %v4014 = vunpack.c.h.b16 %v3820
    %v4015 = vunpack.c.l.b16 %v3821
    %v4016 = vunpack.c.h.b16 %v3821
    %v4017 = vunpack.c.l.b16 %v3822
    %v4018 = vunpack.c.h.b16 %v3822
    %v4019 = vunpack.c.l.b16 %v3823
    %v4020 = vunpack.c.h.b16 %v3823
    %v4021 = vunpack.c.l.b16 %v3824
    %v4022 = vunpack.c.h.b16 %v3824
    %v4023 = vunpack.c.l.b16 %v3825
    %v4024 = vunpack.c.h.b16 %v3825
    %v4025 = vunpack.c.l.b16 %v3826
    %v4026 = vunpack.c.h.b16 %v3826
    %v4027 = vunpack.c.l.b16 %v3827
    %v4028 = vunpack.c.h.b16 %v3827
    %v4029 = vunpack.c.l.b16 %v3828
    %v4030 = vunpack.c.h.b16 %v3828
    %v4031 = vpack.c.b16 %v3907, %v3903
    %v4032 = vpack.c.b16 %v3908, %v3904
    %v4033 = vpack.c.b16 %v3909, %v3905
    %v4034 = vpack.c.b16 %v3910, %v3906
    %v4035 = vpack.c.b16 %v3915, %v3911
    %v4036 = vpack.c.b16 %v3916, %v3912
    %v4037 = vpack.c.b16 %v3917, %v3913
    %v4038 = vpack.c.b16 %v3918, %v3914
    %v4039 = vpack.c.b16 %v3923, %v3919
    %v4040 = vpack.c.b16 %v3924, %v3920
    %v4041 = vpack.c.b16 %v3925, %v3921
    %v4042 = vpack.c.b16 %v3926, %v3922
    %v4043 = vpack.c.b16 %v3931, %v3927
    %v4044 = vpack.c.b16 %v3932, %v3928
    %v4045 = vpack.c.b16 %v3933, %v3929
    %v4046 = vpack.c.b16 %v3934, %v3930
    %v4047 = vpack.c.b16 %v3939, %v3935
    %v4048 = vpack.c.b16 %v3940, %v3936
    %v4049 = vpack.c.b16 %v3941, %v3937
    %v4050 = vpack.c.b16 %v3942, %v3938
    %v4051 = vpack.c.b16 %v3947, %v3943
    %v4052 = vpack.c.b16 %v3948, %v3944
    %v4053 = vpack.c.b16 %v3949, %v3945
    %v4054 = vpack.c.b16 %v3950, %v3946
    %v4055 = vpack.c.b16 %v3955, %v3951
    %v4056 = vpack.c.b16 %v3956, %v3952
    %v4057 = vpack.c.b16 %v3957, %v3953
    %v4058 = vpack.c.b16 %v3958, %v3954
    %v4059 = vpack.c.b16 %v3963, %v3959
    %v4060 = vpack.c.b16 %v3964, %v3960
    %v4061 = vpack.c.b16 %v3965, %v3961
    %v4062 = vpack.c.b16 %v3966, %v3962
    %v4063 = vpack.c.b16 %v3971, %v3967
    %v4064 = vpack.c.b16 %v3972, %v3968
    %v4065 = vpack.c.b16 %v3973, %v3969
    %v4066 = vpack.c.b16 %v3974, %v3970
    %v4067 = vpack.c.b16 %v3979, %v3975
    %v4068 = vpack.c.b16 %v3980, %v3976
    %v4069 = vpack.c.b16 %v3981, %v3977
    %v4070 = vpack.c.b16 %v3982, %v3978
    %v4071 = vpack.c.b16 %v3987, %v3983
    %v4072 = vpack.c.b16 %v3988, %v3984
    %v4073 = vpack.c.b16 %v3989, %v3985
    %v4074 = vpack.c.b16 %v3990, %v3986
    %v4075 = vpack.c.b16 %v3995, %v3991
    %v4076 = vpack.c.b16 %v3996, %v3992
    %v4077 = vpack.c.b16 %v3997, %v3993
    %v4078 = vpack.c.b16 %v3998, %v3994
    %v4079 = vpack.c.b16 %v4003, %v3999
    %v4080 = vpack.c.b16 %v4004, %v4000
    %v4081 = vpack.c.b16 %v4005, %v4001
    %v4082 = vpack.c.b16 %v4006, %v4002
    %v4083 = vpack.c.b16 %v4011, %v4007
    %v4084 = vpack.c.b16 %v4012, %v4008
    %v4085 = vpack.c.b16 %v4013, %v4009
    %v4086 = vpack.c.b16 %v4014, %v4010
    %v4087 = vpack.c.b16 %v4019, %v4015
    %v4088 = vpack.c.b16 %v4020, %v4016
    %v4089 = vpack.c.b16 %v4021, %v4017
    %v4090 = vpack.c.b16 %v4022, %v4018
    %v4091 = vpack.c.b16 %v4027, %v4023
    %v4092 = vpack.c.b16 %v4028, %v4024
    %v4093 = vpack.c.b16 %v4029, %v4025
    %v4094 = vpack.c.b16 %v4030, %v4026
    %4159 = vmatpush.bf16.msra.mxu0 %v4059
    %4160 = vmatpush.bf16.msra.mxu0 %v4055
    %4161 = vmatpush.bf16.msra.mxu0 %v4051
    %4162 = vmatpush.bf16.msra.mxu0 %v4047
    %4163 = vmatpush.bf16.msra.mxu0 %v4043
    %4164 = vmatpush.bf16.msra.mxu0 %v4039
    %4165 = vmatpush.bf16.msra.mxu0 %v4035
    %4166 = vmatpush.bf16.msra.mxu0 %v4031
    %4167 = vmatmul.bf16.gmra.mxu0 %v2300
    %v4168 = vpop.f32.mrf.mxu0
    %v4169 = vadd.f32 0.0, %v4168
    %v4170 = vpop.f32.mrf.mxu0
    %v4171 = vadd.f32 0.0, %v4170
    %4172 = vmatmul.bf16.gmra.mxu0 %v2302
    %v4173 = vpop.f32.mrf.mxu0
    %v4174 = vadd.f32 0.0, %v4173
    %v4175 = vpop.f32.mrf.mxu0
    %v4176 = vadd.f32 0.0, %v4175
    %4177 = vmatmul.bf16.gmra.mxu0 %v2304
    %v4178 = vpop.f32.mrf.mxu0
    %v4179 = vadd.f32 0.0, %v4178
    %v4180 = vpop.f32.mrf.mxu0
    %v4181 = vadd.f32 0.0, %v4180
    %4182 = vmatmul.bf16.gmra.mxu0 %v2306
    %v4183 = vpop.f32.mrf.mxu0
    %v4184 = vadd.f32 0.0, %v4183
    %v4185 = vpop.f32.mrf.mxu0
    %v4186 = vadd.f32 0.0, %v4185
    %4187 = vmatmul.bf16.gmra.mxu0 %v2308
    %v4188 = vpop.f32.mrf.mxu0
    %v4189 = vadd.f32 0.0, %v4188
    %v4190 = vpop.f32.mrf.mxu0
    %v4191 = vadd.f32 0.0, %v4190
    %4192 = vmatmul.bf16.gmra.mxu0 %v2310
    %v4193 = vpop.f32.mrf.mxu0
    %v4194 = vadd.f32 0.0, %v4193
    %v4195 = vpop.f32.mrf.mxu0
    %v4196 = vadd.f32 0.0, %v4195
    %4197 = vmatmul.bf16.gmra.mxu0 %v2312
    %v4198 = vpop.f32.mrf.mxu0
    %v4199 = vadd.f32 0.0, %v4198
    %v4200 = vpop.f32.mrf.mxu0
    %v4201 = vadd.f32 0.0, %v4200
    %4202 = vmatmul.bf16.gmra.mxu0 %v3835
    %v4203 = vpop.f32.mrf.mxu0
    %v4204 = vadd.f32 0.0, %v4203
    %v4205 = vpop.f32.mrf.mxu0
    %v4206 = vadd.f32 0.0, %v4205
    %4207 = vdwg.mxu0
    %4208 = vmatpush.bf16.msra.mxu0 %v4091
    %4209 = vmatpush.bf16.msra.mxu0 %v4087
    %4210 = vmatpush.bf16.msra.mxu0 %v4083
    %4211 = vmatpush.bf16.msra.mxu0 %v4079
    %4212 = vmatpush.bf16.msra.mxu0 %v4075
    %4213 = vmatpush.bf16.msra.mxu0 %v4071
    %4214 = vmatpush.bf16.msra.mxu0 %v4067
    %4215 = vmatpush.bf16.msra.mxu0 %v4063
    %4216 = vmatmul.bf16.gmra.mxu0 %v2301
    %v4217 = vpop.f32.mrf.mxu0
    %v4218 = vadd.f32 %v4169, %v4217
    %v4219 = vpop.f32.mrf.mxu0
    %v4220 = vadd.f32 %v4171, %v4219
    %4221 = vmatmul.bf16.gmra.mxu0 %v2303
    %v4222 = vpop.f32.mrf.mxu0
    %v4223 = vadd.f32 %v4174, %v4222
    %v4224 = vpop.f32.mrf.mxu0
    %v4225 = vadd.f32 %v4176, %v4224
    %4226 = vmatmul.bf16.gmra.mxu0 %v2305
    %v4227 = vpop.f32.mrf.mxu0
    %v4228 = vadd.f32 %v4179, %v4227
    %v4229 = vpop.f32.mrf.mxu0
    %v4230 = vadd.f32 %v4181, %v4229
    %4231 = vmatmul.bf16.gmra.mxu0 %v2307
    %v4232 = vpop.f32.mrf.mxu0
    %v4233 = vadd.f32 %v4184, %v4232
    %v4234 = vpop.f32.mrf.mxu0
    %v4235 = vadd.f32 %v4186, %v4234
    %4236 = vmatmul.bf16.gmra.mxu0 %v2309
    %v4237 = vpop.f32.mrf.mxu0
    %v4238 = vadd.f32 %v4189, %v4237
    %v4239 = vpop.f32.mrf.mxu0
    %v4240 = vadd.f32 %v4191, %v4239
    %4241 = vmatmul.bf16.gmra.mxu0 %v2311
    %v4242 = vpop.f32.mrf.mxu0
    %v4243 = vadd.f32 %v4194, %v4242
    %v4244 = vpop.f32.mrf.mxu0
    %v4245 = vadd.f32 %v4196, %v4244
    %4246 = vmatmul.bf16.gmra.mxu0 %v2313
    %v4247 = vpop.f32.mrf.mxu0
    %v4248 = vadd.f32 %v4199, %v4247
    %v4249 = vpop.f32.mrf.mxu0
    %v4250 = vadd.f32 %v4201, %v4249
    %4251 = vmatmul.bf16.gmra.mxu0 %v3836
    %v4252 = vpop.f32.mrf.mxu0
    %v4253 = vadd.f32 %v4204, %v4252
    %v4254 = vpop.f32.mrf.mxu0
    %v4255 = vadd.f32 %v4206, %v4254
    %4256 = vdwg.mxu0
    %4257 = vmatpush.bf16.msra.mxu0 %v4060
    %4258 = vmatpush.bf16.msra.mxu0 %v4056
    %4259 = vmatpush.bf16.msra.mxu0 %v4052
    %4260 = vmatpush.bf16.msra.mxu0 %v4048
    %4261 = vmatpush.bf16.msra.mxu0 %v4044
    %4262 = vmatpush.bf16.msra.mxu0 %v4040
    %4263 = vmatpush.bf16.msra.mxu0 %v4036
    %4264 = vmatpush.bf16.msra.mxu0 %v4032
    %4265 = vmatmul.bf16.gmra.mxu0 %v2300
    %v4266 = vpop.f32.mrf.mxu0
    %v4267 = vadd.f32 0.0, %v4266
    %v4268 = vpop.f32.mrf.mxu0
    %v4269 = vadd.f32 0.0, %v4268
    %4270 = vmatmul.bf16.gmra.mxu0 %v2302
    %v4271 = vpop.f32.mrf.mxu0
    %v4272 = vadd.f32 0.0, %v4271
    %v4273 = vpop.f32.mrf.mxu0
    %v4274 = vadd.f32 0.0, %v4273
    %4275 = vmatmul.bf16.gmra.mxu0 %v2304
    %v4276 = vpop.f32.mrf.mxu0
    %v4277 = vadd.f32 0.0, %v4276
    %v4278 = vpop.f32.mrf.mxu0
    %v4279 = vadd.f32 0.0, %v4278
    %4280 = vmatmul.bf16.gmra.mxu0 %v2306
    %v4281 = vpop.f32.mrf.mxu0
    %v4282 = vadd.f32 0.0, %v4281
    %v4283 = vpop.f32.mrf.mxu0
    %v4284 = vadd.f32 0.0, %v4283
    %4285 = vmatmul.bf16.gmra.mxu0 %v2308
    %v4286 = vpop.f32.mrf.mxu0
    %v4287 = vadd.f32 0.0, %v4286
    %v4288 = vpop.f32.mrf.mxu0
    %v4289 = vadd.f32 0.0, %v4288
    %4290 = vmatmul.bf16.gmra.mxu0 %v2310
    %v4291 = vpop.f32.mrf.mxu0
    %v4292 = vadd.f32 0.0, %v4291
    %v4293 = vpop.f32.mrf.mxu0
    %v4294 = vadd.f32 0.0, %v4293
    %4295 = vmatmul.bf16.gmra.mxu0 %v2312
    %v4296 = vpop.f32.mrf.mxu0
    %v4297 = vadd.f32 0.0, %v4296
    %v4298 = vpop.f32.mrf.mxu0
    %v4299 = vadd.f32 0.0, %v4298
    %4300 = vmatmul.bf16.gmra.mxu0 %v3835
    %v4301 = vpop.f32.mrf.mxu0
    %v4302 = vadd.f32 0.0, %v4301
    %v4303 = vpop.f32.mrf.mxu0
    %v4304 = vadd.f32 0.0, %v4303
    %4305 = vdwg.mxu0
    %4306 = vmatpush.bf16.msra.mxu0 %v4092
    %4307 = vmatpush.bf16.msra.mxu0 %v4088
    %4308 = vmatpush.bf16.msra.mxu0 %v4084
    %4309 = vmatpush.bf16.msra.mxu0 %v4080
    %4310 = vmatpush.bf16.msra.mxu0 %v4076
    %4311 = vmatpush.bf16.msra.mxu0 %v4072
    %4312 = vmatpush.bf16.msra.mxu0 %v4068
    %4313 = vmatpush.bf16.msra.mxu0 %v4064
    %4314 = vmatmul.bf16.gmra.mxu0 %v2301
    %v4315 = vpop.f32.mrf.mxu0
    %v4316 = vadd.f32 %v4267, %v4315
    %v4317 = vpop.f32.mrf.mxu0
    %v4318 = vadd.f32 %v4269, %v4317
    %4319 = vmatmul.bf16.gmra.mxu0 %v2303
    %v4320 = vpop.f32.mrf.mxu0
    %v4321 = vadd.f32 %v4272, %v4320
    %v4322 = vpop.f32.mrf.mxu0
    %v4323 = vadd.f32 %v4274, %v4322
    %4324 = vmatmul.bf16.gmra.mxu0 %v2305
    %v4325 = vpop.f32.mrf.mxu0
    %v4326 = vadd.f32 %v4277, %v4325
    %v4327 = vpop.f32.mrf.mxu0
    %v4328 = vadd.f32 %v4279, %v4327
    %4329 = vmatmul.bf16.gmra.mxu0 %v2307
    %v4330 = vpop.f32.mrf.mxu0
    %v4331 = vadd.f32 %v4282, %v4330
    %v4332 = vpop.f32.mrf.mxu0
    %v4333 = vadd.f32 %v4284, %v4332
    %4334 = vmatmul.bf16.gmra.mxu0 %v2309
    %v4335 = vpop.f32.mrf.mxu0
    %v4336 = vadd.f32 %v4287, %v4335
    %v4337 = vpop.f32.mrf.mxu0
    %v4338 = vadd.f32 %v4289, %v4337
    %4339 = vmatmul.bf16.gmra.mxu0 %v2311
    %v4340 = vpop.f32.mrf.mxu0
    %v4341 = vadd.f32 %v4292, %v4340
    %v4342 = vpop.f32.mrf.mxu0
    %v4343 = vadd.f32 %v4294, %v4342
    %4344 = vmatmul.bf16.gmra.mxu0 %v2313
    %v4345 = vpop.f32.mrf.mxu0
    %v4346 = vadd.f32 %v4297, %v4345
    %v4347 = vpop.f32.mrf.mxu0
    %v4348 = vadd.f32 %v4299, %v4347
    %4349 = vmatmul.bf16.gmra.mxu0 %v3836
    %v4350 = vpop.f32.mrf.mxu0
    %v4351 = vadd.f32 %v4302, %v4350
    %v4352 = vpop.f32.mrf.mxu0
    %v4353 = vadd.f32 %v4304, %v4352
    %4354 = vdwg.mxu0
    %4355 = vmatpush.bf16.msra.mxu0 %v4061
    %4356 = vmatpush.bf16.msra.mxu0 %v4057
    %4357 = vmatpush.bf16.msra.mxu0 %v4053
    %4358 = vmatpush.bf16.msra.mxu0 %v4049
    %4359 = vmatpush.bf16.msra.mxu0 %v4045
    %4360 = vmatpush.bf16.msra.mxu0 %v4041
    %4361 = vmatpush.bf16.msra.mxu0 %v4037
    %4362 = vmatpush.bf16.msra.mxu0 %v4033
    %4363 = vmatmul.bf16.gmra.mxu0 %v2300
    %v4364 = vpop.f32.mrf.mxu0
    %v4365 = vadd.f32 0.0, %v4364
    %v4366 = vpop.f32.mrf.mxu0
    %v4367 = vadd.f32 0.0, %v4366
    %4368 = vmatmul.bf16.gmra.mxu0 %v2302
    %v4369 = vpop.f32.mrf.mxu0
    %v4370 = vadd.f32 0.0, %v4369
    %v4371 = vpop.f32.mrf.mxu0
    %v4372 = vadd.f32 0.0, %v4371
    %4373 = vmatmul.bf16.gmra.mxu0 %v2304
    %v4374 = vpop.f32.mrf.mxu0
    %v4375 = vadd.f32 0.0, %v4374
    %v4376 = vpop.f32.mrf.mxu0
    %v4377 = vadd.f32 0.0, %v4376
    %4378 = vmatmul.bf16.gmra.mxu0 %v2306
    %v4379 = vpop.f32.mrf.mxu0
    %v4380 = vadd.f32 0.0, %v4379
    %v4381 = vpop.f32.mrf.mxu0
    %v4382 = vadd.f32 0.0, %v4381
    %4383 = vmatmul.bf16.gmra.mxu0 %v2308
    %v4384 = vpop.f32.mrf.mxu0
    %v4385 = vadd.f32 0.0, %v4384
    %v4386 = vpop.f32.mrf.mxu0
    %v4387 = vadd.f32 0.0, %v4386
    %4388 = vmatmul.bf16.gmra.mxu0 %v2310
    %v4389 = vpop.f32.mrf.mxu0
    %v4390 = vadd.f32 0.0, %v4389
    %v4391 = vpop.f32.mrf.mxu0
    %v4392 = vadd.f32 0.0, %v4391
    %4393 = vmatmul.bf16.gmra.mxu0 %v2312
    %v4394 = vpop.f32.mrf.mxu0
    %v4395 = vadd.f32 0.0, %v4394
    %v4396 = vpop.f32.mrf.mxu0
    %v4397 = vadd.f32 0.0, %v4396
    %4398 = vmatmul.bf16.gmra.mxu0 %v3835
    %v4399 = vpop.f32.mrf.mxu0
    %v4400 = vadd.f32 0.0, %v4399
    %v4401 = vpop.f32.mrf.mxu0
    %v4402 = vadd.f32 0.0, %v4401
    %4403 = vdwg.mxu0
    %4404 = vmatpush.bf16.msra.mxu0 %v4093
    %4405 = vmatpush.bf16.msra.mxu0 %v4089
    %4406 = vmatpush.bf16.msra.mxu0 %v4085
    %4407 = vmatpush.bf16.msra.mxu0 %v4081
    %4408 = vmatpush.bf16.msra.mxu0 %v4077
    %4409 = vmatpush.bf16.msra.mxu0 %v4073
    %4410 = vmatpush.bf16.msra.mxu0 %v4069
    %4411 = vmatpush.bf16.msra.mxu0 %v4065
    %4412 = vmatmul.bf16.gmra.mxu0 %v2301
    %v4413 = vpop.f32.mrf.mxu0
    %v4414 = vadd.f32 %v4365, %v4413
    %v4415 = vpop.f32.mrf.mxu0
    %v4416 = vadd.f32 %v4367, %v4415
    %4417 = vmatmul.bf16.gmra.mxu0 %v2303
    %v4418 = vpop.f32.mrf.mxu0
    %v4419 = vadd.f32 %v4370, %v4418
    %v4420 = vpop.f32.mrf.mxu0
    %v4421 = vadd.f32 %v4372, %v4420
    %4422 = vmatmul.bf16.gmra.mxu0 %v2305
    %v4423 = vpop.f32.mrf.mxu0
    %v4424 = vadd.f32 %v4375, %v4423
    %v4425 = vpop.f32.mrf.mxu0
    %v4426 = vadd.f32 %v4377, %v4425
    %4427 = vmatmul.bf16.gmra.mxu0 %v2307
    %v4428 = vpop.f32.mrf.mxu0
    %v4429 = vadd.f32 %v4380, %v4428
    %v4430 = vpop.f32.mrf.mxu0
    %v4431 = vadd.f32 %v4382, %v4430
    %4432 = vmatmul.bf16.gmra.mxu0 %v2309
    %v4433 = vpop.f32.mrf.mxu0
    %v4434 = vadd.f32 %v4385, %v4433
    %v4435 = vpop.f32.mrf.mxu0
    %v4436 = vadd.f32 %v4387, %v4435
    %4437 = vmatmul.bf16.gmra.mxu0 %v2311
    %v4438 = vpop.f32.mrf.mxu0
    %v4439 = vadd.f32 %v4390, %v4438
    %v4440 = vpop.f32.mrf.mxu0
    %v4441 = vadd.f32 %v4392, %v4440
    %4442 = vmatmul.bf16.gmra.mxu0 %v2313
    %v4443 = vpop.f32.mrf.mxu0
    %v4444 = vadd.f32 %v4395, %v4443
    %v4445 = vpop.f32.mrf.mxu0
    %v4446 = vadd.f32 %v4397, %v4445
    %4447 = vmatmul.bf16.gmra.mxu0 %v3836
    %v4448 = vpop.f32.mrf.mxu0
    %v4449 = vadd.f32 %v4400, %v4448
    %v4450 = vpop.f32.mrf.mxu0
    %v4451 = vadd.f32 %v4402, %v4450
    %4452 = vdwg.mxu0
    %4453 = vmatpush.bf16.msra.mxu0 %v4062
    %4454 = vmatpush.bf16.msra.mxu0 %v4058
    %4455 = vmatpush.bf16.msra.mxu0 %v4054
    %4456 = vmatpush.bf16.msra.mxu0 %v4050
    %4457 = vmatpush.bf16.msra.mxu0 %v4046
    %4458 = vmatpush.bf16.msra.mxu0 %v4042
    %4459 = vmatpush.bf16.msra.mxu0 %v4038
    %4460 = vmatpush.bf16.msra.mxu0 %v4034
    %4461 = vmatmul.bf16.gmra.mxu0 %v2300
    %v4462 = vpop.f32.mrf.mxu0
    %v4463 = vadd.f32 0.0, %v4462
    %v4464 = vpop.f32.mrf.mxu0
    %v4465 = vadd.f32 0.0, %v4464
    %4466 = vmatmul.bf16.gmra.mxu0 %v2302
    %v4467 = vpop.f32.mrf.mxu0
    %v4468 = vadd.f32 0.0, %v4467
    %v4469 = vpop.f32.mrf.mxu0
    %v4470 = vadd.f32 0.0, %v4469
    %4471 = vmatmul.bf16.gmra.mxu0 %v2304
    %v4472 = vpop.f32.mrf.mxu0
    %v4473 = vadd.f32 0.0, %v4472
    %v4474 = vpop.f32.mrf.mxu0
    %v4475 = vadd.f32 0.0, %v4474
    %4476 = vmatmul.bf16.gmra.mxu0 %v2306
    %v4477 = vpop.f32.mrf.mxu0
    %v4478 = vadd.f32 0.0, %v4477
    %v4479 = vpop.f32.mrf.mxu0
    %v4480 = vadd.f32 0.0, %v4479
    %4481 = vmatmul.bf16.gmra.mxu0 %v2308
    %v4482 = vpop.f32.mrf.mxu0
    %v4483 = vadd.f32 0.0, %v4482
    %v4484 = vpop.f32.mrf.mxu0
    %v4485 = vadd.f32 0.0, %v4484
    %4486 = vmatmul.bf16.gmra.mxu0 %v2310
    %v4487 = vpop.f32.mrf.mxu0
    %v4488 = vadd.f32 0.0, %v4487
    %v4489 = vpop.f32.mrf.mxu0
    %v4490 = vadd.f32 0.0, %v4489
    %4491 = vmatmul.bf16.gmra.mxu0 %v2312
    %v4492 = vpop.f32.mrf.mxu0
    %v4493 = vadd.f32 0.0, %v4492
    %v4494 = vpop.f32.mrf.mxu0
    %v4495 = vadd.f32 0.0, %v4494
    %4496 = vmatmul.bf16.gmra.mxu0 %v3835
    %v4497 = vpop.f32.mrf.mxu0
    %v4498 = vadd.f32 0.0, %v4497
    %v4499 = vpop.f32.mrf.mxu0
    %v4500 = vadd.f32 0.0, %v4499
    %4501 = vdwg.mxu0
    %4502 = vmatpush.bf16.msra.mxu0 %v4094
    %4503 = vmatpush.bf16.msra.mxu0 %v4090
    %4504 = vmatpush.bf16.msra.mxu0 %v4086
    %4505 = vmatpush.bf16.msra.mxu0 %v4082
    %4506 = vmatpush.bf16.msra.mxu0 %v4078
    %4507 = vmatpush.bf16.msra.mxu0 %v4074
    %4508 = vmatpush.bf16.msra.mxu0 %v4070
    %4509 = vmatpush.bf16.msra.mxu0 %v4066
    %4510 = vmatmul.bf16.gmra.mxu0 %v2301
    %v4511 = vpop.f32.mrf.mxu0
    %v4512 = vadd.f32 %v4463, %v4511
    %v4513 = vpop.f32.mrf.mxu0
    %v4514 = vadd.f32 %v4465, %v4513
    %4515 = vmatmul.bf16.gmra.mxu0 %v2303
    %v4516 = vpop.f32.mrf.mxu0
    %v4517 = vadd.f32 %v4468, %v4516
    %v4518 = vpop.f32.mrf.mxu0
    %v4519 = vadd.f32 %v4470, %v4518
    %4520 = vmatmul.bf16.gmra.mxu0 %v2305
    %v4521 = vpop.f32.mrf.mxu0
    %v4522 = vadd.f32 %v4473, %v4521
    %v4523 = vpop.f32.mrf.mxu0
    %v4524 = vadd.f32 %v4475, %v4523
    %4525 = vmatmul.bf16.gmra.mxu0 %v2307
    %v4526 = vpop.f32.mrf.mxu0
    %v4527 = vadd.f32 %v4478, %v4526
    %v4528 = vpop.f32.mrf.mxu0
    %v4529 = vadd.f32 %v4480, %v4528
    %4530 = vmatmul.bf16.gmra.mxu0 %v2309
    %v4531 = vpop.f32.mrf.mxu0
    %v4532 = vadd.f32 %v4483, %v4531
    %v4533 = vpop.f32.mrf.mxu0
    %v4534 = vadd.f32 %v4485, %v4533
    %4535 = vmatmul.bf16.gmra.mxu0 %v2311
    %v4536 = vpop.f32.mrf.mxu0
    %v4537 = vadd.f32 %v4488, %v4536
    %v4538 = vpop.f32.mrf.mxu0
    %v4539 = vadd.f32 %v4490, %v4538
    %4540 = vmatmul.bf16.gmra.mxu0 %v2313
    %v4541 = vpop.f32.mrf.mxu0
    %v4542 = vadd.f32 %v4493, %v4541
    %v4543 = vpop.f32.mrf.mxu0
    %v4544 = vadd.f32 %v4495, %v4543
    %4545 = vmatmul.bf16.gmra.mxu0 %v3836
    %v4546 = vpop.f32.mrf.mxu0
    %v4547 = vadd.f32 %v4498, %v4546
    %v4548 = vpop.f32.mrf.mxu0
    %v4549 = vadd.f32 %v4500, %v4548
    %4550 = vdwg.mxu0
    %v4551 = vadd.f32 %v3431, %v4218
    %v4552 = vadd.f32 %v3529, %v4316
    %v4553 = vadd.f32 %v3627, %v4414
    %v4554 = vadd.f32 %v3725, %v4512
    %v4555 = vadd.f32 %v3433, %v4220
    %v4556 = vadd.f32 %v3531, %v4318
    %v4557 = vadd.f32 %v3629, %v4416
    %v4558 = vadd.f32 %v3727, %v4514
    %v4559 = vadd.f32 %v3436, %v4223
    %v4560 = vadd.f32 %v3534, %v4321
    %v4561 = vadd.f32 %v3632, %v4419
    %v4562 = vadd.f32 %v3730, %v4517
    %v4563 = vadd.f32 %v3438, %v4225
    %v4564 = vadd.f32 %v3536, %v4323
    %v4565 = vadd.f32 %v3634, %v4421
    %v4566 = vadd.f32 %v3732, %v4519
    %v4567 = vadd.f32 %v3441, %v4228
    %v4568 = vadd.f32 %v3539, %v4326
    %v4569 = vadd.f32 %v3637, %v4424
    %v4570 = vadd.f32 %v3735, %v4522
    %v4571 = vadd.f32 %v3443, %v4230
    %v4572 = vadd.f32 %v3541, %v4328
    %v4573 = vadd.f32 %v3639, %v4426
    %v4574 = vadd.f32 %v3737, %v4524
    %v4575 = vadd.f32 %v3446, %v4233
    %v4576 = vadd.f32 %v3544, %v4331
    %v4577 = vadd.f32 %v3642, %v4429
    %v4578 = vadd.f32 %v3740, %v4527
    %v4579 = vadd.f32 %v3448, %v4235
    %v4580 = vadd.f32 %v3546, %v4333
    %v4581 = vadd.f32 %v3644, %v4431
    %v4582 = vadd.f32 %v3742, %v4529
    %v4583 = vadd.f32 %v3451, %v4238
    %v4584 = vadd.f32 %v3549, %v4336
    %v4585 = vadd.f32 %v3647, %v4434
    %v4586 = vadd.f32 %v3745, %v4532
    %v4587 = vadd.f32 %v3453, %v4240
    %v4588 = vadd.f32 %v3551, %v4338
    %v4589 = vadd.f32 %v3649, %v4436
    %v4590 = vadd.f32 %v3747, %v4534
    %v4591 = vadd.f32 %v3456, %v4243
    %v4592 = vadd.f32 %v3554, %v4341
    %v4593 = vadd.f32 %v3652, %v4439
    %v4594 = vadd.f32 %v3750, %v4537
    %v4595 = vadd.f32 %v3458, %v4245
    %v4596 = vadd.f32 %v3556, %v4343
    %v4597 = vadd.f32 %v3654, %v4441
    %v4598 = vadd.f32 %v3752, %v4539
    %v4599 = vadd.f32 %v3461, %v4248
    %v4600 = vadd.f32 %v3559, %v4346
    %v4601 = vadd.f32 %v3657, %v4444
    %v4602 = vadd.f32 %v3755, %v4542
    %v4603 = vadd.f32 %v3463, %v4250
    %v4604 = vadd.f32 %v3561, %v4348
    %v4605 = vadd.f32 %v3659, %v4446
    %v4606 = vadd.f32 %v3757, %v4544
    %v4607 = vadd.f32 %v3466, %v4253
    %v4608 = vadd.f32 %v3564, %v4351
    %v4609 = vadd.f32 %v3662, %v4449
    %v4610 = vadd.f32 %v3760, %v4547
    %v4611 = vadd.f32 %v3468, %v4255
    %v4612 = vadd.f32 %v3566, %v4353
    %v4613 = vadd.f32 %v3664, %v4451
    %v4614 = vadd.f32 %v3762, %v4549
    %s4615 = scalar_lea.vmem %s3, 1536
    %v4616 = vld [vmem:[%s4615] sm:$0xff]
    %v4617 = vld [vmem:[%s4615 + $0x8] sm:$0xff]
    %v4618 = vld [vmem:[%s4615 + $0x10] sm:$0xff]
    %v4619 = vld [vmem:[%s4615 + $0x18] sm:$0xff]
    %v4620 = vld [vmem:[%s4615 + $0x20] sm:$0xff]
    %v4621 = vld [vmem:[%s4615 + $0x28] sm:$0xff]
    %v4622 = vld [vmem:[%s4615 + $0x30] sm:$0xff]
    %v4623 = vld [vmem:[%s4615 + $0x38] sm:$0xff]
    %v4624 = vld [vmem:[%s4615 + $0x40] sm:$0xff]
    %v4625 = vld [vmem:[%s4615 + $0x48] sm:$0xff]
    %v4626 = vld [vmem:[%s4615 + $0x50] sm:$0xff]
    %v4627 = vld [vmem:[%s4615 + $0x58] sm:$0xff]
    %v4628 = vld [vmem:[%s4615 + $0x60] sm:$0xff]
    %v4629 = vld [vmem:[%s4615 + $0x68] sm:$0xff]
    %v4630 = vld [vmem:[%s4615 + $0x70] sm:$0xff]
    %v4631 = vld [vmem:[%s4615 + $0x78] sm:$0xff]
    %v4632 = vld [vmem:[%s4615 + $0x80] sm:$0xff]
    %v4633 = vld [vmem:[%s4615 + $0x88] sm:$0xff]
    %v4634 = vld [vmem:[%s4615 + $0x90] sm:$0xff]
    %v4635 = vld [vmem:[%s4615 + $0x98] sm:$0xff]
    %v4636 = vld [vmem:[%s4615 + $0xa0] sm:$0xff]
    %v4637 = vld [vmem:[%s4615 + $0xa8] sm:$0xff]
    %v4638 = vld [vmem:[%s4615 + $0xb0] sm:$0xff]
    %v4639 = vld [vmem:[%s4615 + $0xb8] sm:$0xff]
    %v4640 = vld [vmem:[%s4615 + $0xc0] sm:$0xff]
    %v4641 = vld [vmem:[%s4615 + $0xc8] sm:$0xff]
    %v4642 = vld [vmem:[%s4615 + $0xd0] sm:$0xff]
    %v4643 = vld [vmem:[%s4615 + $0xd8] sm:$0xff]
    %v4644 = vld [vmem:[%s4615 + $0xe0] sm:$0xff]
    %v4645 = vld [vmem:[%s4615 + $0xe8] sm:$0xff]
    %v4646 = vld [vmem:[%s4615 + $0xf0] sm:$0xff]
    %v4647 = vld [vmem:[%s4615 + $0xf8] sm:$0xff]
    %v4648 = vld [vmem:[%s4615 + $0x100] sm:$0xff]
    %v4649 = vld [vmem:[%s4615 + $0x108] sm:$0xff]
    %v4650 = vld [vmem:[%s4615 + $0x110] sm:$0xff]
    %v4651 = vld [vmem:[%s4615 + $0x118] sm:$0xff]
    %v4652 = vld [vmem:[%s4615 + $0x120] sm:$0xff]
    %v4653 = vld [vmem:[%s4615 + $0x128] sm:$0xff]
    %v4654 = vld [vmem:[%s4615 + $0x130] sm:$0xff]
    %v4655 = vld [vmem:[%s4615 + $0x138] sm:$0xff]
    %v4656 = vld [vmem:[%s4615 + $0x140] sm:$0xff]
    %v4657 = vld [vmem:[%s4615 + $0x148] sm:$0xff]
    %v4658 = vld [vmem:[%s4615 + $0x150] sm:$0xff]
    %v4659 = vld [vmem:[%s4615 + $0x158] sm:$0xff]
    %v4660 = vld [vmem:[%s4615 + $0x160] sm:$0xff]
    %v4661 = vld [vmem:[%s4615 + $0x168] sm:$0xff]
    %v4662 = vld [vmem:[%s4615 + $0x170] sm:$0xff]
    %v4663 = vld [vmem:[%s4615 + $0x178] sm:$0xff]
    %v4664 = vld [vmem:[%s4615 + $0x180] sm:$0xff]
    %v4665 = vld [vmem:[%s4615 + $0x188] sm:$0xff]
    %v4666 = vld [vmem:[%s4615 + $0x190] sm:$0xff]
    %v4667 = vld [vmem:[%s4615 + $0x198] sm:$0xff]
    %v4668 = vld [vmem:[%s4615 + $0x1a0] sm:$0xff]
    %v4669 = vld [vmem:[%s4615 + $0x1a8] sm:$0xff]
    %v4670 = vld [vmem:[%s4615 + $0x1b0] sm:$0xff]
    %v4671 = vld [vmem:[%s4615 + $0x1b8] sm:$0xff]
    %v4672 = vld [vmem:[%s4615 + $0x1c0] sm:$0xff]
    %v4673 = vld [vmem:[%s4615 + $0x1c8] sm:$0xff]
    %v4674 = vld [vmem:[%s4615 + $0x1d0] sm:$0xff]
    %v4675 = vld [vmem:[%s4615 + $0x1d8] sm:$0xff]
    %v4676 = vld [vmem:[%s4615 + $0x1e0] sm:$0xff]
    %v4677 = vld [vmem:[%s4615 + $0x1e8] sm:$0xff]
    %v4678 = vld [vmem:[%s4615 + $0x1f0] sm:$0xff]
    %v4679 = vld [vmem:[%s4615 + $0x1f8] sm:$0xff]
    %v4682 = vunpack.c.l.b16 %v2117
    %v4683 = vunpack.c.h.b16 %v2117
    %v4684 = vunpack.c.l.b16 %v2118
    %v4685 = vunpack.c.h.b16 %v2118
    %v4686 = vpack.c.b16 %v4684, %v4682
    %v4687 = vpack.c.b16 %v4685, %v4683
    %v4754 = vunpack.c.l.b16 %v4616
    %v4755 = vunpack.c.h.b16 %v4616
    %v4756 = vunpack.c.l.b16 %v4617
    %v4757 = vunpack.c.h.b16 %v4617
    %v4758 = vunpack.c.l.b16 %v4618
    %v4759 = vunpack.c.h.b16 %v4618
    %v4760 = vunpack.c.l.b16 %v4619
    %v4761 = vunpack.c.h.b16 %v4619
    %v4762 = vunpack.c.l.b16 %v4620
    %v4763 = vunpack.c.h.b16 %v4620
    %v4764 = vunpack.c.l.b16 %v4621
    %v4765 = vunpack.c.h.b16 %v4621
    %v4766 = vunpack.c.l.b16 %v4622
    %v4767 = vunpack.c.h.b16 %v4622
    %v4768 = vunpack.c.l.b16 %v4623
    %v4769 = vunpack.c.h.b16 %v4623
    %v4770 = vunpack.c.l.b16 %v4624
    %v4771 = vunpack.c.h.b16 %v4624
    %v4772 = vunpack.c.l.b16 %v4625
    %v4773 = vunpack.c.h.b16 %v4625
    %v4774 = vunpack.c.l.b16 %v4626
    %v4775 = vunpack.c.h.b16 %v4626
    %v4776 = vunpack.c.l.b16 %v4627
    %v4777 = vunpack.c.h.b16 %v4627
    %v4778 = vunpack.c.l.b16 %v4628
    %v4779 = vunpack.c.h.b16 %v4628
    %v4780 = vunpack.c.l.b16 %v4629
    %v4781 = vunpack.c.h.b16 %v4629
    %v4782 = vunpack.c.l.b16 %v4630
    %v4783 = vunpack.c.h.b16 %v4630
    %v4784 = vunpack.c.l.b16 %v4631
    %v4785 = vunpack.c.h.b16 %v4631
    %v4786 = vunpack.c.l.b16 %v4632
    %v4787 = vunpack.c.h.b16 %v4632
    %v4788 = vunpack.c.l.b16 %v4633
    %v4789 = vunpack.c.h.b16 %v4633
    %v4790 = vunpack.c.l.b16 %v4634
    %v4791 = vunpack.c.h.b16 %v4634
    %v4792 = vunpack.c.l.b16 %v4635
    %v4793 = vunpack.c.h.b16 %v4635
    %v4794 = vunpack.c.l.b16 %v4636
    %v4795 = vunpack.c.h.b16 %v4636
    %v4796 = vunpack.c.l.b16 %v4637
    %v4797 = vunpack.c.h.b16 %v4637
    %v4798 = vunpack.c.l.b16 %v4638
    %v4799 = vunpack.c.h.b16 %v4638
    %v4800 = vunpack.c.l.b16 %v4639
    %v4801 = vunpack.c.h.b16 %v4639
    %v4802 = vunpack.c.l.b16 %v4640
    %v4803 = vunpack.c.h.b16 %v4640
    %v4804 = vunpack.c.l.b16 %v4641
    %v4805 = vunpack.c.h.b16 %v4641
    %v4806 = vunpack.c.l.b16 %v4642
    %v4807 = vunpack.c.h.b16 %v4642
    %v4808 = vunpack.c.l.b16 %v4643
    %v4809 = vunpack.c.h.b16 %v4643
    %v4810 = vunpack.c.l.b16 %v4644
    %v4811 = vunpack.c.h.b16 %v4644
    %v4812 = vunpack.c.l.b16 %v4645
    %v4813 = vunpack.c.h.b16 %v4645
    %v4814 = vunpack.c.l.b16 %v4646
    %v4815 = vunpack.c.h.b16 %v4646
    %v4816 = vunpack.c.l.b16 %v4647
    %v4817 = vunpack.c.h.b16 %v4647
    %v4818 = vunpack.c.l.b16 %v4648
    %v4819 = vunpack.c.h.b16 %v4648
    %v4820 = vunpack.c.l.b16 %v4649
    %v4821 = vunpack.c.h.b16 %v4649
    %v4822 = vunpack.c.l.b16 %v4650
    %v4823 = vunpack.c.h.b16 %v4650
    %v4824 = vunpack.c.l.b16 %v4651
    %v4825 = vunpack.c.h.b16 %v4651
    %v4826 = vunpack.c.l.b16 %v4652
    %v4827 = vunpack.c.h.b16 %v4652
    %v4828 = vunpack.c.l.b16 %v4653
    %v4829 = vunpack.c.h.b16 %v4653
    %v4830 = vunpack.c.l.b16 %v4654
    %v4831 = vunpack.c.h.b16 %v4654
    %v4832 = vunpack.c.l.b16 %v4655
    %v4833 = vunpack.c.h.b16 %v4655
    %v4834 = vunpack.c.l.b16 %v4656
    %v4835 = vunpack.c.h.b16 %v4656
    %v4836 = vunpack.c.l.b16 %v4657
    %v4837 = vunpack.c.h.b16 %v4657
    %v4838 = vunpack.c.l.b16 %v4658
    %v4839 = vunpack.c.h.b16 %v4658
    %v4840 = vunpack.c.l.b16 %v4659
    %v4841 = vunpack.c.h.b16 %v4659
    %v4842 = vunpack.c.l.b16 %v4660
    %v4843 = vunpack.c.h.b16 %v4660
    %v4844 = vunpack.c.l.b16 %v4661
    %v4845 = vunpack.c.h.b16 %v4661
    %v4846 = vunpack.c.l.b16 %v4662
    %v4847 = vunpack.c.h.b16 %v4662
    %v4848 = vunpack.c.l.b16 %v4663
    %v4849 = vunpack.c.h.b16 %v4663
    %v4850 = vunpack.c.l.b16 %v4664
    %v4851 = vunpack.c.h.b16 %v4664
    %v4852 = vunpack.c.l.b16 %v4665
    %v4853 = vunpack.c.h.b16 %v4665
    %v4854 = vunpack.c.l.b16 %v4666
    %v4855 = vunpack.c.h.b16 %v4666
    %v4856 = vunpack.c.l.b16 %v4667
    %v4857 = vunpack.c.h.b16 %v4667
    %v4858 = vunpack.c.l.b16 %v4668
    %v4859 = vunpack.c.h.b16 %v4668
    %v4860 = vunpack.c.l.b16 %v4669
    %v4861 = vunpack.c.h.b16 %v4669
    %v4862 = vunpack.c.l.b16 %v4670
    %v4863 = vunpack.c.h.b16 %v4670
    %v4864 = vunpack.c.l.b16 %v4671
    %v4865 = vunpack.c.h.b16 %v4671
    %v4866 = vunpack.c.l.b16 %v4672
    %v4867 = vunpack.c.h.b16 %v4672
    %v4868 = vunpack.c.l.b16 %v4673
    %v4869 = vunpack.c.h.b16 %v4673
    %v4870 = vunpack.c.l.b16 %v4674
    %v4871 = vunpack.c.h.b16 %v4674
    %v4872 = vunpack.c.l.b16 %v4675
    %v4873 = vunpack.c.h.b16 %v4675
    %v4874 = vunpack.c.l.b16 %v4676
    %v4875 = vunpack.c.h.b16 %v4676
    %v4876 = vunpack.c.l.b16 %v4677
    %v4877 = vunpack.c.h.b16 %v4677
    %v4878 = vunpack.c.l.b16 %v4678
    %v4879 = vunpack.c.h.b16 %v4678
    %v4880 = vunpack.c.l.b16 %v4679
    %v4881 = vunpack.c.h.b16 %v4679
    %v4882 = vpack.c.b16 %v4758, %v4754
    %v4883 = vpack.c.b16 %v4759, %v4755
    %v4884 = vpack.c.b16 %v4760, %v4756
    %v4885 = vpack.c.b16 %v4761, %v4757
    %v4886 = vpack.c.b16 %v4766, %v4762
    %v4887 = vpack.c.b16 %v4767, %v4763
    %v4888 = vpack.c.b16 %v4768, %v4764
    %v4889 = vpack.c.b16 %v4769, %v4765
    %v4890 = vpack.c.b16 %v4774, %v4770
    %v4891 = vpack.c.b16 %v4775, %v4771
    %v4892 = vpack.c.b16 %v4776, %v4772
    %v4893 = vpack.c.b16 %v4777, %v4773
    %v4894 = vpack.c.b16 %v4782, %v4778
    %v4895 = vpack.c.b16 %v4783, %v4779
    %v4896 = vpack.c.b16 %v4784, %v4780
    %v4897 = vpack.c.b16 %v4785, %v4781
    %v4898 = vpack.c.b16 %v4790, %v4786
    %v4899 = vpack.c.b16 %v4791, %v4787
    %v4900 = vpack.c.b16 %v4792, %v4788
    %v4901 = vpack.c.b16 %v4793, %v4789
    %v4902 = vpack.c.b16 %v4798, %v4794
    %v4903 = vpack.c.b16 %v4799, %v4795
    %v4904 = vpack.c.b16 %v4800, %v4796
    %v4905 = vpack.c.b16 %v4801, %v4797
    %v4906 = vpack.c.b16 %v4806, %v4802
    %v4907 = vpack.c.b16 %v4807, %v4803
    %v4908 = vpack.c.b16 %v4808, %v4804
    %v4909 = vpack.c.b16 %v4809, %v4805
    %v4910 = vpack.c.b16 %v4814, %v4810
    %v4911 = vpack.c.b16 %v4815, %v4811
    %v4912 = vpack.c.b16 %v4816, %v4812
    %v4913 = vpack.c.b16 %v4817, %v4813
    %v4914 = vpack.c.b16 %v4822, %v4818
    %v4915 = vpack.c.b16 %v4823, %v4819
    %v4916 = vpack.c.b16 %v4824, %v4820
    %v4917 = vpack.c.b16 %v4825, %v4821
    %v4918 = vpack.c.b16 %v4830, %v4826
    %v4919 = vpack.c.b16 %v4831, %v4827
    %v4920 = vpack.c.b16 %v4832, %v4828
    %v4921 = vpack.c.b16 %v4833, %v4829
    %v4922 = vpack.c.b16 %v4838, %v4834
    %v4923 = vpack.c.b16 %v4839, %v4835
    %v4924 = vpack.c.b16 %v4840, %v4836
    %v4925 = vpack.c.b16 %v4841, %v4837
    %v4926 = vpack.c.b16 %v4846, %v4842
    %v4927 = vpack.c.b16 %v4847, %v4843
    %v4928 = vpack.c.b16 %v4848, %v4844
    %v4929 = vpack.c.b16 %v4849, %v4845
    %v4930 = vpack.c.b16 %v4854, %v4850
    %v4931 = vpack.c.b16 %v4855, %v4851
    %v4932 = vpack.c.b16 %v4856, %v4852
    %v4933 = vpack.c.b16 %v4857, %v4853
    %v4934 = vpack.c.b16 %v4862, %v4858
    %v4935 = vpack.c.b16 %v4863, %v4859
    %v4936 = vpack.c.b16 %v4864, %v4860
    %v4937 = vpack.c.b16 %v4865, %v4861
    %v4938 = vpack.c.b16 %v4870, %v4866
    %v4939 = vpack.c.b16 %v4871, %v4867
    %v4940 = vpack.c.b16 %v4872, %v4868
    %v4941 = vpack.c.b16 %v4873, %v4869
    %v4942 = vpack.c.b16 %v4878, %v4874
    %v4943 = vpack.c.b16 %v4879, %v4875
    %v4944 = vpack.c.b16 %v4880, %v4876
    %v4945 = vpack.c.b16 %v4881, %v4877
    %5010 = vmatpush.bf16.msra.mxu0 %v4910
    %5011 = vmatpush.bf16.msra.mxu0 %v4906
    %5012 = vmatpush.bf16.msra.mxu0 %v4902
    %5013 = vmatpush.bf16.msra.mxu0 %v4898
    %5014 = vmatpush.bf16.msra.mxu0 %v4894
    %5015 = vmatpush.bf16.msra.mxu0 %v4890
    %5016 = vmatpush.bf16.msra.mxu0 %v4886
    %5017 = vmatpush.bf16.msra.mxu0 %v4882
    %5018 = vmatmul.bf16.gmra.mxu0 %v2302
    %v5019 = vpop.f32.mrf.mxu0
    %v5020 = vadd.f32 0.0, %v5019
    %v5021 = vpop.f32.mrf.mxu0
    %v5022 = vadd.f32 0.0, %v5021
    %5023 = vmatmul.bf16.gmra.mxu0 %v2304
    %v5024 = vpop.f32.mrf.mxu0
    %v5025 = vadd.f32 0.0, %v5024
    %v5026 = vpop.f32.mrf.mxu0
    %v5027 = vadd.f32 0.0, %v5026
    %5028 = vmatmul.bf16.gmra.mxu0 %v2306
    %v5029 = vpop.f32.mrf.mxu0
    %v5030 = vadd.f32 0.0, %v5029
    %v5031 = vpop.f32.mrf.mxu0
    %v5032 = vadd.f32 0.0, %v5031
    %5033 = vmatmul.bf16.gmra.mxu0 %v2308
    %v5034 = vpop.f32.mrf.mxu0
    %v5035 = vadd.f32 0.0, %v5034
    %v5036 = vpop.f32.mrf.mxu0
    %v5037 = vadd.f32 0.0, %v5036
    %5038 = vmatmul.bf16.gmra.mxu0 %v2310
    %v5039 = vpop.f32.mrf.mxu0
    %v5040 = vadd.f32 0.0, %v5039
    %v5041 = vpop.f32.mrf.mxu0
    %v5042 = vadd.f32 0.0, %v5041
    %5043 = vmatmul.bf16.gmra.mxu0 %v2312
    %v5044 = vpop.f32.mrf.mxu0
    %v5045 = vadd.f32 0.0, %v5044
    %v5046 = vpop.f32.mrf.mxu0
    %v5047 = vadd.f32 0.0, %v5046
    %5048 = vmatmul.bf16.gmra.mxu0 %v3835
    %v5049 = vpop.f32.mrf.mxu0
    %v5050 = vadd.f32 0.0, %v5049
    %v5051 = vpop.f32.mrf.mxu0
    %v5052 = vadd.f32 0.0, %v5051
    %5053 = vmatmul.bf16.gmra.mxu0 %v4686
    %v5054 = vpop.f32.mrf.mxu0
    %v5055 = vadd.f32 0.0, %v5054
    %v5056 = vpop.f32.mrf.mxu0
    %v5057 = vadd.f32 0.0, %v5056
    %5058 = vdwg.mxu0
    %5059 = vmatpush.bf16.msra.mxu0 %v4942
    %5060 = vmatpush.bf16.msra.mxu0 %v4938
    %5061 = vmatpush.bf16.msra.mxu0 %v4934
    %5062 = vmatpush.bf16.msra.mxu0 %v4930
    %5063 = vmatpush.bf16.msra.mxu0 %v4926
    %5064 = vmatpush.bf16.msra.mxu0 %v4922
    %5065 = vmatpush.bf16.msra.mxu0 %v4918
    %5066 = vmatpush.bf16.msra.mxu0 %v4914
    %5067 = vmatmul.bf16.gmra.mxu0 %v2303
    %v5068 = vpop.f32.mrf.mxu0
    %v5069 = vadd.f32 %v5020, %v5068
    %v5070 = vpop.f32.mrf.mxu0
    %v5071 = vadd.f32 %v5022, %v5070
    %5072 = vmatmul.bf16.gmra.mxu0 %v2305
    %v5073 = vpop.f32.mrf.mxu0
    %v5074 = vadd.f32 %v5025, %v5073
    %v5075 = vpop.f32.mrf.mxu0
    %v5076 = vadd.f32 %v5027, %v5075
    %5077 = vmatmul.bf16.gmra.mxu0 %v2307
    %v5078 = vpop.f32.mrf.mxu0
    %v5079 = vadd.f32 %v5030, %v5078
    %v5080 = vpop.f32.mrf.mxu0
    %v5081 = vadd.f32 %v5032, %v5080
    %5082 = vmatmul.bf16.gmra.mxu0 %v2309
    %v5083 = vpop.f32.mrf.mxu0
    %v5084 = vadd.f32 %v5035, %v5083
    %v5085 = vpop.f32.mrf.mxu0
    %v5086 = vadd.f32 %v5037, %v5085
    %5087 = vmatmul.bf16.gmra.mxu0 %v2311
    %v5088 = vpop.f32.mrf.mxu0
    %v5089 = vadd.f32 %v5040, %v5088
    %v5090 = vpop.f32.mrf.mxu0
    %v5091 = vadd.f32 %v5042, %v5090
    %5092 = vmatmul.bf16.gmra.mxu0 %v2313
    %v5093 = vpop.f32.mrf.mxu0
    %v5094 = vadd.f32 %v5045, %v5093
    %v5095 = vpop.f32.mrf.mxu0
    %v5096 = vadd.f32 %v5047, %v5095
    %5097 = vmatmul.bf16.gmra.mxu0 %v3836
    %v5098 = vpop.f32.mrf.mxu0
    %v5099 = vadd.f32 %v5050, %v5098
    %v5100 = vpop.f32.mrf.mxu0
    %v5101 = vadd.f32 %v5052, %v5100
    %5102 = vmatmul.bf16.gmra.mxu0 %v4687
    %v5103 = vpop.f32.mrf.mxu0
    %v5104 = vadd.f32 %v5055, %v5103
    %v5105 = vpop.f32.mrf.mxu0
    %v5106 = vadd.f32 %v5057, %v5105
    %5107 = vdwg.mxu0
    %5108 = vmatpush.bf16.msra.mxu0 %v4911
    %5109 = vmatpush.bf16.msra.mxu0 %v4907
    %5110 = vmatpush.bf16.msra.mxu0 %v4903
    %5111 = vmatpush.bf16.msra.mxu0 %v4899
    %5112 = vmatpush.bf16.msra.mxu0 %v4895
    %5113 = vmatpush.bf16.msra.mxu0 %v4891
    %5114 = vmatpush.bf16.msra.mxu0 %v4887
    %5115 = vmatpush.bf16.msra.mxu0 %v4883
    %5116 = vmatmul.bf16.gmra.mxu0 %v2302
    %v5117 = vpop.f32.mrf.mxu0
    %v5118 = vadd.f32 0.0, %v5117
    %v5119 = vpop.f32.mrf.mxu0
    %v5120 = vadd.f32 0.0, %v5119
    %5121 = vmatmul.bf16.gmra.mxu0 %v2304
    %v5122 = vpop.f32.mrf.mxu0
    %v5123 = vadd.f32 0.0, %v5122
    %v5124 = vpop.f32.mrf.mxu0
    %v5125 = vadd.f32 0.0, %v5124
    %5126 = vmatmul.bf16.gmra.mxu0 %v2306
    %v5127 = vpop.f32.mrf.mxu0
    %v5128 = vadd.f32 0.0, %v5127
    %v5129 = vpop.f32.mrf.mxu0
    %v5130 = vadd.f32 0.0, %v5129
    %5131 = vmatmul.bf16.gmra.mxu0 %v2308
    %v5132 = vpop.f32.mrf.mxu0
    %v5133 = vadd.f32 0.0, %v5132
    %v5134 = vpop.f32.mrf.mxu0
    %v5135 = vadd.f32 0.0, %v5134
    %5136 = vmatmul.bf16.gmra.mxu0 %v2310
    %v5137 = vpop.f32.mrf.mxu0
    %v5138 = vadd.f32 0.0, %v5137
    %v5139 = vpop.f32.mrf.mxu0
    %v5140 = vadd.f32 0.0, %v5139
    %5141 = vmatmul.bf16.gmra.mxu0 %v2312
    %v5142 = vpop.f32.mrf.mxu0
    %v5143 = vadd.f32 0.0, %v5142
    %v5144 = vpop.f32.mrf.mxu0
    %v5145 = vadd.f32 0.0, %v5144
    %5146 = vmatmul.bf16.gmra.mxu0 %v3835
    %v5147 = vpop.f32.mrf.mxu0
    %v5148 = vadd.f32 0.0, %v5147
    %v5149 = vpop.f32.mrf.mxu0
    %v5150 = vadd.f32 0.0, %v5149
    %5151 = vmatmul.bf16.gmra.mxu0 %v4686
    %v5152 = vpop.f32.mrf.mxu0
    %v5153 = vadd.f32 0.0, %v5152
    %v5154 = vpop.f32.mrf.mxu0
    %v5155 = vadd.f32 0.0, %v5154
    %5156 = vdwg.mxu0
    %5157 = vmatpush.bf16.msra.mxu0 %v4943
    %5158 = vmatpush.bf16.msra.mxu0 %v4939
    %5159 = vmatpush.bf16.msra.mxu0 %v4935
    %5160 = vmatpush.bf16.msra.mxu0 %v4931
    %5161 = vmatpush.bf16.msra.mxu0 %v4927
    %5162 = vmatpush.bf16.msra.mxu0 %v4923
    %5163 = vmatpush.bf16.msra.mxu0 %v4919
    %5164 = vmatpush.bf16.msra.mxu0 %v4915
    %5165 = vmatmul.bf16.gmra.mxu0 %v2303
    %v5166 = vpop.f32.mrf.mxu0
    %v5167 = vadd.f32 %v5118, %v5166
    %v5168 = vpop.f32.mrf.mxu0
    %v5169 = vadd.f32 %v5120, %v5168
    %5170 = vmatmul.bf16.gmra.mxu0 %v2305
    %v5171 = vpop.f32.mrf.mxu0
    %v5172 = vadd.f32 %v5123, %v5171
    %v5173 = vpop.f32.mrf.mxu0
    %v5174 = vadd.f32 %v5125, %v5173
    %5175 = vmatmul.bf16.gmra.mxu0 %v2307
    %v5176 = vpop.f32.mrf.mxu0
    %v5177 = vadd.f32 %v5128, %v5176
    %v5178 = vpop.f32.mrf.mxu0
    %v5179 = vadd.f32 %v5130, %v5178
    %5180 = vmatmul.bf16.gmra.mxu0 %v2309
    %v5181 = vpop.f32.mrf.mxu0
    %v5182 = vadd.f32 %v5133, %v5181
    %v5183 = vpop.f32.mrf.mxu0
    %v5184 = vadd.f32 %v5135, %v5183
    %5185 = vmatmul.bf16.gmra.mxu0 %v2311
    %v5186 = vpop.f32.mrf.mxu0
    %v5187 = vadd.f32 %v5138, %v5186
    %v5188 = vpop.f32.mrf.mxu0
    %v5189 = vadd.f32 %v5140, %v5188
    %5190 = vmatmul.bf16.gmra.mxu0 %v2313
    %v5191 = vpop.f32.mrf.mxu0
    %v5192 = vadd.f32 %v5143, %v5191
    %v5193 = vpop.f32.mrf.mxu0
    %v5194 = vadd.f32 %v5145, %v5193
    %5195 = vmatmul.bf16.gmra.mxu0 %v3836
    %v5196 = vpop.f32.mrf.mxu0
    %v5197 = vadd.f32 %v5148, %v5196
    %v5198 = vpop.f32.mrf.mxu0
    %v5199 = vadd.f32 %v5150, %v5198
    %5200 = vmatmul.bf16.gmra.mxu0 %v4687
    %v5201 = vpop.f32.mrf.mxu0
    %v5202 = vadd.f32 %v5153, %v5201
    %v5203 = vpop.f32.mrf.mxu0
    %v5204 = vadd.f32 %v5155, %v5203
    %5205 = vdwg.mxu0
    %5206 = vmatpush.bf16.msra.mxu0 %v4912
    %5207 = vmatpush.bf16.msra.mxu0 %v4908
    %5208 = vmatpush.bf16.msra.mxu0 %v4904
    %5209 = vmatpush.bf16.msra.mxu0 %v4900
    %5210 = vmatpush.bf16.msra.mxu0 %v4896
    %5211 = vmatpush.bf16.msra.mxu0 %v4892
    %5212 = vmatpush.bf16.msra.mxu0 %v4888
    %5213 = vmatpush.bf16.msra.mxu0 %v4884
    %5214 = vmatmul.bf16.gmra.mxu0 %v2302
    %v5215 = vpop.f32.mrf.mxu0
    %v5216 = vadd.f32 0.0, %v5215
    %v5217 = vpop.f32.mrf.mxu0
    %v5218 = vadd.f32 0.0, %v5217
    %5219 = vmatmul.bf16.gmra.mxu0 %v2304
    %v5220 = vpop.f32.mrf.mxu0
    %v5221 = vadd.f32 0.0, %v5220
    %v5222 = vpop.f32.mrf.mxu0
    %v5223 = vadd.f32 0.0, %v5222
    %5224 = vmatmul.bf16.gmra.mxu0 %v2306
    %v5225 = vpop.f32.mrf.mxu0
    %v5226 = vadd.f32 0.0, %v5225
    %v5227 = vpop.f32.mrf.mxu0
    %v5228 = vadd.f32 0.0, %v5227
    %5229 = vmatmul.bf16.gmra.mxu0 %v2308
    %v5230 = vpop.f32.mrf.mxu0
    %v5231 = vadd.f32 0.0, %v5230
    %v5232 = vpop.f32.mrf.mxu0
    %v5233 = vadd.f32 0.0, %v5232
    %5234 = vmatmul.bf16.gmra.mxu0 %v2310
    %v5235 = vpop.f32.mrf.mxu0
    %v5236 = vadd.f32 0.0, %v5235
    %v5237 = vpop.f32.mrf.mxu0
    %v5238 = vadd.f32 0.0, %v5237
    %5239 = vmatmul.bf16.gmra.mxu0 %v2312
    %v5240 = vpop.f32.mrf.mxu0
    %v5241 = vadd.f32 0.0, %v5240
    %v5242 = vpop.f32.mrf.mxu0
    %v5243 = vadd.f32 0.0, %v5242
    %5244 = vmatmul.bf16.gmra.mxu0 %v3835
    %v5245 = vpop.f32.mrf.mxu0
    %v5246 = vadd.f32 0.0, %v5245
    %v5247 = vpop.f32.mrf.mxu0
    %v5248 = vadd.f32 0.0, %v5247
    %5249 = vmatmul.bf16.gmra.mxu0 %v4686
    %v5250 = vpop.f32.mrf.mxu0
    %v5251 = vadd.f32 0.0, %v5250
    %v5252 = vpop.f32.mrf.mxu0
    %v5253 = vadd.f32 0.0, %v5252
    %5254 = vdwg.mxu0
    %5255 = vmatpush.bf16.msra.mxu0 %v4944
    %5256 = vmatpush.bf16.msra.mxu0 %v4940
    %5257 = vmatpush.bf16.msra.mxu0 %v4936
    %5258 = vmatpush.bf16.msra.mxu0 %v4932
    %5259 = vmatpush.bf16.msra.mxu0 %v4928
    %5260 = vmatpush.bf16.msra.mxu0 %v4924
    %5261 = vmatpush.bf16.msra.mxu0 %v4920
    %5262 = vmatpush.bf16.msra.mxu0 %v4916
    %5263 = vmatmul.bf16.gmra.mxu0 %v2303
    %v5264 = vpop.f32.mrf.mxu0
    %v5265 = vadd.f32 %v5216, %v5264
    %v5266 = vpop.f32.mrf.mxu0
    %v5267 = vadd.f32 %v5218, %v5266
    %5268 = vmatmul.bf16.gmra.mxu0 %v2305
    %v5269 = vpop.f32.mrf.mxu0
    %v5270 = vadd.f32 %v5221, %v5269
    %v5271 = vpop.f32.mrf.mxu0
    %v5272 = vadd.f32 %v5223, %v5271
    %5273 = vmatmul.bf16.gmra.mxu0 %v2307
    %v5274 = vpop.f32.mrf.mxu0
    %v5275 = vadd.f32 %v5226, %v5274
    %v5276 = vpop.f32.mrf.mxu0
    %v5277 = vadd.f32 %v5228, %v5276
    %5278 = vmatmul.bf16.gmra.mxu0 %v2309
    %v5279 = vpop.f32.mrf.mxu0
    %v5280 = vadd.f32 %v5231, %v5279
    %v5281 = vpop.f32.mrf.mxu0
    %v5282 = vadd.f32 %v5233, %v5281
    %5283 = vmatmul.bf16.gmra.mxu0 %v2311
    %v5284 = vpop.f32.mrf.mxu0
    %v5285 = vadd.f32 %v5236, %v5284
    %v5286 = vpop.f32.mrf.mxu0
    %v5287 = vadd.f32 %v5238, %v5286
    %5288 = vmatmul.bf16.gmra.mxu0 %v2313
    %v5289 = vpop.f32.mrf.mxu0
    %v5290 = vadd.f32 %v5241, %v5289
    %v5291 = vpop.f32.mrf.mxu0
    %v5292 = vadd.f32 %v5243, %v5291
    %5293 = vmatmul.bf16.gmra.mxu0 %v3836
    %v5294 = vpop.f32.mrf.mxu0
    %v5295 = vadd.f32 %v5246, %v5294
    %v5296 = vpop.f32.mrf.mxu0
    %v5297 = vadd.f32 %v5248, %v5296
    %5298 = vmatmul.bf16.gmra.mxu0 %v4687
    %v5299 = vpop.f32.mrf.mxu0
    %v5300 = vadd.f32 %v5251, %v5299
    %v5301 = vpop.f32.mrf.mxu0
    %v5302 = vadd.f32 %v5253, %v5301
    %5303 = vdwg.mxu0
    %5304 = vmatpush.bf16.msra.mxu0 %v4913
    %5305 = vmatpush.bf16.msra.mxu0 %v4909
    %5306 = vmatpush.bf16.msra.mxu0 %v4905
    %5307 = vmatpush.bf16.msra.mxu0 %v4901
    %5308 = vmatpush.bf16.msra.mxu0 %v4897
    %5309 = vmatpush.bf16.msra.mxu0 %v4893
    %5310 = vmatpush.bf16.msra.mxu0 %v4889
    %5311 = vmatpush.bf16.msra.mxu0 %v4885
    %5312 = vmatmul.bf16.gmra.mxu0 %v2302
    %v5313 = vpop.f32.mrf.mxu0
    %v5314 = vadd.f32 0.0, %v5313
    %v5315 = vpop.f32.mrf.mxu0
    %v5316 = vadd.f32 0.0, %v5315
    %5317 = vmatmul.bf16.gmra.mxu0 %v2304
    %v5318 = vpop.f32.mrf.mxu0
    %v5319 = vadd.f32 0.0, %v5318
    %v5320 = vpop.f32.mrf.mxu0
    %v5321 = vadd.f32 0.0, %v5320
    %5322 = vmatmul.bf16.gmra.mxu0 %v2306
    %v5323 = vpop.f32.mrf.mxu0
    %v5324 = vadd.f32 0.0, %v5323
    %v5325 = vpop.f32.mrf.mxu0
    %v5326 = vadd.f32 0.0, %v5325
    %5327 = vmatmul.bf16.gmra.mxu0 %v2308
    %v5328 = vpop.f32.mrf.mxu0
    %v5329 = vadd.f32 0.0, %v5328
    %v5330 = vpop.f32.mrf.mxu0
    %v5331 = vadd.f32 0.0, %v5330
    %5332 = vmatmul.bf16.gmra.mxu0 %v2310
    %v5333 = vpop.f32.mrf.mxu0
    %v5334 = vadd.f32 0.0, %v5333
    %v5335 = vpop.f32.mrf.mxu0
    %v5336 = vadd.f32 0.0, %v5335
    %5337 = vmatmul.bf16.gmra.mxu0 %v2312
    %v5338 = vpop.f32.mrf.mxu0
    %v5339 = vadd.f32 0.0, %v5338
    %v5340 = vpop.f32.mrf.mxu0
    %v5341 = vadd.f32 0.0, %v5340
    %5342 = vmatmul.bf16.gmra.mxu0 %v3835
    %v5343 = vpop.f32.mrf.mxu0
    %v5344 = vadd.f32 0.0, %v5343
    %v5345 = vpop.f32.mrf.mxu0
    %v5346 = vadd.f32 0.0, %v5345
    %5347 = vmatmul.bf16.gmra.mxu0 %v4686
    %v5348 = vpop.f32.mrf.mxu0
    %v5349 = vadd.f32 0.0, %v5348
    %v5350 = vpop.f32.mrf.mxu0
    %v5351 = vadd.f32 0.0, %v5350
    %5352 = vdwg.mxu0
    %5353 = vmatpush.bf16.msra.mxu0 %v4945
    %5354 = vmatpush.bf16.msra.mxu0 %v4941
    %5355 = vmatpush.bf16.msra.mxu0 %v4937
    %5356 = vmatpush.bf16.msra.mxu0 %v4933
    %5357 = vmatpush.bf16.msra.mxu0 %v4929
    %5358 = vmatpush.bf16.msra.mxu0 %v4925
    %5359 = vmatpush.bf16.msra.mxu0 %v4921
    %5360 = vmatpush.bf16.msra.mxu0 %v4917
    %5361 = vmatmul.bf16.gmra.mxu0 %v2303
    %v5362 = vpop.f32.mrf.mxu0
    %v5363 = vadd.f32 %v5314, %v5362
    %v5364 = vpop.f32.mrf.mxu0
    %v5365 = vadd.f32 %v5316, %v5364
    %5366 = vmatmul.bf16.gmra.mxu0 %v2305
    %v5367 = vpop.f32.mrf.mxu0
    %v5368 = vadd.f32 %v5319, %v5367
    %v5369 = vpop.f32.mrf.mxu0
    %v5370 = vadd.f32 %v5321, %v5369
    %5371 = vmatmul.bf16.gmra.mxu0 %v2307
    %v5372 = vpop.f32.mrf.mxu0
    %v5373 = vadd.f32 %v5324, %v5372
    %v5374 = vpop.f32.mrf.mxu0
    %v5375 = vadd.f32 %v5326, %v5374
    %5376 = vmatmul.bf16.gmra.mxu0 %v2309
    %v5377 = vpop.f32.mrf.mxu0
    %v5378 = vadd.f32 %v5329, %v5377
    %v5379 = vpop.f32.mrf.mxu0
    %v5380 = vadd.f32 %v5331, %v5379
    %5381 = vmatmul.bf16.gmra.mxu0 %v2311
    %v5382 = vpop.f32.mrf.mxu0
    %v5383 = vadd.f32 %v5334, %v5382
    %v5384 = vpop.f32.mrf.mxu0
    %v5385 = vadd.f32 %v5336, %v5384
    %5386 = vmatmul.bf16.gmra.mxu0 %v2313
    %v5387 = vpop.f32.mrf.mxu0
    %v5388 = vadd.f32 %v5339, %v5387
    %v5389 = vpop.f32.mrf.mxu0
    %v5390 = vadd.f32 %v5341, %v5389
    %5391 = vmatmul.bf16.gmra.mxu0 %v3836
    %v5392 = vpop.f32.mrf.mxu0
    %v5393 = vadd.f32 %v5344, %v5392
    %v5394 = vpop.f32.mrf.mxu0
    %v5395 = vadd.f32 %v5346, %v5394
    %5396 = vmatmul.bf16.gmra.mxu0 %v4687
    %v5397 = vpop.f32.mrf.mxu0
    %v5398 = vadd.f32 %v5349, %v5397
    %v5399 = vpop.f32.mrf.mxu0
    %v5400 = vadd.f32 %v5351, %v5399
    %5401 = vdwg.mxu0
    %v5402 = vadd.f32 %v4551, %v5069
    %v5403 = vadd.f32 %v4552, %v5167
    %v5404 = vadd.f32 %v4553, %v5265
    %v5405 = vadd.f32 %v4554, %v5363
    %v5406 = vadd.f32 %v4555, %v5071
    %v5407 = vadd.f32 %v4556, %v5169
    %v5408 = vadd.f32 %v4557, %v5267
    %v5409 = vadd.f32 %v4558, %v5365
    %v5410 = vadd.f32 %v4559, %v5074
    %v5411 = vadd.f32 %v4560, %v5172
    %v5412 = vadd.f32 %v4561, %v5270
    %v5413 = vadd.f32 %v4562, %v5368
    %v5414 = vadd.f32 %v4563, %v5076
    %v5415 = vadd.f32 %v4564, %v5174
    %v5416 = vadd.f32 %v4565, %v5272
    %v5417 = vadd.f32 %v4566, %v5370
    %v5418 = vadd.f32 %v4567, %v5079
    %v5419 = vadd.f32 %v4568, %v5177
    %v5420 = vadd.f32 %v4569, %v5275
    %v5421 = vadd.f32 %v4570, %v5373
    %v5422 = vadd.f32 %v4571, %v5081
    %v5423 = vadd.f32 %v4572, %v5179
    %v5424 = vadd.f32 %v4573, %v5277
    %v5425 = vadd.f32 %v4574, %v5375
    %v5426 = vadd.f32 %v4575, %v5084
    %v5427 = vadd.f32 %v4576, %v5182
    %v5428 = vadd.f32 %v4577, %v5280
    %v5429 = vadd.f32 %v4578, %v5378
    %v5430 = vadd.f32 %v4579, %v5086
    %v5431 = vadd.f32 %v4580, %v5184
    %v5432 = vadd.f32 %v4581, %v5282
    %v5433 = vadd.f32 %v4582, %v5380
    %v5434 = vadd.f32 %v4583, %v5089
    %v5435 = vadd.f32 %v4584, %v5187
    %v5436 = vadd.f32 %v4585, %v5285
    %v5437 = vadd.f32 %v4586, %v5383
    %v5438 = vadd.f32 %v4587, %v5091
    %v5439 = vadd.f32 %v4588, %v5189
    %v5440 = vadd.f32 %v4589, %v5287
    %v5441 = vadd.f32 %v4590, %v5385
    %v5442 = vadd.f32 %v4591, %v5094
    %v5443 = vadd.f32 %v4592, %v5192
    %v5444 = vadd.f32 %v4593, %v5290
    %v5445 = vadd.f32 %v4594, %v5388
    %v5446 = vadd.f32 %v4595, %v5096
    %v5447 = vadd.f32 %v4596, %v5194
    %v5448 = vadd.f32 %v4597, %v5292
    %v5449 = vadd.f32 %v4598, %v5390
    %v5450 = vadd.f32 %v4599, %v5099
    %v5451 = vadd.f32 %v4600, %v5197
    %v5452 = vadd.f32 %v4601, %v5295
    %v5453 = vadd.f32 %v4602, %v5393
    %v5454 = vadd.f32 %v4603, %v5101
    %v5455 = vadd.f32 %v4604, %v5199
    %v5456 = vadd.f32 %v4605, %v5297
    %v5457 = vadd.f32 %v4606, %v5395
    %v5458 = vadd.f32 %v4607, %v5104
    %v5459 = vadd.f32 %v4608, %v5202
    %v5460 = vadd.f32 %v4609, %v5300
    %v5461 = vadd.f32 %v4610, %v5398
    %v5462 = vadd.f32 %v4611, %v5106
    %v5463 = vadd.f32 %v4612, %v5204
    %v5464 = vadd.f32 %v4613, %v5302
    %v5465 = vadd.f32 %v4614, %v5400
    %s5466 = scalar_lea.vmem %s3, 2048
    %v5467 = vld [vmem:[%s5466] sm:$0xff]
    %v5468 = vld [vmem:[%s5466 + $0x8] sm:$0xff]
    %v5469 = vld [vmem:[%s5466 + $0x10] sm:$0xff]
    %v5470 = vld [vmem:[%s5466 + $0x18] sm:$0xff]
    %v5471 = vld [vmem:[%s5466 + $0x20] sm:$0xff]
    %v5472 = vld [vmem:[%s5466 + $0x28] sm:$0xff]
    %v5473 = vld [vmem:[%s5466 + $0x30] sm:$0xff]
    %v5474 = vld [vmem:[%s5466 + $0x38] sm:$0xff]
    %v5475 = vld [vmem:[%s5466 + $0x40] sm:$0xff]
    %v5476 = vld [vmem:[%s5466 + $0x48] sm:$0xff]
    %v5477 = vld [vmem:[%s5466 + $0x50] sm:$0xff]
    %v5478 = vld [vmem:[%s5466 + $0x58] sm:$0xff]
    %v5479 = vld [vmem:[%s5466 + $0x60] sm:$0xff]
    %v5480 = vld [vmem:[%s5466 + $0x68] sm:$0xff]
    %v5481 = vld [vmem:[%s5466 + $0x70] sm:$0xff]
    %v5482 = vld [vmem:[%s5466 + $0x78] sm:$0xff]
    %v5483 = vld [vmem:[%s5466 + $0x80] sm:$0xff]
    %v5484 = vld [vmem:[%s5466 + $0x88] sm:$0xff]
    %v5485 = vld [vmem:[%s5466 + $0x90] sm:$0xff]
    %v5486 = vld [vmem:[%s5466 + $0x98] sm:$0xff]
    %v5487 = vld [vmem:[%s5466 + $0xa0] sm:$0xff]
    %v5488 = vld [vmem:[%s5466 + $0xa8] sm:$0xff]
    %v5489 = vld [vmem:[%s5466 + $0xb0] sm:$0xff]
    %v5490 = vld [vmem:[%s5466 + $0xb8] sm:$0xff]
    %v5491 = vld [vmem:[%s5466 + $0xc0] sm:$0xff]
    %v5492 = vld [vmem:[%s5466 + $0xc8] sm:$0xff]
    %v5493 = vld [vmem:[%s5466 + $0xd0] sm:$0xff]
    %v5494 = vld [vmem:[%s5466 + $0xd8] sm:$0xff]
    %v5495 = vld [vmem:[%s5466 + $0xe0] sm:$0xff]
    %v5496 = vld [vmem:[%s5466 + $0xe8] sm:$0xff]
    %v5497 = vld [vmem:[%s5466 + $0xf0] sm:$0xff]
    %v5498 = vld [vmem:[%s5466 + $0xf8] sm:$0xff]
    %v5499 = vld [vmem:[%s5466 + $0x100] sm:$0xff]
    %v5500 = vld [vmem:[%s5466 + $0x108] sm:$0xff]
    %v5501 = vld [vmem:[%s5466 + $0x110] sm:$0xff]
    %v5502 = vld [vmem:[%s5466 + $0x118] sm:$0xff]
    %v5503 = vld [vmem:[%s5466 + $0x120] sm:$0xff]
    %v5504 = vld [vmem:[%s5466 + $0x128] sm:$0xff]
    %v5505 = vld [vmem:[%s5466 + $0x130] sm:$0xff]
    %v5506 = vld [vmem:[%s5466 + $0x138] sm:$0xff]
    %v5507 = vld [vmem:[%s5466 + $0x140] sm:$0xff]
    %v5508 = vld [vmem:[%s5466 + $0x148] sm:$0xff]
    %v5509 = vld [vmem:[%s5466 + $0x150] sm:$0xff]
    %v5510 = vld [vmem:[%s5466 + $0x158] sm:$0xff]
    %v5511 = vld [vmem:[%s5466 + $0x160] sm:$0xff]
    %v5512 = vld [vmem:[%s5466 + $0x168] sm:$0xff]
    %v5513 = vld [vmem:[%s5466 + $0x170] sm:$0xff]
    %v5514 = vld [vmem:[%s5466 + $0x178] sm:$0xff]
    %v5515 = vld [vmem:[%s5466 + $0x180] sm:$0xff]
    %v5516 = vld [vmem:[%s5466 + $0x188] sm:$0xff]
    %v5517 = vld [vmem:[%s5466 + $0x190] sm:$0xff]
    %v5518 = vld [vmem:[%s5466 + $0x198] sm:$0xff]
    %v5519 = vld [vmem:[%s5466 + $0x1a0] sm:$0xff]
    %v5520 = vld [vmem:[%s5466 + $0x1a8] sm:$0xff]
    %v5521 = vld [vmem:[%s5466 + $0x1b0] sm:$0xff]
    %v5522 = vld [vmem:[%s5466 + $0x1b8] sm:$0xff]
    %v5523 = vld [vmem:[%s5466 + $0x1c0] sm:$0xff]
    %v5524 = vld [vmem:[%s5466 + $0x1c8] sm:$0xff]
    %v5525 = vld [vmem:[%s5466 + $0x1d0] sm:$0xff]
    %v5526 = vld [vmem:[%s5466 + $0x1d8] sm:$0xff]
    %v5527 = vld [vmem:[%s5466 + $0x1e0] sm:$0xff]
    %v5528 = vld [vmem:[%s5466 + $0x1e8] sm:$0xff]
    %v5529 = vld [vmem:[%s5466 + $0x1f0] sm:$0xff]
    %v5530 = vld [vmem:[%s5466 + $0x1f8] sm:$0xff]
    %v5533 = vunpack.c.l.b16 %v2119
    %v5534 = vunpack.c.h.b16 %v2119
    %v5535 = vunpack.c.l.b16 %v2120
    %v5536 = vunpack.c.h.b16 %v2120
    %v5537 = vpack.c.b16 %v5535, %v5533
    %v5538 = vpack.c.b16 %v5536, %v5534
    %v5605 = vunpack.c.l.b16 %v5467
    %v5606 = vunpack.c.h.b16 %v5467
    %v5607 = vunpack.c.l.b16 %v5468
    %v5608 = vunpack.c.h.b16 %v5468
    %v5609 = vunpack.c.l.b16 %v5469
    %v5610 = vunpack.c.h.b16 %v5469
    %v5611 = vunpack.c.l.b16 %v5470
    %v5612 = vunpack.c.h.b16 %v5470
    %v5613 = vunpack.c.l.b16 %v5471
    %v5614 = vunpack.c.h.b16 %v5471
    %v5615 = vunpack.c.l.b16 %v5472
    %v5616 = vunpack.c.h.b16 %v5472
    %v5617 = vunpack.c.l.b16 %v5473
    %v5618 = vunpack.c.h.b16 %v5473
    %v5619 = vunpack.c.l.b16 %v5474
    %v5620 = vunpack.c.h.b16 %v5474
    %v5621 = vunpack.c.l.b16 %v5475
    %v5622 = vunpack.c.h.b16 %v5475
    %v5623 = vunpack.c.l.b16 %v5476
    %v5624 = vunpack.c.h.b16 %v5476
    %v5625 = vunpack.c.l.b16 %v5477
    %v5626 = vunpack.c.h.b16 %v5477
    %v5627 = vunpack.c.l.b16 %v5478
    %v5628 = vunpack.c.h.b16 %v5478
    %v5629 = vunpack.c.l.b16 %v5479
    %v5630 = vunpack.c.h.b16 %v5479
    %v5631 = vunpack.c.l.b16 %v5480
    %v5632 = vunpack.c.h.b16 %v5480
    %v5633 = vunpack.c.l.b16 %v5481
    %v5634 = vunpack.c.h.b16 %v5481
    %v5635 = vunpack.c.l.b16 %v5482
    %v5636 = vunpack.c.h.b16 %v5482
    %v5637 = vunpack.c.l.b16 %v5483
    %v5638 = vunpack.c.h.b16 %v5483
    %v5639 = vunpack.c.l.b16 %v5484
    %v5640 = vunpack.c.h.b16 %v5484
    %v5641 = vunpack.c.l.b16 %v5485
    %v5642 = vunpack.c.h.b16 %v5485
    %v5643 = vunpack.c.l.b16 %v5486
    %v5644 = vunpack.c.h.b16 %v5486
    %v5645 = vunpack.c.l.b16 %v5487
    %v5646 = vunpack.c.h.b16 %v5487
    %v5647 = vunpack.c.l.b16 %v5488
    %v5648 = vunpack.c.h.b16 %v5488
    %v5649 = vunpack.c.l.b16 %v5489
    %v5650 = vunpack.c.h.b16 %v5489
    %v5651 = vunpack.c.l.b16 %v5490
    %v5652 = vunpack.c.h.b16 %v5490
    %v5653 = vunpack.c.l.b16 %v5491
    %v5654 = vunpack.c.h.b16 %v5491
    %v5655 = vunpack.c.l.b16 %v5492
    %v5656 = vunpack.c.h.b16 %v5492
    %v5657 = vunpack.c.l.b16 %v5493
    %v5658 = vunpack.c.h.b16 %v5493
    %v5659 = vunpack.c.l.b16 %v5494
    %v5660 = vunpack.c.h.b16 %v5494
    %v5661 = vunpack.c.l.b16 %v5495
    %v5662 = vunpack.c.h.b16 %v5495
    %v5663 = vunpack.c.l.b16 %v5496
    %v5664 = vunpack.c.h.b16 %v5496
    %v5665 = vunpack.c.l.b16 %v5497
    %v5666 = vunpack.c.h.b16 %v5497
    %v5667 = vunpack.c.l.b16 %v5498
    %v5668 = vunpack.c.h.b16 %v5498
    %v5669 = vunpack.c.l.b16 %v5499
    %v5670 = vunpack.c.h.b16 %v5499
    %v5671 = vunpack.c.l.b16 %v5500
    %v5672 = vunpack.c.h.b16 %v5500
    %v5673 = vunpack.c.l.b16 %v5501
    %v5674 = vunpack.c.h.b16 %v5501
    %v5675 = vunpack.c.l.b16 %v5502
    %v5676 = vunpack.c.h.b16 %v5502
    %v5677 = vunpack.c.l.b16 %v5503
    %v5678 = vunpack.c.h.b16 %v5503
    %v5679 = vunpack.c.l.b16 %v5504
    %v5680 = vunpack.c.h.b16 %v5504
    %v5681 = vunpack.c.l.b16 %v5505
    %v5682 = vunpack.c.h.b16 %v5505
    %v5683 = vunpack.c.l.b16 %v5506
    %v5684 = vunpack.c.h.b16 %v5506
    %v5685 = vunpack.c.l.b16 %v5507
    %v5686 = vunpack.c.h.b16 %v5507
    %v5687 = vunpack.c.l.b16 %v5508
    %v5688 = vunpack.c.h.b16 %v5508
    %v5689 = vunpack.c.l.b16 %v5509
    %v5690 = vunpack.c.h.b16 %v5509
    %v5691 = vunpack.c.l.b16 %v5510
    %v5692 = vunpack.c.h.b16 %v5510
    %v5693 = vunpack.c.l.b16 %v5511
    %v5694 = vunpack.c.h.b16 %v5511
    %v5695 = vunpack.c.l.b16 %v5512
    %v5696 = vunpack.c.h.b16 %v5512
    %v5697 = vunpack.c.l.b16 %v5513
    %v5698 = vunpack.c.h.b16 %v5513
    %v5699 = vunpack.c.l.b16 %v5514
    %v5700 = vunpack.c.h.b16 %v5514
    %v5701 = vunpack.c.l.b16 %v5515
    %v5702 = vunpack.c.h.b16 %v5515
    %v5703 = vunpack.c.l.b16 %v5516
    %v5704 = vunpack.c.h.b16 %v5516
    %v5705 = vunpack.c.l.b16 %v5517
    %v5706 = vunpack.c.h.b16 %v5517
    %v5707 = vunpack.c.l.b16 %v5518
    %v5708 = vunpack.c.h.b16 %v5518
    %v5709 = vunpack.c.l.b16 %v5519
    %v5710 = vunpack.c.h.b16 %v5519
    %v5711 = vunpack.c.l.b16 %v5520
    %v5712 = vunpack.c.h.b16 %v5520
    %v5713 = vunpack.c.l.b16 %v5521
    %v5714 = vunpack.c.h.b16 %v5521
    %v5715 = vunpack.c.l.b16 %v5522
    %v5716 = vunpack.c.h.b16 %v5522
    %v5717 = vunpack.c.l.b16 %v5523
    %v5718 = vunpack.c.h.b16 %v5523
    %v5719 = vunpack.c.l.b16 %v5524
    %v5720 = vunpack.c.h.b16 %v5524
    %v5721 = vunpack.c.l.b16 %v5525
    %v5722 = vunpack.c.h.b16 %v5525
    %v5723 = vunpack.c.l.b16 %v5526
    %v5724 = vunpack.c.h.b16 %v5526
    %v5725 = vunpack.c.l.b16 %v5527
    %v5726 = vunpack.c.h.b16 %v5527
    %v5727 = vunpack.c.l.b16 %v5528
    %v5728 = vunpack.c.h.b16 %v5528
    %v5729 = vunpack.c.l.b16 %v5529
    %v5730 = vunpack.c.h.b16 %v5529
    %v5731 = vunpack.c.l.b16 %v5530
    %v5732 = vunpack.c.h.b16 %v5530
    %v5733 = vpack.c.b16 %v5609, %v5605
    %v5734 = vpack.c.b16 %v5610, %v5606
    %v5735 = vpack.c.b16 %v5611, %v5607
    %v5736 = vpack.c.b16 %v5612, %v5608
    %v5737 = vpack.c.b16 %v5617, %v5613
    %v5738 = vpack.c.b16 %v5618, %v5614
    %v5739 = vpack.c.b16 %v5619, %v5615
    %v5740 = vpack.c.b16 %v5620, %v5616
    %v5741 = vpack.c.b16 %v5625, %v5621
    %v5742 = vpack.c.b16 %v5626, %v5622
    %v5743 = vpack.c.b16 %v5627, %v5623
    %v5744 = vpack.c.b16 %v5628, %v5624
    %v5745 = vpack.c.b16 %v5633, %v5629
    %v5746 = vpack.c.b16 %v5634, %v5630
    %v5747 = vpack.c.b16 %v5635, %v5631
    %v5748 = vpack.c.b16 %v5636, %v5632
    %v5749 = vpack.c.b16 %v5641, %v5637
    %v5750 = vpack.c.b16 %v5642, %v5638
    %v5751 = vpack.c.b16 %v5643, %v5639
    %v5752 = vpack.c.b16 %v5644, %v5640
    %v5753 = vpack.c.b16 %v5649, %v5645
    %v5754 = vpack.c.b16 %v5650, %v5646
    %v5755 = vpack.c.b16 %v5651, %v5647
    %v5756 = vpack.c.b16 %v5652, %v5648
    %v5757 = vpack.c.b16 %v5657, %v5653
    %v5758 = vpack.c.b16 %v5658, %v5654
    %v5759 = vpack.c.b16 %v5659, %v5655
    %v5760 = vpack.c.b16 %v5660, %v5656
    %v5761 = vpack.c.b16 %v5665, %v5661
    %v5762 = vpack.c.b16 %v5666, %v5662
    %v5763 = vpack.c.b16 %v5667, %v5663
    %v5764 = vpack.c.b16 %v5668, %v5664
    %v5765 = vpack.c.b16 %v5673, %v5669
    %v5766 = vpack.c.b16 %v5674, %v5670
    %v5767 = vpack.c.b16 %v5675, %v5671
    %v5768 = vpack.c.b16 %v5676, %v5672
    %v5769 = vpack.c.b16 %v5681, %v5677
    %v5770 = vpack.c.b16 %v5682, %v5678
    %v5771 = vpack.c.b16 %v5683, %v5679
    %v5772 = vpack.c.b16 %v5684, %v5680
    %v5773 = vpack.c.b16 %v5689, %v5685
    %v5774 = vpack.c.b16 %v5690, %v5686
    %v5775 = vpack.c.b16 %v5691, %v5687
    %v5776 = vpack.c.b16 %v5692, %v5688
    %v5777 = vpack.c.b16 %v5697, %v5693
    %v5778 = vpack.c.b16 %v5698, %v5694
    %v5779 = vpack.c.b16 %v5699, %v5695
    %v5780 = vpack.c.b16 %v5700, %v5696
    %v5781 = vpack.c.b16 %v5705, %v5701
    %v5782 = vpack.c.b16 %v5706, %v5702
    %v5783 = vpack.c.b16 %v5707, %v5703
    %v5784 = vpack.c.b16 %v5708, %v5704
    %v5785 = vpack.c.b16 %v5713, %v5709
    %v5786 = vpack.c.b16 %v5714, %v5710
    %v5787 = vpack.c.b16 %v5715, %v5711
    %v5788 = vpack.c.b16 %v5716, %v5712
    %v5789 = vpack.c.b16 %v5721, %v5717
    %v5790 = vpack.c.b16 %v5722, %v5718
    %v5791 = vpack.c.b16 %v5723, %v5719
    %v5792 = vpack.c.b16 %v5724, %v5720
    %v5793 = vpack.c.b16 %v5729, %v5725
    %v5794 = vpack.c.b16 %v5730, %v5726
    %v5795 = vpack.c.b16 %v5731, %v5727
    %v5796 = vpack.c.b16 %v5732, %v5728
    %5861 = vmatpush.bf16.msra.mxu0 %v5761
    %5862 = vmatpush.bf16.msra.mxu0 %v5757
    %5863 = vmatpush.bf16.msra.mxu0 %v5753
    %5864 = vmatpush.bf16.msra.mxu0 %v5749
    %5865 = vmatpush.bf16.msra.mxu0 %v5745
    %5866 = vmatpush.bf16.msra.mxu0 %v5741
    %5867 = vmatpush.bf16.msra.mxu0 %v5737
    %5868 = vmatpush.bf16.msra.mxu0 %v5733
    %5869 = vmatmul.bf16.gmra.mxu0 %v2304
    %v5870 = vpop.f32.mrf.mxu0
    %v5871 = vadd.f32 0.0, %v5870
    %v5872 = vpop.f32.mrf.mxu0
    %v5873 = vadd.f32 0.0, %v5872
    %5874 = vmatmul.bf16.gmra.mxu0 %v2306
    %v5875 = vpop.f32.mrf.mxu0
    %v5876 = vadd.f32 0.0, %v5875
    %v5877 = vpop.f32.mrf.mxu0
    %v5878 = vadd.f32 0.0, %v5877
    %5879 = vmatmul.bf16.gmra.mxu0 %v2308
    %v5880 = vpop.f32.mrf.mxu0
    %v5881 = vadd.f32 0.0, %v5880
    %v5882 = vpop.f32.mrf.mxu0
    %v5883 = vadd.f32 0.0, %v5882
    %5884 = vmatmul.bf16.gmra.mxu0 %v2310
    %v5885 = vpop.f32.mrf.mxu0
    %v5886 = vadd.f32 0.0, %v5885
    %v5887 = vpop.f32.mrf.mxu0
    %v5888 = vadd.f32 0.0, %v5887
    %5889 = vmatmul.bf16.gmra.mxu0 %v2312
    %v5890 = vpop.f32.mrf.mxu0
    %v5891 = vadd.f32 0.0, %v5890
    %v5892 = vpop.f32.mrf.mxu0
    %v5893 = vadd.f32 0.0, %v5892
    %5894 = vmatmul.bf16.gmra.mxu0 %v3835
    %v5895 = vpop.f32.mrf.mxu0
    %v5896 = vadd.f32 0.0, %v5895
    %v5897 = vpop.f32.mrf.mxu0
    %v5898 = vadd.f32 0.0, %v5897
    %5899 = vmatmul.bf16.gmra.mxu0 %v4686
    %v5900 = vpop.f32.mrf.mxu0
    %v5901 = vadd.f32 0.0, %v5900
    %v5902 = vpop.f32.mrf.mxu0
    %v5903 = vadd.f32 0.0, %v5902
    %5904 = vmatmul.bf16.gmra.mxu0 %v5537
    %v5905 = vpop.f32.mrf.mxu0
    %v5906 = vadd.f32 0.0, %v5905
    %v5907 = vpop.f32.mrf.mxu0
    %v5908 = vadd.f32 0.0, %v5907
    %5909 = vdwg.mxu0
    %5910 = vmatpush.bf16.msra.mxu0 %v5793
    %5911 = vmatpush.bf16.msra.mxu0 %v5789
    %5912 = vmatpush.bf16.msra.mxu0 %v5785
    %5913 = vmatpush.bf16.msra.mxu0 %v5781
    %5914 = vmatpush.bf16.msra.mxu0 %v5777
    %5915 = vmatpush.bf16.msra.mxu0 %v5773
    %5916 = vmatpush.bf16.msra.mxu0 %v5769
    %5917 = vmatpush.bf16.msra.mxu0 %v5765
    %5918 = vmatmul.bf16.gmra.mxu0 %v2305
    %v5919 = vpop.f32.mrf.mxu0
    %v5920 = vadd.f32 %v5871, %v5919
    %v5921 = vpop.f32.mrf.mxu0
    %v5922 = vadd.f32 %v5873, %v5921
    %5923 = vmatmul.bf16.gmra.mxu0 %v2307
    %v5924 = vpop.f32.mrf.mxu0
    %v5925 = vadd.f32 %v5876, %v5924
    %v5926 = vpop.f32.mrf.mxu0
    %v5927 = vadd.f32 %v5878, %v5926
    %5928 = vmatmul.bf16.gmra.mxu0 %v2309
    %v5929 = vpop.f32.mrf.mxu0
    %v5930 = vadd.f32 %v5881, %v5929
    %v5931 = vpop.f32.mrf.mxu0
    %v5932 = vadd.f32 %v5883, %v5931
    %5933 = vmatmul.bf16.gmra.mxu0 %v2311
    %v5934 = vpop.f32.mrf.mxu0
    %v5935 = vadd.f32 %v5886, %v5934
    %v5936 = vpop.f32.mrf.mxu0
    %v5937 = vadd.f32 %v5888, %v5936
    %5938 = vmatmul.bf16.gmra.mxu0 %v2313
    %v5939 = vpop.f32.mrf.mxu0
    %v5940 = vadd.f32 %v5891, %v5939
    %v5941 = vpop.f32.mrf.mxu0
    %v5942 = vadd.f32 %v5893, %v5941
    %5943 = vmatmul.bf16.gmra.mxu0 %v3836
    %v5944 = vpop.f32.mrf.mxu0
    %v5945 = vadd.f32 %v5896, %v5944
    %v5946 = vpop.f32.mrf.mxu0
    %v5947 = vadd.f32 %v5898, %v5946
    %5948 = vmatmul.bf16.gmra.mxu0 %v4687
    %v5949 = vpop.f32.mrf.mxu0
    %v5950 = vadd.f32 %v5901, %v5949
    %v5951 = vpop.f32.mrf.mxu0
    %v5952 = vadd.f32 %v5903, %v5951
    %5953 = vmatmul.bf16.gmra.mxu0 %v5538
    %v5954 = vpop.f32.mrf.mxu0
    %v5955 = vadd.f32 %v5906, %v5954
    %v5956 = vpop.f32.mrf.mxu0
    %v5957 = vadd.f32 %v5908, %v5956
    %5958 = vdwg.mxu0
    %5959 = vmatpush.bf16.msra.mxu0 %v5762
    %5960 = vmatpush.bf16.msra.mxu0 %v5758
    %5961 = vmatpush.bf16.msra.mxu0 %v5754
    %5962 = vmatpush.bf16.msra.mxu0 %v5750
    %5963 = vmatpush.bf16.msra.mxu0 %v5746
    %5964 = vmatpush.bf16.msra.mxu0 %v5742
    %5965 = vmatpush.bf16.msra.mxu0 %v5738
    %5966 = vmatpush.bf16.msra.mxu0 %v5734
    %5967 = vmatmul.bf16.gmra.mxu0 %v2304
    %v5968 = vpop.f32.mrf.mxu0
    %v5969 = vadd.f32 0.0, %v5968
    %v5970 = vpop.f32.mrf.mxu0
    %v5971 = vadd.f32 0.0, %v5970
    %5972 = vmatmul.bf16.gmra.mxu0 %v2306
    %v5973 = vpop.f32.mrf.mxu0
    %v5974 = vadd.f32 0.0, %v5973
    %v5975 = vpop.f32.mrf.mxu0
    %v5976 = vadd.f32 0.0, %v5975
    %5977 = vmatmul.bf16.gmra.mxu0 %v2308
    %v5978 = vpop.f32.mrf.mxu0
    %v5979 = vadd.f32 0.0, %v5978
    %v5980 = vpop.f32.mrf.mxu0
    %v5981 = vadd.f32 0.0, %v5980
    %5982 = vmatmul.bf16.gmra.mxu0 %v2310
    %v5983 = vpop.f32.mrf.mxu0
    %v5984 = vadd.f32 0.0, %v5983
    %v5985 = vpop.f32.mrf.mxu0
    %v5986 = vadd.f32 0.0, %v5985
    %5987 = vmatmul.bf16.gmra.mxu0 %v2312
    %v5988 = vpop.f32.mrf.mxu0
    %v5989 = vadd.f32 0.0, %v5988
    %v5990 = vpop.f32.mrf.mxu0
    %v5991 = vadd.f32 0.0, %v5990
    %5992 = vmatmul.bf16.gmra.mxu0 %v3835
    %v5993 = vpop.f32.mrf.mxu0
    %v5994 = vadd.f32 0.0, %v5993
    %v5995 = vpop.f32.mrf.mxu0
    %v5996 = vadd.f32 0.0, %v5995
    %5997 = vmatmul.bf16.gmra.mxu0 %v4686
    %v5998 = vpop.f32.mrf.mxu0
    %v5999 = vadd.f32 0.0, %v5998
    %v6000 = vpop.f32.mrf.mxu0
    %v6001 = vadd.f32 0.0, %v6000
    %6002 = vmatmul.bf16.gmra.mxu0 %v5537
    %v6003 = vpop.f32.mrf.mxu0
    %v6004 = vadd.f32 0.0, %v6003
    %v6005 = vpop.f32.mrf.mxu0
    %v6006 = vadd.f32 0.0, %v6005
    %6007 = vdwg.mxu0
    %6008 = vmatpush.bf16.msra.mxu0 %v5794
    %6009 = vmatpush.bf16.msra.mxu0 %v5790
    %6010 = vmatpush.bf16.msra.mxu0 %v5786
    %6011 = vmatpush.bf16.msra.mxu0 %v5782
    %6012 = vmatpush.bf16.msra.mxu0 %v5778
    %6013 = vmatpush.bf16.msra.mxu0 %v5774
    %6014 = vmatpush.bf16.msra.mxu0 %v5770
    %6015 = vmatpush.bf16.msra.mxu0 %v5766
    %6016 = vmatmul.bf16.gmra.mxu0 %v2305
    %v6017 = vpop.f32.mrf.mxu0
    %v6018 = vadd.f32 %v5969, %v6017
    %v6019 = vpop.f32.mrf.mxu0
    %v6020 = vadd.f32 %v5971, %v6019
    %6021 = vmatmul.bf16.gmra.mxu0 %v2307
    %v6022 = vpop.f32.mrf.mxu0
    %v6023 = vadd.f32 %v5974, %v6022
    %v6024 = vpop.f32.mrf.mxu0
    %v6025 = vadd.f32 %v5976, %v6024
    %6026 = vmatmul.bf16.gmra.mxu0 %v2309
    %v6027 = vpop.f32.mrf.mxu0
    %v6028 = vadd.f32 %v5979, %v6027
    %v6029 = vpop.f32.mrf.mxu0
    %v6030 = vadd.f32 %v5981, %v6029
    %6031 = vmatmul.bf16.gmra.mxu0 %v2311
    %v6032 = vpop.f32.mrf.mxu0
    %v6033 = vadd.f32 %v5984, %v6032
    %v6034 = vpop.f32.mrf.mxu0
    %v6035 = vadd.f32 %v5986, %v6034
    %6036 = vmatmul.bf16.gmra.mxu0 %v2313
    %v6037 = vpop.f32.mrf.mxu0
    %v6038 = vadd.f32 %v5989, %v6037
    %v6039 = vpop.f32.mrf.mxu0
    %v6040 = vadd.f32 %v5991, %v6039
    %6041 = vmatmul.bf16.gmra.mxu0 %v3836
    %v6042 = vpop.f32.mrf.mxu0
    %v6043 = vadd.f32 %v5994, %v6042
    %v6044 = vpop.f32.mrf.mxu0
    %v6045 = vadd.f32 %v5996, %v6044
    %6046 = vmatmul.bf16.gmra.mxu0 %v4687
    %v6047 = vpop.f32.mrf.mxu0
    %v6048 = vadd.f32 %v5999, %v6047
    %v6049 = vpop.f32.mrf.mxu0
    %v6050 = vadd.f32 %v6001, %v6049
    %6051 = vmatmul.bf16.gmra.mxu0 %v5538
    %v6052 = vpop.f32.mrf.mxu0
    %v6053 = vadd.f32 %v6004, %v6052
    %v6054 = vpop.f32.mrf.mxu0
    %v6055 = vadd.f32 %v6006, %v6054
    %6056 = vdwg.mxu0
    %6057 = vmatpush.bf16.msra.mxu0 %v5763
    %6058 = vmatpush.bf16.msra.mxu0 %v5759
    %6059 = vmatpush.bf16.msra.mxu0 %v5755
    %6060 = vmatpush.bf16.msra.mxu0 %v5751
    %6061 = vmatpush.bf16.msra.mxu0 %v5747
    %6062 = vmatpush.bf16.msra.mxu0 %v5743
    %6063 = vmatpush.bf16.msra.mxu0 %v5739
    %6064 = vmatpush.bf16.msra.mxu0 %v5735
    %6065 = vmatmul.bf16.gmra.mxu0 %v2304
    %v6066 = vpop.f32.mrf.mxu0
    %v6067 = vadd.f32 0.0, %v6066
    %v6068 = vpop.f32.mrf.mxu0
    %v6069 = vadd.f32 0.0, %v6068
    %6070 = vmatmul.bf16.gmra.mxu0 %v2306
    %v6071 = vpop.f32.mrf.mxu0
    %v6072 = vadd.f32 0.0, %v6071
    %v6073 = vpop.f32.mrf.mxu0
    %v6074 = vadd.f32 0.0, %v6073
    %6075 = vmatmul.bf16.gmra.mxu0 %v2308
    %v6076 = vpop.f32.mrf.mxu0
    %v6077 = vadd.f32 0.0, %v6076
    %v6078 = vpop.f32.mrf.mxu0
    %v6079 = vadd.f32 0.0, %v6078
    %6080 = vmatmul.bf16.gmra.mxu0 %v2310
    %v6081 = vpop.f32.mrf.mxu0
    %v6082 = vadd.f32 0.0, %v6081
    %v6083 = vpop.f32.mrf.mxu0
    %v6084 = vadd.f32 0.0, %v6083
    %6085 = vmatmul.bf16.gmra.mxu0 %v2312
    %v6086 = vpop.f32.mrf.mxu0
    %v6087 = vadd.f32 0.0, %v6086
    %v6088 = vpop.f32.mrf.mxu0
    %v6089 = vadd.f32 0.0, %v6088
    %6090 = vmatmul.bf16.gmra.mxu0 %v3835
    %v6091 = vpop.f32.mrf.mxu0
    %v6092 = vadd.f32 0.0, %v6091
    %v6093 = vpop.f32.mrf.mxu0
    %v6094 = vadd.f32 0.0, %v6093
    %6095 = vmatmul.bf16.gmra.mxu0 %v4686
    %v6096 = vpop.f32.mrf.mxu0
    %v6097 = vadd.f32 0.0, %v6096
    %v6098 = vpop.f32.mrf.mxu0
    %v6099 = vadd.f32 0.0, %v6098
    %6100 = vmatmul.bf16.gmra.mxu0 %v5537
    %v6101 = vpop.f32.mrf.mxu0
    %v6102 = vadd.f32 0.0, %v6101
    %v6103 = vpop.f32.mrf.mxu0
    %v6104 = vadd.f32 0.0, %v6103
    %6105 = vdwg.mxu0
    %6106 = vmatpush.bf16.msra.mxu0 %v5795
    %6107 = vmatpush.bf16.msra.mxu0 %v5791
    %6108 = vmatpush.bf16.msra.mxu0 %v5787
    %6109 = vmatpush.bf16.msra.mxu0 %v5783
    %6110 = vmatpush.bf16.msra.mxu0 %v5779
    %6111 = vmatpush.bf16.msra.mxu0 %v5775
    %6112 = vmatpush.bf16.msra.mxu0 %v5771
    %6113 = vmatpush.bf16.msra.mxu0 %v5767
    %6114 = vmatmul.bf16.gmra.mxu0 %v2305
    %v6115 = vpop.f32.mrf.mxu0
    %v6116 = vadd.f32 %v6067, %v6115
    %v6117 = vpop.f32.mrf.mxu0
    %v6118 = vadd.f32 %v6069, %v6117
    %6119 = vmatmul.bf16.gmra.mxu0 %v2307
    %v6120 = vpop.f32.mrf.mxu0
    %v6121 = vadd.f32 %v6072, %v6120
    %v6122 = vpop.f32.mrf.mxu0
    %v6123 = vadd.f32 %v6074, %v6122
    %6124 = vmatmul.bf16.gmra.mxu0 %v2309
    %v6125 = vpop.f32.mrf.mxu0
    %v6126 = vadd.f32 %v6077, %v6125
    %v6127 = vpop.f32.mrf.mxu0
    %v6128 = vadd.f32 %v6079, %v6127
    %6129 = vmatmul.bf16.gmra.mxu0 %v2311
    %v6130 = vpop.f32.mrf.mxu0
    %v6131 = vadd.f32 %v6082, %v6130
    %v6132 = vpop.f32.mrf.mxu0
    %v6133 = vadd.f32 %v6084, %v6132
    %6134 = vmatmul.bf16.gmra.mxu0 %v2313
    %v6135 = vpop.f32.mrf.mxu0
    %v6136 = vadd.f32 %v6087, %v6135
    %v6137 = vpop.f32.mrf.mxu0
    %v6138 = vadd.f32 %v6089, %v6137
    %6139 = vmatmul.bf16.gmra.mxu0 %v3836
    %v6140 = vpop.f32.mrf.mxu0
    %v6141 = vadd.f32 %v6092, %v6140
    %v6142 = vpop.f32.mrf.mxu0
    %v6143 = vadd.f32 %v6094, %v6142
    %6144 = vmatmul.bf16.gmra.mxu0 %v4687
    %v6145 = vpop.f32.mrf.mxu0
    %v6146 = vadd.f32 %v6097, %v6145
    %v6147 = vpop.f32.mrf.mxu0
    %v6148 = vadd.f32 %v6099, %v6147
    %6149 = vmatmul.bf16.gmra.mxu0 %v5538
    %v6150 = vpop.f32.mrf.mxu0
    %v6151 = vadd.f32 %v6102, %v6150
    %v6152 = vpop.f32.mrf.mxu0
    %v6153 = vadd.f32 %v6104, %v6152
    %6154 = vdwg.mxu0
    %6155 = vmatpush.bf16.msra.mxu0 %v5764
    %6156 = vmatpush.bf16.msra.mxu0 %v5760
    %6157 = vmatpush.bf16.msra.mxu0 %v5756
    %6158 = vmatpush.bf16.msra.mxu0 %v5752
    %6159 = vmatpush.bf16.msra.mxu0 %v5748
    %6160 = vmatpush.bf16.msra.mxu0 %v5744
    %6161 = vmatpush.bf16.msra.mxu0 %v5740
    %6162 = vmatpush.bf16.msra.mxu0 %v5736
    %6163 = vmatmul.bf16.gmra.mxu0 %v2304
    %v6164 = vpop.f32.mrf.mxu0
    %v6165 = vadd.f32 0.0, %v6164
    %v6166 = vpop.f32.mrf.mxu0
    %v6167 = vadd.f32 0.0, %v6166
    %6168 = vmatmul.bf16.gmra.mxu0 %v2306
    %v6169 = vpop.f32.mrf.mxu0
    %v6170 = vadd.f32 0.0, %v6169
    %v6171 = vpop.f32.mrf.mxu0
    %v6172 = vadd.f32 0.0, %v6171
    %6173 = vmatmul.bf16.gmra.mxu0 %v2308
    %v6174 = vpop.f32.mrf.mxu0
    %v6175 = vadd.f32 0.0, %v6174
    %v6176 = vpop.f32.mrf.mxu0
    %v6177 = vadd.f32 0.0, %v6176
    %6178 = vmatmul.bf16.gmra.mxu0 %v2310
    %v6179 = vpop.f32.mrf.mxu0
    %v6180 = vadd.f32 0.0, %v6179
    %v6181 = vpop.f32.mrf.mxu0
    %v6182 = vadd.f32 0.0, %v6181
    %6183 = vmatmul.bf16.gmra.mxu0 %v2312
    %v6184 = vpop.f32.mrf.mxu0
    %v6185 = vadd.f32 0.0, %v6184
    %v6186 = vpop.f32.mrf.mxu0
    %v6187 = vadd.f32 0.0, %v6186
    %6188 = vmatmul.bf16.gmra.mxu0 %v3835
    %v6189 = vpop.f32.mrf.mxu0
    %v6190 = vadd.f32 0.0, %v6189
    %v6191 = vpop.f32.mrf.mxu0
    %v6192 = vadd.f32 0.0, %v6191
    %6193 = vmatmul.bf16.gmra.mxu0 %v4686
    %v6194 = vpop.f32.mrf.mxu0
    %v6195 = vadd.f32 0.0, %v6194
    %v6196 = vpop.f32.mrf.mxu0
    %v6197 = vadd.f32 0.0, %v6196
    %6198 = vmatmul.bf16.gmra.mxu0 %v5537
    %v6199 = vpop.f32.mrf.mxu0
    %v6200 = vadd.f32 0.0, %v6199
    %v6201 = vpop.f32.mrf.mxu0
    %v6202 = vadd.f32 0.0, %v6201
    %6203 = vdwg.mxu0
    %6204 = vmatpush.bf16.msra.mxu0 %v5796
    %6205 = vmatpush.bf16.msra.mxu0 %v5792
    %6206 = vmatpush.bf16.msra.mxu0 %v5788
    %6207 = vmatpush.bf16.msra.mxu0 %v5784
    %6208 = vmatpush.bf16.msra.mxu0 %v5780
    %6209 = vmatpush.bf16.msra.mxu0 %v5776
    %6210 = vmatpush.bf16.msra.mxu0 %v5772
    %6211 = vmatpush.bf16.msra.mxu0 %v5768
    %6212 = vmatmul.bf16.gmra.mxu0 %v2305
    %v6213 = vpop.f32.mrf.mxu0
    %v6214 = vadd.f32 %v6165, %v6213
    %v6215 = vpop.f32.mrf.mxu0
    %v6216 = vadd.f32 %v6167, %v6215
    %6217 = vmatmul.bf16.gmra.mxu0 %v2307
    %v6218 = vpop.f32.mrf.mxu0
    %v6219 = vadd.f32 %v6170, %v6218
    %v6220 = vpop.f32.mrf.mxu0
    %v6221 = vadd.f32 %v6172, %v6220
    %6222 = vmatmul.bf16.gmra.mxu0 %v2309
    %v6223 = vpop.f32.mrf.mxu0
    %v6224 = vadd.f32 %v6175, %v6223
    %v6225 = vpop.f32.mrf.mxu0
    %v6226 = vadd.f32 %v6177, %v6225
    %6227 = vmatmul.bf16.gmra.mxu0 %v2311
    %v6228 = vpop.f32.mrf.mxu0
    %v6229 = vadd.f32 %v6180, %v6228
    %v6230 = vpop.f32.mrf.mxu0
    %v6231 = vadd.f32 %v6182, %v6230
    %6232 = vmatmul.bf16.gmra.mxu0 %v2313
    %v6233 = vpop.f32.mrf.mxu0
    %v6234 = vadd.f32 %v6185, %v6233
    %v6235 = vpop.f32.mrf.mxu0
    %v6236 = vadd.f32 %v6187, %v6235
    %6237 = vmatmul.bf16.gmra.mxu0 %v3836
    %v6238 = vpop.f32.mrf.mxu0
    %v6239 = vadd.f32 %v6190, %v6238
    %v6240 = vpop.f32.mrf.mxu0
    %v6241 = vadd.f32 %v6192, %v6240
    %6242 = vmatmul.bf16.gmra.mxu0 %v4687
    %v6243 = vpop.f32.mrf.mxu0
    %v6244 = vadd.f32 %v6195, %v6243
    %v6245 = vpop.f32.mrf.mxu0
    %v6246 = vadd.f32 %v6197, %v6245
    %6247 = vmatmul.bf16.gmra.mxu0 %v5538
    %v6248 = vpop.f32.mrf.mxu0
    %v6249 = vadd.f32 %v6200, %v6248
    %v6250 = vpop.f32.mrf.mxu0
    %v6251 = vadd.f32 %v6202, %v6250
    %6252 = vdwg.mxu0
    %v6253 = vadd.f32 %v5402, %v5920
    %v6254 = vadd.f32 %v5403, %v6018
    %v6255 = vadd.f32 %v5404, %v6116
    %v6256 = vadd.f32 %v5405, %v6214
    %v6257 = vadd.f32 %v5406, %v5922
    %v6258 = vadd.f32 %v5407, %v6020
    %v6259 = vadd.f32 %v5408, %v6118
    %v6260 = vadd.f32 %v5409, %v6216
    %v6261 = vadd.f32 %v5410, %v5925
    %v6262 = vadd.f32 %v5411, %v6023
    %v6263 = vadd.f32 %v5412, %v6121
    %v6264 = vadd.f32 %v5413, %v6219
    %v6265 = vadd.f32 %v5414, %v5927
    %v6266 = vadd.f32 %v5415, %v6025
    %v6267 = vadd.f32 %v5416, %v6123
    %v6268 = vadd.f32 %v5417, %v6221
    %v6269 = vadd.f32 %v5418, %v5930
    %v6270 = vadd.f32 %v5419, %v6028
    %v6271 = vadd.f32 %v5420, %v6126
    %v6272 = vadd.f32 %v5421, %v6224
    %v6273 = vadd.f32 %v5422, %v5932
    %v6274 = vadd.f32 %v5423, %v6030
    %v6275 = vadd.f32 %v5424, %v6128
    %v6276 = vadd.f32 %v5425, %v6226
    %v6277 = vadd.f32 %v5426, %v5935
    %v6278 = vadd.f32 %v5427, %v6033
    %v6279 = vadd.f32 %v5428, %v6131
    %v6280 = vadd.f32 %v5429, %v6229
    %v6281 = vadd.f32 %v5430, %v5937
    %v6282 = vadd.f32 %v5431, %v6035
    %v6283 = vadd.f32 %v5432, %v6133
    %v6284 = vadd.f32 %v5433, %v6231
    %v6285 = vadd.f32 %v5434, %v5940
    %v6286 = vadd.f32 %v5435, %v6038
    %v6287 = vadd.f32 %v5436, %v6136
    %v6288 = vadd.f32 %v5437, %v6234
    %v6289 = vadd.f32 %v5438, %v5942
    %v6290 = vadd.f32 %v5439, %v6040
    %v6291 = vadd.f32 %v5440, %v6138
    %v6292 = vadd.f32 %v5441, %v6236
    %v6293 = vadd.f32 %v5442, %v5945
    %v6294 = vadd.f32 %v5443, %v6043
    %v6295 = vadd.f32 %v5444, %v6141
    %v6296 = vadd.f32 %v5445, %v6239
    %v6297 = vadd.f32 %v5446, %v5947
    %v6298 = vadd.f32 %v5447, %v6045
    %v6299 = vadd.f32 %v5448, %v6143
    %v6300 = vadd.f32 %v5449, %v6241
    %v6301 = vadd.f32 %v5450, %v5950
    %v6302 = vadd.f32 %v5451, %v6048
    %v6303 = vadd.f32 %v5452, %v6146
    %v6304 = vadd.f32 %v5453, %v6244
    %v6305 = vadd.f32 %v5454, %v5952
    %v6306 = vadd.f32 %v5455, %v6050
    %v6307 = vadd.f32 %v5456, %v6148
    %v6308 = vadd.f32 %v5457, %v6246
    %v6309 = vadd.f32 %v5458, %v5955
    %v6310 = vadd.f32 %v5459, %v6053
    %v6311 = vadd.f32 %v5460, %v6151
    %v6312 = vadd.f32 %v5461, %v6249
    %v6313 = vadd.f32 %v5462, %v5957
    %v6314 = vadd.f32 %v5463, %v6055
    %v6315 = vadd.f32 %v5464, %v6153
    %v6316 = vadd.f32 %v5465, %v6251
    %v6317 = vld [vmem:[%s4] sm:$0xf]
    %v6319 = vperm.slane %v6317, 0
    %v6320 = vperm.slane %v6317, 1
    %v6321 = vperm.slane %v6317, 2
    %v6322 = vperm.slane %v6317, 3
    %v6327 = vadd.f32 %v6253, %v6319
    %v6328 = vadd.f32 %v6254, %v6320
    %v6329 = vadd.f32 %v6255, %v6321
    %v6330 = vadd.f32 %v6256, %v6322
    %v6331 = vadd.f32 %v6257, %v6319
    %v6332 = vadd.f32 %v6258, %v6320
    %v6333 = vadd.f32 %v6259, %v6321
    %v6334 = vadd.f32 %v6260, %v6322
    %v6335 = vadd.f32 %v6261, %v6319
    %v6336 = vadd.f32 %v6262, %v6320
    %v6337 = vadd.f32 %v6263, %v6321
    %v6338 = vadd.f32 %v6264, %v6322
    %v6339 = vadd.f32 %v6265, %v6319
    %v6340 = vadd.f32 %v6266, %v6320
    %v6341 = vadd.f32 %v6267, %v6321
    %v6342 = vadd.f32 %v6268, %v6322
    %v6343 = vadd.f32 %v6269, %v6319
    %v6344 = vadd.f32 %v6270, %v6320
    %v6345 = vadd.f32 %v6271, %v6321
    %v6346 = vadd.f32 %v6272, %v6322
    %v6347 = vadd.f32 %v6273, %v6319
    %v6348 = vadd.f32 %v6274, %v6320
    %v6349 = vadd.f32 %v6275, %v6321
    %v6350 = vadd.f32 %v6276, %v6322
    %v6351 = vadd.f32 %v6277, %v6319
    %v6352 = vadd.f32 %v6278, %v6320
    %v6353 = vadd.f32 %v6279, %v6321
    %v6354 = vadd.f32 %v6280, %v6322
    %v6355 = vadd.f32 %v6281, %v6319
    %v6356 = vadd.f32 %v6282, %v6320
    %v6357 = vadd.f32 %v6283, %v6321
    %v6358 = vadd.f32 %v6284, %v6322
    %v6359 = vadd.f32 %v6285, %v6319
    %v6360 = vadd.f32 %v6286, %v6320
    %v6361 = vadd.f32 %v6287, %v6321
    %v6362 = vadd.f32 %v6288, %v6322
    %v6363 = vadd.f32 %v6289, %v6319
    %v6364 = vadd.f32 %v6290, %v6320
    %v6365 = vadd.f32 %v6291, %v6321
    %v6366 = vadd.f32 %v6292, %v6322
    %v6367 = vadd.f32 %v6293, %v6319
    %v6368 = vadd.f32 %v6294, %v6320
    %v6369 = vadd.f32 %v6295, %v6321
    %v6370 = vadd.f32 %v6296, %v6322
    %v6371 = vadd.f32 %v6297, %v6319
    %v6372 = vadd.f32 %v6298, %v6320
    %v6373 = vadd.f32 %v6299, %v6321
    %v6374 = vadd.f32 %v6300, %v6322
    %v6375 = vadd.f32 %v6301, %v6319
    %v6376 = vadd.f32 %v6302, %v6320
    %v6377 = vadd.f32 %v6303, %v6321
    %v6378 = vadd.f32 %v6304, %v6322
    %v6379 = vadd.f32 %v6305, %v6319
    %v6380 = vadd.f32 %v6306, %v6320
    %v6381 = vadd.f32 %v6307, %v6321
    %v6382 = vadd.f32 %v6308, %v6322
    %v6383 = vadd.f32 %v6309, %v6319
    %v6384 = vadd.f32 %v6310, %v6320
    %v6385 = vadd.f32 %v6311, %v6321
    %v6386 = vadd.f32 %v6312, %v6322
    %v6387 = vadd.f32 %v6313, %v6319
    %v6388 = vadd.f32 %v6314, %v6320
    %v6389 = vadd.f32 %v6315, %v6321
    %v6390 = vadd.f32 %v6316, %v6322
    %v6391 = vmax.f32 %v6327, 0.0
    %v6392 = vmax.f32 %v6328, 0.0
    %v6393 = vmax.f32 %v6329, 0.0
    %v6394 = vmax.f32 %v6330, 0.0
    %v6395 = vmax.f32 %v6331, 0.0
    %v6396 = vmax.f32 %v6332, 0.0
    %v6397 = vmax.f32 %v6333, 0.0
    %v6398 = vmax.f32 %v6334, 0.0
    %v6399 = vmax.f32 %v6335, 0.0
    %v6400 = vmax.f32 %v6336, 0.0
    %v6401 = vmax.f32 %v6337, 0.0
    %v6402 = vmax.f32 %v6338, 0.0
    %v6403 = vmax.f32 %v6339, 0.0
    %v6404 = vmax.f32 %v6340, 0.0
    %v6405 = vmax.f32 %v6341, 0.0
    %v6406 = vmax.f32 %v6342, 0.0
    %v6407 = vmax.f32 %v6343, 0.0
    %v6408 = vmax.f32 %v6344, 0.0
    %v6409 = vmax.f32 %v6345, 0.0
    %v6410 = vmax.f32 %v6346, 0.0
    %v6411 = vmax.f32 %v6347, 0.0
    %v6412 = vmax.f32 %v6348, 0.0
    %v6413 = vmax.f32 %v6349, 0.0
    %v6414 = vmax.f32 %v6350, 0.0
    %v6415 = vmax.f32 %v6351, 0.0
    %v6416 = vmax.f32 %v6352, 0.0
    %v6417 = vmax.f32 %v6353, 0.0
    %v6418 = vmax.f32 %v6354, 0.0
    %v6419 = vmax.f32 %v6355, 0.0
    %v6420 = vmax.f32 %v6356, 0.0
    %v6421 = vmax.f32 %v6357, 0.0
    %v6422 = vmax.f32 %v6358, 0.0
    %v6423 = vmax.f32 %v6359, 0.0
    %v6424 = vmax.f32 %v6360, 0.0
    %v6425 = vmax.f32 %v6361, 0.0
    %v6426 = vmax.f32 %v6362, 0.0
    %v6427 = vmax.f32 %v6363, 0.0
    %v6428 = vmax.f32 %v6364, 0.0
    %v6429 = vmax.f32 %v6365, 0.0
    %v6430 = vmax.f32 %v6366, 0.0
    %v6431 = vmax.f32 %v6367, 0.0
    %v6432 = vmax.f32 %v6368, 0.0
    %v6433 = vmax.f32 %v6369, 0.0
    %v6434 = vmax.f32 %v6370, 0.0
    %v6435 = vmax.f32 %v6371, 0.0
    %v6436 = vmax.f32 %v6372, 0.0
    %v6437 = vmax.f32 %v6373, 0.0
    %v6438 = vmax.f32 %v6374, 0.0
    %v6439 = vmax.f32 %v6375, 0.0
    %v6440 = vmax.f32 %v6376, 0.0
    %v6441 = vmax.f32 %v6377, 0.0
    %v6442 = vmax.f32 %v6378, 0.0
    %v6443 = vmax.f32 %v6379, 0.0
    %v6444 = vmax.f32 %v6380, 0.0
    %v6445 = vmax.f32 %v6381, 0.0
    %v6446 = vmax.f32 %v6382, 0.0
    %v6447 = vmax.f32 %v6383, 0.0
    %v6448 = vmax.f32 %v6384, 0.0
    %v6449 = vmax.f32 %v6385, 0.0
    %v6450 = vmax.f32 %v6386, 0.0
    %v6451 = vmax.f32 %v6387, 0.0
    %v6452 = vmax.f32 %v6388, 0.0
    %v6453 = vmax.f32 %v6389, 0.0
    %v6454 = vmax.f32 %v6390, 0.0
    %v6455 = vpack.c.bf16 %v6392, %v6391
    %v6456 = vpack.c.bf16 %v6394, %v6393
    %v6457 = vpack.c.bf16 %v6396, %v6395
    %v6458 = vpack.c.bf16 %v6398, %v6397
    %v6459 = vpack.c.bf16 %v6400, %v6399
    %v6460 = vpack.c.bf16 %v6402, %v6401
    %v6461 = vpack.c.bf16 %v6404, %v6403
    %v6462 = vpack.c.bf16 %v6406, %v6405
    %v6463 = vpack.c.bf16 %v6408, %v6407
    %v6464 = vpack.c.bf16 %v6410, %v6409
    %v6465 = vpack.c.bf16 %v6412, %v6411
    %v6466 = vpack.c.bf16 %v6414, %v6413
    %v6467 = vpack.c.bf16 %v6416, %v6415
    %v6468 = vpack.c.bf16 %v6418, %v6417
    %v6469 = vpack.c.bf16 %v6420, %v6419
    %v6470 = vpack.c.bf16 %v6422, %v6421
    %v6471 = vpack.c.bf16 %v6424, %v6423
    %v6472 = vpack.c.bf16 %v6426, %v6425
    %v6473 = vpack.c.bf16 %v6428, %v6427
    %v6474 = vpack.c.bf16 %v6430, %v6429
    %v6475 = vpack.c.bf16 %v6432, %v6431
    %v6476 = vpack.c.bf16 %v6434, %v6433
    %v6477 = vpack.c.bf16 %v6436, %v6435
    %v6478 = vpack.c.bf16 %v6438, %v6437
    %v6479 = vpack.c.bf16 %v6440, %v6439
    %v6480 = vpack.c.bf16 %v6442, %v6441
    %v6481 = vpack.c.bf16 %v6444, %v6443
    %v6482 = vpack.c.bf16 %v6446, %v6445
    %v6483 = vpack.c.bf16 %v6448, %v6447
    %v6484 = vpack.c.bf16 %v6450, %v6449
    %v6485 = vpack.c.bf16 %v6452, %v6451
    %v6486 = vpack.c.bf16 %v6454, %v6453
    %v6487 = vld [vmem:[#allocation2] sm:$0xf]
    %v6488 = vld [vmem:[#allocation2 + $0x4] sm:$0xf]
    %v6489 = vld [vmem:[#allocation2 + $0x8] sm:$0xf]
    %v6490 = vld [vmem:[#allocation2 + $0xc] sm:$0xf]
    %v6491 = vld [vmem:[#allocation2 + $0x10] sm:$0xf]
    %v6492 = vld [vmem:[#allocation2 + $0x14] sm:$0xf]
    %v6493 = vld [vmem:[#allocation2 + $0x18] sm:$0xf]
    %v6494 = vld [vmem:[#allocation2 + $0x1c] sm:$0xf]
    %v6495 = vld [vmem:[#allocation2 + $0x20] sm:$0xf]
    %v6496 = vld [vmem:[#allocation2 + $0x24] sm:$0xf]
    %v6497 = vld [vmem:[#allocation2 + $0x28] sm:$0xf]
    %v6498 = vld [vmem:[#allocation2 + $0x2c] sm:$0xf]
    %v6499 = vld [vmem:[#allocation2 + $0x30] sm:$0xf]
    %v6500 = vld [vmem:[#allocation2 + $0x34] sm:$0xf]
    %v6501 = vld [vmem:[#allocation2 + $0x38] sm:$0xf]
    %v6502 = vld [vmem:[#allocation2 + $0x3c] sm:$0xf]
    %v6503 = vld [vmem:[#allocation2 + $0x40] sm:$0xf]
    %v6504 = vld [vmem:[#allocation2 + $0x44] sm:$0xf]
    %v6505 = vld [vmem:[#allocation2 + $0x48] sm:$0xf]
    %v6506 = vld [vmem:[#allocation2 + $0x4c] sm:$0xf]
    %v6507 = vld [vmem:[#allocation2 + $0x50] sm:$0xf]
    %v6508 = vld [vmem:[#allocation2 + $0x54] sm:$0xf]
    %v6509 = vld [vmem:[#allocation2 + $0x58] sm:$0xf]
    %v6510 = vld [vmem:[#allocation2 + $0x5c] sm:$0xf]
    %v6511 = vld [vmem:[#allocation2 + $0x60] sm:$0xf]
    %v6512 = vld [vmem:[#allocation2 + $0x64] sm:$0xf]
    %v6513 = vld [vmem:[#allocation2 + $0x68] sm:$0xf]
    %v6514 = vld [vmem:[#allocation2 + $0x6c] sm:$0xf]
    %v6515 = vld [vmem:[#allocation2 + $0x70] sm:$0xf]
    %v6516 = vld [vmem:[#allocation2 + $0x74] sm:$0xf]
    %v6517 = vld [vmem:[#allocation2 + $0x78] sm:$0xf]
    %v6518 = vld [vmem:[#allocation2 + $0x7c] sm:$0xf]
    %v6519 = vld [vmem:[#allocation2 + $0x80] sm:$0xf]
    %v6520 = vld [vmem:[#allocation2 + $0x84] sm:$0xf]
    %v6521 = vld [vmem:[#allocation2 + $0x88] sm:$0xf]
    %v6522 = vld [vmem:[#allocation2 + $0x8c] sm:$0xf]
    %v6523 = vld [vmem:[#allocation2 + $0x90] sm:$0xf]
    %v6524 = vld [vmem:[#allocation2 + $0x94] sm:$0xf]
    %v6525 = vld [vmem:[#allocation2 + $0x98] sm:$0xf]
    %v6526 = vld [vmem:[#allocation2 + $0x9c] sm:$0xf]
    %v6527 = vld [vmem:[#allocation2 + $0xa0] sm:$0xf]
    %v6528 = vld [vmem:[#allocation2 + $0xa4] sm:$0xf]
    %v6529 = vld [vmem:[#allocation2 + $0xa8] sm:$0xf]
    %v6530 = vld [vmem:[#allocation2 + $0xac] sm:$0xf]
    %v6531 = vld [vmem:[#allocation2 + $0xb0] sm:$0xf]
    %v6532 = vld [vmem:[#allocation2 + $0xb4] sm:$0xf]
    %v6533 = vld [vmem:[#allocation2 + $0xb8] sm:$0xf]
    %v6534 = vld [vmem:[#allocation2 + $0xbc] sm:$0xf]
    %v6535 = vld [vmem:[#allocation2 + $0xc0] sm:$0xf]
    %v6536 = vld [vmem:[#allocation2 + $0xc4] sm:$0xf]
    %v6537 = vld [vmem:[#allocation2 + $0xc8] sm:$0xf]
    %v6538 = vld [vmem:[#allocation2 + $0xcc] sm:$0xf]
    %v6539 = vld [vmem:[#allocation2 + $0xd0] sm:$0xf]
    %v6540 = vld [vmem:[#allocation2 + $0xd4] sm:$0xf]
    %v6541 = vld [vmem:[#allocation2 + $0xd8] sm:$0xf]
    %v6542 = vld [vmem:[#allocation2 + $0xdc] sm:$0xf]
    %v6543 = vld [vmem:[#allocation2 + $0xe0] sm:$0xf]
    %v6544 = vld [vmem:[#allocation2 + $0xe4] sm:$0xf]
    %v6545 = vld [vmem:[#allocation2 + $0xe8] sm:$0xf]
    %v6546 = vld [vmem:[#allocation2 + $0xec] sm:$0xf]
    %v6547 = vld [vmem:[#allocation2 + $0xf0] sm:$0xf]
    %v6548 = vld [vmem:[#allocation2 + $0xf4] sm:$0xf]
    %v6549 = vld [vmem:[#allocation2 + $0xf8] sm:$0xf]
    %v6550 = vld [vmem:[#allocation2 + $0xfc] sm:$0xf]
    %s6551 = scalar_lea.vmem [#allocation2], 256
    %v6552 = vld [vmem:[%s6551] sm:$0xf]
    %v6553 = vld [vmem:[%s6551 + $0x4] sm:$0xf]
    %v6554 = vld [vmem:[%s6551 + $0x8] sm:$0xf]
    %v6555 = vld [vmem:[%s6551 + $0xc] sm:$0xf]
    %v6556 = vld [vmem:[%s6551 + $0x10] sm:$0xf]
    %v6557 = vld [vmem:[%s6551 + $0x14] sm:$0xf]
    %v6558 = vld [vmem:[%s6551 + $0x18] sm:$0xf]
    %v6559 = vld [vmem:[%s6551 + $0x1c] sm:$0xf]
    %v6560 = vld [vmem:[%s6551 + $0x20] sm:$0xf]
    %v6561 = vld [vmem:[%s6551 + $0x24] sm:$0xf]
    %v6562 = vld [vmem:[%s6551 + $0x28] sm:$0xf]
    %v6563 = vld [vmem:[%s6551 + $0x2c] sm:$0xf]
    %v6564 = vld [vmem:[%s6551 + $0x30] sm:$0xf]
    %v6565 = vld [vmem:[%s6551 + $0x34] sm:$0xf]
    %v6566 = vld [vmem:[%s6551 + $0x38] sm:$0xf]
    %v6567 = vld [vmem:[%s6551 + $0x3c] sm:$0xf]
    %v6568 = vld [vmem:[%s6551 + $0x40] sm:$0xf]
    %v6569 = vld [vmem:[%s6551 + $0x44] sm:$0xf]
    %v6570 = vld [vmem:[%s6551 + $0x48] sm:$0xf]
    %v6571 = vld [vmem:[%s6551 + $0x4c] sm:$0xf]
    %v6572 = vld [vmem:[%s6551 + $0x50] sm:$0xf]
    %v6573 = vld [vmem:[%s6551 + $0x54] sm:$0xf]
    %v6574 = vld [vmem:[%s6551 + $0x58] sm:$0xf]
    %v6575 = vld [vmem:[%s6551 + $0x5c] sm:$0xf]
    %v6576 = vld [vmem:[%s6551 + $0x60] sm:$0xf]
    %v6577 = vld [vmem:[%s6551 + $0x64] sm:$0xf]
    %v6578 = vld [vmem:[%s6551 + $0x68] sm:$0xf]
    %v6579 = vld [vmem:[%s6551 + $0x6c] sm:$0xf]
    %v6580 = vld [vmem:[%s6551 + $0x70] sm:$0xf]
    %v6581 = vld [vmem:[%s6551 + $0x74] sm:$0xf]
    %v6582 = vld [vmem:[%s6551 + $0x78] sm:$0xf]
    %v6583 = vld [vmem:[%s6551 + $0x7c] sm:$0xf]
    %v6584 = vld [vmem:[%s6551 + $0x80] sm:$0xf]
    %v6585 = vld [vmem:[%s6551 + $0x84] sm:$0xf]
    %v6586 = vld [vmem:[%s6551 + $0x88] sm:$0xf]
    %v6587 = vld [vmem:[%s6551 + $0x8c] sm:$0xf]
    %v6588 = vld [vmem:[%s6551 + $0x90] sm:$0xf]
    %v6589 = vld [vmem:[%s6551 + $0x94] sm:$0xf]
    %v6590 = vld [vmem:[%s6551 + $0x98] sm:$0xf]
    %v6591 = vld [vmem:[%s6551 + $0x9c] sm:$0xf]
    %v6592 = vld [vmem:[%s6551 + $0xa0] sm:$0xf]
    %v6593 = vld [vmem:[%s6551 + $0xa4] sm:$0xf]
    %v6594 = vld [vmem:[%s6551 + $0xa8] sm:$0xf]
    %v6595 = vld [vmem:[%s6551 + $0xac] sm:$0xf]
    %v6596 = vld [vmem:[%s6551 + $0xb0] sm:$0xf]
    %v6597 = vld [vmem:[%s6551 + $0xb4] sm:$0xf]
    %v6598 = vld [vmem:[%s6551 + $0xb8] sm:$0xf]
    %v6599 = vld [vmem:[%s6551 + $0xbc] sm:$0xf]
    %v6600 = vld [vmem:[%s6551 + $0xc0] sm:$0xf]
    %v6601 = vld [vmem:[%s6551 + $0xc4] sm:$0xf]
    %v6602 = vld [vmem:[%s6551 + $0xc8] sm:$0xf]
    %v6603 = vld [vmem:[%s6551 + $0xcc] sm:$0xf]
    %v6604 = vld [vmem:[%s6551 + $0xd0] sm:$0xf]
    %v6605 = vld [vmem:[%s6551 + $0xd4] sm:$0xf]
    %v6606 = vld [vmem:[%s6551 + $0xd8] sm:$0xf]
    %v6607 = vld [vmem:[%s6551 + $0xdc] sm:$0xf]
    %v6608 = vld [vmem:[%s6551 + $0xe0] sm:$0xf]
    %v6609 = vld [vmem:[%s6551 + $0xe4] sm:$0xf]
    %v6610 = vld [vmem:[%s6551 + $0xe8] sm:$0xf]
    %v6611 = vld [vmem:[%s6551 + $0xec] sm:$0xf]
    %v6612 = vld [vmem:[%s6551 + $0xf0] sm:$0xf]
    %v6613 = vld [vmem:[%s6551 + $0xf4] sm:$0xf]
    %v6614 = vld [vmem:[%s6551 + $0xf8] sm:$0xf]
    %v6615 = vld [vmem:[%s6551 + $0xfc] sm:$0xf]
    %v6620 = vunpack.c.l.b16 %v6459
    %v6621 = vunpack.c.h.b16 %v6459
    %v6622 = vunpack.c.l.b16 %v6460
    %v6623 = vunpack.c.h.b16 %v6460
    %v6624 = vunpack.c.l.b16 %v6461
    %v6625 = vunpack.c.h.b16 %v6461
    %v6626 = vunpack.c.l.b16 %v6462
    %v6627 = vunpack.c.h.b16 %v6462
    %v6628 = vpack.c.b16 %v6624, %v6620
    %v6629 = vpack.c.b16 %v6625, %v6621
    %v6630 = vpack.c.b16 %v6626, %v6622
    %v6631 = vpack.c.b16 %v6627, %v6623
    %v6700 = vunpack.c.l.b16 %v6552
    %v6701 = vunpack.c.l.b16 %v6553
    %v6702 = vunpack.c.l.b16 %v6554
    %v6703 = vunpack.c.l.b16 %v6555
    %v6704 = vunpack.c.l.b16 %v6556
    %v6705 = vunpack.c.l.b16 %v6557
    %v6706 = vunpack.c.l.b16 %v6558
    %v6707 = vunpack.c.l.b16 %v6559
    %v6708 = vunpack.c.l.b16 %v6560
    %v6709 = vunpack.c.l.b16 %v6561
    %v6710 = vunpack.c.l.b16 %v6562
    %v6711 = vunpack.c.l.b16 %v6563
    %v6712 = vunpack.c.l.b16 %v6564
    %v6713 = vunpack.c.l.b16 %v6565
    %v6714 = vunpack.c.l.b16 %v6566
    %v6715 = vunpack.c.l.b16 %v6567
    %v6716 = vunpack.c.l.b16 %v6568
    %v6717 = vunpack.c.l.b16 %v6569
    %v6718 = vunpack.c.l.b16 %v6570
    %v6719 = vunpack.c.l.b16 %v6571
    %v6720 = vunpack.c.l.b16 %v6572
    %v6721 = vunpack.c.l.b16 %v6573
    %v6722 = vunpack.c.l.b16 %v6574
    %v6723 = vunpack.c.l.b16 %v6575
    %v6724 = vunpack.c.l.b16 %v6576
    %v6725 = vunpack.c.l.b16 %v6577
    %v6726 = vunpack.c.l.b16 %v6578
    %v6727 = vunpack.c.l.b16 %v6579
    %v6728 = vunpack.c.l.b16 %v6580
    %v6729 = vunpack.c.l.b16 %v6581
    %v6730 = vunpack.c.l.b16 %v6582
    %v6731 = vunpack.c.l.b16 %v6583
    %v6732 = vunpack.c.l.b16 %v6584
    %v6733 = vunpack.c.l.b16 %v6585
    %v6734 = vunpack.c.l.b16 %v6586
    %v6735 = vunpack.c.l.b16 %v6587
    %v6736 = vunpack.c.l.b16 %v6588
    %v6737 = vunpack.c.l.b16 %v6589
    %v6738 = vunpack.c.l.b16 %v6590
    %v6739 = vunpack.c.l.b16 %v6591
    %v6740 = vunpack.c.l.b16 %v6592
    %v6741 = vunpack.c.l.b16 %v6593
    %v6742 = vunpack.c.l.b16 %v6594
    %v6743 = vunpack.c.l.b16 %v6595
    %v6744 = vunpack.c.l.b16 %v6596
    %v6745 = vunpack.c.l.b16 %v6597
    %v6746 = vunpack.c.l.b16 %v6598
    %v6747 = vunpack.c.l.b16 %v6599
    %v6748 = vunpack.c.l.b16 %v6600
    %v6749 = vunpack.c.l.b16 %v6601
    %v6750 = vunpack.c.l.b16 %v6602
    %v6751 = vunpack.c.l.b16 %v6603
    %v6752 = vunpack.c.l.b16 %v6604
    %v6753 = vunpack.c.l.b16 %v6605
    %v6754 = vunpack.c.l.b16 %v6606
    %v6755 = vunpack.c.l.b16 %v6607
    %v6756 = vunpack.c.l.b16 %v6608
    %v6757 = vunpack.c.l.b16 %v6609
    %v6758 = vunpack.c.l.b16 %v6610
    %v6759 = vunpack.c.l.b16 %v6611
    %v6760 = vunpack.c.l.b16 %v6612
    %v6761 = vunpack.c.l.b16 %v6613
    %v6762 = vunpack.c.l.b16 %v6614
    %v6763 = vunpack.c.l.b16 %v6615
    %v6764 = vpack.c.b16 %v6701, %v6700
    %v6765 = vpack.c.b16 %v6703, %v6702
    %v6766 = vpack.c.b16 %v6705, %v6704
    %v6767 = vpack.c.b16 %v6707, %v6706
    %v6768 = vpack.c.b16 %v6709, %v6708
    %v6769 = vpack.c.b16 %v6711, %v6710
    %v6770 = vpack.c.b16 %v6713, %v6712
    %v6771 = vpack.c.b16 %v6715, %v6714
    %v6772 = vpack.c.b16 %v6717, %v6716
    %v6773 = vpack.c.b16 %v6719, %v6718
    %v6774 = vpack.c.b16 %v6721, %v6720
    %v6775 = vpack.c.b16 %v6723, %v6722
    %v6776 = vpack.c.b16 %v6725, %v6724
    %v6777 = vpack.c.b16 %v6727, %v6726
    %v6778 = vpack.c.b16 %v6729, %v6728
    %v6779 = vpack.c.b16 %v6731, %v6730
    %v6780 = vpack.c.b16 %v6733, %v6732
    %v6781 = vpack.c.b16 %v6735, %v6734
    %v6782 = vpack.c.b16 %v6737, %v6736
    %v6783 = vpack.c.b16 %v6739, %v6738
    %v6784 = vpack.c.b16 %v6741, %v6740
    %v6785 = vpack.c.b16 %v6743, %v6742
    %v6786 = vpack.c.b16 %v6745, %v6744
    %v6787 = vpack.c.b16 %v6747, %v6746
    %v6788 = vpack.c.b16 %v6749, %v6748
    %v6789 = vpack.c.b16 %v6751, %v6750
    %v6790 = vpack.c.b16 %v6753, %v6752
    %v6791 = vpack.c.b16 %v6755, %v6754
    %v6792 = vpack.c.b16 %v6757, %v6756
    %v6793 = vpack.c.b16 %v6759, %v6758
    %v6794 = vpack.c.b16 %v6761, %v6760
    %v6795 = vpack.c.b16 %v6763, %v6762
    %6828 = vmatpush.bf16.msra.mxu0 %v6771
    %6829 = vmatpush.bf16.msra.mxu0 %v6770
    %6830 = vmatpush.bf16.msra.mxu0 %v6769
    %6831 = vmatpush.bf16.msra.mxu0 %v6768
    %6832 = vmatpush.bf16.msra.mxu0 %v6767
    %6833 = vmatpush.bf16.msra.mxu0 %v6766
    %6834 = vmatpush.bf16.msra.mxu0 %v6765
    %6835 = vmatpush.bf16.msra.mxu0 %v6764
    %6836 = vmatmul.bf16.gmra.mxu0 %v6628
    %v6837 = vpop.f32.mrf.mxu0
    %v6838 = vadd.f32 0.0, %v6837
    %v6839 = vpop.f32.mrf.mxu0
    %v6840 = vadd.f32 0.0, %v6839
    %6841 = vdwg.mxu0
    %6842 = vmatpush.bf16.msra.mxu0 %v6779
    %6843 = vmatpush.bf16.msra.mxu0 %v6778
    %6844 = vmatpush.bf16.msra.mxu0 %v6777
    %6845 = vmatpush.bf16.msra.mxu0 %v6776
    %6846 = vmatpush.bf16.msra.mxu0 %v6775
    %6847 = vmatpush.bf16.msra.mxu0 %v6774
    %6848 = vmatpush.bf16.msra.mxu0 %v6773
    %6849 = vmatpush.bf16.msra.mxu0 %v6772
    %6850 = vmatmul.bf16.gmra.mxu0 %v6629
    %v6851 = vpop.f32.mrf.mxu0
    %v6852 = vadd.f32 %v6838, %v6851
    %v6853 = vpop.f32.mrf.mxu0
    %v6854 = vadd.f32 %v6840, %v6853
    %6855 = vdwg.mxu0
    %6856 = vmatpush.bf16.msra.mxu0 %v6787
    %6857 = vmatpush.bf16.msra.mxu0 %v6786
    %6858 = vmatpush.bf16.msra.mxu0 %v6785
    %6859 = vmatpush.bf16.msra.mxu0 %v6784
    %6860 = vmatpush.bf16.msra.mxu0 %v6783
    %6861 = vmatpush.bf16.msra.mxu0 %v6782
    %6862 = vmatpush.bf16.msra.mxu0 %v6781
    %6863 = vmatpush.bf16.msra.mxu0 %v6780
    %6864 = vmatmul.bf16.gmra.mxu0 %v6630
    %v6865 = vpop.f32.mrf.mxu0
    %v6866 = vadd.f32 %v6852, %v6865
    %v6867 = vpop.f32.mrf.mxu0
    %v6868 = vadd.f32 %v6854, %v6867
    %6869 = vdwg.mxu0
    %6870 = vmatpush.bf16.msra.mxu0 %v6795
    %6871 = vmatpush.bf16.msra.mxu0 %v6794
    %6872 = vmatpush.bf16.msra.mxu0 %v6793
    %6873 = vmatpush.bf16.msra.mxu0 %v6792
    %6874 = vmatpush.bf16.msra.mxu0 %v6791
    %6875 = vmatpush.bf16.msra.mxu0 %v6790
    %6876 = vmatpush.bf16.msra.mxu0 %v6789
    %6877 = vmatpush.bf16.msra.mxu0 %v6788
    %6878 = vmatmul.bf16.gmra.mxu0 %v6631
    %v6879 = vpop.f32.mrf.mxu0
    %v6880 = vadd.f32 %v6866, %v6879
    %v6881 = vpop.f32.mrf.mxu0
    %v6882 = vadd.f32 %v6868, %v6881
    %6883 = vdwg.mxu0
    %v6888 = vunpack.c.l.b16 %v6455
    %v6889 = vunpack.c.h.b16 %v6455
    %v6890 = vunpack.c.l.b16 %v6456
    %v6891 = vunpack.c.h.b16 %v6456
    %v6892 = vunpack.c.l.b16 %v6457
    %v6893 = vunpack.c.h.b16 %v6457
    %v6894 = vunpack.c.l.b16 %v6458
    %v6895 = vunpack.c.h.b16 %v6458
    %v6896 = vpack.c.b16 %v6892, %v6888
    %v6897 = vpack.c.b16 %v6893, %v6889
    %v6898 = vpack.c.b16 %v6894, %v6890
    %v6899 = vpack.c.b16 %v6895, %v6891
    %v6968 = vunpack.c.l.b16 %v6487
    %v6969 = vunpack.c.l.b16 %v6488
    %v6970 = vunpack.c.l.b16 %v6489
    %v6971 = vunpack.c.l.b16 %v6490
    %v6972 = vunpack.c.l.b16 %v6491
    %v6973 = vunpack.c.l.b16 %v6492
    %v6974 = vunpack.c.l.b16 %v6493
    %v6975 = vunpack.c.l.b16 %v6494
    %v6976 = vunpack.c.l.b16 %v6495
    %v6977 = vunpack.c.l.b16 %v6496
    %v6978 = vunpack.c.l.b16 %v6497
    %v6979 = vunpack.c.l.b16 %v6498
    %v6980 = vunpack.c.l.b16 %v6499
    %v6981 = vunpack.c.l.b16 %v6500
    %v6982 = vunpack.c.l.b16 %v6501
    %v6983 = vunpack.c.l.b16 %v6502
    %v6984 = vunpack.c.l.b16 %v6503
    %v6985 = vunpack.c.l.b16 %v6504
    %v6986 = vunpack.c.l.b16 %v6505
    %v6987 = vunpack.c.l.b16 %v6506
    %v6988 = vunpack.c.l.b16 %v6507
    %v6989 = vunpack.c.l.b16 %v6508
    %v6990 = vunpack.c.l.b16 %v6509
    %v6991 = vunpack.c.l.b16 %v6510
    %v6992 = vunpack.c.l.b16 %v6511
    %v6993 = vunpack.c.l.b16 %v6512
    %v6994 = vunpack.c.l.b16 %v6513
    %v6995 = vunpack.c.l.b16 %v6514
    %v6996 = vunpack.c.l.b16 %v6515
    %v6997 = vunpack.c.l.b16 %v6516
    %v6998 = vunpack.c.l.b16 %v6517
    %v6999 = vunpack.c.l.b16 %v6518
    %v7000 = vunpack.c.l.b16 %v6519
    %v7001 = vunpack.c.l.b16 %v6520
    %v7002 = vunpack.c.l.b16 %v6521
    %v7003 = vunpack.c.l.b16 %v6522
    %v7004 = vunpack.c.l.b16 %v6523
    %v7005 = vunpack.c.l.b16 %v6524
    %v7006 = vunpack.c.l.b16 %v6525
    %v7007 = vunpack.c.l.b16 %v6526
    %v7008 = vunpack.c.l.b16 %v6527
    %v7009 = vunpack.c.l.b16 %v6528
    %v7010 = vunpack.c.l.b16 %v6529
    %v7011 = vunpack.c.l.b16 %v6530
    %v7012 = vunpack.c.l.b16 %v6531
    %v7013 = vunpack.c.l.b16 %v6532
    %v7014 = vunpack.c.l.b16 %v6533
    %v7015 = vunpack.c.l.b16 %v6534
    %v7016 = vunpack.c.l.b16 %v6535
    %v7017 = vunpack.c.l.b16 %v6536
    %v7018 = vunpack.c.l.b16 %v6537
    %v7019 = vunpack.c.l.b16 %v6538
    %v7020 = vunpack.c.l.b16 %v6539
    %v7021 = vunpack.c.l.b16 %v6540
    %v7022 = vunpack.c.l.b16 %v6541
    %v7023 = vunpack.c.l.b16 %v6542
    %v7024 = vunpack.c.l.b16 %v6543
    %v7025 = vunpack.c.l.b16 %v6544
    %v7026 = vunpack.c.l.b16 %v6545
    %v7027 = vunpack.c.l.b16 %v6546
    %v7028 = vunpack.c.l.b16 %v6547
    %v7029 = vunpack.c.l.b16 %v6548
    %v7030 = vunpack.c.l.b16 %v6549
    %v7031 = vunpack.c.l.b16 %v6550
    %v7032 = vpack.c.b16 %v6969, %v6968
    %v7033 = vpack.c.b16 %v6971, %v6970
    %v7034 = vpack.c.b16 %v6973, %v6972
    %v7035 = vpack.c.b16 %v6975, %v6974
    %v7036 = vpack.c.b16 %v6977, %v6976
    %v7037 = vpack.c.b16 %v6979, %v6978
    %v7038 = vpack.c.b16 %v6981, %v6980
    %v7039 = vpack.c.b16 %v6983, %v6982
    %v7040 = vpack.c.b16 %v6985, %v6984
    %v7041 = vpack.c.b16 %v6987, %v6986
    %v7042 = vpack.c.b16 %v6989, %v6988
    %v7043 = vpack.c.b16 %v6991, %v6990
    %v7044 = vpack.c.b16 %v6993, %v6992
    %v7045 = vpack.c.b16 %v6995, %v6994
    %v7046 = vpack.c.b16 %v6997, %v6996
    %v7047 = vpack.c.b16 %v6999, %v6998
    %v7048 = vpack.c.b16 %v7001, %v7000
    %v7049 = vpack.c.b16 %v7003, %v7002
    %v7050 = vpack.c.b16 %v7005, %v7004
    %v7051 = vpack.c.b16 %v7007, %v7006
    %v7052 = vpack.c.b16 %v7009, %v7008
    %v7053 = vpack.c.b16 %v7011, %v7010
    %v7054 = vpack.c.b16 %v7013, %v7012
    %v7055 = vpack.c.b16 %v7015, %v7014
    %v7056 = vpack.c.b16 %v7017, %v7016
    %v7057 = vpack.c.b16 %v7019, %v7018
    %v7058 = vpack.c.b16 %v7021, %v7020
    %v7059 = vpack.c.b16 %v7023, %v7022
    %v7060 = vpack.c.b16 %v7025, %v7024
    %v7061 = vpack.c.b16 %v7027, %v7026
    %v7062 = vpack.c.b16 %v7029, %v7028
    %v7063 = vpack.c.b16 %v7031, %v7030
    %7096 = vmatpush.bf16.msra.mxu0 %v7039
    %7097 = vmatpush.bf16.msra.mxu0 %v7038
    %7098 = vmatpush.bf16.msra.mxu0 %v7037
    %7099 = vmatpush.bf16.msra.mxu0 %v7036
    %7100 = vmatpush.bf16.msra.mxu0 %v7035
    %7101 = vmatpush.bf16.msra.mxu0 %v7034
    %7102 = vmatpush.bf16.msra.mxu0 %v7033
    %7103 = vmatpush.bf16.msra.mxu0 %v7032
    %7104 = vmatmul.bf16.gmra.mxu0 %v6896
    %v7105 = vpop.f32.mrf.mxu0
    %v7106 = vadd.f32 %v6880, %v7105
    %v7107 = vpop.f32.mrf.mxu0
    %v7108 = vadd.f32 %v6882, %v7107
    %7109 = vdwg.mxu0
    %7110 = vmatpush.bf16.msra.mxu0 %v7047
    %7111 = vmatpush.bf16.msra.mxu0 %v7046
    %7112 = vmatpush.bf16.msra.mxu0 %v7045
    %7113 = vmatpush.bf16.msra.mxu0 %v7044
    %7114 = vmatpush.bf16.msra.mxu0 %v7043
    %7115 = vmatpush.bf16.msra.mxu0 %v7042
    %7116 = vmatpush.bf16.msra.mxu0 %v7041
    %7117 = vmatpush.bf16.msra.mxu0 %v7040
    %7118 = vmatmul.bf16.gmra.mxu0 %v6897
    %v7119 = vpop.f32.mrf.mxu0
    %v7120 = vadd.f32 %v7106, %v7119
    %v7121 = vpop.f32.mrf.mxu0
    %v7122 = vadd.f32 %v7108, %v7121
    %7123 = vdwg.mxu0
    %7124 = vmatpush.bf16.msra.mxu0 %v7055
    %7125 = vmatpush.bf16.msra.mxu0 %v7054
    %7126 = vmatpush.bf16.msra.mxu0 %v7053
    %7127 = vmatpush.bf16.msra.mxu0 %v7052
    %7128 = vmatpush.bf16.msra.mxu0 %v7051
    %7129 = vmatpush.bf16.msra.mxu0 %v7050
    %7130 = vmatpush.bf16.msra.mxu0 %v7049
    %7131 = vmatpush.bf16.msra.mxu0 %v7048
    %7132 = vmatmul.bf16.gmra.mxu0 %v6898
    %v7133 = vpop.f32.mrf.mxu0
    %v7134 = vadd.f32 %v7120, %v7133
    %v7135 = vpop.f32.mrf.mxu0
    %v7136 = vadd.f32 %v7122, %v7135
    %7137 = vdwg.mxu0
    %7138 = vmatpush.bf16.msra.mxu0 %v7063
    %7139 = vmatpush.bf16.msra.mxu0 %v7062
    %7140 = vmatpush.bf16.msra.mxu0 %v7061
    %7141 = vmatpush.bf16.msra.mxu0 %v7060
    %7142 = vmatpush.bf16.msra.mxu0 %v7059
    %7143 = vmatpush.bf16.msra.mxu0 %v7058
    %7144 = vmatpush.bf16.msra.mxu0 %v7057
    %7145 = vmatpush.bf16.msra.mxu0 %v7056
    %7146 = vmatmul.bf16.gmra.mxu0 %v6899
    %v7147 = vpop.f32.mrf.mxu0
    %v7148 = vadd.f32 %v7134, %v7147
    %v7149 = vpop.f32.mrf.mxu0
    %v7150 = vadd.f32 %v7136, %v7149
    %7151 = vdwg.mxu0
    %s7152 = scalar_lea.vmem [#allocation2], 512
    %v7153 = vld [vmem:[%s7152] sm:$0xf]
    %v7154 = vld [vmem:[%s7152 + $0x4] sm:$0xf]
    %v7155 = vld [vmem:[%s7152 + $0x8] sm:$0xf]
    %v7156 = vld [vmem:[%s7152 + $0xc] sm:$0xf]
    %v7157 = vld [vmem:[%s7152 + $0x10] sm:$0xf]
    %v7158 = vld [vmem:[%s7152 + $0x14] sm:$0xf]
    %v7159 = vld [vmem:[%s7152 + $0x18] sm:$0xf]
    %v7160 = vld [vmem:[%s7152 + $0x1c] sm:$0xf]
    %v7161 = vld [vmem:[%s7152 + $0x20] sm:$0xf]
    %v7162 = vld [vmem:[%s7152 + $0x24] sm:$0xf]
    %v7163 = vld [vmem:[%s7152 + $0x28] sm:$0xf]
    %v7164 = vld [vmem:[%s7152 + $0x2c] sm:$0xf]
    %v7165 = vld [vmem:[%s7152 + $0x30] sm:$0xf]
    %v7166 = vld [vmem:[%s7152 + $0x34] sm:$0xf]
    %v7167 = vld [vmem:[%s7152 + $0x38] sm:$0xf]
    %v7168 = vld [vmem:[%s7152 + $0x3c] sm:$0xf]
    %v7169 = vld [vmem:[%s7152 + $0x40] sm:$0xf]
    %v7170 = vld [vmem:[%s7152 + $0x44] sm:$0xf]
    %v7171 = vld [vmem:[%s7152 + $0x48] sm:$0xf]
    %v7172 = vld [vmem:[%s7152 + $0x4c] sm:$0xf]
    %v7173 = vld [vmem:[%s7152 + $0x50] sm:$0xf]
    %v7174 = vld [vmem:[%s7152 + $0x54] sm:$0xf]
    %v7175 = vld [vmem:[%s7152 + $0x58] sm:$0xf]
    %v7176 = vld [vmem:[%s7152 + $0x5c] sm:$0xf]
    %v7177 = vld [vmem:[%s7152 + $0x60] sm:$0xf]
    %v7178 = vld [vmem:[%s7152 + $0x64] sm:$0xf]
    %v7179 = vld [vmem:[%s7152 + $0x68] sm:$0xf]
    %v7180 = vld [vmem:[%s7152 + $0x6c] sm:$0xf]
    %v7181 = vld [vmem:[%s7152 + $0x70] sm:$0xf]
    %v7182 = vld [vmem:[%s7152 + $0x74] sm:$0xf]
    %v7183 = vld [vmem:[%s7152 + $0x78] sm:$0xf]
    %v7184 = vld [vmem:[%s7152 + $0x7c] sm:$0xf]
    %v7185 = vld [vmem:[%s7152 + $0x80] sm:$0xf]
    %v7186 = vld [vmem:[%s7152 + $0x84] sm:$0xf]
    %v7187 = vld [vmem:[%s7152 + $0x88] sm:$0xf]
    %v7188 = vld [vmem:[%s7152 + $0x8c] sm:$0xf]
    %v7189 = vld [vmem:[%s7152 + $0x90] sm:$0xf]
    %v7190 = vld [vmem:[%s7152 + $0x94] sm:$0xf]
    %v7191 = vld [vmem:[%s7152 + $0x98] sm:$0xf]
    %v7192 = vld [vmem:[%s7152 + $0x9c] sm:$0xf]
    %v7193 = vld [vmem:[%s7152 + $0xa0] sm:$0xf]
    %v7194 = vld [vmem:[%s7152 + $0xa4] sm:$0xf]
    %v7195 = vld [vmem:[%s7152 + $0xa8] sm:$0xf]
    %v7196 = vld [vmem:[%s7152 + $0xac] sm:$0xf]
    %v7197 = vld [vmem:[%s7152 + $0xb0] sm:$0xf]
    %v7198 = vld [vmem:[%s7152 + $0xb4] sm:$0xf]
    %v7199 = vld [vmem:[%s7152 + $0xb8] sm:$0xf]
    %v7200 = vld [vmem:[%s7152 + $0xbc] sm:$0xf]
    %v7201 = vld [vmem:[%s7152 + $0xc0] sm:$0xf]
    %v7202 = vld [vmem:[%s7152 + $0xc4] sm:$0xf]
    %v7203 = vld [vmem:[%s7152 + $0xc8] sm:$0xf]
    %v7204 = vld [vmem:[%s7152 + $0xcc] sm:$0xf]
    %v7205 = vld [vmem:[%s7152 + $0xd0] sm:$0xf]
    %v7206 = vld [vmem:[%s7152 + $0xd4] sm:$0xf]
    %v7207 = vld [vmem:[%s7152 + $0xd8] sm:$0xf]
    %v7208 = vld [vmem:[%s7152 + $0xdc] sm:$0xf]
    %v7209 = vld [vmem:[%s7152 + $0xe0] sm:$0xf]
    %v7210 = vld [vmem:[%s7152 + $0xe4] sm:$0xf]
    %v7211 = vld [vmem:[%s7152 + $0xe8] sm:$0xf]
    %v7212 = vld [vmem:[%s7152 + $0xec] sm:$0xf]
    %v7213 = vld [vmem:[%s7152 + $0xf0] sm:$0xf]
    %v7214 = vld [vmem:[%s7152 + $0xf4] sm:$0xf]
    %v7215 = vld [vmem:[%s7152 + $0xf8] sm:$0xf]
    %v7216 = vld [vmem:[%s7152 + $0xfc] sm:$0xf]
    %v7221 = vunpack.c.l.b16 %v6463
    %v7222 = vunpack.c.h.b16 %v6463
    %v7223 = vunpack.c.l.b16 %v6464
    %v7224 = vunpack.c.h.b16 %v6464
    %v7225 = vunpack.c.l.b16 %v6465
    %v7226 = vunpack.c.h.b16 %v6465
    %v7227 = vunpack.c.l.b16 %v6466
    %v7228 = vunpack.c.h.b16 %v6466
    %v7229 = vpack.c.b16 %v7225, %v7221
    %v7230 = vpack.c.b16 %v7226, %v7222
    %v7231 = vpack.c.b16 %v7227, %v7223
    %v7232 = vpack.c.b16 %v7228, %v7224
    %v7301 = vunpack.c.l.b16 %v7153
    %v7302 = vunpack.c.l.b16 %v7154
    %v7303 = vunpack.c.l.b16 %v7155
    %v7304 = vunpack.c.l.b16 %v7156
    %v7305 = vunpack.c.l.b16 %v7157
    %v7306 = vunpack.c.l.b16 %v7158
    %v7307 = vunpack.c.l.b16 %v7159
    %v7308 = vunpack.c.l.b16 %v7160
    %v7309 = vunpack.c.l.b16 %v7161
    %v7310 = vunpack.c.l.b16 %v7162
    %v7311 = vunpack.c.l.b16 %v7163
    %v7312 = vunpack.c.l.b16 %v7164
    %v7313 = vunpack.c.l.b16 %v7165
    %v7314 = vunpack.c.l.b16 %v7166
    %v7315 = vunpack.c.l.b16 %v7167
    %v7316 = vunpack.c.l.b16 %v7168
    %v7317 = vunpack.c.l.b16 %v7169
    %v7318 = vunpack.c.l.b16 %v7170
    %v7319 = vunpack.c.l.b16 %v7171
    %v7320 = vunpack.c.l.b16 %v7172
    %v7321 = vunpack.c.l.b16 %v7173
    %v7322 = vunpack.c.l.b16 %v7174
    %v7323 = vunpack.c.l.b16 %v7175
    %v7324 = vunpack.c.l.b16 %v7176
    %v7325 = vunpack.c.l.b16 %v7177
    %v7326 = vunpack.c.l.b16 %v7178
    %v7327 = vunpack.c.l.b16 %v7179
    %v7328 = vunpack.c.l.b16 %v7180
    %v7329 = vunpack.c.l.b16 %v7181
    %v7330 = vunpack.c.l.b16 %v7182
    %v7331 = vunpack.c.l.b16 %v7183
    %v7332 = vunpack.c.l.b16 %v7184
    %v7333 = vunpack.c.l.b16 %v7185
    %v7334 = vunpack.c.l.b16 %v7186
    %v7335 = vunpack.c.l.b16 %v7187
    %v7336 = vunpack.c.l.b16 %v7188
    %v7337 = vunpack.c.l.b16 %v7189
    %v7338 = vunpack.c.l.b16 %v7190
    %v7339 = vunpack.c.l.b16 %v7191
    %v7340 = vunpack.c.l.b16 %v7192
    %v7341 = vunpack.c.l.b16 %v7193
    %v7342 = vunpack.c.l.b16 %v7194
    %v7343 = vunpack.c.l.b16 %v7195
    %v7344 = vunpack.c.l.b16 %v7196
    %v7345 = vunpack.c.l.b16 %v7197
    %v7346 = vunpack.c.l.b16 %v7198
    %v7347 = vunpack.c.l.b16 %v7199
    %v7348 = vunpack.c.l.b16 %v7200
    %v7349 = vunpack.c.l.b16 %v7201
    %v7350 = vunpack.c.l.b16 %v7202
    %v7351 = vunpack.c.l.b16 %v7203
    %v7352 = vunpack.c.l.b16 %v7204
    %v7353 = vunpack.c.l.b16 %v7205
    %v7354 = vunpack.c.l.b16 %v7206
    %v7355 = vunpack.c.l.b16 %v7207
    %v7356 = vunpack.c.l.b16 %v7208
    %v7357 = vunpack.c.l.b16 %v7209
    %v7358 = vunpack.c.l.b16 %v7210
    %v7359 = vunpack.c.l.b16 %v7211
    %v7360 = vunpack.c.l.b16 %v7212
    %v7361 = vunpack.c.l.b16 %v7213
    %v7362 = vunpack.c.l.b16 %v7214
    %v7363 = vunpack.c.l.b16 %v7215
    %v7364 = vunpack.c.l.b16 %v7216
    %v7365 = vpack.c.b16 %v7302, %v7301
    %v7366 = vpack.c.b16 %v7304, %v7303
    %v7367 = vpack.c.b16 %v7306, %v7305
    %v7368 = vpack.c.b16 %v7308, %v7307
    %v7369 = vpack.c.b16 %v7310, %v7309
    %v7370 = vpack.c.b16 %v7312, %v7311
    %v7371 = vpack.c.b16 %v7314, %v7313
    %v7372 = vpack.c.b16 %v7316, %v7315
    %v7373 = vpack.c.b16 %v7318, %v7317
    %v7374 = vpack.c.b16 %v7320, %v7319
    %v7375 = vpack.c.b16 %v7322, %v7321
    %v7376 = vpack.c.b16 %v7324, %v7323
    %v7377 = vpack.c.b16 %v7326, %v7325
    %v7378 = vpack.c.b16 %v7328, %v7327
    %v7379 = vpack.c.b16 %v7330, %v7329
    %v7380 = vpack.c.b16 %v7332, %v7331
    %v7381 = vpack.c.b16 %v7334, %v7333
    %v7382 = vpack.c.b16 %v7336, %v7335
    %v7383 = vpack.c.b16 %v7338, %v7337
    %v7384 = vpack.c.b16 %v7340, %v7339
    %v7385 = vpack.c.b16 %v7342, %v7341
    %v7386 = vpack.c.b16 %v7344, %v7343
    %v7387 = vpack.c.b16 %v7346, %v7345
    %v7388 = vpack.c.b16 %v7348, %v7347
    %v7389 = vpack.c.b16 %v7350, %v7349
    %v7390 = vpack.c.b16 %v7352, %v7351
    %v7391 = vpack.c.b16 %v7354, %v7353
    %v7392 = vpack.c.b16 %v7356, %v7355
    %v7393 = vpack.c.b16 %v7358, %v7357
    %v7394 = vpack.c.b16 %v7360, %v7359
    %v7395 = vpack.c.b16 %v7362, %v7361
    %v7396 = vpack.c.b16 %v7364, %v7363
    %7429 = vmatpush.bf16.msra.mxu0 %v7372
    %7430 = vmatpush.bf16.msra.mxu0 %v7371
    %7431 = vmatpush.bf16.msra.mxu0 %v7370
    %7432 = vmatpush.bf16.msra.mxu0 %v7369
    %7433 = vmatpush.bf16.msra.mxu0 %v7368
    %7434 = vmatpush.bf16.msra.mxu0 %v7367
    %7435 = vmatpush.bf16.msra.mxu0 %v7366
    %7436 = vmatpush.bf16.msra.mxu0 %v7365
    %7437 = vmatmul.bf16.gmra.mxu0 %v7229
    %v7438 = vpop.f32.mrf.mxu0
    %v7439 = vadd.f32 0.0, %v7438
    %v7440 = vpop.f32.mrf.mxu0
    %v7441 = vadd.f32 0.0, %v7440
    %7442 = vdwg.mxu0
    %7443 = vmatpush.bf16.msra.mxu0 %v7380
    %7444 = vmatpush.bf16.msra.mxu0 %v7379
    %7445 = vmatpush.bf16.msra.mxu0 %v7378
    %7446 = vmatpush.bf16.msra.mxu0 %v7377
    %7447 = vmatpush.bf16.msra.mxu0 %v7376
    %7448 = vmatpush.bf16.msra.mxu0 %v7375
    %7449 = vmatpush.bf16.msra.mxu0 %v7374
    %7450 = vmatpush.bf16.msra.mxu0 %v7373
    %7451 = vmatmul.bf16.gmra.mxu0 %v7230
    %v7452 = vpop.f32.mrf.mxu0
    %v7453 = vadd.f32 %v7439, %v7452
    %v7454 = vpop.f32.mrf.mxu0
    %v7455 = vadd.f32 %v7441, %v7454
    %7456 = vdwg.mxu0
    %7457 = vmatpush.bf16.msra.mxu0 %v7388
    %7458 = vmatpush.bf16.msra.mxu0 %v7387
    %7459 = vmatpush.bf16.msra.mxu0 %v7386
    %7460 = vmatpush.bf16.msra.mxu0 %v7385
    %7461 = vmatpush.bf16.msra.mxu0 %v7384
    %7462 = vmatpush.bf16.msra.mxu0 %v7383
    %7463 = vmatpush.bf16.msra.mxu0 %v7382
    %7464 = vmatpush.bf16.msra.mxu0 %v7381
    %7465 = vmatmul.bf16.gmra.mxu0 %v7231
    %v7466 = vpop.f32.mrf.mxu0
    %v7467 = vadd.f32 %v7453, %v7466
    %v7468 = vpop.f32.mrf.mxu0
    %v7469 = vadd.f32 %v7455, %v7468
    %7470 = vdwg.mxu0
    %7471 = vmatpush.bf16.msra.mxu0 %v7396
    %7472 = vmatpush.bf16.msra.mxu0 %v7395
    %7473 = vmatpush.bf16.msra.mxu0 %v7394
    %7474 = vmatpush.bf16.msra.mxu0 %v7393
    %7475 = vmatpush.bf16.msra.mxu0 %v7392
    %7476 = vmatpush.bf16.msra.mxu0 %v7391
    %7477 = vmatpush.bf16.msra.mxu0 %v7390
    %7478 = vmatpush.bf16.msra.mxu0 %v7389
    %7479 = vmatmul.bf16.gmra.mxu0 %v7232
    %v7480 = vpop.f32.mrf.mxu0
    %v7481 = vadd.f32 %v7467, %v7480
    %v7482 = vpop.f32.mrf.mxu0
    %v7483 = vadd.f32 %v7469, %v7482
    %7484 = vdwg.mxu0
    %v7485 = vadd.f32 %v7148, %v7481
    %v7486 = vadd.f32 %v7150, %v7483
    %s7487 = scalar_lea.vmem [#allocation2], 768
    %v7488 = vld [vmem:[%s7487] sm:$0xf]
    %v7489 = vld [vmem:[%s7487 + $0x4] sm:$0xf]
    %v7490 = vld [vmem:[%s7487 + $0x8] sm:$0xf]
    %v7491 = vld [vmem:[%s7487 + $0xc] sm:$0xf]
    %v7492 = vld [vmem:[%s7487 + $0x10] sm:$0xf]
    %v7493 = vld [vmem:[%s7487 + $0x14] sm:$0xf]
    %v7494 = vld [vmem:[%s7487 + $0x18] sm:$0xf]
    %v7495 = vld [vmem:[%s7487 + $0x1c] sm:$0xf]
    %v7496 = vld [vmem:[%s7487 + $0x20] sm:$0xf]
    %v7497 = vld [vmem:[%s7487 + $0x24] sm:$0xf]
    %v7498 = vld [vmem:[%s7487 + $0x28] sm:$0xf]
    %v7499 = vld [vmem:[%s7487 + $0x2c] sm:$0xf]
    %v7500 = vld [vmem:[%s7487 + $0x30] sm:$0xf]
    %v7501 = vld [vmem:[%s7487 + $0x34] sm:$0xf]
    %v7502 = vld [vmem:[%s7487 + $0x38] sm:$0xf]
    %v7503 = vld [vmem:[%s7487 + $0x3c] sm:$0xf]
    %v7504 = vld [vmem:[%s7487 + $0x40] sm:$0xf]
    %v7505 = vld [vmem:[%s7487 + $0x44] sm:$0xf]
    %v7506 = vld [vmem:[%s7487 + $0x48] sm:$0xf]
    %v7507 = vld [vmem:[%s7487 + $0x4c] sm:$0xf]
    %v7508 = vld [vmem:[%s7487 + $0x50] sm:$0xf]
    %v7509 = vld [vmem:[%s7487 + $0x54] sm:$0xf]
    %v7510 = vld [vmem:[%s7487 + $0x58] sm:$0xf]
    %v7511 = vld [vmem:[%s7487 + $0x5c] sm:$0xf]
    %v7512 = vld [vmem:[%s7487 + $0x60] sm:$0xf]
    %v7513 = vld [vmem:[%s7487 + $0x64] sm:$0xf]
    %v7514 = vld [vmem:[%s7487 + $0x68] sm:$0xf]
    %v7515 = vld [vmem:[%s7487 + $0x6c] sm:$0xf]
    %v7516 = vld [vmem:[%s7487 + $0x70] sm:$0xf]
    %v7517 = vld [vmem:[%s7487 + $0x74] sm:$0xf]
    %v7518 = vld [vmem:[%s7487 + $0x78] sm:$0xf]
    %v7519 = vld [vmem:[%s7487 + $0x7c] sm:$0xf]
    %v7520 = vld [vmem:[%s7487 + $0x80] sm:$0xf]
    %v7521 = vld [vmem:[%s7487 + $0x84] sm:$0xf]
    %v7522 = vld [vmem:[%s7487 + $0x88] sm:$0xf]
    %v7523 = vld [vmem:[%s7487 + $0x8c] sm:$0xf]
    %v7524 = vld [vmem:[%s7487 + $0x90] sm:$0xf]
    %v7525 = vld [vmem:[%s7487 + $0x94] sm:$0xf]
    %v7526 = vld [vmem:[%s7487 + $0x98] sm:$0xf]
    %v7527 = vld [vmem:[%s7487 + $0x9c] sm:$0xf]
    %v7528 = vld [vmem:[%s7487 + $0xa0] sm:$0xf]
    %v7529 = vld [vmem:[%s7487 + $0xa4] sm:$0xf]
    %v7530 = vld [vmem:[%s7487 + $0xa8] sm:$0xf]
    %v7531 = vld [vmem:[%s7487 + $0xac] sm:$0xf]
    %v7532 = vld [vmem:[%s7487 + $0xb0] sm:$0xf]
    %v7533 = vld [vmem:[%s7487 + $0xb4] sm:$0xf]
    %v7534 = vld [vmem:[%s7487 + $0xb8] sm:$0xf]
    %v7535 = vld [vmem:[%s7487 + $0xbc] sm:$0xf]
    %v7536 = vld [vmem:[%s7487 + $0xc0] sm:$0xf]
    %v7537 = vld [vmem:[%s7487 + $0xc4] sm:$0xf]
    %v7538 = vld [vmem:[%s7487 + $0xc8] sm:$0xf]
    %v7539 = vld [vmem:[%s7487 + $0xcc] sm:$0xf]
    %v7540 = vld [vmem:[%s7487 + $0xd0] sm:$0xf]
    %v7541 = vld [vmem:[%s7487 + $0xd4] sm:$0xf]
    %v7542 = vld [vmem:[%s7487 + $0xd8] sm:$0xf]
    %v7543 = vld [vmem:[%s7487 + $0xdc] sm:$0xf]
    %v7544 = vld [vmem:[%s7487 + $0xe0] sm:$0xf]
    %v7545 = vld [vmem:[%s7487 + $0xe4] sm:$0xf]
    %v7546 = vld [vmem:[%s7487 + $0xe8] sm:$0xf]
    %v7547 = vld [vmem:[%s7487 + $0xec] sm:$0xf]
    %v7548 = vld [vmem:[%s7487 + $0xf0] sm:$0xf]
    %v7549 = vld [vmem:[%s7487 + $0xf4] sm:$0xf]
    %v7550 = vld [vmem:[%s7487 + $0xf8] sm:$0xf]
    %v7551 = vld [vmem:[%s7487 + $0xfc] sm:$0xf]
    %v7556 = vunpack.c.l.b16 %v6467
    %v7557 = vunpack.c.h.b16 %v6467
    %v7558 = vunpack.c.l.b16 %v6468
    %v7559 = vunpack.c.h.b16 %v6468
    %v7560 = vunpack.c.l.b16 %v6469
    %v7561 = vunpack.c.h.b16 %v6469
    %v7562 = vunpack.c.l.b16 %v6470
    %v7563 = vunpack.c.h.b16 %v6470
    %v7564 = vpack.c.b16 %v7560, %v7556
    %v7565 = vpack.c.b16 %v7561, %v7557
    %v7566 = vpack.c.b16 %v7562, %v7558
    %v7567 = vpack.c.b16 %v7563, %v7559
    %v7636 = vunpack.c.l.b16 %v7488
    %v7637 = vunpack.c.l.b16 %v7489
    %v7638 = vunpack.c.l.b16 %v7490
    %v7639 = vunpack.c.l.b16 %v7491
    %v7640 = vunpack.c.l.b16 %v7492
    %v7641 = vunpack.c.l.b16 %v7493
    %v7642 = vunpack.c.l.b16 %v7494
    %v7643 = vunpack.c.l.b16 %v7495
    %v7644 = vunpack.c.l.b16 %v7496
    %v7645 = vunpack.c.l.b16 %v7497
    %v7646 = vunpack.c.l.b16 %v7498
    %v7647 = vunpack.c.l.b16 %v7499
    %v7648 = vunpack.c.l.b16 %v7500
    %v7649 = vunpack.c.l.b16 %v7501
    %v7650 = vunpack.c.l.b16 %v7502
    %v7651 = vunpack.c.l.b16 %v7503
    %v7652 = vunpack.c.l.b16 %v7504
    %v7653 = vunpack.c.l.b16 %v7505
    %v7654 = vunpack.c.l.b16 %v7506
    %v7655 = vunpack.c.l.b16 %v7507
    %v7656 = vunpack.c.l.b16 %v7508
    %v7657 = vunpack.c.l.b16 %v7509
    %v7658 = vunpack.c.l.b16 %v7510
    %v7659 = vunpack.c.l.b16 %v7511
    %v7660 = vunpack.c.l.b16 %v7512
    %v7661 = vunpack.c.l.b16 %v7513
    %v7662 = vunpack.c.l.b16 %v7514
    %v7663 = vunpack.c.l.b16 %v7515
    %v7664 = vunpack.c.l.b16 %v7516
    %v7665 = vunpack.c.l.b16 %v7517
    %v7666 = vunpack.c.l.b16 %v7518
    %v7667 = vunpack.c.l.b16 %v7519
    %v7668 = vunpack.c.l.b16 %v7520
    %v7669 = vunpack.c.l.b16 %v7521
    %v7670 = vunpack.c.l.b16 %v7522
    %v7671 = vunpack.c.l.b16 %v7523
    %v7672 = vunpack.c.l.b16 %v7524
    %v7673 = vunpack.c.l.b16 %v7525
    %v7674 = vunpack.c.l.b16 %v7526
    %v7675 = vunpack.c.l.b16 %v7527
    %v7676 = vunpack.c.l.b16 %v7528
    %v7677 = vunpack.c.l.b16 %v7529
    %v7678 = vunpack.c.l.b16 %v7530
    %v7679 = vunpack.c.l.b16 %v7531
    %v7680 = vunpack.c.l.b16 %v7532
    %v7681 = vunpack.c.l.b16 %v7533
    %v7682 = vunpack.c.l.b16 %v7534
    %v7683 = vunpack.c.l.b16 %v7535
    %v7684 = vunpack.c.l.b16 %v7536
    %v7685 = vunpack.c.l.b16 %v7537
    %v7686 = vunpack.c.l.b16 %v7538
    %v7687 = vunpack.c.l.b16 %v7539
    %v7688 = vunpack.c.l.b16 %v7540
    %v7689 = vunpack.c.l.b16 %v7541
    %v7690 = vunpack.c.l.b16 %v7542
    %v7691 = vunpack.c.l.b16 %v7543
    %v7692 = vunpack.c.l.b16 %v7544
    %v7693 = vunpack.c.l.b16 %v7545
    %v7694 = vunpack.c.l.b16 %v7546
    %v7695 = vunpack.c.l.b16 %v7547
    %v7696 = vunpack.c.l.b16 %v7548
    %v7697 = vunpack.c.l.b16 %v7549
    %v7698 = vunpack.c.l.b16 %v7550
    %v7699 = vunpack.c.l.b16 %v7551
    %v7700 = vpack.c.b16 %v7637, %v7636
    %v7701 = vpack.c.b16 %v7639, %v7638
    %v7702 = vpack.c.b16 %v7641, %v7640
    %v7703 = vpack.c.b16 %v7643, %v7642
    %v7704 = vpack.c.b16 %v7645, %v7644
    %v7705 = vpack.c.b16 %v7647, %v7646
    %v7706 = vpack.c.b16 %v7649, %v7648
    %v7707 = vpack.c.b16 %v7651, %v7650
    %v7708 = vpack.c.b16 %v7653, %v7652
    %v7709 = vpack.c.b16 %v7655, %v7654
    %v7710 = vpack.c.b16 %v7657, %v7656
    %v7711 = vpack.c.b16 %v7659, %v7658
    %v7712 = vpack.c.b16 %v7661, %v7660
    %v7713 = vpack.c.b16 %v7663, %v7662
    %v7714 = vpack.c.b16 %v7665, %v7664
    %v7715 = vpack.c.b16 %v7667, %v7666
    %v7716 = vpack.c.b16 %v7669, %v7668
    %v7717 = vpack.c.b16 %v7671, %v7670
    %v7718 = vpack.c.b16 %v7673, %v7672
    %v7719 = vpack.c.b16 %v7675, %v7674
    %v7720 = vpack.c.b16 %v7677, %v7676
    %v7721 = vpack.c.b16 %v7679, %v7678
    %v7722 = vpack.c.b16 %v7681, %v7680
    %v7723 = vpack.c.b16 %v7683, %v7682
    %v7724 = vpack.c.b16 %v7685, %v7684
    %v7725 = vpack.c.b16 %v7687, %v7686
    %v7726 = vpack.c.b16 %v7689, %v7688
    %v7727 = vpack.c.b16 %v7691, %v7690
    %v7728 = vpack.c.b16 %v7693, %v7692
    %v7729 = vpack.c.b16 %v7695, %v7694
    %v7730 = vpack.c.b16 %v7697, %v7696
    %v7731 = vpack.c.b16 %v7699, %v7698
    %7764 = vmatpush.bf16.msra.mxu0 %v7707
    %7765 = vmatpush.bf16.msra.mxu0 %v7706
    %7766 = vmatpush.bf16.msra.mxu0 %v7705
    %7767 = vmatpush.bf16.msra.mxu0 %v7704
    %7768 = vmatpush.bf16.msra.mxu0 %v7703
    %7769 = vmatpush.bf16.msra.mxu0 %v7702
    %7770 = vmatpush.bf16.msra.mxu0 %v7701
    %7771 = vmatpush.bf16.msra.mxu0 %v7700
    %7772 = vmatmul.bf16.gmra.mxu0 %v7564
    %v7773 = vpop.f32.mrf.mxu0
    %v7774 = vadd.f32 0.0, %v7773
    %v7775 = vpop.f32.mrf.mxu0
    %v7776 = vadd.f32 0.0, %v7775
    %7777 = vdwg.mxu0
    %7778 = vmatpush.bf16.msra.mxu0 %v7715
    %7779 = vmatpush.bf16.msra.mxu0 %v7714
    %7780 = vmatpush.bf16.msra.mxu0 %v7713
    %7781 = vmatpush.bf16.msra.mxu0 %v7712
    %7782 = vmatpush.bf16.msra.mxu0 %v7711
    %7783 = vmatpush.bf16.msra.mxu0 %v7710
    %7784 = vmatpush.bf16.msra.mxu0 %v7709
    %7785 = vmatpush.bf16.msra.mxu0 %v7708
    %7786 = vmatmul.bf16.gmra.mxu0 %v7565
    %v7787 = vpop.f32.mrf.mxu0
    %v7788 = vadd.f32 %v7774, %v7787
    %v7789 = vpop.f32.mrf.mxu0
    %v7790 = vadd.f32 %v7776, %v7789
    %7791 = vdwg.mxu0
    %7792 = vmatpush.bf16.msra.mxu0 %v7723
    %7793 = vmatpush.bf16.msra.mxu0 %v7722
    %7794 = vmatpush.bf16.msra.mxu0 %v7721
    %7795 = vmatpush.bf16.msra.mxu0 %v7720
    %7796 = vmatpush.bf16.msra.mxu0 %v7719
    %7797 = vmatpush.bf16.msra.mxu0 %v7718
    %7798 = vmatpush.bf16.msra.mxu0 %v7717
    %7799 = vmatpush.bf16.msra.mxu0 %v7716
    %7800 = vmatmul.bf16.gmra.mxu0 %v7566
    %v7801 = vpop.f32.mrf.mxu0
    %v7802 = vadd.f32 %v7788, %v7801
    %v7803 = vpop.f32.mrf.mxu0
    %v7804 = vadd.f32 %v7790, %v7803
    %7805 = vdwg.mxu0
    %7806 = vmatpush.bf16.msra.mxu0 %v7731
    %7807 = vmatpush.bf16.msra.mxu0 %v7730
    %7808 = vmatpush.bf16.msra.mxu0 %v7729
    %7809 = vmatpush.bf16.msra.mxu0 %v7728
    %7810 = vmatpush.bf16.msra.mxu0 %v7727
    %7811 = vmatpush.bf16.msra.mxu0 %v7726
    %7812 = vmatpush.bf16.msra.mxu0 %v7725
    %7813 = vmatpush.bf16.msra.mxu0 %v7724
    %7814 = vmatmul.bf16.gmra.mxu0 %v7567
    %v7815 = vpop.f32.mrf.mxu0
    %v7816 = vadd.f32 %v7802, %v7815
    %v7817 = vpop.f32.mrf.mxu0
    %v7818 = vadd.f32 %v7804, %v7817
    %7819 = vdwg.mxu0
    %v7820 = vadd.f32 %v7485, %v7816
    %v7821 = vadd.f32 %v7486, %v7818
    %s7822 = scalar_lea.vmem [#allocation2], 1024
    %v7823 = vld [vmem:[%s7822] sm:$0xf]
    %v7824 = vld [vmem:[%s7822 + $0x4] sm:$0xf]
    %v7825 = vld [vmem:[%s7822 + $0x8] sm:$0xf]
    %v7826 = vld [vmem:[%s7822 + $0xc] sm:$0xf]
    %v7827 = vld [vmem:[%s7822 + $0x10] sm:$0xf]
    %v7828 = vld [vmem:[%s7822 + $0x14] sm:$0xf]
    %v7829 = vld [vmem:[%s7822 + $0x18] sm:$0xf]
    %v7830 = vld [vmem:[%s7822 + $0x1c] sm:$0xf]
    %v7831 = vld [vmem:[%s7822 + $0x20] sm:$0xf]
    %v7832 = vld [vmem:[%s7822 + $0x24] sm:$0xf]
    %v7833 = vld [vmem:[%s7822 + $0x28] sm:$0xf]
    %v7834 = vld [vmem:[%s7822 + $0x2c] sm:$0xf]
    %v7835 = vld [vmem:[%s7822 + $0x30] sm:$0xf]
    %v7836 = vld [vmem:[%s7822 + $0x34] sm:$0xf]
    %v7837 = vld [vmem:[%s7822 + $0x38] sm:$0xf]
    %v7838 = vld [vmem:[%s7822 + $0x3c] sm:$0xf]
    %v7839 = vld [vmem:[%s7822 + $0x40] sm:$0xf]
    %v7840 = vld [vmem:[%s7822 + $0x44] sm:$0xf]
    %v7841 = vld [vmem:[%s7822 + $0x48] sm:$0xf]
    %v7842 = vld [vmem:[%s7822 + $0x4c] sm:$0xf]
    %v7843 = vld [vmem:[%s7822 + $0x50] sm:$0xf]
    %v7844 = vld [vmem:[%s7822 + $0x54] sm:$0xf]
    %v7845 = vld [vmem:[%s7822 + $0x58] sm:$0xf]
    %v7846 = vld [vmem:[%s7822 + $0x5c] sm:$0xf]
    %v7847 = vld [vmem:[%s7822 + $0x60] sm:$0xf]
    %v7848 = vld [vmem:[%s7822 + $0x64] sm:$0xf]
    %v7849 = vld [vmem:[%s7822 + $0x68] sm:$0xf]
    %v7850 = vld [vmem:[%s7822 + $0x6c] sm:$0xf]
    %v7851 = vld [vmem:[%s7822 + $0x70] sm:$0xf]
    %v7852 = vld [vmem:[%s7822 + $0x74] sm:$0xf]
    %v7853 = vld [vmem:[%s7822 + $0x78] sm:$0xf]
    %v7854 = vld [vmem:[%s7822 + $0x7c] sm:$0xf]
    %v7855 = vld [vmem:[%s7822 + $0x80] sm:$0xf]
    %v7856 = vld [vmem:[%s7822 + $0x84] sm:$0xf]
    %v7857 = vld [vmem:[%s7822 + $0x88] sm:$0xf]
    %v7858 = vld [vmem:[%s7822 + $0x8c] sm:$0xf]
    %v7859 = vld [vmem:[%s7822 + $0x90] sm:$0xf]
    %v7860 = vld [vmem:[%s7822 + $0x94] sm:$0xf]
    %v7861 = vld [vmem:[%s7822 + $0x98] sm:$0xf]
    %v7862 = vld [vmem:[%s7822 + $0x9c] sm:$0xf]
    %v7863 = vld [vmem:[%s7822 + $0xa0] sm:$0xf]
    %v7864 = vld [vmem:[%s7822 + $0xa4] sm:$0xf]
    %v7865 = vld [vmem:[%s7822 + $0xa8] sm:$0xf]
    %v7866 = vld [vmem:[%s7822 + $0xac] sm:$0xf]
    %v7867 = vld [vmem:[%s7822 + $0xb0] sm:$0xf]
    %v7868 = vld [vmem:[%s7822 + $0xb4] sm:$0xf]
    %v7869 = vld [vmem:[%s7822 + $0xb8] sm:$0xf]
    %v7870 = vld [vmem:[%s7822 + $0xbc] sm:$0xf]
    %v7871 = vld [vmem:[%s7822 + $0xc0] sm:$0xf]
    %v7872 = vld [vmem:[%s7822 + $0xc4] sm:$0xf]
    %v7873 = vld [vmem:[%s7822 + $0xc8] sm:$0xf]
    %v7874 = vld [vmem:[%s7822 + $0xcc] sm:$0xf]
    %v7875 = vld [vmem:[%s7822 + $0xd0] sm:$0xf]
    %v7876 = vld [vmem:[%s7822 + $0xd4] sm:$0xf]
    %v7877 = vld [vmem:[%s7822 + $0xd8] sm:$0xf]
    %v7878 = vld [vmem:[%s7822 + $0xdc] sm:$0xf]
    %v7879 = vld [vmem:[%s7822 + $0xe0] sm:$0xf]
    %v7880 = vld [vmem:[%s7822 + $0xe4] sm:$0xf]
    %v7881 = vld [vmem:[%s7822 + $0xe8] sm:$0xf]
    %v7882 = vld [vmem:[%s7822 + $0xec] sm:$0xf]
    %v7883 = vld [vmem:[%s7822 + $0xf0] sm:$0xf]
    %v7884 = vld [vmem:[%s7822 + $0xf4] sm:$0xf]
    %v7885 = vld [vmem:[%s7822 + $0xf8] sm:$0xf]
    %v7886 = vld [vmem:[%s7822 + $0xfc] sm:$0xf]
    %v7891 = vunpack.c.l.b16 %v6471
    %v7892 = vunpack.c.h.b16 %v6471
    %v7893 = vunpack.c.l.b16 %v6472
    %v7894 = vunpack.c.h.b16 %v6472
    %v7895 = vunpack.c.l.b16 %v6473
    %v7896 = vunpack.c.h.b16 %v6473
    %v7897 = vunpack.c.l.b16 %v6474
    %v7898 = vunpack.c.h.b16 %v6474
    %v7899 = vpack.c.b16 %v7895, %v7891
    %v7900 = vpack.c.b16 %v7896, %v7892
    %v7901 = vpack.c.b16 %v7897, %v7893
    %v7902 = vpack.c.b16 %v7898, %v7894
    %v7971 = vunpack.c.l.b16 %v7823
    %v7972 = vunpack.c.l.b16 %v7824
    %v7973 = vunpack.c.l.b16 %v7825
    %v7974 = vunpack.c.l.b16 %v7826
    %v7975 = vunpack.c.l.b16 %v7827
    %v7976 = vunpack.c.l.b16 %v7828
    %v7977 = vunpack.c.l.b16 %v7829
    %v7978 = vunpack.c.l.b16 %v7830
    %v7979 = vunpack.c.l.b16 %v7831
    %v7980 = vunpack.c.l.b16 %v7832
    %v7981 = vunpack.c.l.b16 %v7833
    %v7982 = vunpack.c.l.b16 %v7834
    %v7983 = vunpack.c.l.b16 %v7835
    %v7984 = vunpack.c.l.b16 %v7836
    %v7985 = vunpack.c.l.b16 %v7837
    %v7986 = vunpack.c.l.b16 %v7838
    %v7987 = vunpack.c.l.b16 %v7839
    %v7988 = vunpack.c.l.b16 %v7840
    %v7989 = vunpack.c.l.b16 %v7841
    %v7990 = vunpack.c.l.b16 %v7842
    %v7991 = vunpack.c.l.b16 %v7843
    %v7992 = vunpack.c.l.b16 %v7844
    %v7993 = vunpack.c.l.b16 %v7845
    %v7994 = vunpack.c.l.b16 %v7846
    %v7995 = vunpack.c.l.b16 %v7847
    %v7996 = vunpack.c.l.b16 %v7848
    %v7997 = vunpack.c.l.b16 %v7849
    %v7998 = vunpack.c.l.b16 %v7850
    %v7999 = vunpack.c.l.b16 %v7851
    %v8000 = vunpack.c.l.b16 %v7852
    %v8001 = vunpack.c.l.b16 %v7853
    %v8002 = vunpack.c.l.b16 %v7854
    %v8003 = vunpack.c.l.b16 %v7855
    %v8004 = vunpack.c.l.b16 %v7856
    %v8005 = vunpack.c.l.b16 %v7857
    %v8006 = vunpack.c.l.b16 %v7858
    %v8007 = vunpack.c.l.b16 %v7859
    %v8008 = vunpack.c.l.b16 %v7860
    %v8009 = vunpack.c.l.b16 %v7861
    %v8010 = vunpack.c.l.b16 %v7862
    %v8011 = vunpack.c.l.b16 %v7863
    %v8012 = vunpack.c.l.b16 %v7864
    %v8013 = vunpack.c.l.b16 %v7865
    %v8014 = vunpack.c.l.b16 %v7866
    %v8015 = vunpack.c.l.b16 %v7867
    %v8016 = vunpack.c.l.b16 %v7868
    %v8017 = vunpack.c.l.b16 %v7869
    %v8018 = vunpack.c.l.b16 %v7870
    %v8019 = vunpack.c.l.b16 %v7871
    %v8020 = vunpack.c.l.b16 %v7872
    %v8021 = vunpack.c.l.b16 %v7873
    %v8022 = vunpack.c.l.b16 %v7874
    %v8023 = vunpack.c.l.b16 %v7875
    %v8024 = vunpack.c.l.b16 %v7876
    %v8025 = vunpack.c.l.b16 %v7877
    %v8026 = vunpack.c.l.b16 %v7878
    %v8027 = vunpack.c.l.b16 %v7879
    %v8028 = vunpack.c.l.b16 %v7880
    %v8029 = vunpack.c.l.b16 %v7881
    %v8030 = vunpack.c.l.b16 %v7882
    %v8031 = vunpack.c.l.b16 %v7883
    %v8032 = vunpack.c.l.b16 %v7884
    %v8033 = vunpack.c.l.b16 %v7885
    %v8034 = vunpack.c.l.b16 %v7886
    %v8035 = vpack.c.b16 %v7972, %v7971
    %v8036 = vpack.c.b16 %v7974, %v7973
    %v8037 = vpack.c.b16 %v7976, %v7975
    %v8038 = vpack.c.b16 %v7978, %v7977
    %v8039 = vpack.c.b16 %v7980, %v7979
    %v8040 = vpack.c.b16 %v7982, %v7981
    %v8041 = vpack.c.b16 %v7984, %v7983
    %v8042 = vpack.c.b16 %v7986, %v7985
    %v8043 = vpack.c.b16 %v7988, %v7987
    %v8044 = vpack.c.b16 %v7990, %v7989
    %v8045 = vpack.c.b16 %v7992, %v7991
    %v8046 = vpack.c.b16 %v7994, %v7993
    %v8047 = vpack.c.b16 %v7996, %v7995
    %v8048 = vpack.c.b16 %v7998, %v7997
    %v8049 = vpack.c.b16 %v8000, %v7999
    %v8050 = vpack.c.b16 %v8002, %v8001
    %v8051 = vpack.c.b16 %v8004, %v8003
    %v8052 = vpack.c.b16 %v8006, %v8005
    %v8053 = vpack.c.b16 %v8008, %v8007
    %v8054 = vpack.c.b16 %v8010, %v8009
    %v8055 = vpack.c.b16 %v8012, %v8011
    %v8056 = vpack.c.b16 %v8014, %v8013
    %v8057 = vpack.c.b16 %v8016, %v8015
    %v8058 = vpack.c.b16 %v8018, %v8017
    %v8059 = vpack.c.b16 %v8020, %v8019
    %v8060 = vpack.c.b16 %v8022, %v8021
    %v8061 = vpack.c.b16 %v8024, %v8023
    %v8062 = vpack.c.b16 %v8026, %v8025
    %v8063 = vpack.c.b16 %v8028, %v8027
    %v8064 = vpack.c.b16 %v8030, %v8029
    %v8065 = vpack.c.b16 %v8032, %v8031
    %v8066 = vpack.c.b16 %v8034, %v8033
    %8099 = vmatpush.bf16.msra.mxu0 %v8042
    %8100 = vmatpush.bf16.msra.mxu0 %v8041
    %8101 = vmatpush.bf16.msra.mxu0 %v8040
    %8102 = vmatpush.bf16.msra.mxu0 %v8039
    %8103 = vmatpush.bf16.msra.mxu0 %v8038
    %8104 = vmatpush.bf16.msra.mxu0 %v8037
    %8105 = vmatpush.bf16.msra.mxu0 %v8036
    %8106 = vmatpush.bf16.msra.mxu0 %v8035
    %8107 = vmatmul.bf16.gmra.mxu0 %v7899
    %v8108 = vpop.f32.mrf.mxu0
    %v8109 = vadd.f32 0.0, %v8108
    %v8110 = vpop.f32.mrf.mxu0
    %v8111 = vadd.f32 0.0, %v8110
    %8112 = vdwg.mxu0
    %8113 = vmatpush.bf16.msra.mxu0 %v8050
    %8114 = vmatpush.bf16.msra.mxu0 %v8049
    %8115 = vmatpush.bf16.msra.mxu0 %v8048
    %8116 = vmatpush.bf16.msra.mxu0 %v8047
    %8117 = vmatpush.bf16.msra.mxu0 %v8046
    %8118 = vmatpush.bf16.msra.mxu0 %v8045
    %8119 = vmatpush.bf16.msra.mxu0 %v8044
    %8120 = vmatpush.bf16.msra.mxu0 %v8043
    %8121 = vmatmul.bf16.gmra.mxu0 %v7900
    %v8122 = vpop.f32.mrf.mxu0
    %v8123 = vadd.f32 %v8109, %v8122
    %v8124 = vpop.f32.mrf.mxu0
    %v8125 = vadd.f32 %v8111, %v8124
    %8126 = vdwg.mxu0
    %8127 = vmatpush.bf16.msra.mxu0 %v8058
    %8128 = vmatpush.bf16.msra.mxu0 %v8057
    %8129 = vmatpush.bf16.msra.mxu0 %v8056
    %8130 = vmatpush.bf16.msra.mxu0 %v8055
    %8131 = vmatpush.bf16.msra.mxu0 %v8054
    %8132 = vmatpush.bf16.msra.mxu0 %v8053
    %8133 = vmatpush.bf16.msra.mxu0 %v8052
    %8134 = vmatpush.bf16.msra.mxu0 %v8051
    %8135 = vmatmul.bf16.gmra.mxu0 %v7901
    %v8136 = vpop.f32.mrf.mxu0
    %v8137 = vadd.f32 %v8123, %v8136
    %v8138 = vpop.f32.mrf.mxu0
    %v8139 = vadd.f32 %v8125, %v8138
    %8140 = vdwg.mxu0
    %8141 = vmatpush.bf16.msra.mxu0 %v8066
    %8142 = vmatpush.bf16.msra.mxu0 %v8065
    %8143 = vmatpush.bf16.msra.mxu0 %v8064
    %8144 = vmatpush.bf16.msra.mxu0 %v8063
    %8145 = vmatpush.bf16.msra.mxu0 %v8062
    %8146 = vmatpush.bf16.msra.mxu0 %v8061
    %8147 = vmatpush.bf16.msra.mxu0 %v8060
    %8148 = vmatpush.bf16.msra.mxu0 %v8059
    %8149 = vmatmul.bf16.gmra.mxu0 %v7902
    %v8150 = vpop.f32.mrf.mxu0
    %v8151 = vadd.f32 %v8137, %v8150
    %v8152 = vpop.f32.mrf.mxu0
    %v8153 = vadd.f32 %v8139, %v8152
    %8154 = vdwg.mxu0
    %v8155 = vadd.f32 %v7820, %v8151
    %v8156 = vadd.f32 %v7821, %v8153
    %s8157 = scalar_lea.vmem [#allocation2], 1280
    %v8158 = vld [vmem:[%s8157] sm:$0xf]
    %v8159 = vld [vmem:[%s8157 + $0x4] sm:$0xf]
    %v8160 = vld [vmem:[%s8157 + $0x8] sm:$0xf]
    %v8161 = vld [vmem:[%s8157 + $0xc] sm:$0xf]
    %v8162 = vld [vmem:[%s8157 + $0x10] sm:$0xf]
    %v8163 = vld [vmem:[%s8157 + $0x14] sm:$0xf]
    %v8164 = vld [vmem:[%s8157 + $0x18] sm:$0xf]
    %v8165 = vld [vmem:[%s8157 + $0x1c] sm:$0xf]
    %v8166 = vld [vmem:[%s8157 + $0x20] sm:$0xf]
    %v8167 = vld [vmem:[%s8157 + $0x24] sm:$0xf]
    %v8168 = vld [vmem:[%s8157 + $0x28] sm:$0xf]
    %v8169 = vld [vmem:[%s8157 + $0x2c] sm:$0xf]
    %v8170 = vld [vmem:[%s8157 + $0x30] sm:$0xf]
    %v8171 = vld [vmem:[%s8157 + $0x34] sm:$0xf]
    %v8172 = vld [vmem:[%s8157 + $0x38] sm:$0xf]
    %v8173 = vld [vmem:[%s8157 + $0x3c] sm:$0xf]
    %v8174 = vld [vmem:[%s8157 + $0x40] sm:$0xf]
    %v8175 = vld [vmem:[%s8157 + $0x44] sm:$0xf]
    %v8176 = vld [vmem:[%s8157 + $0x48] sm:$0xf]
    %v8177 = vld [vmem:[%s8157 + $0x4c] sm:$0xf]
    %v8178 = vld [vmem:[%s8157 + $0x50] sm:$0xf]
    %v8179 = vld [vmem:[%s8157 + $0x54] sm:$0xf]
    %v8180 = vld [vmem:[%s8157 + $0x58] sm:$0xf]
    %v8181 = vld [vmem:[%s8157 + $0x5c] sm:$0xf]
    %v8182 = vld [vmem:[%s8157 + $0x60] sm:$0xf]
    %v8183 = vld [vmem:[%s8157 + $0x64] sm:$0xf]
    %v8184 = vld [vmem:[%s8157 + $0x68] sm:$0xf]
    %v8185 = vld [vmem:[%s8157 + $0x6c] sm:$0xf]
    %v8186 = vld [vmem:[%s8157 + $0x70] sm:$0xf]
    %v8187 = vld [vmem:[%s8157 + $0x74] sm:$0xf]
    %v8188 = vld [vmem:[%s8157 + $0x78] sm:$0xf]
    %v8189 = vld [vmem:[%s8157 + $0x7c] sm:$0xf]
    %v8190 = vld [vmem:[%s8157 + $0x80] sm:$0xf]
    %v8191 = vld [vmem:[%s8157 + $0x84] sm:$0xf]
    %v8192 = vld [vmem:[%s8157 + $0x88] sm:$0xf]
    %v8193 = vld [vmem:[%s8157 + $0x8c] sm:$0xf]
    %v8194 = vld [vmem:[%s8157 + $0x90] sm:$0xf]
    %v8195 = vld [vmem:[%s8157 + $0x94] sm:$0xf]
    %v8196 = vld [vmem:[%s8157 + $0x98] sm:$0xf]
    %v8197 = vld [vmem:[%s8157 + $0x9c] sm:$0xf]
    %v8198 = vld [vmem:[%s8157 + $0xa0] sm:$0xf]
    %v8199 = vld [vmem:[%s8157 + $0xa4] sm:$0xf]
    %v8200 = vld [vmem:[%s8157 + $0xa8] sm:$0xf]
    %v8201 = vld [vmem:[%s8157 + $0xac] sm:$0xf]
    %v8202 = vld [vmem:[%s8157 + $0xb0] sm:$0xf]
    %v8203 = vld [vmem:[%s8157 + $0xb4] sm:$0xf]
    %v8204 = vld [vmem:[%s8157 + $0xb8] sm:$0xf]
    %v8205 = vld [vmem:[%s8157 + $0xbc] sm:$0xf]
    %v8206 = vld [vmem:[%s8157 + $0xc0] sm:$0xf]
    %v8207 = vld [vmem:[%s8157 + $0xc4] sm:$0xf]
    %v8208 = vld [vmem:[%s8157 + $0xc8] sm:$0xf]
    %v8209 = vld [vmem:[%s8157 + $0xcc] sm:$0xf]
    %v8210 = vld [vmem:[%s8157 + $0xd0] sm:$0xf]
    %v8211 = vld [vmem:[%s8157 + $0xd4] sm:$0xf]
    %v8212 = vld [vmem:[%s8157 + $0xd8] sm:$0xf]
    %v8213 = vld [vmem:[%s8157 + $0xdc] sm:$0xf]
    %v8214 = vld [vmem:[%s8157 + $0xe0] sm:$0xf]
    %v8215 = vld [vmem:[%s8157 + $0xe4] sm:$0xf]
    %v8216 = vld [vmem:[%s8157 + $0xe8] sm:$0xf]
    %v8217 = vld [vmem:[%s8157 + $0xec] sm:$0xf]
    %v8218 = vld [vmem:[%s8157 + $0xf0] sm:$0xf]
    %v8219 = vld [vmem:[%s8157 + $0xf4] sm:$0xf]
    %v8220 = vld [vmem:[%s8157 + $0xf8] sm:$0xf]
    %v8221 = vld [vmem:[%s8157 + $0xfc] sm:$0xf]
    %v8226 = vunpack.c.l.b16 %v6475
    %v8227 = vunpack.c.h.b16 %v6475
    %v8228 = vunpack.c.l.b16 %v6476
    %v8229 = vunpack.c.h.b16 %v6476
    %v8230 = vunpack.c.l.b16 %v6477
    %v8231 = vunpack.c.h.b16 %v6477
    %v8232 = vunpack.c.l.b16 %v6478
    %v8233 = vunpack.c.h.b16 %v6478
    %v8234 = vpack.c.b16 %v8230, %v8226
    %v8235 = vpack.c.b16 %v8231, %v8227
    %v8236 = vpack.c.b16 %v8232, %v8228
    %v8237 = vpack.c.b16 %v8233, %v8229
    %v8306 = vunpack.c.l.b16 %v8158
    %v8307 = vunpack.c.l.b16 %v8159
    %v8308 = vunpack.c.l.b16 %v8160
    %v8309 = vunpack.c.l.b16 %v8161
    %v8310 = vunpack.c.l.b16 %v8162
    %v8311 = vunpack.c.l.b16 %v8163
    %v8312 = vunpack.c.l.b16 %v8164
    %v8313 = vunpack.c.l.b16 %v8165
    %v8314 = vunpack.c.l.b16 %v8166
    %v8315 = vunpack.c.l.b16 %v8167
    %v8316 = vunpack.c.l.b16 %v8168
    %v8317 = vunpack.c.l.b16 %v8169
    %v8318 = vunpack.c.l.b16 %v8170
    %v8319 = vunpack.c.l.b16 %v8171
    %v8320 = vunpack.c.l.b16 %v8172
    %v8321 = vunpack.c.l.b16 %v8173
    %v8322 = vunpack.c.l.b16 %v8174
    %v8323 = vunpack.c.l.b16 %v8175
    %v8324 = vunpack.c.l.b16 %v8176
    %v8325 = vunpack.c.l.b16 %v8177
    %v8326 = vunpack.c.l.b16 %v8178
    %v8327 = vunpack.c.l.b16 %v8179
    %v8328 = vunpack.c.l.b16 %v8180
    %v8329 = vunpack.c.l.b16 %v8181
    %v8330 = vunpack.c.l.b16 %v8182
    %v8331 = vunpack.c.l.b16 %v8183
    %v8332 = vunpack.c.l.b16 %v8184
    %v8333 = vunpack.c.l.b16 %v8185
    %v8334 = vunpack.c.l.b16 %v8186
    %v8335 = vunpack.c.l.b16 %v8187
    %v8336 = vunpack.c.l.b16 %v8188
    %v8337 = vunpack.c.l.b16 %v8189
    %v8338 = vunpack.c.l.b16 %v8190
    %v8339 = vunpack.c.l.b16 %v8191
    %v8340 = vunpack.c.l.b16 %v8192
    %v8341 = vunpack.c.l.b16 %v8193
    %v8342 = vunpack.c.l.b16 %v8194
    %v8343 = vunpack.c.l.b16 %v8195
    %v8344 = vunpack.c.l.b16 %v8196
    %v8345 = vunpack.c.l.b16 %v8197
    %v8346 = vunpack.c.l.b16 %v8198
    %v8347 = vunpack.c.l.b16 %v8199
    %v8348 = vunpack.c.l.b16 %v8200
    %v8349 = vunpack.c.l.b16 %v8201
    %v8350 = vunpack.c.l.b16 %v8202
    %v8351 = vunpack.c.l.b16 %v8203
    %v8352 = vunpack.c.l.b16 %v8204
    %v8353 = vunpack.c.l.b16 %v8205
    %v8354 = vunpack.c.l.b16 %v8206
    %v8355 = vunpack.c.l.b16 %v8207
    %v8356 = vunpack.c.l.b16 %v8208
    %v8357 = vunpack.c.l.b16 %v8209
    %v8358 = vunpack.c.l.b16 %v8210
    %v8359 = vunpack.c.l.b16 %v8211
    %v8360 = vunpack.c.l.b16 %v8212
    %v8361 = vunpack.c.l.b16 %v8213
    %v8362 = vunpack.c.l.b16 %v8214
    %v8363 = vunpack.c.l.b16 %v8215
    %v8364 = vunpack.c.l.b16 %v8216
    %v8365 = vunpack.c.l.b16 %v8217
    %v8366 = vunpack.c.l.b16 %v8218
    %v8367 = vunpack.c.l.b16 %v8219
    %v8368 = vunpack.c.l.b16 %v8220
    %v8369 = vunpack.c.l.b16 %v8221
    %v8370 = vpack.c.b16 %v8307, %v8306
    %v8371 = vpack.c.b16 %v8309, %v8308
    %v8372 = vpack.c.b16 %v8311, %v8310
    %v8373 = vpack.c.b16 %v8313, %v8312
    %v8374 = vpack.c.b16 %v8315, %v8314
    %v8375 = vpack.c.b16 %v8317, %v8316
    %v8376 = vpack.c.b16 %v8319, %v8318
    %v8377 = vpack.c.b16 %v8321, %v8320
    %v8378 = vpack.c.b16 %v8323, %v8322
    %v8379 = vpack.c.b16 %v8325, %v8324
    %v8380 = vpack.c.b16 %v8327, %v8326
    %v8381 = vpack.c.b16 %v8329, %v8328
    %v8382 = vpack.c.b16 %v8331, %v8330
    %v8383 = vpack.c.b16 %v8333, %v8332
    %v8384 = vpack.c.b16 %v8335, %v8334
    %v8385 = vpack.c.b16 %v8337, %v8336
    %v8386 = vpack.c.b16 %v8339, %v8338
    %v8387 = vpack.c.b16 %v8341, %v8340
    %v8388 = vpack.c.b16 %v8343, %v8342
    %v8389 = vpack.c.b16 %v8345, %v8344
    %v8390 = vpack.c.b16 %v8347, %v8346
    %v8391 = vpack.c.b16 %v8349, %v8348
    %v8392 = vpack.c.b16 %v8351, %v8350
    %v8393 = vpack.c.b16 %v8353, %v8352
    %v8394 = vpack.c.b16 %v8355, %v8354
    %v8395 = vpack.c.b16 %v8357, %v8356
    %v8396 = vpack.c.b16 %v8359, %v8358
    %v8397 = vpack.c.b16 %v8361, %v8360
    %v8398 = vpack.c.b16 %v8363, %v8362
    %v8399 = vpack.c.b16 %v8365, %v8364
    %v8400 = vpack.c.b16 %v8367, %v8366
    %v8401 = vpack.c.b16 %v8369, %v8368
    %8434 = vmatpush.bf16.msra.mxu0 %v8377
    %8435 = vmatpush.bf16.msra.mxu0 %v8376
    %8436 = vmatpush.bf16.msra.mxu0 %v8375
    %8437 = vmatpush.bf16.msra.mxu0 %v8374
    %8438 = vmatpush.bf16.msra.mxu0 %v8373
    %8439 = vmatpush.bf16.msra.mxu0 %v8372
    %8440 = vmatpush.bf16.msra.mxu0 %v8371
    %8441 = vmatpush.bf16.msra.mxu0 %v8370
    %8442 = vmatmul.bf16.gmra.mxu0 %v8234
    %v8443 = vpop.f32.mrf.mxu0
    %v8444 = vadd.f32 0.0, %v8443
    %v8445 = vpop.f32.mrf.mxu0
    %v8446 = vadd.f32 0.0, %v8445
    %8447 = vdwg.mxu0
    %8448 = vmatpush.bf16.msra.mxu0 %v8385
    %8449 = vmatpush.bf16.msra.mxu0 %v8384
    %8450 = vmatpush.bf16.msra.mxu0 %v8383
    %8451 = vmatpush.bf16.msra.mxu0 %v8382
    %8452 = vmatpush.bf16.msra.mxu0 %v8381
    %8453 = vmatpush.bf16.msra.mxu0 %v8380
    %8454 = vmatpush.bf16.msra.mxu0 %v8379
    %8455 = vmatpush.bf16.msra.mxu0 %v8378
    %8456 = vmatmul.bf16.gmra.mxu0 %v8235
    %v8457 = vpop.f32.mrf.mxu0
    %v8458 = vadd.f32 %v8444, %v8457
    %v8459 = vpop.f32.mrf.mxu0
    %v8460 = vadd.f32 %v8446, %v8459
    %8461 = vdwg.mxu0
    %8462 = vmatpush.bf16.msra.mxu0 %v8393
    %8463 = vmatpush.bf16.msra.mxu0 %v8392
    %8464 = vmatpush.bf16.msra.mxu0 %v8391
    %8465 = vmatpush.bf16.msra.mxu0 %v8390
    %8466 = vmatpush.bf16.msra.mxu0 %v8389
    %8467 = vmatpush.bf16.msra.mxu0 %v8388
    %8468 = vmatpush.bf16.msra.mxu0 %v8387
    %8469 = vmatpush.bf16.msra.mxu0 %v8386
    %8470 = vmatmul.bf16.gmra.mxu0 %v8236
    %v8471 = vpop.f32.mrf.mxu0
    %v8472 = vadd.f32 %v8458, %v8471
    %v8473 = vpop.f32.mrf.mxu0
    %v8474 = vadd.f32 %v8460, %v8473
    %8475 = vdwg.mxu0
    %8476 = vmatpush.bf16.msra.mxu0 %v8401
    %8477 = vmatpush.bf16.msra.mxu0 %v8400
    %8478 = vmatpush.bf16.msra.mxu0 %v8399
    %8479 = vmatpush.bf16.msra.mxu0 %v8398
    %8480 = vmatpush.bf16.msra.mxu0 %v8397
    %8481 = vmatpush.bf16.msra.mxu0 %v8396
    %8482 = vmatpush.bf16.msra.mxu0 %v8395
    %8483 = vmatpush.bf16.msra.mxu0 %v8394
    %8484 = vmatmul.bf16.gmra.mxu0 %v8237
    %v8485 = vpop.f32.mrf.mxu0
    %v8486 = vadd.f32 %v8472, %v8485
    %v8487 = vpop.f32.mrf.mxu0
    %v8488 = vadd.f32 %v8474, %v8487
    %8489 = vdwg.mxu0
    %v8490 = vadd.f32 %v8155, %v8486
    %v8491 = vadd.f32 %v8156, %v8488
    %s8492 = scalar_lea.vmem [#allocation2], 1536
    %v8493 = vld [vmem:[%s8492] sm:$0xf]
    %v8494 = vld [vmem:[%s8492 + $0x4] sm:$0xf]
    %v8495 = vld [vmem:[%s8492 + $0x8] sm:$0xf]
    %v8496 = vld [vmem:[%s8492 + $0xc] sm:$0xf]
    %v8497 = vld [vmem:[%s8492 + $0x10] sm:$0xf]
    %v8498 = vld [vmem:[%s8492 + $0x14] sm:$0xf]
    %v8499 = vld [vmem:[%s8492 + $0x18] sm:$0xf]
    %v8500 = vld [vmem:[%s8492 + $0x1c] sm:$0xf]
    %v8501 = vld [vmem:[%s8492 + $0x20] sm:$0xf]
    %v8502 = vld [vmem:[%s8492 + $0x24] sm:$0xf]
    %v8503 = vld [vmem:[%s8492 + $0x28] sm:$0xf]
    %v8504 = vld [vmem:[%s8492 + $0x2c] sm:$0xf]
    %v8505 = vld [vmem:[%s8492 + $0x30] sm:$0xf]
    %v8506 = vld [vmem:[%s8492 + $0x34] sm:$0xf]
    %v8507 = vld [vmem:[%s8492 + $0x38] sm:$0xf]
    %v8508 = vld [vmem:[%s8492 + $0x3c] sm:$0xf]
    %v8509 = vld [vmem:[%s8492 + $0x40] sm:$0xf]
    %v8510 = vld [vmem:[%s8492 + $0x44] sm:$0xf]
    %v8511 = vld [vmem:[%s8492 + $0x48] sm:$0xf]
    %v8512 = vld [vmem:[%s8492 + $0x4c] sm:$0xf]
    %v8513 = vld [vmem:[%s8492 + $0x50] sm:$0xf]
    %v8514 = vld [vmem:[%s8492 + $0x54] sm:$0xf]
    %v8515 = vld [vmem:[%s8492 + $0x58] sm:$0xf]
    %v8516 = vld [vmem:[%s8492 + $0x5c] sm:$0xf]
    %v8517 = vld [vmem:[%s8492 + $0x60] sm:$0xf]
    %v8518 = vld [vmem:[%s8492 + $0x64] sm:$0xf]
    %v8519 = vld [vmem:[%s8492 + $0x68] sm:$0xf]
    %v8520 = vld [vmem:[%s8492 + $0x6c] sm:$0xf]
    %v8521 = vld [vmem:[%s8492 + $0x70] sm:$0xf]
    %v8522 = vld [vmem:[%s8492 + $0x74] sm:$0xf]
    %v8523 = vld [vmem:[%s8492 + $0x78] sm:$0xf]
    %v8524 = vld [vmem:[%s8492 + $0x7c] sm:$0xf]
    %v8525 = vld [vmem:[%s8492 + $0x80] sm:$0xf]
    %v8526 = vld [vmem:[%s8492 + $0x84] sm:$0xf]
    %v8527 = vld [vmem:[%s8492 + $0x88] sm:$0xf]
    %v8528 = vld [vmem:[%s8492 + $0x8c] sm:$0xf]
    %v8529 = vld [vmem:[%s8492 + $0x90] sm:$0xf]
    %v8530 = vld [vmem:[%s8492 + $0x94] sm:$0xf]
    %v8531 = vld [vmem:[%s8492 + $0x98] sm:$0xf]
    %v8532 = vld [vmem:[%s8492 + $0x9c] sm:$0xf]
    %v8533 = vld [vmem:[%s8492 + $0xa0] sm:$0xf]
    %v8534 = vld [vmem:[%s8492 + $0xa4] sm:$0xf]
    %v8535 = vld [vmem:[%s8492 + $0xa8] sm:$0xf]
    %v8536 = vld [vmem:[%s8492 + $0xac] sm:$0xf]
    %v8537 = vld [vmem:[%s8492 + $0xb0] sm:$0xf]
    %v8538 = vld [vmem:[%s8492 + $0xb4] sm:$0xf]
    %v8539 = vld [vmem:[%s8492 + $0xb8] sm:$0xf]
    %v8540 = vld [vmem:[%s8492 + $0xbc] sm:$0xf]
    %v8541 = vld [vmem:[%s8492 + $0xc0] sm:$0xf]
    %v8542 = vld [vmem:[%s8492 + $0xc4] sm:$0xf]
    %v8543 = vld [vmem:[%s8492 + $0xc8] sm:$0xf]
    %v8544 = vld [vmem:[%s8492 + $0xcc] sm:$0xf]
    %v8545 = vld [vmem:[%s8492 + $0xd0] sm:$0xf]
    %v8546 = vld [vmem:[%s8492 + $0xd4] sm:$0xf]
    %v8547 = vld [vmem:[%s8492 + $0xd8] sm:$0xf]
    %v8548 = vld [vmem:[%s8492 + $0xdc] sm:$0xf]
    %v8549 = vld [vmem:[%s8492 + $0xe0] sm:$0xf]
    %v8550 = vld [vmem:[%s8492 + $0xe4] sm:$0xf]
    %v8551 = vld [vmem:[%s8492 + $0xe8] sm:$0xf]
    %v8552 = vld [vmem:[%s8492 + $0xec] sm:$0xf]
    %v8553 = vld [vmem:[%s8492 + $0xf0] sm:$0xf]
    %v8554 = vld [vmem:[%s8492 + $0xf4] sm:$0xf]
    %v8555 = vld [vmem:[%s8492 + $0xf8] sm:$0xf]
    %v8556 = vld [vmem:[%s8492 + $0xfc] sm:$0xf]
    %v8561 = vunpack.c.l.b16 %v6479
    %v8562 = vunpack.c.h.b16 %v6479
    %v8563 = vunpack.c.l.b16 %v6480
    %v8564 = vunpack.c.h.b16 %v6480
    %v8565 = vunpack.c.l.b16 %v6481
    %v8566 = vunpack.c.h.b16 %v6481
    %v8567 = vunpack.c.l.b16 %v6482
    %v8568 = vunpack.c.h.b16 %v6482
    %v8569 = vpack.c.b16 %v8565, %v8561
    %v8570 = vpack.c.b16 %v8566, %v8562
    %v8571 = vpack.c.b16 %v8567, %v8563
    %v8572 = vpack.c.b16 %v8568, %v8564
    %v8641 = vunpack.c.l.b16 %v8493
    %v8642 = vunpack.c.l.b16 %v8494
    %v8643 = vunpack.c.l.b16 %v8495
    %v8644 = vunpack.c.l.b16 %v8496
    %v8645 = vunpack.c.l.b16 %v8497
    %v8646 = vunpack.c.l.b16 %v8498
    %v8647 = vunpack.c.l.b16 %v8499
    %v8648 = vunpack.c.l.b16 %v8500
    %v8649 = vunpack.c.l.b16 %v8501
    %v8650 = vunpack.c.l.b16 %v8502
    %v8651 = vunpack.c.l.b16 %v8503
    %v8652 = vunpack.c.l.b16 %v8504
    %v8653 = vunpack.c.l.b16 %v8505
    %v8654 = vunpack.c.l.b16 %v8506
    %v8655 = vunpack.c.l.b16 %v8507
    %v8656 = vunpack.c.l.b16 %v8508
    %v8657 = vunpack.c.l.b16 %v8509
    %v8658 = vunpack.c.l.b16 %v8510
    %v8659 = vunpack.c.l.b16 %v8511
    %v8660 = vunpack.c.l.b16 %v8512
    %v8661 = vunpack.c.l.b16 %v8513
    %v8662 = vunpack.c.l.b16 %v8514
    %v8663 = vunpack.c.l.b16 %v8515
    %v8664 = vunpack.c.l.b16 %v8516
    %v8665 = vunpack.c.l.b16 %v8517
    %v8666 = vunpack.c.l.b16 %v8518
    %v8667 = vunpack.c.l.b16 %v8519
    %v8668 = vunpack.c.l.b16 %v8520
    %v8669 = vunpack.c.l.b16 %v8521
    %v8670 = vunpack.c.l.b16 %v8522
    %v8671 = vunpack.c.l.b16 %v8523
    %v8672 = vunpack.c.l.b16 %v8524
    %v8673 = vunpack.c.l.b16 %v8525
    %v8674 = vunpack.c.l.b16 %v8526
    %v8675 = vunpack.c.l.b16 %v8527
    %v8676 = vunpack.c.l.b16 %v8528
    %v8677 = vunpack.c.l.b16 %v8529
    %v8678 = vunpack.c.l.b16 %v8530
    %v8679 = vunpack.c.l.b16 %v8531
    %v8680 = vunpack.c.l.b16 %v8532
    %v8681 = vunpack.c.l.b16 %v8533
    %v8682 = vunpack.c.l.b16 %v8534
    %v8683 = vunpack.c.l.b16 %v8535
    %v8684 = vunpack.c.l.b16 %v8536
    %v8685 = vunpack.c.l.b16 %v8537
    %v8686 = vunpack.c.l.b16 %v8538
    %v8687 = vunpack.c.l.b16 %v8539
    %v8688 = vunpack.c.l.b16 %v8540
    %v8689 = vunpack.c.l.b16 %v8541
    %v8690 = vunpack.c.l.b16 %v8542
    %v8691 = vunpack.c.l.b16 %v8543
    %v8692 = vunpack.c.l.b16 %v8544
    %v8693 = vunpack.c.l.b16 %v8545
    %v8694 = vunpack.c.l.b16 %v8546
    %v8695 = vunpack.c.l.b16 %v8547
    %v8696 = vunpack.c.l.b16 %v8548
    %v8697 = vunpack.c.l.b16 %v8549
    %v8698 = vunpack.c.l.b16 %v8550
    %v8699 = vunpack.c.l.b16 %v8551
    %v8700 = vunpack.c.l.b16 %v8552
    %v8701 = vunpack.c.l.b16 %v8553
    %v8702 = vunpack.c.l.b16 %v8554
    %v8703 = vunpack.c.l.b16 %v8555
    %v8704 = vunpack.c.l.b16 %v8556
    %v8705 = vpack.c.b16 %v8642, %v8641
    %v8706 = vpack.c.b16 %v8644, %v8643
    %v8707 = vpack.c.b16 %v8646, %v8645
    %v8708 = vpack.c.b16 %v8648, %v8647
    %v8709 = vpack.c.b16 %v8650, %v8649
    %v8710 = vpack.c.b16 %v8652, %v8651
    %v8711 = vpack.c.b16 %v8654, %v8653
    %v8712 = vpack.c.b16 %v8656, %v8655
    %v8713 = vpack.c.b16 %v8658, %v8657
    %v8714 = vpack.c.b16 %v8660, %v8659
    %v8715 = vpack.c.b16 %v8662, %v8661
    %v8716 = vpack.c.b16 %v8664, %v8663
    %v8717 = vpack.c.b16 %v8666, %v8665
    %v8718 = vpack.c.b16 %v8668, %v8667
    %v8719 = vpack.c.b16 %v8670, %v8669
    %v8720 = vpack.c.b16 %v8672, %v8671
    %v8721 = vpack.c.b16 %v8674, %v8673
    %v8722 = vpack.c.b16 %v8676, %v8675
    %v8723 = vpack.c.b16 %v8678, %v8677
    %v8724 = vpack.c.b16 %v8680, %v8679
    %v8725 = vpack.c.b16 %v8682, %v8681
    %v8726 = vpack.c.b16 %v8684, %v8683
    %v8727 = vpack.c.b16 %v8686, %v8685
    %v8728 = vpack.c.b16 %v8688, %v8687
    %v8729 = vpack.c.b16 %v8690, %v8689
    %v8730 = vpack.c.b16 %v8692, %v8691
    %v8731 = vpack.c.b16 %v8694, %v8693
    %v8732 = vpack.c.b16 %v8696, %v8695
    %v8733 = vpack.c.b16 %v8698, %v8697
    %v8734 = vpack.c.b16 %v8700, %v8699
    %v8735 = vpack.c.b16 %v8702, %v8701
    %v8736 = vpack.c.b16 %v8704, %v8703
    %8769 = vmatpush.bf16.msra.mxu0 %v8712
    %8770 = vmatpush.bf16.msra.mxu0 %v8711
    %8771 = vmatpush.bf16.msra.mxu0 %v8710
    %8772 = vmatpush.bf16.msra.mxu0 %v8709
    %8773 = vmatpush.bf16.msra.mxu0 %v8708
    %8774 = vmatpush.bf16.msra.mxu0 %v8707
    %8775 = vmatpush.bf16.msra.mxu0 %v8706
    %8776 = vmatpush.bf16.msra.mxu0 %v8705
    %8777 = vmatmul.bf16.gmra.mxu0 %v8569
    %v8778 = vpop.f32.mrf.mxu0
    %v8779 = vadd.f32 0.0, %v8778
    %v8780 = vpop.f32.mrf.mxu0
    %v8781 = vadd.f32 0.0, %v8780
    %8782 = vdwg.mxu0
    %8783 = vmatpush.bf16.msra.mxu0 %v8720
    %8784 = vmatpush.bf16.msra.mxu0 %v8719
    %8785 = vmatpush.bf16.msra.mxu0 %v8718
    %8786 = vmatpush.bf16.msra.mxu0 %v8717
    %8787 = vmatpush.bf16.msra.mxu0 %v8716
    %8788 = vmatpush.bf16.msra.mxu0 %v8715
    %8789 = vmatpush.bf16.msra.mxu0 %v8714
    %8790 = vmatpush.bf16.msra.mxu0 %v8713
    %8791 = vmatmul.bf16.gmra.mxu0 %v8570
    %v8792 = vpop.f32.mrf.mxu0
    %v8793 = vadd.f32 %v8779, %v8792
    %v8794 = vpop.f32.mrf.mxu0
    %v8795 = vadd.f32 %v8781, %v8794
    %8796 = vdwg.mxu0
    %8797 = vmatpush.bf16.msra.mxu0 %v8728
    %8798 = vmatpush.bf16.msra.mxu0 %v8727
    %8799 = vmatpush.bf16.msra.mxu0 %v8726
    %8800 = vmatpush.bf16.msra.mxu0 %v8725
    %8801 = vmatpush.bf16.msra.mxu0 %v8724
    %8802 = vmatpush.bf16.msra.mxu0 %v8723
    %8803 = vmatpush.bf16.msra.mxu0 %v8722
    %8804 = vmatpush.bf16.msra.mxu0 %v8721
    %8805 = vmatmul.bf16.gmra.mxu0 %v8571
    %v8806 = vpop.f32.mrf.mxu0
    %v8807 = vadd.f32 %v8793, %v8806
    %v8808 = vpop.f32.mrf.mxu0
    %v8809 = vadd.f32 %v8795, %v8808
    %8810 = vdwg.mxu0
    %8811 = vmatpush.bf16.msra.mxu0 %v8736
    %8812 = vmatpush.bf16.msra.mxu0 %v8735
    %8813 = vmatpush.bf16.msra.mxu0 %v8734
    %8814 = vmatpush.bf16.msra.mxu0 %v8733
    %8815 = vmatpush.bf16.msra.mxu0 %v8732
    %8816 = vmatpush.bf16.msra.mxu0 %v8731
    %8817 = vmatpush.bf16.msra.mxu0 %v8730
    %8818 = vmatpush.bf16.msra.mxu0 %v8729
    %8819 = vmatmul.bf16.gmra.mxu0 %v8572
    %v8820 = vpop.f32.mrf.mxu0
    %v8821 = vadd.f32 %v8807, %v8820
    %v8822 = vpop.f32.mrf.mxu0
    %v8823 = vadd.f32 %v8809, %v8822
    %8824 = vdwg.mxu0
    %v8825 = vadd.f32 %v8490, %v8821
    %v8826 = vadd.f32 %v8491, %v8823
    %s8827 = scalar_lea.vmem [#allocation2], 1792
    %v8828 = vld [vmem:[%s8827] sm:$0xf]
    %v8829 = vld [vmem:[%s8827 + $0x4] sm:$0xf]
    %v8830 = vld [vmem:[%s8827 + $0x8] sm:$0xf]
    %v8831 = vld [vmem:[%s8827 + $0xc] sm:$0xf]
    %v8832 = vld [vmem:[%s8827 + $0x10] sm:$0xf]
    %v8833 = vld [vmem:[%s8827 + $0x14] sm:$0xf]
    %v8834 = vld [vmem:[%s8827 + $0x18] sm:$0xf]
    %v8835 = vld [vmem:[%s8827 + $0x1c] sm:$0xf]
    %v8836 = vld [vmem:[%s8827 + $0x20] sm:$0xf]
    %v8837 = vld [vmem:[%s8827 + $0x24] sm:$0xf]
    %v8838 = vld [vmem:[%s8827 + $0x28] sm:$0xf]
    %v8839 = vld [vmem:[%s8827 + $0x2c] sm:$0xf]
    %v8840 = vld [vmem:[%s8827 + $0x30] sm:$0xf]
    %v8841 = vld [vmem:[%s8827 + $0x34] sm:$0xf]
    %v8842 = vld [vmem:[%s8827 + $0x38] sm:$0xf]
    %v8843 = vld [vmem:[%s8827 + $0x3c] sm:$0xf]
    %v8844 = vld [vmem:[%s8827 + $0x40] sm:$0xf]
    %v8845 = vld [vmem:[%s8827 + $0x44] sm:$0xf]
    %v8846 = vld [vmem:[%s8827 + $0x48] sm:$0xf]
    %v8847 = vld [vmem:[%s8827 + $0x4c] sm:$0xf]
    %v8848 = vld [vmem:[%s8827 + $0x50] sm:$0xf]
    %v8849 = vld [vmem:[%s8827 + $0x54] sm:$0xf]
    %v8850 = vld [vmem:[%s8827 + $0x58] sm:$0xf]
    %v8851 = vld [vmem:[%s8827 + $0x5c] sm:$0xf]
    %v8852 = vld [vmem:[%s8827 + $0x60] sm:$0xf]
    %v8853 = vld [vmem:[%s8827 + $0x64] sm:$0xf]
    %v8854 = vld [vmem:[%s8827 + $0x68] sm:$0xf]
    %v8855 = vld [vmem:[%s8827 + $0x6c] sm:$0xf]
    %v8856 = vld [vmem:[%s8827 + $0x70] sm:$0xf]
    %v8857 = vld [vmem:[%s8827 + $0x74] sm:$0xf]
    %v8858 = vld [vmem:[%s8827 + $0x78] sm:$0xf]
    %v8859 = vld [vmem:[%s8827 + $0x7c] sm:$0xf]
    %v8860 = vld [vmem:[%s8827 + $0x80] sm:$0xf]
    %v8861 = vld [vmem:[%s8827 + $0x84] sm:$0xf]
    %v8862 = vld [vmem:[%s8827 + $0x88] sm:$0xf]
    %v8863 = vld [vmem:[%s8827 + $0x8c] sm:$0xf]
    %v8864 = vld [vmem:[%s8827 + $0x90] sm:$0xf]
    %v8865 = vld [vmem:[%s8827 + $0x94] sm:$0xf]
    %v8866 = vld [vmem:[%s8827 + $0x98] sm:$0xf]
    %v8867 = vld [vmem:[%s8827 + $0x9c] sm:$0xf]
    %v8868 = vld [vmem:[%s8827 + $0xa0] sm:$0xf]
    %v8869 = vld [vmem:[%s8827 + $0xa4] sm:$0xf]
    %v8870 = vld [vmem:[%s8827 + $0xa8] sm:$0xf]
    %v8871 = vld [vmem:[%s8827 + $0xac] sm:$0xf]
    %v8872 = vld [vmem:[%s8827 + $0xb0] sm:$0xf]
    %v8873 = vld [vmem:[%s8827 + $0xb4] sm:$0xf]
    %v8874 = vld [vmem:[%s8827 + $0xb8] sm:$0xf]
    %v8875 = vld [vmem:[%s8827 + $0xbc] sm:$0xf]
    %v8876 = vld [vmem:[%s8827 + $0xc0] sm:$0xf]
    %v8877 = vld [vmem:[%s8827 + $0xc4] sm:$0xf]
    %v8878 = vld [vmem:[%s8827 + $0xc8] sm:$0xf]
    %v8879 = vld [vmem:[%s8827 + $0xcc] sm:$0xf]
    %v8880 = vld [vmem:[%s8827 + $0xd0] sm:$0xf]
    %v8881 = vld [vmem:[%s8827 + $0xd4] sm:$0xf]
    %v8882 = vld [vmem:[%s8827 + $0xd8] sm:$0xf]
    %v8883 = vld [vmem:[%s8827 + $0xdc] sm:$0xf]
    %v8884 = vld [vmem:[%s8827 + $0xe0] sm:$0xf]
    %v8885 = vld [vmem:[%s8827 + $0xe4] sm:$0xf]
    %v8886 = vld [vmem:[%s8827 + $0xe8] sm:$0xf]
    %v8887 = vld [vmem:[%s8827 + $0xec] sm:$0xf]
    %v8888 = vld [vmem:[%s8827 + $0xf0] sm:$0xf]
    %v8889 = vld [vmem:[%s8827 + $0xf4] sm:$0xf]
    %v8890 = vld [vmem:[%s8827 + $0xf8] sm:$0xf]
    %v8891 = vld [vmem:[%s8827 + $0xfc] sm:$0xf]
    %v8896 = vunpack.c.l.b16 %v6483
    %v8897 = vunpack.c.h.b16 %v6483
    %v8898 = vunpack.c.l.b16 %v6484
    %v8899 = vunpack.c.h.b16 %v6484
    %v8900 = vunpack.c.l.b16 %v6485
    %v8901 = vunpack.c.h.b16 %v6485
    %v8902 = vunpack.c.l.b16 %v6486
    %v8903 = vunpack.c.h.b16 %v6486
    %v8904 = vpack.c.b16 %v8900, %v8896
    %v8905 = vpack.c.b16 %v8901, %v8897
    %v8906 = vpack.c.b16 %v8902, %v8898
    %v8907 = vpack.c.b16 %v8903, %v8899
    %v8976 = vunpack.c.l.b16 %v8828
    %v8977 = vunpack.c.l.b16 %v8829
    %v8978 = vunpack.c.l.b16 %v8830
    %v8979 = vunpack.c.l.b16 %v8831
    %v8980 = vunpack.c.l.b16 %v8832
    %v8981 = vunpack.c.l.b16 %v8833
    %v8982 = vunpack.c.l.b16 %v8834
    %v8983 = vunpack.c.l.b16 %v8835
    %v8984 = vunpack.c.l.b16 %v8836
    %v8985 = vunpack.c.l.b16 %v8837
    %v8986 = vunpack.c.l.b16 %v8838
    %v8987 = vunpack.c.l.b16 %v8839
    %v8988 = vunpack.c.l.b16 %v8840
    %v8989 = vunpack.c.l.b16 %v8841
    %v8990 = vunpack.c.l.b16 %v8842
    %v8991 = vunpack.c.l.b16 %v8843
    %v8992 = vunpack.c.l.b16 %v8844
    %v8993 = vunpack.c.l.b16 %v8845
    %v8994 = vunpack.c.l.b16 %v8846
    %v8995 = vunpack.c.l.b16 %v8847
    %v8996 = vunpack.c.l.b16 %v8848
    %v8997 = vunpack.c.l.b16 %v8849
    %v8998 = vunpack.c.l.b16 %v8850
    %v8999 = vunpack.c.l.b16 %v8851
    %v9000 = vunpack.c.l.b16 %v8852
    %v9001 = vunpack.c.l.b16 %v8853
    %v9002 = vunpack.c.l.b16 %v8854
    %v9003 = vunpack.c.l.b16 %v8855
    %v9004 = vunpack.c.l.b16 %v8856
    %v9005 = vunpack.c.l.b16 %v8857
    %v9006 = vunpack.c.l.b16 %v8858
    %v9007 = vunpack.c.l.b16 %v8859
    %v9008 = vunpack.c.l.b16 %v8860
    %v9009 = vunpack.c.l.b16 %v8861
    %v9010 = vunpack.c.l.b16 %v8862
    %v9011 = vunpack.c.l.b16 %v8863
    %v9012 = vunpack.c.l.b16 %v8864
    %v9013 = vunpack.c.l.b16 %v8865
    %v9014 = vunpack.c.l.b16 %v8866
    %v9015 = vunpack.c.l.b16 %v8867
    %v9016 = vunpack.c.l.b16 %v8868
    %v9017 = vunpack.c.l.b16 %v8869
    %v9018 = vunpack.c.l.b16 %v8870
    %v9019 = vunpack.c.l.b16 %v8871
    %v9020 = vunpack.c.l.b16 %v8872
    %v9021 = vunpack.c.l.b16 %v8873
    %v9022 = vunpack.c.l.b16 %v8874
    %v9023 = vunpack.c.l.b16 %v8875
    %v9024 = vunpack.c.l.b16 %v8876
    %v9025 = vunpack.c.l.b16 %v8877
    %v9026 = vunpack.c.l.b16 %v8878
    %v9027 = vunpack.c.l.b16 %v8879
    %v9028 = vunpack.c.l.b16 %v8880
    %v9029 = vunpack.c.l.b16 %v8881
    %v9030 = vunpack.c.l.b16 %v8882
    %v9031 = vunpack.c.l.b16 %v8883
    %v9032 = vunpack.c.l.b16 %v8884
    %v9033 = vunpack.c.l.b16 %v8885
    %v9034 = vunpack.c.l.b16 %v8886
    %v9035 = vunpack.c.l.b16 %v8887
    %v9036 = vunpack.c.l.b16 %v8888
    %v9037 = vunpack.c.l.b16 %v8889
    %v9038 = vunpack.c.l.b16 %v8890
    %v9039 = vunpack.c.l.b16 %v8891
    %v9040 = vpack.c.b16 %v8977, %v8976
    %v9041 = vpack.c.b16 %v8979, %v8978
    %v9042 = vpack.c.b16 %v8981, %v8980
    %v9043 = vpack.c.b16 %v8983, %v8982
    %v9044 = vpack.c.b16 %v8985, %v8984
    %v9045 = vpack.c.b16 %v8987, %v8986
    %v9046 = vpack.c.b16 %v8989, %v8988
    %v9047 = vpack.c.b16 %v8991, %v8990
    %v9048 = vpack.c.b16 %v8993, %v8992
    %v9049 = vpack.c.b16 %v8995, %v8994
    %v9050 = vpack.c.b16 %v8997, %v8996
    %v9051 = vpack.c.b16 %v8999, %v8998
    %v9052 = vpack.c.b16 %v9001, %v9000
    %v9053 = vpack.c.b16 %v9003, %v9002
    %v9054 = vpack.c.b16 %v9005, %v9004
    %v9055 = vpack.c.b16 %v9007, %v9006
    %v9056 = vpack.c.b16 %v9009, %v9008
    %v9057 = vpack.c.b16 %v9011, %v9010
    %v9058 = vpack.c.b16 %v9013, %v9012
    %v9059 = vpack.c.b16 %v9015, %v9014
    %v9060 = vpack.c.b16 %v9017, %v9016
    %v9061 = vpack.c.b16 %v9019, %v9018
    %v9062 = vpack.c.b16 %v9021, %v9020
    %v9063 = vpack.c.b16 %v9023, %v9022
    %v9064 = vpack.c.b16 %v9025, %v9024
    %v9065 = vpack.c.b16 %v9027, %v9026
    %v9066 = vpack.c.b16 %v9029, %v9028
    %v9067 = vpack.c.b16 %v9031, %v9030
    %v9068 = vpack.c.b16 %v9033, %v9032
    %v9069 = vpack.c.b16 %v9035, %v9034
    %v9070 = vpack.c.b16 %v9037, %v9036
    %v9071 = vpack.c.b16 %v9039, %v9038
    %9104 = vmatpush.bf16.msra.mxu0 %v9047
    %9105 = vmatpush.bf16.msra.mxu0 %v9046
    %9106 = vmatpush.bf16.msra.mxu0 %v9045
    %9107 = vmatpush.bf16.msra.mxu0 %v9044
    %9108 = vmatpush.bf16.msra.mxu0 %v9043
    %9109 = vmatpush.bf16.msra.mxu0 %v9042
    %9110 = vmatpush.bf16.msra.mxu0 %v9041
    %9111 = vmatpush.bf16.msra.mxu0 %v9040
    %9112 = vmatmul.bf16.gmra.mxu0 %v8904
    %v9113 = vpop.f32.mrf.mxu0
    %v9114 = vadd.f32 0.0, %v9113
    %v9115 = vpop.f32.mrf.mxu0
    %v9116 = vadd.f32 0.0, %v9115
    %9117 = vdwg.mxu0
    %9118 = vmatpush.bf16.msra.mxu0 %v9055
    %9119 = vmatpush.bf16.msra.mxu0 %v9054
    %9120 = vmatpush.bf16.msra.mxu0 %v9053
    %9121 = vmatpush.bf16.msra.mxu0 %v9052
    %9122 = vmatpush.bf16.msra.mxu0 %v9051
    %9123 = vmatpush.bf16.msra.mxu0 %v9050
    %9124 = vmatpush.bf16.msra.mxu0 %v9049
    %9125 = vmatpush.bf16.msra.mxu0 %v9048
    %9126 = vmatmul.bf16.gmra.mxu0 %v8905
    %v9127 = vpop.f32.mrf.mxu0
    %v9128 = vadd.f32 %v9114, %v9127
    %v9129 = vpop.f32.mrf.mxu0
    %v9130 = vadd.f32 %v9116, %v9129
    %9131 = vdwg.mxu0
    %9132 = vmatpush.bf16.msra.mxu0 %v9063
    %9133 = vmatpush.bf16.msra.mxu0 %v9062
    %9134 = vmatpush.bf16.msra.mxu0 %v9061
    %9135 = vmatpush.bf16.msra.mxu0 %v9060
    %9136 = vmatpush.bf16.msra.mxu0 %v9059
    %9137 = vmatpush.bf16.msra.mxu0 %v9058
    %9138 = vmatpush.bf16.msra.mxu0 %v9057
    %9139 = vmatpush.bf16.msra.mxu0 %v9056
    %9140 = vmatmul.bf16.gmra.mxu0 %v8906
    %v9141 = vpop.f32.mrf.mxu0
    %v9142 = vadd.f32 %v9128, %v9141
    %v9143 = vpop.f32.mrf.mxu0
    %v9144 = vadd.f32 %v9130, %v9143
    %9145 = vdwg.mxu0
    %9146 = vmatpush.bf16.msra.mxu0 %v9071
    %9147 = vmatpush.bf16.msra.mxu0 %v9070
    %9148 = vmatpush.bf16.msra.mxu0 %v9069
    %9149 = vmatpush.bf16.msra.mxu0 %v9068
    %9150 = vmatpush.bf16.msra.mxu0 %v9067
    %9151 = vmatpush.bf16.msra.mxu0 %v9066
    %9152 = vmatpush.bf16.msra.mxu0 %v9065
    %9153 = vmatpush.bf16.msra.mxu0 %v9064
    %9154 = vmatmul.bf16.gmra.mxu0 %v8907
    %v9155 = vpop.f32.mrf.mxu0
    %v9156 = vadd.f32 %v9142, %v9155
    %v9157 = vpop.f32.mrf.mxu0
    %v9158 = vadd.f32 %v9144, %v9157
    %9159 = vdwg.mxu0
    %v9160 = vadd.f32 %v8825, %v9156
    %v9161 = vadd.f32 %v8826, %v9158
    %v9162 = vld [vmem:[%s6] sm:$0x1]
    %v9164 = vperm.slane %v9162, 0
    %v9166 = vadd.f32 %v9160, %v9164
    %v9167 = vadd.f32 %v9161, %v9164
    %v9168 = vmax.f32 %v9166, 0.0
    %v9169 = vmax.f32 %v9167, 0.0
    %v9170 = vpack.c.bf16 %v9169, %v9168
    %v9171 = vld [vmem:[%s7] sm:$0xf]
    %v9172 = vld [vmem:[%s7 + $0x4] sm:$0xf]
    %v9173 = vld [vmem:[%s7 + $0x8] sm:$0xf]
    %v9174 = vld [vmem:[%s7 + $0xc] sm:$0xf]
    %v9175 = vld [vmem:[%s7 + $0x10] sm:$0xf]
    %v9176 = vld [vmem:[%s7 + $0x14] sm:$0xf]
    %v9177 = vld [vmem:[%s7 + $0x18] sm:$0xf]
    %v9178 = vld [vmem:[%s7 + $0x1c] sm:$0xf]
    %v9179 = vld [vmem:[%s7 + $0x20] sm:$0xf]
    %v9180 = vld [vmem:[%s7 + $0x24] sm:$0xf]
    %v9181 = vld [vmem:[%s7 + $0x28] sm:$0xf]
    %v9182 = vld [vmem:[%s7 + $0x2c] sm:$0xf]
    %v9183 = vld [vmem:[%s7 + $0x30] sm:$0xf]
    %v9184 = vld [vmem:[%s7 + $0x34] sm:$0xf]
    %v9185 = vld [vmem:[%s7 + $0x38] sm:$0xf]
    %v9186 = vld [vmem:[%s7 + $0x3c] sm:$0xf]
    %v9187 = vld [vmem:[%s8] sm:$0x1]
    %v9189 = vperm.slane %v9187, 0
    %v9207 = vunpack.c.l.b16 %v9171
    %v9208 = vunpack.c.l.b16 %v9172
    %v9209 = vunpack.c.l.b16 %v9173
    %v9210 = vunpack.c.l.b16 %v9174
    %v9211 = vunpack.c.l.b16 %v9175
    %v9212 = vunpack.c.l.b16 %v9176
    %v9213 = vunpack.c.l.b16 %v9177
    %v9214 = vunpack.c.l.b16 %v9178
    %v9215 = vunpack.c.l.b16 %v9179
    %v9216 = vunpack.c.l.b16 %v9180
    %v9217 = vunpack.c.l.b16 %v9181
    %v9218 = vunpack.c.l.b16 %v9182
    %v9219 = vunpack.c.l.b16 %v9183
    %v9220 = vunpack.c.l.b16 %v9184
    %v9221 = vunpack.c.l.b16 %v9185
    %v9222 = vunpack.c.l.b16 %v9186
    %v9223 = vpack.c.b16 %v9208, %v9207
    %v9224 = vpack.c.b16 %v9210, %v9209
    %v9225 = vpack.c.b16 %v9212, %v9211
    %v9226 = vpack.c.b16 %v9214, %v9213
    %v9227 = vpack.c.b16 %v9216, %v9215
    %v9228 = vpack.c.b16 %v9218, %v9217
    %v9229 = vpack.c.b16 %v9220, %v9219
    %v9230 = vpack.c.b16 %v9222, %v9221
    %9239 = vmatpush.bf16.msra.mxu0 %v9230
    %9240 = vmatpush.bf16.msra.mxu0 %v9229
    %9241 = vmatpush.bf16.msra.mxu0 %v9228
    %9242 = vmatpush.bf16.msra.mxu0 %v9227
    %9243 = vmatpush.bf16.msra.mxu0 %v9226
    %9244 = vmatpush.bf16.msra.mxu0 %v9225
    %9245 = vmatpush.bf16.msra.mxu0 %v9224
    %9246 = vmatpush.bf16.msra.mxu0 %v9223
    %9247 = vmatmul.bf16.gmra.mxu0 %v9170
    %v9248 = vpop.f32.mrf.mxu0
    %v9249 = vadd.f32 %v9189, %v9248
    %v9250 = vpop.f32.mrf.mxu0
    %v9251 = vadd.f32 %v9189, %v9250
    %9252 = vdwg.mxu0
    %vm9253 = vcmask 80896
    %v9254 = vsel %vm9253, %v9249, -inf
    %9255 = vmax.xlane.f32.xlu0 %v9254
    %v9256 = vpop.xlane.xlu0 %9255
    %v9257 = vsel %vm9253, %v9251, -inf
    %9258 = vmax.xlane.f32.xlu0 %v9257
    %v9259 = vpop.xlane.xlu0 %9258
    %v9260 = vsub.f32 %v9249, %v9256
    %v9261 = vsub.f32 %v9251, %v9259
    %v9262 = vmul.f32 %v9260, 1.442695
    %v9263 = vpow.pop %v9262
    %v9264 = vmul.f32 %v9261, 1.442695
    %v9265 = vpow.pop %v9264
    %v9266 = vsel %vm9253, %v9263, 0.0
    %9267 = vadd.xlane.f32.xlu0 %v9266
    %v9268 = vpop.xlane.xlu0 %9267
    %v9269 = vsel %vm9253, %v9265, 0.0
    %9270 = vadd.xlane.f32.xlu0 %v9269
    %v9271 = vpop.xlane.xlu0 %9270
    %v9272 = vlog2.pop %v9268
    %v9273 = vmul.f32 %v9272, 0.6931472
    %v9274 = vlog2.pop %v9271
    %v9275 = vmul.f32 %v9274, 0.6931472
    %v9276 = vsub.f32 %v9260, %v9273
    %v9277 = vsub.f32 %v9261, %v9275
    %9278 = vst.msk [vmem:[%s9] sm:$0xff] %vm9253, %v9276
    %9279 = vst.msk [vmem:[%s9 + $0x8] sm:$0xff] %vm9253, %v9277
    // Predicated region
    $region42: #{net_forward.1} parent=1 // pred_check
      _
    $region43: #{net_forward.1} parent=1 // pred_check_branch
      %9281 = sbr.rel (0) target = $region45
    $region44: #{net_forward.1} parent=1 // pred_region
      _
    $region45: #{net_forward.1} parent=1 // pred_fallthru
      _
    // Predicated region
    $region46: #{net_forward.1} parent=1 // pred_check
      _
    $region47: #{net_forward.1} parent=1 // pred_check_branch
      %9283 = sbr.rel (0) target = $region49
    $region48: #{net_forward.1} parent=1 // pred_region
      _
    $region49: #{net_forward.1} parent=1 // pred_fallthru
      _
    %9284 = vsyncpa [#allocation3], 1

</llo_original>
